<compile_context>
chip_gen: v7x
topology: tpu7x:2x2x1
jax: 0.10.0
libtpu: 0.0.40
codegen_flags: <defaults>
</compile_context>

<pallas_src>
import numpy as np

import jax
import jax.numpy as jnp
from jax.experimental import pallas as pl
from jax.experimental.pallas import tpu as pltpu

F32 = jnp.float32
BF16 = jnp.bfloat16
LAT = 10            # latent_vars
TB = 16             # images per grid step (multiple of 16 for bf16 packing)
LANES = 128
BN_EPS = 1e-5


# ----------------------------------------------------------------------------
# Pallas kernel (factory closes over the batch tile size tb).
# Activation layout: [h_block * tb, lanes], row index = y*tb + b,
# lane index = w*C + c, lane widths padded to multiples of 128.
# ----------------------------------------------------------------------------
def _make_kernel(tb):
    def take(x, blocks):
        # gather row blocks (each tb rows); contiguous -> single static slice
        if blocks[-1] - blocks[0] + 1 == len(blocks):
            return x[blocks[0] * tb:(blocks[-1] + 1) * tb]
        return jnp.concatenate([x[b * tb:(b + 1) * tb] for b in blocks], axis=0)

    def conv(x, kh, stride, h_out, w_ref, b_ref, relu=True):
        # one K-stacked MXU matmul:  out[y] = sum_i x[stride*y + i] @ W_i
        x = x.astype(BF16)
        pieces = [take(x, [stride * y + i for y in range(h_out)]) for i in range(kh)]
        lhs = pieces[0] if kh == 1 else jnp.concatenate(pieces, axis=1)
        out = jnp.dot(lhs, w_ref[...], preferred_element_type=jnp.float32) + b_ref[...]
        return jnp.maximum(out, 0.0) if relu else out

    def dilate(x, h_in, stride, pad_top, pad_bot):
        # row-dilate + pad so a ConvTranspose becomes a stride-1 gather conv
        x = x.astype(BF16)
        zero = jnp.zeros((tb, x.shape[1]), BF16)
        blks = [zero] * pad_top
        for p in range(h_in):
            if p:
                blks.extend([zero] * (stride - 1))
            blks.append(x[p * tb:(p + 1) * tb])
        blks.extend([zero] * pad_bot)
        return jnp.concatenate(blks, axis=0)

    def kernel(x_ref, eps_ref,
               w1, a1, w2, a2, w3, a3,
               wf1, bf1, wf2, bf2,
               w4, a4, w5, a5, w6, a6,
               xhat_ref, zp_ref):
        # ------------------------------ encoder ------------------------------
        x0 = x_ref[...].reshape(14 * tb, LANES)          # [14*tb, 128] (s2d in)
        h1 = conv(x0, 3, 1, 12, w1, a1)                  # conv1+bnf1+relu [12*tb,384]
        h2 = conv(h1, 5, 2, 4, w2, a2)                   # conv2+bnf2+relu [4*tb,128]
        h3 = conv(h2, 3, 1, 2, w3, a3).astype(BF16)      # conv3+bnf3+relu [2*tb,64]

        # fc1 -> [mu | log_sig] in one fused dot (flatten folded into weight)
        zp = (jnp.dot(h3[:tb], wf1[0], preferred_element_type=jnp.float32)
              + jnp.dot(h3[tb:], wf1[1], preferred_element_type=jnp.float32)
              + bf1[...])                                # [tb, 20]
        zp_ref[...] = zp
        mu, ls = zp[:, :LAT], zp[:, LAT:]

        # reparameterization: z = mu + exp(log_sig / 2) * eps
        z = (mu + jnp.exp(ls * 0.5) * eps_ref[...]).astype(BF16)

        # ------------------------------ decoder ------------------------------
        # fc2 (+ bnb1 folded) emitted directly in the row-block layout, relu
        d0 = jnp.maximum(jnp.dot(z, wf2[0], preferred_element_type=jnp.float32)
                         + bf2[0], 0.0)
        d1 = jnp.maximum(jnp.dot(z, wf2[1], preferred_element_type=jnp.float32)
                         + bf2[1], 0.0)
        d = jnp.concatenate([d0, d1], axis=0)            # [2*tb, 128]

        g = conv(dilate(d, 2, 1, 2, 2), 3, 1, 4, w4, a4)          # dconv1+bnb2 [4*tb,128]
        g = conv(dilate(g, 4, 2, 4, 5), 5, 1, 12, w5, a5)         # dconv2+bnb3 [12*tb,384]
        xh = conv(dilate(g, 12, 2, 4, 5), 5, 1, 28, w6, a6,
                  relu=False)                                     # dconv3 [28*tb,128]
        xhat_ref[...] = xh.reshape(28, tb, LANES)

    return kernel


# ----------------------------------------------------------------------------
# Operator builders (plain JAX / numpy, run once outside the kernel)
# ----------------------------------------------------------------------------
def _bn_fold(bn):
    gamma, beta, mean, var = bn
    scale = gamma / jnp.sqrt(var + BN_EPS)
    return scale, beta - mean * scale


def _col_ops_conv(w, stride, w_in, w_out):
    """Conv2d weight [O,C,kh,kw] -> [kh, w_in*C, w_out*O] column-mix ops."""
    o, c, kh, kw = w.shape
    wi = np.arange(w_in)[:, None, None]
    xi = np.arange(w_out)[None, :, None]
    ji = np.arange(kw)[None, None, :]
    m = jnp.asarray((wi == stride * xi + ji).astype(np.float32))
    ops = jnp.einsum('wxj,ocij->iwcxo', m, w)
    return ops.reshape(kh, w_in * c, w_out * o)


def _col_ops_convT(w, stride, w_in, w_out):
    """ConvTranspose2d weight [Cin,Cout,kh,kw] -> [kh, w_in*Cin, w_out*Cout]."""
    ci, co, kh, kw = w.shape
    qi = np.arange(w_in)[:, None, None]
    xi = np.arange(w_out)[None, :, None]
    ji = np.arange(kw)[None, None, :]
    m = jnp.asarray((xi == stride * qi + ji).astype(np.float32))
    ops = jnp.einsum('qxj,coij->iqcxo', m, w)
    return ops.reshape(kh, w_in * ci, w_out * co)


def _stack(ops, *, pad_k_to=None, pad_n_to=None, flip=False):
    """[kh,K,N] per-kernel-row column ops -> one K-stacked bf16 weight."""
    kh, K, N = ops.shape
    if pad_k_to and pad_k_to > K:
        ops = jnp.pad(ops, ((0, 0), (0, pad_k_to - K), (0, 0)))
    if pad_n_to and pad_n_to > N:
        ops = jnp.pad(ops, ((0, 0), (0, 0), (0, pad_n_to - N)))
    if flip:                      # decoder gather over dilated rows: flipped taps
        ops = ops[::-1]
    return ops.reshape(kh * ops.shape[1], ops.shape[2]).astype(BF16)


def _bias_row(bias, w_out, pad_n_to=None):
    row = jnp.tile(bias, (w_out,))
    if pad_n_to and pad_n_to > row.shape[0]:
        row = jnp.pad(row, (0, pad_n_to - row.shape[0]))
    return row[None, :].astype(F32)


def prepare_params(params):
    """Lower PyTorch-layout CVAE2 params into kernel matmul operators (once)."""
    p = params
    ops = {}

    # conv1: 5x5/s2 rewritten as 3x3/s1 over a 2x2 space-to-depth input; bnf1 folded
    scale, shift = _bn_fold(p['bnf1'])
    w1 = jnp.pad(p['conv1_w'], ((0, 0), (0, 0), (0, 1), (0, 1)))       # [32,1,6,6]
    w1 = w1.reshape(32, 1, 3, 2, 3, 2)
    w1 = jnp.transpose(w1, (0, 1, 3, 5, 2, 4)).reshape(32, 4, 3, 3)
    w1 = w1 * scale[:, None, None, None]
    ops['w1'] = _stack(_col_ops_conv(w1, 1, 14, 12), pad_k_to=LANES)   # [384,384]
    ops['a1'] = _bias_row(scale * p['conv1_b'] + shift, 12)

    scale, shift = _bn_fold(p['bnf2'])
    ops['w2'] = _stack(_col_ops_conv(p['conv2_w'] * scale[:, None, None, None],
                                     2, 12, 4))                        # [1920,128]
    ops['a2'] = _bias_row(scale * p['conv2_b'] + shift, 4)

    scale, shift = _bn_fold(p['bnf3'])
    ops['w3'] = _stack(_col_ops_conv(p['conv3_w'] * scale[:, None, None, None],
                                     1, 4, 2))                         # [384,64]
    ops['a3'] = _bias_row(scale * p['conv3_b'] + shift, 2)

    # fc1 -> [mu | log_sig] fused; NCHW-flat permutation folded into the weight
    wf = p['fc1_w'].reshape(2 * LAT, 32, 2, 2)                 # [n, c, y, w]
    wf = jnp.transpose(wf, (2, 3, 1, 0)).reshape(2, 64, 2 * LAT)
    ops['wf1'] = wf.astype(BF16)                               # [y, w*32+c, n]
    ops['bf1'] = p['fc1_b'][None, :].astype(F32)

    # fc2 (+ bnb1 folded), emitted directly in the decoder row-block layout
    scale, shift = _bn_fold(p['bnb1'])
    rs = jnp.repeat(scale, 4)
    wd = (p['fc2_w'] * rs[:, None]).reshape(32, 2, 2, LAT)     # [c, y, w, n]
    wd = jnp.transpose(wd, (1, 2, 0, 3)).reshape(2, 64, LAT)   # [y, w*32+c, n]
    wd = jnp.transpose(wd, (0, 2, 1))                          # [y, n, lane]
    ops['wf2'] = jnp.pad(wd, ((0, 0), (0, 0), (0, LANES - 64))).astype(BF16)
    bd = (p['fc2_b'] * rs + jnp.repeat(shift, 4)).reshape(32, 2, 2)
    bd = jnp.transpose(bd, (1, 2, 0)).reshape(2, 1, 64)
    ops['bf2'] = jnp.pad(bd, ((0, 0), (0, 0), (0, LANES - 64))).astype(F32)

    # decoder transposed convs (following BN folded in); flipped-tap K-stacks
    scale, shift = _bn_fold(p['bnb2'])
    ops['w4'] = _stack(_col_ops_convT(p['dconv1_w'] * scale[None, :, None, None],
                                      1, 2, 4), pad_k_to=LANES, flip=True)   # [384,128]
    ops['a4'] = _bias_row(scale * p['dconv1_b'] + shift, 4)

    scale, shift = _bn_fold(p['bnb3'])
    ops['w5'] = _stack(_col_ops_convT(p['dconv2_w'] * scale[None, :, None, None],
                                      2, 4, 12), flip=True)                  # [640,384]
    ops['a5'] = _bias_row(scale * p['dconv2_b'] + shift, 12)

    ops['w6'] = _stack(_col_ops_convT(p['dconv3_w'], 2, 12, 28),
                       pad_n_to=LANES, flip=True)                            # [1920,128]
    ops['a6'] = _bias_row(p['dconv3_b'], 28, pad_n_to=LANES)
    return ops


# ----------------------------------------------------------------------------
# Forward wrapper: one pallas_call, grid over batch tiles (>=2 steps)
# ----------------------------------------------------------------------------
_WEIGHT_ORDER = ('w1', 'a1', 'w2', 'a2', 'w3', 'a3',
                 'wf1', 'bf1', 'wf2', 'bf2',
                 'w4', 'a4', 'w5', 'a5', 'w6', 'a6')


def _const_spec(a):
    zero = (0,) * a.ndim
    return pl.BlockSpec(a.shape, lambda i: zero)


def cvae2_forward(ops, x, eps, *, tb=TB):
    """CVAE2.forward: returns (x_hat [B,1,28,28], mu [B,10], log_sig [B,10])."""
    bsz = x.shape[0]
    assert x.shape[1:] == (1, 28, 28)
    assert tb % 16 == 0
    x = x.astype(F32)
    n_tiles = max(2, -(-bsz // tb))            # >=2 grid steps for megacore / 2 TCs
    b_pad = n_tiles * tb

    # 2x2 space-to-depth input -> [14, b_pad, 128]; lane = w*4 + phase, zero-padded
    xs = x.reshape(bsz, 14, 2, 14, 2)
    xs = jnp.transpose(xs, (0, 1, 3, 2, 4)).reshape(bsz, 14, 56)
    xs = jnp.pad(xs, ((0, b_pad - bsz), (0, 0), (0, LANES - 56)))
    xs = jnp.transpose(xs, (1, 0, 2))
    ep = jnp.pad(eps.astype(F32), ((0, b_pad - bsz), (0, 0)))

    weights = [ops[k] for k in _WEIGHT_ORDER]
    in_specs = [pl.BlockSpec((14, tb, LANES), lambda i: (0, i, 0)),   # s2d input
                pl.BlockSpec((tb, LAT), lambda i: (i, 0))]            # eps
    in_specs += [_const_spec(w) for w in weights]
    out_specs = [pl.BlockSpec((28, tb, LANES), lambda i: (0, i, 0)),  # lane-dense x_hat
                 pl.BlockSpec((tb, 2 * LAT), lambda i: (i, 0))]       # [mu | log_sig]
    out_shape = [jax.ShapeDtypeStruct((28, b_pad, LANES), F32),
                 jax.ShapeDtypeStruct((b_pad, 2 * LAT), F32)]

    xh, zp = pl.pallas_call(
        _make_kernel(tb),
        grid=(n_tiles,),
        in_specs=in_specs,
        out_specs=out_specs,
        out_shape=out_shape,
        compiler_params=pltpu.CompilerParams(
            dimension_semantics=("parallel",),
            vmem_limit_bytes=32 * 1024 * 1024),
    )(xs, ep, *weights)

    x_hat = jnp.transpose(xh, (1, 0, 2))[:bsz, :, :28][:, None, :, :]
    return x_hat, zp[:bsz, :LAT], zp[:bsz, LAT:]


# ----------------------------------------------------------------------------
# Deterministic PyTorch-layout params; BN given non-trivial running stats.
# ----------------------------------------------------------------------------
def init_params(key):
    def uniform(k, shape, fan_in):
        bound = 1.0 / np.sqrt(fan_in)
        return jax.random.uniform(k, shape, F32, -bound, bound)

    def bn(k):
        k1, k2, k3, k4 = jax.random.split(k, 4)
        return (jax.random.uniform(k1, (32,), F32, 0.5, 1.5),    # gamma
                jax.random.uniform(k2, (32,), F32, -0.1, 0.1),   # beta
                jax.random.uniform(k3, (32,), F32, -0.1, 0.1),   # running mean
                jax.random.uniform(k4, (32,), F32, 0.5, 1.5))    # running var

    ks = iter(jax.random.split(key, 24))
    return {
        'conv1_w': uniform(next(ks), (32, 1, 5, 5), 25),
        'conv1_b': uniform(next(ks), (32,), 25),
        'conv2_w': uniform(next(ks), (32, 32, 5, 5), 32 * 25),
        'conv2_b': uniform(next(ks), (32,), 32 * 25),
        'conv3_w': uniform(next(ks), (32, 32, 3, 3), 32 * 9),
        'conv3_b': uniform(next(ks), (32,), 32 * 9),
        'fc1_w': uniform(next(ks), (2 * LAT, 128), 128),
        'fc1_b': uniform(next(ks), (2 * LAT,), 128),
        'fc2_w': uniform(next(ks), (128, LAT), LAT),
        'fc2_b': uniform(next(ks), (128,), LAT),
        'dconv1_w': uniform(next(ks), (32, 32, 3, 3), 32 * 9),
        'dconv1_b': uniform(next(ks), (32,), 32 * 9),
        'dconv2_w': uniform(next(ks), (32, 32, 5, 5), 32 * 25),
        'dconv2_b': uniform(next(ks), (32,), 32 * 25),
        'dconv3_w': uniform(next(ks), (32, 1, 5, 5), 25),
        'dconv3_b': uniform(next(ks), (1,), 25),
        'bnf1': bn(next(ks)), 'bnf2': bn(next(ks)), 'bnf3': bn(next(ks)),
        'bnb1': bn(next(ks)), 'bnb2': bn(next(ks)), 'bnb3': bn(next(ks)),
    }


# ----------------------------------------------------------------------------
# Pure-JAX reference (eval-mode BN) for correctness checking
# ----------------------------------------------------------------------------
def _bn_eval_ref(x, bn):
    g, beta, mean, var = bn
    inv = g / jnp.sqrt(var + BN_EPS)
    return x * inv[None, :, None, None] + (beta - mean * inv)[None, :, None, None]


def _conv_ref(x, w, b, stride):
    y = jax.lax.conv_general_dilated(
        x, w, window_strides=(stride, stride), padding='VALID',
        dimension_numbers=('NCHW', 'OIHW', 'NCHW'))
    return y + b[None, :, None, None]


def _convT_ref(x, w, b, stride, out_pad):
    k = w.shape[2]
    wf = jnp.transpose(jnp.flip(w, (2, 3)), (1, 0, 2, 3))
    y = jax.lax.conv_general_dilated(
        x, wf, window_strides=(1, 1),
        padding=[(k - 1, k - 1 + out_pad), (k - 1, k - 1 + out_pad)],
        lhs_dilation=(stride, stride),
        dimension_numbers=('NCHW', 'OIHW', 'NCHW'))
    return y + b[None, :, None, None]


def cvae2_reference(params, x, eps):
    p = params
    h = jax.nn.relu(_bn_eval_ref(_conv_ref(x, p['conv1_w'], p['conv1_b'], 2), p['bnf1']))
    h = jax.nn.relu(_bn_eval_ref(_conv_ref(h, p['conv2_w'], p['conv2_b'], 2), p['bnf2']))
    h = jax.nn.relu(_bn_eval_ref(_conv_ref(h, p['conv3_w'], p['conv3_b'], 1), p['bnf3']))
    bsz = x.shape[0]
    flat = h.reshape(bsz, -1)
    zp = flat @ p['fc1_w'].T + p['fc1_b']
    mu, log_sig = zp[:, :LAT], zp[:, LAT:]
    z = mu + jnp.exp(log_sig / 2.0) * eps
    d = (z @ p['fc2_w'].T + p['fc2_b']).reshape(bsz, 32, 2, 2)
    d = jax.nn.relu(_bn_eval_ref(d, p['bnb1']))
    d = jax.nn.relu(_bn_eval_ref(_convT_ref(d, p['dconv1_w'], p['dconv1_b'], 1, 0), p['bnb2']))
    d = jax.nn.relu(_bn_eval_ref(_convT_ref(d, p['dconv2_w'], p['dconv2_b'], 2, 1), p['bnb3']))
    x_hat = _convT_ref(d, p['dconv3_w'], p['dconv3_b'], 2, 1)
    return x_hat, mu, log_sig


if __name__ == "__main__":
    key = jax.random.PRNGKey(0)
    kp, kx, ke = jax.random.split(key, 3)
    params = init_params(kp)
    ops = prepare_params(params)                 # one-time weight/operator prep

    batch = 32                                   # 2 grid steps at TB=16
    x = jax.random.normal(kx, (batch, 1, 28, 28), dtype=F32)
    eps = jax.random.normal(ke, (batch, LAT), dtype=F32)

    fwd = jax.jit(cvae2_forward)
    x_hat, mu, log_sig = jax.block_until_ready(fwd(ops, x, eps))

    assert x_hat.shape == (batch, 1, 28, 28)
    assert mu.shape == (batch, LAT) and log_sig.shape == (batch, LAT)
    assert bool(jnp.all(jnp.isfinite(x_hat)))

    # validate against a pure-JAX/XLA reference of the same forward
    ref_xh, ref_mu, ref_ls = jax.jit(cvae2_reference)(params, x, eps)
    assert bool(jnp.allclose(mu, ref_mu, atol=5e-2, rtol=5e-2))
    assert bool(jnp.allclose(log_sig, ref_ls, atol=5e-2, rtol=5e-2))
    assert bool(jnp.allclose(x_hat, ref_xh, atol=5e-2, rtol=5e-2))

    print("KERNEL_OK")
</pallas_src>

<mosaic_0001>
module attributes {stable_mosaic.version = 11 : i64} {
  func.func @kernel(%arg0: i32, %arg1: memref<14x16x128xf32, #tpu.memory_space<vmem>>, %arg2: memref<16x10xf32, #tpu.memory_space<vmem>>, %arg3: memref<384x384xbf16, #tpu.memory_space<vmem>>, %arg4: memref<1x384xf32, #tpu.memory_space<vmem>>, %arg5: memref<1920x128xbf16, #tpu.memory_space<vmem>>, %arg6: memref<1x128xf32, #tpu.memory_space<vmem>>, %arg7: memref<384x64xbf16, #tpu.memory_space<vmem>>, %arg8: memref<1x64xf32, #tpu.memory_space<vmem>>, %arg9: memref<2x64x20xbf16, #tpu.memory_space<vmem>>, %arg10: memref<1x20xf32, #tpu.memory_space<vmem>>, %arg11: memref<2x10x128xbf16, #tpu.memory_space<vmem>>, %arg12: memref<2x1x128xf32, #tpu.memory_space<vmem>>, %arg13: memref<384x128xbf16, #tpu.memory_space<vmem>>, %arg14: memref<1x128xf32, #tpu.memory_space<vmem>>, %arg15: memref<640x384xbf16, #tpu.memory_space<vmem>>, %arg16: memref<1x384xf32, #tpu.memory_space<vmem>>, %arg17: memref<1920x128xbf16, #tpu.memory_space<vmem>>, %arg18: memref<1x128xf32, #tpu.memory_space<vmem>>, %arg19: memref<28x16x128xf32, #tpu.memory_space<vmem>>, %arg20: memref<16x20xf32, #tpu.memory_space<vmem>>) attributes {dimension_semantics = [#tpu.dimension_semantics<parallel>], iteration_bounds = array<i64: 2>, scalar_prefetch = 0 : i64, scratch_operands = 0 : i64, tpu.core_type = #tpu.core_type<tc>, window_params = [{transform_indices = @transform_0, window_bounds = array<i64: 14, 16, 128>}, {transform_indices = @transform_1, window_bounds = array<i64: 16, 10>}, {pipeline_mode = #tpu.pipeline_mode<synchronous>, transform_indices = @transform_2, window_bounds = array<i64: 384, 384>}, {pipeline_mode = #tpu.pipeline_mode<synchronous>, transform_indices = @transform_3, window_bounds = array<i64: 1, 384>}, {pipeline_mode = #tpu.pipeline_mode<synchronous>, transform_indices = @transform_4, window_bounds = array<i64: 1920, 128>}, {pipeline_mode = #tpu.pipeline_mode<synchronous>, transform_indices = @transform_5, window_bounds = array<i64: 1, 128>}, {pipeline_mode = #tpu.pipeline_mode<synchronous>, transform_indices = @transform_6, window_bounds = array<i64: 384, 64>}, {pipeline_mode = #tpu.pipeline_mode<synchronous>, transform_indices = @transform_7, window_bounds = array<i64: 1, 64>}, {pipeline_mode = #tpu.pipeline_mode<synchronous>, transform_indices = @transform_8, window_bounds = array<i64: 2, 64, 20>}, {pipeline_mode = #tpu.pipeline_mode<synchronous>, transform_indices = @transform_9, window_bounds = array<i64: 1, 20>}, {pipeline_mode = #tpu.pipeline_mode<synchronous>, transform_indices = @transform_10, window_bounds = array<i64: 2, 10, 128>}, {pipeline_mode = #tpu.pipeline_mode<synchronous>, transform_indices = @transform_11, window_bounds = array<i64: 2, 1, 128>}, {pipeline_mode = #tpu.pipeline_mode<synchronous>, transform_indices = @transform_12, window_bounds = array<i64: 384, 128>}, {pipeline_mode = #tpu.pipeline_mode<synchronous>, transform_indices = @transform_13, window_bounds = array<i64: 1, 128>}, {pipeline_mode = #tpu.pipeline_mode<synchronous>, transform_indices = @transform_14, window_bounds = array<i64: 640, 384>}, {pipeline_mode = #tpu.pipeline_mode<synchronous>, transform_indices = @transform_15, window_bounds = array<i64: 1, 384>}, {pipeline_mode = #tpu.pipeline_mode<synchronous>, transform_indices = @transform_16, window_bounds = array<i64: 1920, 128>}, {pipeline_mode = #tpu.pipeline_mode<synchronous>, transform_indices = @transform_17, window_bounds = array<i64: 1, 128>}, {transform_indices = @transform_18, window_bounds = array<i64: 28, 16, 128>}, {transform_indices = @transform_19, window_bounds = array<i64: 16, 20>}]} {
    %c0 = arith.constant 0 : index
    %c0_0 = arith.constant 0 : index
    %c0_1 = arith.constant 0 : index
    %0 = vector.load %arg1[%c0, %c0_0, %c0_1] : memref<14x16x128xf32, #tpu.memory_space<vmem>>, vector<14x16x128xf32>
    %1 = vector.shape_cast %0 : vector<14x16x128xf32> to vector<224x128xf32>
    %2 = arith.truncf %1 : vector<224x128xf32> to vector<224x128xbf16>
    %3 = vector.extract_strided_slice %2 {offsets = [0, 0], sizes = [192, 128], strides = [1, 1]} : vector<224x128xbf16> to vector<192x128xbf16>
    %4 = vector.extract_strided_slice %2 {offsets = [16, 0], sizes = [192, 128], strides = [1, 1]} : vector<224x128xbf16> to vector<192x128xbf16>
    %5 = vector.extract_strided_slice %2 {offsets = [32, 0], sizes = [192, 128], strides = [1, 1]} : vector<224x128xbf16> to vector<192x128xbf16>
    %6 = tpu.concatenate %3, %4, %5 in 1 : vector<192x128xbf16>, vector<192x128xbf16>, vector<192x128xbf16> -> vector<192x384xbf16>
    %c0_2 = arith.constant 0 : index
    %c0_3 = arith.constant 0 : index
    %7 = vector.load %arg3[%c0_2, %c0_3] : memref<384x384xbf16, #tpu.memory_space<vmem>>, vector<384x384xbf16>
    %cst = arith.constant dense<0.000000e+00> : vector<192x384xf32>
    %8 = tpu.matmul %6, %7, %cst {dimension_numbers = #tpu.dot_dimension_numbers<[1], [0], [0], [1], [0, 0, 1, 1], [], []>} : vector<192x384xbf16>, vector<384x384xbf16>, vector<192x384xf32> -> vector<192x384xf32>
    %c0_4 = arith.constant 0 : index
    %c0_5 = arith.constant 0 : index
    %9 = vector.load %arg4[%c0_4, %c0_5] : memref<1x384xf32, #tpu.memory_space<vmem>>, vector<1x384xf32>
    %10 = vector.broadcast %9 : vector<1x384xf32> to vector<192x384xf32>
    %11 = arith.addf %8, %10 : vector<192x384xf32>
    %cst_6 = arith.constant 0.000000e+00 : f32
    %12 = vector.broadcast %cst_6 : f32 to vector<192x384xf32>
    %13 = arith.maximumf %11, %12 : vector<192x384xf32>
    %14 = arith.truncf %13 : vector<192x384xf32> to vector<192x384xbf16>
    %15 = vector.extract_strided_slice %14 {offsets = [0, 0], sizes = [16, 384], strides = [1, 1]} : vector<192x384xbf16> to vector<16x384xbf16>
    %16 = vector.extract_strided_slice %14 {offsets = [32, 0], sizes = [16, 384], strides = [1, 1]} : vector<192x384xbf16> to vector<16x384xbf16>
    %17 = vector.extract_strided_slice %14 {offsets = [64, 0], sizes = [16, 384], strides = [1, 1]} : vector<192x384xbf16> to vector<16x384xbf16>
    %18 = vector.extract_strided_slice %14 {offsets = [96, 0], sizes = [16, 384], strides = [1, 1]} : vector<192x384xbf16> to vector<16x384xbf16>
    %19 = tpu.concatenate %15, %16, %17, %18 in 0 : vector<16x384xbf16>, vector<16x384xbf16>, vector<16x384xbf16>, vector<16x384xbf16> -> vector<64x384xbf16>
    %20 = vector.extract_strided_slice %14 {offsets = [16, 0], sizes = [16, 384], strides = [1, 1]} : vector<192x384xbf16> to vector<16x384xbf16>
    %21 = vector.extract_strided_slice %14 {offsets = [48, 0], sizes = [16, 384], strides = [1, 1]} : vector<192x384xbf16> to vector<16x384xbf16>
    %22 = vector.extract_strided_slice %14 {offsets = [80, 0], sizes = [16, 384], strides = [1, 1]} : vector<192x384xbf16> to vector<16x384xbf16>
    %23 = vector.extract_strided_slice %14 {offsets = [112, 0], sizes = [16, 384], strides = [1, 1]} : vector<192x384xbf16> to vector<16x384xbf16>
    %24 = tpu.concatenate %20, %21, %22, %23 in 0 : vector<16x384xbf16>, vector<16x384xbf16>, vector<16x384xbf16>, vector<16x384xbf16> -> vector<64x384xbf16>
    %25 = vector.extract_strided_slice %14 {offsets = [32, 0], sizes = [16, 384], strides = [1, 1]} : vector<192x384xbf16> to vector<16x384xbf16>
    %26 = vector.extract_strided_slice %14 {offsets = [64, 0], sizes = [16, 384], strides = [1, 1]} : vector<192x384xbf16> to vector<16x384xbf16>
    %27 = vector.extract_strided_slice %14 {offsets = [96, 0], sizes = [16, 384], strides = [1, 1]} : vector<192x384xbf16> to vector<16x384xbf16>
    %28 = vector.extract_strided_slice %14 {offsets = [128, 0], sizes = [16, 384], strides = [1, 1]} : vector<192x384xbf16> to vector<16x384xbf16>
    %29 = tpu.concatenate %25, %26, %27, %28 in 0 : vector<16x384xbf16>, vector<16x384xbf16>, vector<16x384xbf16>, vector<16x384xbf16> -> vector<64x384xbf16>
    %30 = vector.extract_strided_slice %14 {offsets = [48, 0], sizes = [16, 384], strides = [1, 1]} : vector<192x384xbf16> to vector<16x384xbf16>
    %31 = vector.extract_strided_slice %14 {offsets = [80, 0], sizes = [16, 384], strides = [1, 1]} : vector<192x384xbf16> to vector<16x384xbf16>
    %32 = vector.extract_strided_slice %14 {offsets = [112, 0], sizes = [16, 384], strides = [1, 1]} : vector<192x384xbf16> to vector<16x384xbf16>
    %33 = vector.extract_strided_slice %14 {offsets = [144, 0], sizes = [16, 384], strides = [1, 1]} : vector<192x384xbf16> to vector<16x384xbf16>
    %34 = tpu.concatenate %30, %31, %32, %33 in 0 : vector<16x384xbf16>, vector<16x384xbf16>, vector<16x384xbf16>, vector<16x384xbf16> -> vector<64x384xbf16>
    %35 = vector.extract_strided_slice %14 {offsets = [64, 0], sizes = [16, 384], strides = [1, 1]} : vector<192x384xbf16> to vector<16x384xbf16>
    %36 = vector.extract_strided_slice %14 {offsets = [96, 0], sizes = [16, 384], strides = [1, 1]} : vector<192x384xbf16> to vector<16x384xbf16>
    %37 = vector.extract_strided_slice %14 {offsets = [128, 0], sizes = [16, 384], strides = [1, 1]} : vector<192x384xbf16> to vector<16x384xbf16>
    %38 = vector.extract_strided_slice %14 {offsets = [160, 0], sizes = [16, 384], strides = [1, 1]} : vector<192x384xbf16> to vector<16x384xbf16>
    %39 = tpu.concatenate %35, %36, %37, %38 in 0 : vector<16x384xbf16>, vector<16x384xbf16>, vector<16x384xbf16>, vector<16x384xbf16> -> vector<64x384xbf16>
    %40 = tpu.concatenate %19, %24, %29, %34, %39 in 1 : vector<64x384xbf16>, vector<64x384xbf16>, vector<64x384xbf16>, vector<64x384xbf16>, vector<64x384xbf16> -> vector<64x1920xbf16>
    %c0_7 = arith.constant 0 : index
    %c0_8 = arith.constant 0 : index
    %41 = vector.load %arg5[%c0_7, %c0_8] : memref<1920x128xbf16, #tpu.memory_space<vmem>>, vector<1920x128xbf16>
    %cst_9 = arith.constant dense<0.000000e+00> : vector<64x128xf32>
    %42 = tpu.matmul %40, %41, %cst_9 {dimension_numbers = #tpu.dot_dimension_numbers<[1], [0], [0], [1], [0, 0, 1, 1], [], []>} : vector<64x1920xbf16>, vector<1920x128xbf16>, vector<64x128xf32> -> vector<64x128xf32>
    %c0_10 = arith.constant 0 : index
    %c0_11 = arith.constant 0 : index
    %43 = vector.load %arg6[%c0_10, %c0_11] : memref<1x128xf32, #tpu.memory_space<vmem>>, vector<1x128xf32>
    %44 = vector.broadcast %43 : vector<1x128xf32> to vector<64x128xf32>
    %45 = arith.addf %42, %44 : vector<64x128xf32>
    %cst_12 = arith.constant 0.000000e+00 : f32
    %46 = vector.broadcast %cst_12 : f32 to vector<64x128xf32>
    %47 = arith.maximumf %45, %46 : vector<64x128xf32>
    %48 = arith.truncf %47 : vector<64x128xf32> to vector<64x128xbf16>
    %49 = vector.extract_strided_slice %48 {offsets = [0, 0], sizes = [32, 128], strides = [1, 1]} : vector<64x128xbf16> to vector<32x128xbf16>
    %50 = vector.extract_strided_slice %48 {offsets = [16, 0], sizes = [32, 128], strides = [1, 1]} : vector<64x128xbf16> to vector<32x128xbf16>
    %51 = vector.extract_strided_slice %48 {offsets = [32, 0], sizes = [32, 128], strides = [1, 1]} : vector<64x128xbf16> to vector<32x128xbf16>
    %52 = tpu.concatenate %49, %50, %51 in 1 : vector<32x128xbf16>, vector<32x128xbf16>, vector<32x128xbf16> -> vector<32x384xbf16>
    %c0_13 = arith.constant 0 : index
    %c0_14 = arith.constant 0 : index
    %53 = vector.load %arg7[%c0_13, %c0_14] : memref<384x64xbf16, #tpu.memory_space<vmem>>, vector<384x64xbf16>
    %cst_15 = arith.constant dense<0.000000e+00> : vector<32x64xf32>
    %54 = tpu.matmul %52, %53, %cst_15 {dimension_numbers = #tpu.dot_dimension_numbers<[1], [0], [0], [1], [0, 0, 1, 1], [], []>} : vector<32x384xbf16>, vector<384x64xbf16>, vector<32x64xf32> -> vector<32x64xf32>
    %c0_16 = arith.constant 0 : index
    %c0_17 = arith.constant 0 : index
    %55 = vector.load %arg8[%c0_16, %c0_17] : memref<1x64xf32, #tpu.memory_space<vmem>>, vector<1x64xf32>
    %56 = vector.broadcast %55 : vector<1x64xf32> to vector<32x64xf32>
    %57 = arith.addf %54, %56 : vector<32x64xf32>
    %cst_18 = arith.constant 0.000000e+00 : f32
    %58 = vector.broadcast %cst_18 : f32 to vector<32x64xf32>
    %59 = arith.maximumf %57, %58 : vector<32x64xf32>
    %60 = arith.truncf %59 : vector<32x64xf32> to vector<32x64xbf16>
    %61 = vector.extract_strided_slice %60 {offsets = [0, 0], sizes = [16, 64], strides = [1, 1]} : vector<32x64xbf16> to vector<16x64xbf16>
    %c0_19 = arith.constant 0 : index
    %c0_20 = arith.constant 0 : index
    %c0_21 = arith.constant 0 : index
    %62 = vector.load %arg9[%c0_19, %c0_20, %c0_21] : memref<2x64x20xbf16, #tpu.memory_space<vmem>>, vector<1x64x20xbf16>
    %63 = vector.shape_cast %62 : vector<1x64x20xbf16> to vector<64x20xbf16>
    %cst_22 = arith.constant dense<0.000000e+00> : vector<16x20xf32>
    %64 = tpu.matmul %61, %63, %cst_22 {dimension_numbers = #tpu.dot_dimension_numbers<[1], [0], [0], [1], [0, 0, 1, 1], [], []>} : vector<16x64xbf16>, vector<64x20xbf16>, vector<16x20xf32> -> vector<16x20xf32>
    %65 = vector.extract_strided_slice %60 {offsets = [16, 0], sizes = [16, 64], strides = [1, 1]} : vector<32x64xbf16> to vector<16x64xbf16>
    %c1 = arith.constant 1 : index
    %c0_23 = arith.constant 0 : index
    %c0_24 = arith.constant 0 : index
    %66 = vector.load %arg9[%c1, %c0_23, %c0_24] : memref<2x64x20xbf16, #tpu.memory_space<vmem>>, vector<1x64x20xbf16>
    %67 = vector.shape_cast %66 : vector<1x64x20xbf16> to vector<64x20xbf16>
    %cst_25 = arith.constant dense<0.000000e+00> : vector<16x20xf32>
    %68 = tpu.matmul %65, %67, %cst_25 {dimension_numbers = #tpu.dot_dimension_numbers<[1], [0], [0], [1], [0, 0, 1, 1], [], []>} : vector<16x64xbf16>, vector<64x20xbf16>, vector<16x20xf32> -> vector<16x20xf32>
    %69 = arith.addf %64, %68 : vector<16x20xf32>
    %c0_26 = arith.constant 0 : index
    %c0_27 = arith.constant 0 : index
    %70 = vector.load %arg10[%c0_26, %c0_27] : memref<1x20xf32, #tpu.memory_space<vmem>>, vector<1x20xf32>
    %71 = vector.broadcast %70 : vector<1x20xf32> to vector<16x20xf32>
    %72 = arith.addf %69, %71 : vector<16x20xf32>
    %c0_28 = arith.constant 0 : index
    %c0_29 = arith.constant 0 : index
    %73 = vector.load %arg20[%c0_28, %c0_29] : memref<16x20xf32, #tpu.memory_space<vmem>>, vector<16x20xf32>
    tpu.vector_store %arg20[%c0_28, %c0_29], %72 {strides = array<i32>} : memref<16x20xf32, #tpu.memory_space<vmem>>, vector<16x20xf32>,
    %74 = vector.extract_strided_slice %72 {offsets = [0, 0], sizes = [16, 10], strides = [1, 1]} : vector<16x20xf32> to vector<16x10xf32>
    %75 = vector.extract_strided_slice %72 {offsets = [0, 10], sizes = [16, 10], strides = [1, 1]} : vector<16x20xf32> to vector<16x10xf32>
    %cst_30 = arith.constant 5.000000e-01 : f32
    %76 = vector.broadcast %cst_30 : f32 to vector<16x10xf32>
    %77 = arith.mulf %75, %76 : vector<16x10xf32>
    %78 = math.exp %77 : vector<16x10xf32>
    %c0_31 = arith.constant 0 : index
    %c0_32 = arith.constant 0 : index
    %79 = vector.load %arg2[%c0_31, %c0_32] : memref<16x10xf32, #tpu.memory_space<vmem>>, vector<16x10xf32>
    %80 = arith.mulf %78, %79 : vector<16x10xf32>
    %81 = arith.addf %74, %80 : vector<16x10xf32>
    %82 = arith.truncf %81 : vector<16x10xf32> to vector<16x10xbf16>
    %c0_33 = arith.constant 0 : index
    %c0_34 = arith.constant 0 : index
    %c0_35 = arith.constant 0 : index
    %83 = vector.load %arg11[%c0_33, %c0_34, %c0_35] : memref<2x10x128xbf16, #tpu.memory_space<vmem>>, vector<1x10x128xbf16>
    %84 = vector.shape_cast %83 : vector<1x10x128xbf16> to vector<10x128xbf16>
    %cst_36 = arith.constant dense<0.000000e+00> : vector<16x128xf32>
    %85 = tpu.matmul %82, %84, %cst_36 {dimension_numbers = #tpu.dot_dimension_numbers<[1], [0], [0], [1], [0, 0, 1, 1], [], []>} : vector<16x10xbf16>, vector<10x128xbf16>, vector<16x128xf32> -> vector<16x128xf32>
    %c0_37 = arith.constant 0 : index
    %c0_38 = arith.constant 0 : index
    %c0_39 = arith.constant 0 : index
    %86 = vector.load %arg12[%c0_37, %c0_38, %c0_39] : memref<2x1x128xf32, #tpu.memory_space<vmem>>, vector<1x1x128xf32>
    %87 = vector.shape_cast %86 : vector<1x1x128xf32> to vector<1x128xf32>
    %88 = vector.broadcast %87 : vector<1x128xf32> to vector<16x128xf32>
    %89 = arith.addf %85, %88 : vector<16x128xf32>
    %cst_40 = arith.constant 0.000000e+00 : f32
    %90 = vector.broadcast %cst_40 : f32 to vector<16x128xf32>
    %91 = arith.maximumf %89, %90 : vector<16x128xf32>
    %c1_41 = arith.constant 1 : index
    %c0_42 = arith.constant 0 : index
    %c0_43 = arith.constant 0 : index
    %92 = vector.load %arg11[%c1_41, %c0_42, %c0_43] : memref<2x10x128xbf16, #tpu.memory_space<vmem>>, vector<1x10x128xbf16>
    %93 = vector.shape_cast %92 : vector<1x10x128xbf16> to vector<10x128xbf16>
    %cst_44 = arith.constant dense<0.000000e+00> : vector<16x128xf32>
    %94 = tpu.matmul %82, %93, %cst_44 {dimension_numbers = #tpu.dot_dimension_numbers<[1], [0], [0], [1], [0, 0, 1, 1], [], []>} : vector<16x10xbf16>, vector<10x128xbf16>, vector<16x128xf32> -> vector<16x128xf32>
    %c1_45 = arith.constant 1 : index
    %c0_46 = arith.constant 0 : index
    %c0_47 = arith.constant 0 : index
    %95 = vector.load %arg12[%c1_45, %c0_46, %c0_47] : memref<2x1x128xf32, #tpu.memory_space<vmem>>, vector<1x1x128xf32>
    %96 = vector.shape_cast %95 : vector<1x1x128xf32> to vector<1x128xf32>
    %97 = vector.broadcast %96 : vector<1x128xf32> to vector<16x128xf32>
    %98 = arith.addf %94, %97 : vector<16x128xf32>
    %cst_48 = arith.constant 0.000000e+00 : f32
    %99 = vector.broadcast %cst_48 : f32 to vector<16x128xf32>
    %100 = arith.maximumf %98, %99 : vector<16x128xf32>
    %101 = tpu.concatenate %91, %100 in 0 : vector<16x128xf32>, vector<16x128xf32> -> vector<32x128xf32>
    %102 = arith.truncf %101 : vector<32x128xf32> to vector<32x128xbf16>
    %cst_49 = arith.constant 0.000000e+00 : bf16
    %103 = vector.broadcast %cst_49 : bf16 to vector<16x128xbf16>
    %104 = vector.extract_strided_slice %102 {offsets = [0, 0], sizes = [16, 128], strides = [1, 1]} : vector<32x128xbf16> to vector<16x128xbf16>
    %105 = vector.extract_strided_slice %102 {offsets = [16, 0], sizes = [16, 128], strides = [1, 1]} : vector<32x128xbf16> to vector<16x128xbf16>
    %106 = tpu.concatenate %103, %103, %104, %105, %103, %103 in 0 : vector<16x128xbf16>, vector<16x128xbf16>, vector<16x128xbf16>, vector<16x128xbf16>, vector<16x128xbf16>, vector<16x128xbf16> -> vector<96x128xbf16>
    %107 = vector.extract_strided_slice %106 {offsets = [0, 0], sizes = [64, 128], strides = [1, 1]} : vector<96x128xbf16> to vector<64x128xbf16>
    %108 = vector.extract_strided_slice %106 {offsets = [16, 0], sizes = [64, 128], strides = [1, 1]} : vector<96x128xbf16> to vector<64x128xbf16>
    %109 = vector.extract_strided_slice %106 {offsets = [32, 0], sizes = [64, 128], strides = [1, 1]} : vector<96x128xbf16> to vector<64x128xbf16>
    %110 = tpu.concatenate %107, %108, %109 in 1 : vector<64x128xbf16>, vector<64x128xbf16>, vector<64x128xbf16> -> vector<64x384xbf16>
    %c0_50 = arith.constant 0 : index
    %c0_51 = arith.constant 0 : index
    %111 = vector.load %arg13[%c0_50, %c0_51] : memref<384x128xbf16, #tpu.memory_space<vmem>>, vector<384x128xbf16>
    %cst_52 = arith.constant dense<0.000000e+00> : vector<64x128xf32>
    %112 = tpu.matmul %110, %111, %cst_52 {dimension_numbers = #tpu.dot_dimension_numbers<[1], [0], [0], [1], [0, 0, 1, 1], [], []>} : vector<64x384xbf16>, vector<384x128xbf16>, vector<64x128xf32> -> vector<64x128xf32>
    %c0_53 = arith.constant 0 : index
    %c0_54 = arith.constant 0 : index
    %113 = vector.load %arg14[%c0_53, %c0_54] : memref<1x128xf32, #tpu.memory_space<vmem>>, vector<1x128xf32>
    %114 = vector.broadcast %113 : vector<1x128xf32> to vector<64x128xf32>
    %115 = arith.addf %112, %114 : vector<64x128xf32>
    %cst_55 = arith.constant 0.000000e+00 : f32
    %116 = vector.broadcast %cst_55 : f32 to vector<64x128xf32>
    %117 = arith.maximumf %115, %116 : vector<64x128xf32>
    %118 = arith.truncf %117 : vector<64x128xf32> to vector<64x128xbf16>
    %cst_56 = arith.constant 0.000000e+00 : bf16
    %119 = vector.broadcast %cst_56 : bf16 to vector<16x128xbf16>
    %120 = vector.extract_strided_slice %118 {offsets = [0, 0], sizes = [16, 128], strides = [1, 1]} : vector<64x128xbf16> to vector<16x128xbf16>
    %121 = vector.extract_strided_slice %118 {offsets = [16, 0], sizes = [16, 128], strides = [1, 1]} : vector<64x128xbf16> to vector<16x128xbf16>
    %122 = vector.extract_strided_slice %118 {offsets = [32, 0], sizes = [16, 128], strides = [1, 1]} : vector<64x128xbf16> to vector<16x128xbf16>
    %123 = vector.extract_strided_slice %118 {offsets = [48, 0], sizes = [16, 128], strides = [1, 1]} : vector<64x128xbf16> to vector<16x128xbf16>
    %124 = tpu.concatenate %119, %119, %119, %119, %120, %119, %121, %119, %122, %119, %123, %119, %119, %119, %119, %119 in 0 : vector<16x128xbf16>, vector<16x128xbf16>, vector<16x128xbf16>, vector<16x128xbf16>, vector<16x128xbf16>, vector<16x128xbf16>, vector<16x128xbf16>, vector<16x128xbf16>, vector<16x128xbf16>, vector<16x128xbf16>, vector<16x128xbf16>, vector<16x128xbf16>, vector<16x128xbf16>, vector<16x128xbf16>, vector<16x128xbf16>, vector<16x128xbf16> -> vector<256x128xbf16>
    %125 = vector.extract_strided_slice %124 {offsets = [0, 0], sizes = [192, 128], strides = [1, 1]} : vector<256x128xbf16> to vector<192x128xbf16>
    %126 = vector.extract_strided_slice %124 {offsets = [16, 0], sizes = [192, 128], strides = [1, 1]} : vector<256x128xbf16> to vector<192x128xbf16>
    %127 = vector.extract_strided_slice %124 {offsets = [32, 0], sizes = [192, 128], strides = [1, 1]} : vector<256x128xbf16> to vector<192x128xbf16>
    %128 = vector.extract_strided_slice %124 {offsets = [48, 0], sizes = [192, 128], strides = [1, 1]} : vector<256x128xbf16> to vector<192x128xbf16>
    %129 = vector.extract_strided_slice %124 {offsets = [64, 0], sizes = [192, 128], strides = [1, 1]} : vector<256x128xbf16> to vector<192x128xbf16>
    %130 = tpu.concatenate %125, %126, %127, %128, %129 in 1 : vector<192x128xbf16>, vector<192x128xbf16>, vector<192x128xbf16>, vector<192x128xbf16>, vector<192x128xbf16> -> vector<192x640xbf16>
    %c0_57 = arith.constant 0 : index
    %c0_58 = arith.constant 0 : index
    %131 = vector.load %arg15[%c0_57, %c0_58] : memref<640x384xbf16, #tpu.memory_space<vmem>>, vector<640x384xbf16>
    %cst_59 = arith.constant dense<0.000000e+00> : vector<192x384xf32>
    %132 = tpu.matmul %130, %131, %cst_59 {dimension_numbers = #tpu.dot_dimension_numbers<[1], [0], [0], [1], [0, 0, 1, 1], [], []>} : vector<192x640xbf16>, vector<640x384xbf16>, vector<192x384xf32> -> vector<192x384xf32>
    %c0_60 = arith.constant 0 : index
    %c0_61 = arith.constant 0 : index
    %133 = vector.load %arg16[%c0_60, %c0_61] : memref<1x384xf32, #tpu.memory_space<vmem>>, vector<1x384xf32>
    %134 = vector.broadcast %133 : vector<1x384xf32> to vector<192x384xf32>
    %135 = arith.addf %132, %134 : vector<192x384xf32>
    %cst_62 = arith.constant 0.000000e+00 : f32
    %136 = vector.broadcast %cst_62 : f32 to vector<192x384xf32>
    %137 = arith.maximumf %135, %136 : vector<192x384xf32>
    %138 = arith.truncf %137 : vector<192x384xf32> to vector<192x384xbf16>
    %cst_63 = arith.constant 0.000000e+00 : bf16
    %139 = vector.broadcast %cst_63 : bf16 to vector<16x384xbf16>
    %140 = vector.extract_strided_slice %138 {offsets = [0, 0], sizes = [16, 384], strides = [1, 1]} : vector<192x384xbf16> to vector<16x384xbf16>
    %141 = vector.extract_strided_slice %138 {offsets = [16, 0], sizes = [16, 384], strides = [1, 1]} : vector<192x384xbf16> to vector<16x384xbf16>
    %142 = vector.extract_strided_slice %138 {offsets = [32, 0], sizes = [16, 384], strides = [1, 1]} : vector<192x384xbf16> to vector<16x384xbf16>
    %143 = vector.extract_strided_slice %138 {offsets = [48, 0], sizes = [16, 384], strides = [1, 1]} : vector<192x384xbf16> to vector<16x384xbf16>
    %144 = vector.extract_strided_slice %138 {offsets = [64, 0], sizes = [16, 384], strides = [1, 1]} : vector<192x384xbf16> to vector<16x384xbf16>
    %145 = vector.extract_strided_slice %138 {offsets = [80, 0], sizes = [16, 384], strides = [1, 1]} : vector<192x384xbf16> to vector<16x384xbf16>
    %146 = vector.extract_strided_slice %138 {offsets = [96, 0], sizes = [16, 384], strides = [1, 1]} : vector<192x384xbf16> to vector<16x384xbf16>
    %147 = vector.extract_strided_slice %138 {offsets = [112, 0], sizes = [16, 384], strides = [1, 1]} : vector<192x384xbf16> to vector<16x384xbf16>
    %148 = vector.extract_strided_slice %138 {offsets = [128, 0], sizes = [16, 384], strides = [1, 1]} : vector<192x384xbf16> to vector<16x384xbf16>
    %149 = vector.extract_strided_slice %138 {offsets = [144, 0], sizes = [16, 384], strides = [1, 1]} : vector<192x384xbf16> to vector<16x384xbf16>
    %150 = vector.extract_strided_slice %138 {offsets = [160, 0], sizes = [16, 384], strides = [1, 1]} : vector<192x384xbf16> to vector<16x384xbf16>
    %151 = vector.extract_strided_slice %138 {offsets = [176, 0], sizes = [16, 384], strides = [1, 1]} : vector<192x384xbf16> to vector<16x384xbf16>
    %152 = tpu.concatenate %139, %139, %139, %139, %140, %139, %141, %139, %142, %139, %143, %139, %144, %139, %145, %139 in 0 : vector<16x384xbf16>, vector<16x384xbf16>, vector<16x384xbf16>, vector<16x384xbf16>, vector<16x384xbf16>, vector<16x384xbf16>, vector<16x384xbf16>, vector<16x384xbf16>, vector<16x384xbf16>, vector<16x384xbf16>, vector<16x384xbf16>, vector<16x384xbf16>, vector<16x384xbf16>, vector<16x384xbf16>, vector<16x384xbf16>, vector<16x384xbf16> -> vector<256x384xbf16>
    %153 = tpu.concatenate %146, %139, %147, %139, %148, %139, %149, %139, %150, %139, %151, %139, %139, %139, %139, %139 in 0 : vector<16x384xbf16>, vector<16x384xbf16>, vector<16x384xbf16>, vector<16x384xbf16>, vector<16x384xbf16>, vector<16x384xbf16>, vector<16x384xbf16>, vector<16x384xbf16>, vector<16x384xbf16>, vector<16x384xbf16>, vector<16x384xbf16>, vector<16x384xbf16>, vector<16x384xbf16>, vector<16x384xbf16>, vector<16x384xbf16>, vector<16x384xbf16> -> vector<256x384xbf16>
    %154 = tpu.concatenate %152, %153 in 0 : vector<256x384xbf16>, vector<256x384xbf16> -> vector<512x384xbf16>
    %155 = vector.extract_strided_slice %154 {offsets = [0, 0], sizes = [448, 384], strides = [1, 1]} : vector<512x384xbf16> to vector<448x384xbf16>
    %156 = vector.extract_strided_slice %154 {offsets = [16, 0], sizes = [448, 384], strides = [1, 1]} : vector<512x384xbf16> to vector<448x384xbf16>
    %157 = vector.extract_strided_slice %154 {offsets = [32, 0], sizes = [448, 384], strides = [1, 1]} : vector<512x384xbf16> to vector<448x384xbf16>
    %158 = vector.extract_strided_slice %154 {offsets = [48, 0], sizes = [448, 384], strides = [1, 1]} : vector<512x384xbf16> to vector<448x384xbf16>
    %159 = vector.extract_strided_slice %154 {offsets = [64, 0], sizes = [448, 384], strides = [1, 1]} : vector<512x384xbf16> to vector<448x384xbf16>
    %160 = tpu.concatenate %155, %156, %157, %158, %159 in 1 : vector<448x384xbf16>, vector<448x384xbf16>, vector<448x384xbf16>, vector<448x384xbf16>, vector<448x384xbf16> -> vector<448x1920xbf16>
    %c0_64 = arith.constant 0 : index
    %c0_65 = arith.constant 0 : index
    %161 = vector.load %arg17[%c0_64, %c0_65] : memref<1920x128xbf16, #tpu.memory_space<vmem>>, vector<1920x128xbf16>
    %cst_66 = arith.constant dense<0.000000e+00> : vector<448x128xf32>
    %162 = tpu.matmul %160, %161, %cst_66 {dimension_numbers = #tpu.dot_dimension_numbers<[1], [0], [0], [1], [0, 0, 1, 1], [], []>} : vector<448x1920xbf16>, vector<1920x128xbf16>, vector<448x128xf32> -> vector<448x128xf32>
    %c0_67 = arith.constant 0 : index
    %c0_68 = arith.constant 0 : index
    %163 = vector.load %arg18[%c0_67, %c0_68] : memref<1x128xf32, #tpu.memory_space<vmem>>, vector<1x128xf32>
    %164 = vector.broadcast %163 : vector<1x128xf32> to vector<448x128xf32>
    %165 = arith.addf %162, %164 : vector<448x128xf32>
    %166 = vector.shape_cast %165 : vector<448x128xf32> to vector<28x16x128xf32>
    %c0_69 = arith.constant 0 : index
    %c0_70 = arith.constant 0 : index
    %c0_71 = arith.constant 0 : index
    %167 = vector.load %arg19[%c0_69, %c0_70, %c0_71] : memref<28x16x128xf32, #tpu.memory_space<vmem>>, vector<28x16x128xf32>
    tpu.vector_store %arg19[%c0_69, %c0_70, %c0_71], %166 {strides = array<i32>} : memref<28x16x128xf32, #tpu.memory_space<vmem>>, vector<28x16x128xf32>,
    return
  }
  func.func @transform_0(%arg0: i32) -> (i32, i32, i32) {
    %c0_i32 = arith.constant 0 : i32
    %c0_i32_0 = arith.constant 0 : i32
    %c0_i32_1 = arith.constant 0 : i32
    return %c0_i32, %arg0, %c0_i32_0 : i32, i32, i32
  }
  func.func @transform_1(%arg0: i32) -> (i32, i32) {
    %c0_i32 = arith.constant 0 : i32
    %c0_i32_0 = arith.constant 0 : i32
    return %arg0, %c0_i32 : i32, i32
  }
  func.func @transform_2(%arg0: i32) -> (i32, i32) {
    %c0_i32 = arith.constant 0 : i32
    %c0_i32_0 = arith.constant 0 : i32
    %c0_i32_1 = arith.constant 0 : i32
    return %c0_i32, %c0_i32_0 : i32, i32
  }
  func.func @transform_3(%arg0: i32) -> (i32, i32) {
    %c0_i32 = arith.constant 0 : i32
    %c0_i32_0 = arith.constant 0 : i32
    %c0_i32_1 = arith.constant 0 : i32
    return %c0_i32, %c0_i32_0 : i32, i32
  }
  func.func @transform_4(%arg0: i32) -> (i32, i32) {
    %c0_i32 = arith.constant 0 : i32
    %c0_i32_0 = arith.constant 0 : i32
    %c0_i32_1 = arith.constant 0 : i32
    return %c0_i32, %c0_i32_0 : i32, i32
  }
  func.func @transform_5(%arg0: i32) -> (i32, i32) {
    %c0_i32 = arith.constant 0 : i32
    %c0_i32_0 = arith.constant 0 : i32
    %c0_i32_1 = arith.constant 0 : i32
    return %c0_i32, %c0_i32_0 : i32, i32
  }
  func.func @transform_6(%arg0: i32) -> (i32, i32) {
    %c0_i32 = arith.constant 0 : i32
    %c0_i32_0 = arith.constant 0 : i32
    %c0_i32_1 = arith.constant 0 : i32
    return %c0_i32, %c0_i32_0 : i32, i32
  }
  func.func @transform_7(%arg0: i32) -> (i32, i32) {
    %c0_i32 = arith.constant 0 : i32
    %c0_i32_0 = arith.constant 0 : i32
    %c0_i32_1 = arith.constant 0 : i32
    return %c0_i32, %c0_i32_0 : i32, i32
  }
  func.func @transform_8(%arg0: i32) -> (i32, i32, i32) {
    %c0_i32 = arith.constant 0 : i32
    %c0_i32_0 = arith.constant 0 : i32
    %c0_i32_1 = arith.constant 0 : i32
    %c0_i32_2 = arith.constant 0 : i32
    return %c0_i32, %c0_i32_0, %c0_i32_1 : i32, i32, i32
  }
  func.func @transform_9(%arg0: i32) -> (i32, i32) {
    %c0_i32 = arith.constant 0 : i32
    %c0_i32_0 = arith.constant 0 : i32
    %c0_i32_1 = arith.constant 0 : i32
    return %c0_i32, %c0_i32_0 : i32, i32
  }
  func.func @transform_10(%arg0: i32) -> (i32, i32, i32) {
    %c0_i32 = arith.constant 0 : i32
    %c0_i32_0 = arith.constant 0 : i32
    %c0_i32_1 = arith.constant 0 : i32
    %c0_i32_2 = arith.constant 0 : i32
    return %c0_i32, %c0_i32_0, %c0_i32_1 : i32, i32, i32
  }
  func.func @transform_11(%arg0: i32) -> (i32, i32, i32) {
    %c0_i32 = arith.constant 0 : i32
    %c0_i32_0 = arith.constant 0 : i32
    %c0_i32_1 = arith.constant 0 : i32
    %c0_i32_2 = arith.constant 0 : i32
    return %c0_i32, %c0_i32_0, %c0_i32_1 : i32, i32, i32
  }
  func.func @transform_12(%arg0: i32) -> (i32, i32) {
    %c0_i32 = arith.constant 0 : i32
    %c0_i32_0 = arith.constant 0 : i32
    %c0_i32_1 = arith.constant 0 : i32
    return %c0_i32, %c0_i32_0 : i32, i32
  }
  func.func @transform_13(%arg0: i32) -> (i32, i32) {
    %c0_i32 = arith.constant 0 : i32
    %c0_i32_0 = arith.constant 0 : i32
    %c0_i32_1 = arith.constant 0 : i32
    return %c0_i32, %c0_i32_0 : i32, i32
  }
  func.func @transform_14(%arg0: i32) -> (i32, i32) {
    %c0_i32 = arith.constant 0 : i32
    %c0_i32_0 = arith.constant 0 : i32
    %c0_i32_1 = arith.constant 0 : i32
    return %c0_i32, %c0_i32_0 : i32, i32
  }
  func.func @transform_15(%arg0: i32) -> (i32, i32) {
    %c0_i32 = arith.constant 0 : i32
    %c0_i32_0 = arith.constant 0 : i32
    %c0_i32_1 = arith.constant 0 : i32
    return %c0_i32, %c0_i32_0 : i32, i32
  }
  func.func @transform_16(%arg0: i32) -> (i32, i32) {
    %c0_i32 = arith.constant 0 : i32
    %c0_i32_0 = arith.constant 0 : i32
    %c0_i32_1 = arith.constant 0 : i32
    return %c0_i32, %c0_i32_0 : i32, i32
  }
  func.func @transform_17(%arg0: i32) -> (i32, i32) {
    %c0_i32 = arith.constant 0 : i32
    %c0_i32_0 = arith.constant 0 : i32
    %c0_i32_1 = arith.constant 0 : i32
    return %c0_i32, %c0_i32_0 : i32, i32
  }
  func.func @transform_18(%arg0: i32) -> (i32, i32, i32) {
    %c0_i32 = arith.constant 0 : i32
    %c0_i32_0 = arith.constant 0 : i32
    %c0_i32_1 = arith.constant 0 : i32
    return %c0_i32, %arg0, %c0_i32_0 : i32, i32, i32
  }
  func.func @transform_19(%arg0: i32) -> (i32, i32) {
    %c0_i32 = arith.constant 0 : i32
    %c0_i32_0 = arith.constant 0 : i32
    return %arg0, %c0_i32 : i32, i32
  }
}

</mosaic_0001>

<llo_original>
// kernel: cvae2_forward.1
$region0: #{cvae2_forward.1}
  #allocation0 [shape = 'u32[]', space=smem, size = 0x4, offset = 0x4, fixed_abs, tag = 'smem constant byte address 0x4 - core index']
  #allocation1 [shape = 'u32[144,128]{1,0:T(1,128)}', space=vmem, size = 0x12000, scoped, tag = 'internal scratch']
  %s0 = inlined_call_operand.vmem [shape: f32[14,32,128], index: 0, kind: input, shape index: {}]
  %s1 = inlined_call_operand.vmem [shape: f32[32,10], index: 1, kind: input, shape index: {}]
  %s2 = inlined_call_operand.vmem [shape: bf16[384,384], index: 2, kind: input, shape index: {}]
  %s3 = inlined_call_operand.vmem [shape: f32[1,384], index: 3, kind: input, shape index: {}]
  %s4 = inlined_call_operand.vmem [shape: bf16[1920,128], index: 4, kind: input, shape index: {}]
  %s5 = inlined_call_operand.vmem [shape: f32[1,128], index: 5, kind: input, shape index: {}]
  %s6 = inlined_call_operand.vmem [shape: bf16[384,64], index: 6, kind: input, shape index: {}]
  %s7 = inlined_call_operand.vmem [shape: f32[1,64], index: 7, kind: input, shape index: {}]
  %s8 = inlined_call_operand.vmem [shape: bf16[2,64,20], index: 8, kind: input, shape index: {}]
  %s9 = inlined_call_operand.vmem [shape: f32[1,20], index: 9, kind: input, shape index: {}]
  %s10 = inlined_call_operand.vmem [shape: bf16[2,10,128], index: 10, kind: input, shape index: {}]
  %s11 = inlined_call_operand.vmem [shape: f32[2,1,128], index: 11, kind: input, shape index: {}]
  %s12 = inlined_call_operand.vmem [shape: bf16[384,128], index: 12, kind: input, shape index: {}]
  %s13 = inlined_call_operand.vmem [shape: f32[1,128], index: 13, kind: input, shape index: {}]
  %s14 = inlined_call_operand.vmem [shape: bf16[640,384], index: 14, kind: input, shape index: {}]
  %s15 = inlined_call_operand.vmem [shape: f32[1,384], index: 15, kind: input, shape index: {}]
  %s16 = inlined_call_operand.vmem [shape: bf16[1920,128], index: 16, kind: input, shape index: {}]
  %s17 = inlined_call_operand.vmem [shape: f32[1,128], index: 17, kind: input, shape index: {}]
  %s18 = inlined_call_operand.vmem [shape: f32[28,32,128], index: 18, kind: output, shape index: {0}]
  %s19 = inlined_call_operand.vmem [shape: f32[32,20], index: 19, kind: output, shape index: {1}]
  %20 = xla_tuple %s18, %s19
  %s21 = sld [smem:[#allocation0]]
  $region185: #{cvae2_forward.1} parent=0
    _
  %s23 = ssub.s32 1, %s21
  %s24 = scalar_select 0, %s23, %s21
  $region1: #{cvae2_forward.1} parent=0
    #allocation2 [shape = 'u8[229376]{0}', space=vmem, size = 0x38000, scoped, tag = 'input window, operand 0']
    #allocation3 [shape = 'u8[458752]{0}', space=vmem, size = 0x70000, scoped, tag = 'output window, operand 0']
    loop: start=0, step=1, limit=4
    $region2: #{cvae2_forward.1} parent=1 // loop_pre_header
      _
    $region3: #{cvae2_forward.1} parent=1 // loop_header
      %s26 = sphi 0, %s30
      %p27 = scmp.ge.s32.totalorder %s26, 4
      %s36 = sphi 0, %s38
      %s39 = sphi 0, %s36
      %s40 = sphi 0, %s39
      %s56 = sphi 0, %s40
      %s62 = sphi 0, %s64
      %s65 = sphi 0, %s62
      %s66 = sphi 0, %s65
      %s82 = sphi 0, %s66
      %s86 = sphi 0, %s86
      %s88 = sphi 0, %s86
      %s89 = sphi 0, %s88
      %s103 = sphi 0, %s89
      %s107 = sphi 0, %s107
      %s109 = sphi 0, %s107
      %s110 = sphi 0, %s109
      %s124 = sphi 0, %s110
      %s128 = sphi 0, %s128
      %s130 = sphi 0, %s128
      %s131 = sphi 0, %s130
      %s145 = sphi 0, %s131
      %s149 = sphi 0, %s149
      %s151 = sphi 0, %s149
      %s152 = sphi 0, %s151
      %s166 = sphi 0, %s152
      %s170 = sphi 0, %s170
      %s172 = sphi 0, %s170
      %s173 = sphi 0, %s172
      %s187 = sphi 0, %s173
      %s191 = sphi 0, %s191
      %s193 = sphi 0, %s191
      %s194 = sphi 0, %s193
      %s208 = sphi 0, %s194
      %s212 = sphi 0, %s212
      %s214 = sphi 0, %s212
      %s215 = sphi 0, %s214
      %s229 = sphi 0, %s215
      %s233 = sphi 0, %s233
      %s235 = sphi 0, %s233
      %s236 = sphi 0, %s235
      %s250 = sphi 0, %s236
      %s254 = sphi 0, %s254
      %s256 = sphi 0, %s254
      %s257 = sphi 0, %s256
      %s271 = sphi 0, %s257
      %s275 = sphi 0, %s275
      %s277 = sphi 0, %s275
      %s278 = sphi 0, %s277
      %s292 = sphi 0, %s278
      %s296 = sphi 0, %s296
      %s298 = sphi 0, %s296
      %s299 = sphi 0, %s298
      %s313 = sphi 0, %s299
      %s317 = sphi 0, %s317
      %s319 = sphi 0, %s317
      %s320 = sphi 0, %s319
      %s334 = sphi 0, %s320
      %s338 = sphi 0, %s338
      %s340 = sphi 0, %s338
      %s341 = sphi 0, %s340
      %s355 = sphi 0, %s341
      %s359 = sphi 0, %s359
      %s361 = sphi 0, %s359
      %s362 = sphi 0, %s361
      %s376 = sphi 0, %s362
      %s380 = sphi 0, %s380
      %s382 = sphi 0, %s380
      %s383 = sphi 0, %s382
      %s397 = sphi 0, %s383
      %s401 = sphi 0, %s401
      %s403 = sphi 0, %s401
      %s404 = sphi 0, %s403
      %s418 = sphi 0, %s404
      %s424 = sphi 0, %s426
      %s427 = sphi 0, %s424
      %s428 = sphi 0, %s427
      %s444 = sphi 0, %s428
      %s450 = sphi 0, %s452
      %s453 = sphi 0, %s450
      %s454 = sphi 0, %s453
      %s470 = sphi 0, %s454
    $region4: #{cvae2_forward.1} parent=1 // loop_header_branch
      %29 = sbr.rel (%p27) target = $region8
    $region5: #{cvae2_forward.1} parent=1 // loop_body
      %s31 = ssub.s32 %s26, 1
      %s32 = ssub.s32 %s26, 2
      %s33 = sadd.s32 %s26, 1
      %s34 = ssub.s32 %s26, %s33
      %p35 = scmp.eq.s32.totalorder %s34, 0
      %s37 = sadd.s32 %s36, 1
      %s38 = scalar_select %p35, %s36, %s37
      %p41 = pneg %p35
      %p42 = scmp.eq.s32.totalorder %s26, 1
      %p43 = por %p41, %p42
      %p44 = scmp.ne.s32.totalorder %s36, %s39
      %p45 = scmp.eq.s32.totalorder %s26, 0
      %p46 = por %p44, %p45
      %p47 = scmp.ne.s32.totalorder %s36, %s39
      %p48 = scmp.eq.s32.totalorder %s31, 1
      %p49 = por %p47, %p48
      %p50 = scmp.ne.s32.totalorder %s39, %s40
      %p51 = scmp.eq.s32.totalorder %s31, 0
      %p52 = por %p50, %p51
      %p53 = scmp.ne.s32.totalorder %s39, %s40
      %p54 = scmp.eq.s32.totalorder %s32, 1
      %p55 = por %p53, %p54
      %p57 = scmp.ne.s32.totalorder %s40, %s56
      %p58 = scmp.eq.s32.totalorder %s32, 0
      %p59 = por %p57, %p58
      %s60 = ssub.s32 %s26, %s33
      %p61 = scmp.eq.s32.totalorder %s60, 0
      %s63 = sadd.s32 %s62, 1
      %s64 = scalar_select %p61, %s62, %s63
      %p67 = pneg %p61
      %p68 = scmp.eq.s32.totalorder %s26, 1
      %p69 = por %p67, %p68
      %p70 = scmp.ne.s32.totalorder %s62, %s65
      %p71 = scmp.eq.s32.totalorder %s26, 0
      %p72 = por %p70, %p71
      %p73 = scmp.ne.s32.totalorder %s62, %s65
      %p74 = scmp.eq.s32.totalorder %s31, 1
      %p75 = por %p73, %p74
      %p76 = scmp.ne.s32.totalorder %s65, %s66
      %p77 = scmp.eq.s32.totalorder %s31, 0
      %p78 = por %p76, %p77
      %p79 = scmp.ne.s32.totalorder %s65, %s66
      %p80 = scmp.eq.s32.totalorder %s32, 1
      %p81 = por %p79, %p80
      %p83 = scmp.ne.s32.totalorder %s66, %s82
      %p84 = scmp.eq.s32.totalorder %s32, 0
      %p85 = por %p83, %p84
      %s87 = sadd.s32 %s86, 1
      %p90 = scmp.eq.s32.totalorder %s26, 1
      %p91 = scmp.ne.s32.totalorder %s86, %s88
      %p92 = scmp.eq.s32.totalorder %s26, 0
      %p93 = por %p91, %p92
      %p94 = scmp.ne.s32.totalorder %s86, %s88
      %p95 = scmp.eq.s32.totalorder %s31, 1
      %p96 = por %p94, %p95
      %p97 = scmp.ne.s32.totalorder %s88, %s89
      %p98 = scmp.eq.s32.totalorder %s31, 0
      %p99 = por %p97, %p98
      %p100 = scmp.ne.s32.totalorder %s88, %s89
      %p101 = scmp.eq.s32.totalorder %s32, 1
      %p102 = por %p100, %p101
      %p104 = scmp.ne.s32.totalorder %s89, %s103
      %p105 = scmp.eq.s32.totalorder %s32, 0
      %p106 = por %p104, %p105
      %s108 = sadd.s32 %s107, 1
      %p111 = scmp.eq.s32.totalorder %s26, 1
      %p112 = scmp.ne.s32.totalorder %s107, %s109
      %p113 = scmp.eq.s32.totalorder %s26, 0
      %p114 = por %p112, %p113
      %p115 = scmp.ne.s32.totalorder %s107, %s109
      %p116 = scmp.eq.s32.totalorder %s31, 1
      %p117 = por %p115, %p116
      %p118 = scmp.ne.s32.totalorder %s109, %s110
      %p119 = scmp.eq.s32.totalorder %s31, 0
      %p120 = por %p118, %p119
      %p121 = scmp.ne.s32.totalorder %s109, %s110
      %p122 = scmp.eq.s32.totalorder %s32, 1
      %p123 = por %p121, %p122
      %p125 = scmp.ne.s32.totalorder %s110, %s124
      %p126 = scmp.eq.s32.totalorder %s32, 0
      %p127 = por %p125, %p126
      %s129 = sadd.s32 %s128, 1
      %p132 = scmp.eq.s32.totalorder %s26, 1
      %p133 = scmp.ne.s32.totalorder %s128, %s130
      %p134 = scmp.eq.s32.totalorder %s26, 0
      %p135 = por %p133, %p134
      %p136 = scmp.ne.s32.totalorder %s128, %s130
      %p137 = scmp.eq.s32.totalorder %s31, 1
      %p138 = por %p136, %p137
      %p139 = scmp.ne.s32.totalorder %s130, %s131
      %p140 = scmp.eq.s32.totalorder %s31, 0
      %p141 = por %p139, %p140
      %p142 = scmp.ne.s32.totalorder %s130, %s131
      %p143 = scmp.eq.s32.totalorder %s32, 1
      %p144 = por %p142, %p143
      %p146 = scmp.ne.s32.totalorder %s131, %s145
      %p147 = scmp.eq.s32.totalorder %s32, 0
      %p148 = por %p146, %p147
      %s150 = sadd.s32 %s149, 1
      %p153 = scmp.eq.s32.totalorder %s26, 1
      %p154 = scmp.ne.s32.totalorder %s149, %s151
      %p155 = scmp.eq.s32.totalorder %s26, 0
      %p156 = por %p154, %p155
      %p157 = scmp.ne.s32.totalorder %s149, %s151
      %p158 = scmp.eq.s32.totalorder %s31, 1
      %p159 = por %p157, %p158
      %p160 = scmp.ne.s32.totalorder %s151, %s152
      %p161 = scmp.eq.s32.totalorder %s31, 0
      %p162 = por %p160, %p161
      %p163 = scmp.ne.s32.totalorder %s151, %s152
      %p164 = scmp.eq.s32.totalorder %s32, 1
      %p165 = por %p163, %p164
      %p167 = scmp.ne.s32.totalorder %s152, %s166
      %p168 = scmp.eq.s32.totalorder %s32, 0
      %p169 = por %p167, %p168
      %s171 = sadd.s32 %s170, 1
      %p174 = scmp.eq.s32.totalorder %s26, 1
      %p175 = scmp.ne.s32.totalorder %s170, %s172
      %p176 = scmp.eq.s32.totalorder %s26, 0
      %p177 = por %p175, %p176
      %p178 = scmp.ne.s32.totalorder %s170, %s172
      %p179 = scmp.eq.s32.totalorder %s31, 1
      %p180 = por %p178, %p179
      %p181 = scmp.ne.s32.totalorder %s172, %s173
      %p182 = scmp.eq.s32.totalorder %s31, 0
      %p183 = por %p181, %p182
      %p184 = scmp.ne.s32.totalorder %s172, %s173
      %p185 = scmp.eq.s32.totalorder %s32, 1
      %p186 = por %p184, %p185
      %p188 = scmp.ne.s32.totalorder %s173, %s187
      %p189 = scmp.eq.s32.totalorder %s32, 0
      %p190 = por %p188, %p189
      %s192 = sadd.s32 %s191, 1
      %p195 = scmp.eq.s32.totalorder %s26, 1
      %p196 = scmp.ne.s32.totalorder %s191, %s193
      %p197 = scmp.eq.s32.totalorder %s26, 0
      %p198 = por %p196, %p197
      %p199 = scmp.ne.s32.totalorder %s191, %s193
      %p200 = scmp.eq.s32.totalorder %s31, 1
      %p201 = por %p199, %p200
      %p202 = scmp.ne.s32.totalorder %s193, %s194
      %p203 = scmp.eq.s32.totalorder %s31, 0
      %p204 = por %p202, %p203
      %p205 = scmp.ne.s32.totalorder %s193, %s194
      %p206 = scmp.eq.s32.totalorder %s32, 1
      %p207 = por %p205, %p206
      %p209 = scmp.ne.s32.totalorder %s194, %s208
      %p210 = scmp.eq.s32.totalorder %s32, 0
      %p211 = por %p209, %p210
      %s213 = sadd.s32 %s212, 1
      %p216 = scmp.eq.s32.totalorder %s26, 1
      %p217 = scmp.ne.s32.totalorder %s212, %s214
      %p218 = scmp.eq.s32.totalorder %s26, 0
      %p219 = por %p217, %p218
      %p220 = scmp.ne.s32.totalorder %s212, %s214
      %p221 = scmp.eq.s32.totalorder %s31, 1
      %p222 = por %p220, %p221
      %p223 = scmp.ne.s32.totalorder %s214, %s215
      %p224 = scmp.eq.s32.totalorder %s31, 0
      %p225 = por %p223, %p224
      %p226 = scmp.ne.s32.totalorder %s214, %s215
      %p227 = scmp.eq.s32.totalorder %s32, 1
      %p228 = por %p226, %p227
      %p230 = scmp.ne.s32.totalorder %s215, %s229
      %p231 = scmp.eq.s32.totalorder %s32, 0
      %p232 = por %p230, %p231
      %s234 = sadd.s32 %s233, 1
      %p237 = scmp.eq.s32.totalorder %s26, 1
      %p238 = scmp.ne.s32.totalorder %s233, %s235
      %p239 = scmp.eq.s32.totalorder %s26, 0
      %p240 = por %p238, %p239
      %p241 = scmp.ne.s32.totalorder %s233, %s235
      %p242 = scmp.eq.s32.totalorder %s31, 1
      %p243 = por %p241, %p242
      %p244 = scmp.ne.s32.totalorder %s235, %s236
      %p245 = scmp.eq.s32.totalorder %s31, 0
      %p246 = por %p244, %p245
      %p247 = scmp.ne.s32.totalorder %s235, %s236
      %p248 = scmp.eq.s32.totalorder %s32, 1
      %p249 = por %p247, %p248
      %p251 = scmp.ne.s32.totalorder %s236, %s250
      %p252 = scmp.eq.s32.totalorder %s32, 0
      %p253 = por %p251, %p252
      %s255 = sadd.s32 %s254, 1
      %p258 = scmp.eq.s32.totalorder %s26, 1
      %p259 = scmp.ne.s32.totalorder %s254, %s256
      %p260 = scmp.eq.s32.totalorder %s26, 0
      %p261 = por %p259, %p260
      %p262 = scmp.ne.s32.totalorder %s254, %s256
      %p263 = scmp.eq.s32.totalorder %s31, 1
      %p264 = por %p262, %p263
      %p265 = scmp.ne.s32.totalorder %s256, %s257
      %p266 = scmp.eq.s32.totalorder %s31, 0
      %p267 = por %p265, %p266
      %p268 = scmp.ne.s32.totalorder %s256, %s257
      %p269 = scmp.eq.s32.totalorder %s32, 1
      %p270 = por %p268, %p269
      %p272 = scmp.ne.s32.totalorder %s257, %s271
      %p273 = scmp.eq.s32.totalorder %s32, 0
      %p274 = por %p272, %p273
      %s276 = sadd.s32 %s275, 1
      %p279 = scmp.eq.s32.totalorder %s26, 1
      %p280 = scmp.ne.s32.totalorder %s275, %s277
      %p281 = scmp.eq.s32.totalorder %s26, 0
      %p282 = por %p280, %p281
      %p283 = scmp.ne.s32.totalorder %s275, %s277
      %p284 = scmp.eq.s32.totalorder %s31, 1
      %p285 = por %p283, %p284
      %p286 = scmp.ne.s32.totalorder %s277, %s278
      %p287 = scmp.eq.s32.totalorder %s31, 0
      %p288 = por %p286, %p287
      %p289 = scmp.ne.s32.totalorder %s277, %s278
      %p290 = scmp.eq.s32.totalorder %s32, 1
      %p291 = por %p289, %p290
      %p293 = scmp.ne.s32.totalorder %s278, %s292
      %p294 = scmp.eq.s32.totalorder %s32, 0
      %p295 = por %p293, %p294
      %s297 = sadd.s32 %s296, 1
      %p300 = scmp.eq.s32.totalorder %s26, 1
      %p301 = scmp.ne.s32.totalorder %s296, %s298
      %p302 = scmp.eq.s32.totalorder %s26, 0
      %p303 = por %p301, %p302
      %p304 = scmp.ne.s32.totalorder %s296, %s298
      %p305 = scmp.eq.s32.totalorder %s31, 1
      %p306 = por %p304, %p305
      %p307 = scmp.ne.s32.totalorder %s298, %s299
      %p308 = scmp.eq.s32.totalorder %s31, 0
      %p309 = por %p307, %p308
      %p310 = scmp.ne.s32.totalorder %s298, %s299
      %p311 = scmp.eq.s32.totalorder %s32, 1
      %p312 = por %p310, %p311
      %p314 = scmp.ne.s32.totalorder %s299, %s313
      %p315 = scmp.eq.s32.totalorder %s32, 0
      %p316 = por %p314, %p315
      %s318 = sadd.s32 %s317, 1
      %p321 = scmp.eq.s32.totalorder %s26, 1
      %p322 = scmp.ne.s32.totalorder %s317, %s319
      %p323 = scmp.eq.s32.totalorder %s26, 0
      %p324 = por %p322, %p323
      %p325 = scmp.ne.s32.totalorder %s317, %s319
      %p326 = scmp.eq.s32.totalorder %s31, 1
      %p327 = por %p325, %p326
      %p328 = scmp.ne.s32.totalorder %s319, %s320
      %p329 = scmp.eq.s32.totalorder %s31, 0
      %p330 = por %p328, %p329
      %p331 = scmp.ne.s32.totalorder %s319, %s320
      %p332 = scmp.eq.s32.totalorder %s32, 1
      %p333 = por %p331, %p332
      %p335 = scmp.ne.s32.totalorder %s320, %s334
      %p336 = scmp.eq.s32.totalorder %s32, 0
      %p337 = por %p335, %p336
      %s339 = sadd.s32 %s338, 1
      %p342 = scmp.eq.s32.totalorder %s26, 1
      %p343 = scmp.ne.s32.totalorder %s338, %s340
      %p344 = scmp.eq.s32.totalorder %s26, 0
      %p345 = por %p343, %p344
      %p346 = scmp.ne.s32.totalorder %s338, %s340
      %p347 = scmp.eq.s32.totalorder %s31, 1
      %p348 = por %p346, %p347
      %p349 = scmp.ne.s32.totalorder %s340, %s341
      %p350 = scmp.eq.s32.totalorder %s31, 0
      %p351 = por %p349, %p350
      %p352 = scmp.ne.s32.totalorder %s340, %s341
      %p353 = scmp.eq.s32.totalorder %s32, 1
      %p354 = por %p352, %p353
      %p356 = scmp.ne.s32.totalorder %s341, %s355
      %p357 = scmp.eq.s32.totalorder %s32, 0
      %p358 = por %p356, %p357
      %s360 = sadd.s32 %s359, 1
      %p363 = scmp.eq.s32.totalorder %s26, 1
      %p364 = scmp.ne.s32.totalorder %s359, %s361
      %p365 = scmp.eq.s32.totalorder %s26, 0
      %p366 = por %p364, %p365
      %p367 = scmp.ne.s32.totalorder %s359, %s361
      %p368 = scmp.eq.s32.totalorder %s31, 1
      %p369 = por %p367, %p368
      %p370 = scmp.ne.s32.totalorder %s361, %s362
      %p371 = scmp.eq.s32.totalorder %s31, 0
      %p372 = por %p370, %p371
      %p373 = scmp.ne.s32.totalorder %s361, %s362
      %p374 = scmp.eq.s32.totalorder %s32, 1
      %p375 = por %p373, %p374
      %p377 = scmp.ne.s32.totalorder %s362, %s376
      %p378 = scmp.eq.s32.totalorder %s32, 0
      %p379 = por %p377, %p378
      %s381 = sadd.s32 %s380, 1
      %p384 = scmp.eq.s32.totalorder %s26, 1
      %p385 = scmp.ne.s32.totalorder %s380, %s382
      %p386 = scmp.eq.s32.totalorder %s26, 0
      %p387 = por %p385, %p386
      %p388 = scmp.ne.s32.totalorder %s380, %s382
      %p389 = scmp.eq.s32.totalorder %s31, 1
      %p390 = por %p388, %p389
      %p391 = scmp.ne.s32.totalorder %s382, %s383
      %p392 = scmp.eq.s32.totalorder %s31, 0
      %p393 = por %p391, %p392
      %p394 = scmp.ne.s32.totalorder %s382, %s383
      %p395 = scmp.eq.s32.totalorder %s32, 1
      %p396 = por %p394, %p395
      %p398 = scmp.ne.s32.totalorder %s383, %s397
      %p399 = scmp.eq.s32.totalorder %s32, 0
      %p400 = por %p398, %p399
      %s402 = sadd.s32 %s401, 1
      %p405 = scmp.eq.s32.totalorder %s26, 1
      %p406 = scmp.ne.s32.totalorder %s401, %s403
      %p407 = scmp.eq.s32.totalorder %s26, 0
      %p408 = por %p406, %p407
      %p409 = scmp.ne.s32.totalorder %s401, %s403
      %p410 = scmp.eq.s32.totalorder %s31, 1
      %p411 = por %p409, %p410
      %p412 = scmp.ne.s32.totalorder %s403, %s404
      %p413 = scmp.eq.s32.totalorder %s31, 0
      %p414 = por %p412, %p413
      %p415 = scmp.ne.s32.totalorder %s403, %s404
      %p416 = scmp.eq.s32.totalorder %s32, 1
      %p417 = por %p415, %p416
      %p419 = scmp.ne.s32.totalorder %s404, %s418
      %p420 = scmp.eq.s32.totalorder %s32, 0
      %p421 = por %p419, %p420
      %s422 = ssub.s32 %s26, %s33
      %p423 = scmp.eq.s32.totalorder %s422, 0
      %s425 = sadd.s32 %s424, 1
      %s426 = scalar_select %p423, %s424, %s425
      %p429 = pneg %p423
      %p430 = scmp.eq.s32.totalorder %s26, 1
      %p431 = por %p429, %p430
      %p432 = scmp.ne.s32.totalorder %s424, %s427
      %p433 = scmp.eq.s32.totalorder %s26, 0
      %p434 = por %p432, %p433
      %p435 = scmp.ne.s32.totalorder %s424, %s427
      %p436 = scmp.eq.s32.totalorder %s31, 1
      %p437 = por %p435, %p436
      %p438 = scmp.ne.s32.totalorder %s427, %s428
      %p439 = scmp.eq.s32.totalorder %s31, 0
      %p440 = por %p438, %p439
      %p441 = scmp.ne.s32.totalorder %s427, %s428
      %p442 = scmp.eq.s32.totalorder %s32, 1
      %p443 = por %p441, %p442
      %p445 = scmp.ne.s32.totalorder %s428, %s444
      %p446 = scmp.eq.s32.totalorder %s32, 0
      %p447 = por %p445, %p446
      %s448 = ssub.s32 %s26, %s33
      %p449 = scmp.eq.s32.totalorder %s448, 0
      %s451 = sadd.s32 %s450, 1
      %s452 = scalar_select %p449, %s450, %s451
      %p455 = pneg %p449
      %p456 = scmp.eq.s32.totalorder %s26, 1
      %p457 = por %p455, %p456
      %p458 = scmp.ne.s32.totalorder %s450, %s453
      %p459 = scmp.eq.s32.totalorder %s26, 0
      %p460 = por %p458, %p459
      %p461 = scmp.ne.s32.totalorder %s450, %s453
      %p462 = scmp.eq.s32.totalorder %s31, 1
      %p463 = por %p461, %p462
      %p464 = scmp.ne.s32.totalorder %s453, %s454
      %p465 = scmp.eq.s32.totalorder %s31, 0
      %p466 = por %p464, %p465
      %p467 = scmp.ne.s32.totalorder %s453, %s454
      %p468 = scmp.eq.s32.totalorder %s32, 1
      %p469 = por %p467, %p468
      %p471 = scmp.ne.s32.totalorder %s454, %s470
      %p472 = scmp.eq.s32.totalorder %s32, 0
      %p473 = por %p471, %p472
      %p474 = scmp.le.s32.totalorder 1, %s26
      %p475 = scmp.lt.s32.totalorder %s26, 3
      %p476 = pnand %p474, %p475
      %p477 = pneg %p476
      // Predicated region
      $region9: #{cvae2_forward.1} parent=5 // pred_check
        _
      $region10: #{cvae2_forward.1} parent=5 // pred_check_branch
        %479 = sbr.rel (%p476) target = $region12
      $region11: #{cvae2_forward.1} parent=5 // pred_region
        %s480 = ssub.s32 %s26, 1
        // Predicated region
        $region13: #{cvae2_forward.1} parent=11 // pred_check
          %p481 = pneg %p99
        $region14: #{cvae2_forward.1} parent=11 // pred_check_branch
          %483 = sbr.rel (%p481) target = $region16
        $region15: #{cvae2_forward.1} parent=11 // pred_region
          _
        $region16: #{cvae2_forward.1} parent=11 // pred_fallthru
          _
        // Predicated region
        $region17: #{cvae2_forward.1} parent=11 // pred_check
          %p484 = pneg %p120
        $region18: #{cvae2_forward.1} parent=11 // pred_check_branch
          %486 = sbr.rel (%p484) target = $region20
        $region19: #{cvae2_forward.1} parent=11 // pred_region
          _
        $region20: #{cvae2_forward.1} parent=11 // pred_fallthru
          _
        // Predicated region
        $region21: #{cvae2_forward.1} parent=11 // pred_check
          %p487 = pneg %p141
        $region22: #{cvae2_forward.1} parent=11 // pred_check_branch
          %489 = sbr.rel (%p487) target = $region24
        $region23: #{cvae2_forward.1} parent=11 // pred_region
          _
        $region24: #{cvae2_forward.1} parent=11 // pred_fallthru
          _
        // Predicated region
        $region25: #{cvae2_forward.1} parent=11 // pred_check
          %p490 = pneg %p162
        $region26: #{cvae2_forward.1} parent=11 // pred_check_branch
          %492 = sbr.rel (%p490) target = $region28
        $region27: #{cvae2_forward.1} parent=11 // pred_region
          _
        $region28: #{cvae2_forward.1} parent=11 // pred_fallthru
          _
        // Predicated region
        $region29: #{cvae2_forward.1} parent=11 // pred_check
          %p493 = pneg %p183
        $region30: #{cvae2_forward.1} parent=11 // pred_check_branch
          %495 = sbr.rel (%p493) target = $region32
        $region31: #{cvae2_forward.1} parent=11 // pred_region
          _
        $region32: #{cvae2_forward.1} parent=11 // pred_fallthru
          _
        // Predicated region
        $region33: #{cvae2_forward.1} parent=11 // pred_check
          %p496 = pneg %p204
        $region34: #{cvae2_forward.1} parent=11 // pred_check_branch
          %498 = sbr.rel (%p496) target = $region36
        $region35: #{cvae2_forward.1} parent=11 // pred_region
          _
        $region36: #{cvae2_forward.1} parent=11 // pred_fallthru
          _
        // Predicated region
        $region37: #{cvae2_forward.1} parent=11 // pred_check
          %p499 = pneg %p225
        $region38: #{cvae2_forward.1} parent=11 // pred_check_branch
          %501 = sbr.rel (%p499) target = $region40
        $region39: #{cvae2_forward.1} parent=11 // pred_region
          _
        $region40: #{cvae2_forward.1} parent=11 // pred_fallthru
          _
        // Predicated region
        $region41: #{cvae2_forward.1} parent=11 // pred_check
          %p502 = pneg %p246
        $region42: #{cvae2_forward.1} parent=11 // pred_check_branch
          %504 = sbr.rel (%p502) target = $region44
        $region43: #{cvae2_forward.1} parent=11 // pred_region
          _
        $region44: #{cvae2_forward.1} parent=11 // pred_fallthru
          _
        // Predicated region
        $region45: #{cvae2_forward.1} parent=11 // pred_check
          %p505 = pneg %p267
        $region46: #{cvae2_forward.1} parent=11 // pred_check_branch
          %507 = sbr.rel (%p505) target = $region48
        $region47: #{cvae2_forward.1} parent=11 // pred_region
          _
        $region48: #{cvae2_forward.1} parent=11 // pred_fallthru
          _
        // Predicated region
        $region49: #{cvae2_forward.1} parent=11 // pred_check
          %p508 = pneg %p288
        $region50: #{cvae2_forward.1} parent=11 // pred_check_branch
          %510 = sbr.rel (%p508) target = $region52
        $region51: #{cvae2_forward.1} parent=11 // pred_region
          _
        $region52: #{cvae2_forward.1} parent=11 // pred_fallthru
          _
        // Predicated region
        $region53: #{cvae2_forward.1} parent=11 // pred_check
          %p511 = pneg %p309
        $region54: #{cvae2_forward.1} parent=11 // pred_check_branch
          %513 = sbr.rel (%p511) target = $region56
        $region55: #{cvae2_forward.1} parent=11 // pred_region
          _
        $region56: #{cvae2_forward.1} parent=11 // pred_fallthru
          _
        // Predicated region
        $region57: #{cvae2_forward.1} parent=11 // pred_check
          %p514 = pneg %p330
        $region58: #{cvae2_forward.1} parent=11 // pred_check_branch
          %516 = sbr.rel (%p514) target = $region60
        $region59: #{cvae2_forward.1} parent=11 // pred_region
          _
        $region60: #{cvae2_forward.1} parent=11 // pred_fallthru
          _
        // Predicated region
        $region61: #{cvae2_forward.1} parent=11 // pred_check
          %p517 = pneg %p351
        $region62: #{cvae2_forward.1} parent=11 // pred_check_branch
          %519 = sbr.rel (%p517) target = $region64
        $region63: #{cvae2_forward.1} parent=11 // pred_region
          _
        $region64: #{cvae2_forward.1} parent=11 // pred_fallthru
          _
        // Predicated region
        $region65: #{cvae2_forward.1} parent=11 // pred_check
          %p520 = pneg %p372
        $region66: #{cvae2_forward.1} parent=11 // pred_check_branch
          %522 = sbr.rel (%p520) target = $region68
        $region67: #{cvae2_forward.1} parent=11 // pred_region
          _
        $region68: #{cvae2_forward.1} parent=11 // pred_fallthru
          _
        // Predicated region
        $region69: #{cvae2_forward.1} parent=11 // pred_check
          %p523 = pneg %p393
        $region70: #{cvae2_forward.1} parent=11 // pred_check_branch
          %525 = sbr.rel (%p523) target = $region72
        $region71: #{cvae2_forward.1} parent=11 // pred_region
          _
        $region72: #{cvae2_forward.1} parent=11 // pred_fallthru
          _
        // Predicated region
        $region73: #{cvae2_forward.1} parent=11 // pred_check
          %p526 = pneg %p414
        $region74: #{cvae2_forward.1} parent=11 // pred_check_branch
          %528 = sbr.rel (%p526) target = $region76
        $region75: #{cvae2_forward.1} parent=11 // pred_region
          _
        $region76: #{cvae2_forward.1} parent=11 // pred_fallthru
          _
      $region12: #{cvae2_forward.1} parent=5 // pred_fallthru
        _
      %p529 = scmp.lt.s32.totalorder %s26, 2
      // Predicated region
      $region77: #{cvae2_forward.1} parent=5 // pred_check
        %p530 = pneg %p529
      $region78: #{cvae2_forward.1} parent=5 // pred_check_branch
        %532 = sbr.rel (%p530) target = $region80
      $region79: #{cvae2_forward.1} parent=5 // pred_region
        // Predicated region
        $region81: #{cvae2_forward.1} parent=79 // pred_check
          %p533 = pneg %p46
        $region82: #{cvae2_forward.1} parent=79 // pred_check_branch
          %535 = sbr.rel (%p533) target = $region84
        $region83: #{cvae2_forward.1} parent=79 // pred_region
          %s536 = sand.u32 %s36, 1
          %s537 = sand.u32 %s36, 1
          %s538 = smul.addr %s537, 224
          %s539 = scalar_lea.vmem [#allocation2], %s538
          %s540 = smul.u32 2, %s26
          %s541 = smul.addr %s540, 8
          %s542 = scalar_lea.vmem %s0, %s541
          // Predicated region
          $region85: #{cvae2_forward.1} parent=83 // pred_check
            _
          $region86: #{cvae2_forward.1} parent=83 // pred_check_branch
            %544 = sbr.rel (0) target = $region88
          $region87: #{cvae2_forward.1} parent=83 // pred_region
            // Predicated region
            $region89: #{cvae2_forward.1} parent=87 // pred_check
              _
            $region90: #{cvae2_forward.1} parent=87 // pred_check_branch
              %546 = sbr.rel (0) target = $region92
            $region91: #{cvae2_forward.1} parent=87 // pred_region
              // Predicated region
              $region104: #{cvae2_forward.1} parent=91 // pred_check
                _
              $region105: #{cvae2_forward.1} parent=91 // pred_check_branch
                %615 = sbr.rel (0) target = $region107
              $region106: #{cvae2_forward.1} parent=91 // pred_region
                loop: start=0, step=1, limit=1
                $region108: #{cvae2_forward.1} parent=106 // loop_pre_header
                  _
                $region109: #{cvae2_forward.1} parent=106 // loop_header
                  %s617 = sphi 0, %s621
                  %p618 = scmp.ge.s32.totalorder %s617, 1
                  %s622 = sphi %s542, %s542
                  %s623 = sphi %s539, %s539
                $region110: #{cvae2_forward.1} parent=106 // loop_header_branch
                  %620 = sbr.rel (%p618) target = $region114
                $region111: #{cvae2_forward.1} parent=106 // loop_body
                  %v624 = vld [vmem:[%s622] sm:$0xff]
                  %625 = vst [vmem:[%s623] sm:$0xff] %v624
                  %v626 = vld [vmem:[%s622 + $0x8] sm:$0xff]
                  %627 = vst [vmem:[%s623 + $0x8] sm:$0xff] %v626
                  %v628 = vld [vmem:[%s622 + $0x20] sm:$0xff]
                  %629 = vst [vmem:[%s623 + $0x10] sm:$0xff] %v628
                  %v630 = vld [vmem:[%s622 + $0x28] sm:$0xff]
                  %631 = vst [vmem:[%s623 + $0x18] sm:$0xff] %v630
                  %v632 = vld [vmem:[%s622 + $0x40] sm:$0xff]
                  %633 = vst [vmem:[%s623 + $0x20] sm:$0xff] %v632
                  %v634 = vld [vmem:[%s622 + $0x48] sm:$0xff]
                  %635 = vst [vmem:[%s623 + $0x28] sm:$0xff] %v634
                  %v636 = vld [vmem:[%s622 + $0x60] sm:$0xff]
                  %637 = vst [vmem:[%s623 + $0x30] sm:$0xff] %v636
                  %v638 = vld [vmem:[%s622 + $0x68] sm:$0xff]
                  %639 = vst [vmem:[%s623 + $0x38] sm:$0xff] %v638
                  %v640 = vld [vmem:[%s622 + $0x80] sm:$0xff]
                  %641 = vst [vmem:[%s623 + $0x40] sm:$0xff] %v640
                  %v642 = vld [vmem:[%s622 + $0x88] sm:$0xff]
                  %643 = vst [vmem:[%s623 + $0x48] sm:$0xff] %v642
                  %v644 = vld [vmem:[%s622 + $0xa0] sm:$0xff]
                  %645 = vst [vmem:[%s623 + $0x50] sm:$0xff] %v644
                  %v646 = vld [vmem:[%s622 + $0xa8] sm:$0xff]
                  %647 = vst [vmem:[%s623 + $0x58] sm:$0xff] %v646
                  %v648 = vld [vmem:[%s622 + $0xc0] sm:$0xff]
                  %649 = vst [vmem:[%s623 + $0x60] sm:$0xff] %v648
                  %v650 = vld [vmem:[%s622 + $0xc8] sm:$0xff]
                  %651 = vst [vmem:[%s623 + $0x68] sm:$0xff] %v650
                  %v652 = vld [vmem:[%s622 + $0xe0] sm:$0xff]
                  %653 = vst [vmem:[%s623 + $0x70] sm:$0xff] %v652
                  %v654 = vld [vmem:[%s622 + $0xe8] sm:$0xff]
                  %655 = vst [vmem:[%s623 + $0x78] sm:$0xff] %v654
                  %v656 = vld [vmem:[%s622 + $0x100] sm:$0xff]
                  %657 = vst [vmem:[%s623 + $0x80] sm:$0xff] %v656
                  %v658 = vld [vmem:[%s622 + $0x108] sm:$0xff]
                  %659 = vst [vmem:[%s623 + $0x88] sm:$0xff] %v658
                  %v660 = vld [vmem:[%s622 + $0x120] sm:$0xff]
                  %661 = vst [vmem:[%s623 + $0x90] sm:$0xff] %v660
                  %v662 = vld [vmem:[%s622 + $0x128] sm:$0xff]
                  %663 = vst [vmem:[%s623 + $0x98] sm:$0xff] %v662
                  %v664 = vld [vmem:[%s622 + $0x140] sm:$0xff]
                  %665 = vst [vmem:[%s623 + $0xa0] sm:$0xff] %v664
                  %v666 = vld [vmem:[%s622 + $0x148] sm:$0xff]
                  %667 = vst [vmem:[%s623 + $0xa8] sm:$0xff] %v666
                  %v668 = vld [vmem:[%s622 + $0x160] sm:$0xff]
                  %669 = vst [vmem:[%s623 + $0xb0] sm:$0xff] %v668
                  %v670 = vld [vmem:[%s622 + $0x168] sm:$0xff]
                  %671 = vst [vmem:[%s623 + $0xb8] sm:$0xff] %v670
                  %v672 = vld [vmem:[%s622 + $0x180] sm:$0xff]
                  %673 = vst [vmem:[%s623 + $0xc0] sm:$0xff] %v672
                  %v674 = vld [vmem:[%s622 + $0x188] sm:$0xff]
                  %675 = vst [vmem:[%s623 + $0xc8] sm:$0xff] %v674
                  %v676 = vld [vmem:[%s622 + $0x1a0] sm:$0xff]
                  %677 = vst [vmem:[%s623 + $0xd0] sm:$0xff] %v676
                  %v678 = vld [vmem:[%s622 + $0x1a8] sm:$0xff]
                  %679 = vst [vmem:[%s623 + $0xd8] sm:$0xff] %v678
                $region112: #{cvae2_forward.1} parent=106 // loop_footer
                  %s621 = sadd.s32 1, %s617
                $region113: #{cvae2_forward.1} parent=106 // loop_footer_branch
                  %616 = sbr.rel target = $region109
                $region114: #{cvae2_forward.1} parent=106 // loop_exit
                  _
              $region107: #{cvae2_forward.1} parent=91 // pred_fallthru
                _
              // Predicated region
              $region115: #{cvae2_forward.1} parent=91 // pred_check
                _
              $region116: #{cvae2_forward.1} parent=91 // pred_check_branch
                %681 = sbr.rel target = $region118
              $region117: #{cvae2_forward.1} parent=91 // pred_region
                _
              $region118: #{cvae2_forward.1} parent=91 // pred_fallthru
                _
            $region92: #{cvae2_forward.1} parent=87 // pred_fallthru
              _
            // Predicated region
            $region93: #{cvae2_forward.1} parent=87 // pred_check
              _
            $region94: #{cvae2_forward.1} parent=87 // pred_check_branch
              %548 = sbr.rel target = $region96
            $region95: #{cvae2_forward.1} parent=87 // pred_region
              loop: start=0, step=1, limit=1
              $region97: #{cvae2_forward.1} parent=95 // loop_pre_header
                _
              $region98: #{cvae2_forward.1} parent=95 // loop_header
                %s551 = sphi 0, %s555
                %p552 = scmp.ge.s32.totalorder %s551, 1
                %s556 = sphi %s542, %s542
                %s557 = sphi %s539, %s539
              $region99: #{cvae2_forward.1} parent=95 // loop_header_branch
                %554 = sbr.rel (%p552) target = $region103
              $region100: #{cvae2_forward.1} parent=95 // loop_body
                %v558 = vld [vmem:[%s556] sm:$0xff]
                %559 = vst [vmem:[%s557] sm:$0xff] %v558
                %v560 = vld [vmem:[%s556 + $0x8] sm:$0xff]
                %561 = vst [vmem:[%s557 + $0x8] sm:$0xff] %v560
                %v562 = vld [vmem:[%s556 + $0x20] sm:$0xff]
                %563 = vst [vmem:[%s557 + $0x10] sm:$0xff] %v562
                %v564 = vld [vmem:[%s556 + $0x28] sm:$0xff]
                %565 = vst [vmem:[%s557 + $0x18] sm:$0xff] %v564
                %v566 = vld [vmem:[%s556 + $0x40] sm:$0xff]
                %567 = vst [vmem:[%s557 + $0x20] sm:$0xff] %v566
                %v568 = vld [vmem:[%s556 + $0x48] sm:$0xff]
                %569 = vst [vmem:[%s557 + $0x28] sm:$0xff] %v568
                %v570 = vld [vmem:[%s556 + $0x60] sm:$0xff]
                %571 = vst [vmem:[%s557 + $0x30] sm:$0xff] %v570
                %v572 = vld [vmem:[%s556 + $0x68] sm:$0xff]
                %573 = vst [vmem:[%s557 + $0x38] sm:$0xff] %v572
                %v574 = vld [vmem:[%s556 + $0x80] sm:$0xff]
                %575 = vst [vmem:[%s557 + $0x40] sm:$0xff] %v574
                %v576 = vld [vmem:[%s556 + $0x88] sm:$0xff]
                %577 = vst [vmem:[%s557 + $0x48] sm:$0xff] %v576
                %v578 = vld [vmem:[%s556 + $0xa0] sm:$0xff]
                %579 = vst [vmem:[%s557 + $0x50] sm:$0xff] %v578
                %v580 = vld [vmem:[%s556 + $0xa8] sm:$0xff]
                %581 = vst [vmem:[%s557 + $0x58] sm:$0xff] %v580
                %v582 = vld [vmem:[%s556 + $0xc0] sm:$0xff]
                %583 = vst [vmem:[%s557 + $0x60] sm:$0xff] %v582
                %v584 = vld [vmem:[%s556 + $0xc8] sm:$0xff]
                %585 = vst [vmem:[%s557 + $0x68] sm:$0xff] %v584
                %v586 = vld [vmem:[%s556 + $0xe0] sm:$0xff]
                %587 = vst [vmem:[%s557 + $0x70] sm:$0xff] %v586
                %v588 = vld [vmem:[%s556 + $0xe8] sm:$0xff]
                %589 = vst [vmem:[%s557 + $0x78] sm:$0xff] %v588
                %v590 = vld [vmem:[%s556 + $0x100] sm:$0xff]
                %591 = vst [vmem:[%s557 + $0x80] sm:$0xff] %v590
                %v592 = vld [vmem:[%s556 + $0x108] sm:$0xff]
                %593 = vst [vmem:[%s557 + $0x88] sm:$0xff] %v592
                %v594 = vld [vmem:[%s556 + $0x120] sm:$0xff]
                %595 = vst [vmem:[%s557 + $0x90] sm:$0xff] %v594
                %v596 = vld [vmem:[%s556 + $0x128] sm:$0xff]
                %597 = vst [vmem:[%s557 + $0x98] sm:$0xff] %v596
                %v598 = vld [vmem:[%s556 + $0x140] sm:$0xff]
                %599 = vst [vmem:[%s557 + $0xa0] sm:$0xff] %v598
                %v600 = vld [vmem:[%s556 + $0x148] sm:$0xff]
                %601 = vst [vmem:[%s557 + $0xa8] sm:$0xff] %v600
                %v602 = vld [vmem:[%s556 + $0x160] sm:$0xff]
                %603 = vst [vmem:[%s557 + $0xb0] sm:$0xff] %v602
                %v604 = vld [vmem:[%s556 + $0x168] sm:$0xff]
                %605 = vst [vmem:[%s557 + $0xb8] sm:$0xff] %v604
                %v606 = vld [vmem:[%s556 + $0x180] sm:$0xff]
                %607 = vst [vmem:[%s557 + $0xc0] sm:$0xff] %v606
                %v608 = vld [vmem:[%s556 + $0x188] sm:$0xff]
                %609 = vst [vmem:[%s557 + $0xc8] sm:$0xff] %v608
                %v610 = vld [vmem:[%s556 + $0x1a0] sm:$0xff]
                %611 = vst [vmem:[%s557 + $0xd0] sm:$0xff] %v610
                %v612 = vld [vmem:[%s556 + $0x1a8] sm:$0xff]
                %613 = vst [vmem:[%s557 + $0xd8] sm:$0xff] %v612
              $region101: #{cvae2_forward.1} parent=95 // loop_footer
                %s555 = sadd.s32 1, %s551
              $region102: #{cvae2_forward.1} parent=95 // loop_footer_branch
                %550 = sbr.rel target = $region98
              $region103: #{cvae2_forward.1} parent=95 // loop_exit
                _
            $region96: #{cvae2_forward.1} parent=87 // pred_fallthru
              _
          $region88: #{cvae2_forward.1} parent=83 // pred_fallthru
            _
          %682 = vnop
        $region84: #{cvae2_forward.1} parent=79 // pred_fallthru
          _
        // Predicated region
        $region119: #{cvae2_forward.1} parent=79 // pred_check
          %p683 = pneg %p72
        $region120: #{cvae2_forward.1} parent=79 // pred_check_branch
          %685 = sbr.rel (%p683) target = $region122
        $region121: #{cvae2_forward.1} parent=79 // pred_region
          %s686 = smul.u32 2, %s26
          %p687 = scmp.lt.s32.totalorder %s686, 3
          %s688 = scalar_select %p687, %s686, 3
          %s689 = smul.addr %s688, 8
          %s690 = scalar_lea.vmem %s1, %s689
          %s691 = smul.u32 2, %s26
        $region122: #{cvae2_forward.1} parent=79 // pred_fallthru
          _
      $region80: #{cvae2_forward.1} parent=5 // pred_fallthru
        _
      %p692 = scmp.le.s32.totalorder 1, %s26
      %p693 = scmp.lt.s32.totalorder %s26, 3
      %p694 = pnand %p692, %p693
      %p695 = pneg %p694
      // Predicated region
      $region123: #{cvae2_forward.1} parent=5 // pred_check
        _
      $region124: #{cvae2_forward.1} parent=5 // pred_check_branch
        %697 = sbr.rel (%p694) target = $region126
      $region125: #{cvae2_forward.1} parent=5 // pred_region
        %s698 = ssub.s32 %s26, 1
        %s699 = sand.u32 %s39, 1
        %s700 = sand.u32 %s39, 1
        %s701 = smul.addr %s700, 224
        %s702 = scalar_lea.vmem [#allocation2], %s701
        // Predicated region
        $region127: #{cvae2_forward.1} parent=125 // pred_check
          %p703 = pneg %p52
        $region128: #{cvae2_forward.1} parent=125 // pred_check_branch
          %705 = sbr.rel (%p703) target = $region130
        $region129: #{cvae2_forward.1} parent=125 // pred_region
          _
        $region130: #{cvae2_forward.1} parent=125 // pred_fallthru
          _
        %s706 = sand.u32 %s39, 1
        %s707 = sand.u32 %s39, 1
        %s708 = smul.addr %s707, 224
        %s709 = scalar_lea.vmem [#allocation2], %s708
        %p710 = pneg %p52
        %p711 = pneg %p49
        %s712 = smul.u32 2, %s31
        %p713 = scmp.lt.s32.totalorder %s712, 3
        %s714 = scalar_select %p713, %s712, 3
        %s715 = smul.addr %s714, 8
        %s716 = scalar_lea.vmem %s1, %s715
        %p717 = pneg %p78
        %p718 = pneg %p75
        %p719 = pneg %p99
        %p720 = pneg %p96
        %p721 = pneg %p120
        %p722 = pneg %p117
        %p723 = pneg %p141
        %p724 = pneg %p138
        %p725 = pneg %p162
        %p726 = pneg %p159
        %p727 = pneg %p183
        %p728 = pneg %p180
        %p729 = pneg %p204
        %p730 = pneg %p201
        %p731 = pneg %p225
        %p732 = pneg %p222
        %p733 = pneg %p246
        %p734 = pneg %p243
        %p735 = pneg %p267
        %p736 = pneg %p264
        %p737 = pneg %p288
        %p738 = pneg %p285
        %p739 = pneg %p309
        %p740 = pneg %p306
        %p741 = pneg %p330
        %p742 = pneg %p327
        %p743 = pneg %p351
        %p744 = pneg %p348
        %p745 = pneg %p372
        %p746 = pneg %p369
        %p747 = pneg %p393
        %p748 = pneg %p390
        %p749 = pneg %p414
        %p750 = pneg %p411
        %p751 = pneg %p440
        %p752 = pneg %p437
        %s753 = sand.u32 %s427, 1
        %s754 = sand.u32 %s427, 1
        %s755 = smul.addr %s754, 448
        %s756 = scalar_lea.vmem [#allocation3], %s755
        %p757 = pneg %p466
        %p758 = pneg %p463
        %s759 = smul.u32 2, %s31
        %p760 = scmp.lt.s32.totalorder %s759, 3
        %s761 = scalar_select %p760, %s759, 3
        %s762 = smul.addr %s761, 8
        %s763 = scalar_lea.vmem %s19, %s762
        %s764 = smul.u32 2, %s31
        %s765 = smul.u32 2, %s31
        %p766 = scmp.lt.s32.totalorder %s765, 3
        %s767 = scalar_select %p766, %s765, 3
        %s768 = smul.addr %s767, 8
        %s769 = scalar_lea.vmem %s1, %s768
        %s770 = smul.u32 2, %s31
        %s771 = smul.u32 2, %s31
        %s772 = smul.u32 2, %s31
        %p773 = scmp.lt.s32.totalorder %s772, 3
        %s774 = scalar_select %p773, %s772, 3
        %s775 = smul.addr %s774, 8
        %s776 = scalar_lea.vmem %s19, %s775
        %s777 = smul.u32 2, %s31
        %v779 = vld [vmem:[%s702] sm:$0xff]
        %v780 = vld [vmem:[%s702 + $0x8] sm:$0xff]
        %v781 = vld [vmem:[%s702 + $0x10] sm:$0xff]
        %v782 = vld [vmem:[%s702 + $0x18] sm:$0xff]
        %v783 = vld [vmem:[%s702 + $0x20] sm:$0xff]
        %v784 = vld [vmem:[%s702 + $0x28] sm:$0xff]
        %v785 = vld [vmem:[%s702 + $0x30] sm:$0xff]
        %v786 = vld [vmem:[%s702 + $0x38] sm:$0xff]
        %v787 = vld [vmem:[%s702 + $0x40] sm:$0xff]
        %v788 = vld [vmem:[%s702 + $0x48] sm:$0xff]
        %v789 = vld [vmem:[%s702 + $0x50] sm:$0xff]
        %v790 = vld [vmem:[%s702 + $0x58] sm:$0xff]
        %v791 = vld [vmem:[%s702 + $0x60] sm:$0xff]
        %v792 = vld [vmem:[%s702 + $0x68] sm:$0xff]
        %v793 = vld [vmem:[%s702 + $0x70] sm:$0xff]
        %v794 = vld [vmem:[%s702 + $0x78] sm:$0xff]
        %v795 = vld [vmem:[%s702 + $0x80] sm:$0xff]
        %v796 = vld [vmem:[%s702 + $0x88] sm:$0xff]
        %v797 = vld [vmem:[%s702 + $0x90] sm:$0xff]
        %v798 = vld [vmem:[%s702 + $0x98] sm:$0xff]
        %v799 = vld [vmem:[%s702 + $0xa0] sm:$0xff]
        %v800 = vld [vmem:[%s702 + $0xa8] sm:$0xff]
        %v801 = vld [vmem:[%s702 + $0xb0] sm:$0xff]
        %v802 = vld [vmem:[%s702 + $0xb8] sm:$0xff]
        %v803 = vld [vmem:[%s702 + $0xc0] sm:$0xff]
        %v804 = vld [vmem:[%s702 + $0xc8] sm:$0xff]
        %v805 = vld [vmem:[%s702 + $0xd0] sm:$0xff]
        %v806 = vld [vmem:[%s702 + $0xd8] sm:$0xff]
        %v807 = vpack.c.bf16 %v780, %v779
        %v808 = vpack.c.bf16 %v782, %v781
        %v809 = vpack.c.bf16 %v784, %v783
        %v810 = vpack.c.bf16 %v786, %v785
        %v811 = vpack.c.bf16 %v788, %v787
        %v812 = vpack.c.bf16 %v790, %v789
        %v813 = vpack.c.bf16 %v792, %v791
        %v814 = vpack.c.bf16 %v794, %v793
        %v815 = vpack.c.bf16 %v796, %v795
        %v816 = vpack.c.bf16 %v798, %v797
        %v817 = vpack.c.bf16 %v800, %v799
        %v818 = vpack.c.bf16 %v802, %v801
        %v819 = vpack.c.bf16 %v804, %v803
        %v820 = vpack.c.bf16 %v806, %v805
        %v821 = vld [vmem:[%s2] sm:$0xff]
        %v822 = vld [vmem:[%s2 + $0x8] sm:$0xf]
        %v823 = vld [vmem:[%s2 + $0xc] sm:$0xff]
        %v824 = vld [vmem:[%s2 + $0x14] sm:$0xf]
        %v825 = vld [vmem:[%s2 + $0x18] sm:$0xff]
        %v826 = vld [vmem:[%s2 + $0x20] sm:$0xf]
        %v827 = vld [vmem:[%s2 + $0x24] sm:$0xff]
        %v828 = vld [vmem:[%s2 + $0x2c] sm:$0xf]
        %v829 = vld [vmem:[%s2 + $0x30] sm:$0xff]
        %v830 = vld [vmem:[%s2 + $0x38] sm:$0xf]
        %v831 = vld [vmem:[%s2 + $0x3c] sm:$0xff]
        %v832 = vld [vmem:[%s2 + $0x44] sm:$0xf]
        %v833 = vld [vmem:[%s2 + $0x48] sm:$0xff]
        %v834 = vld [vmem:[%s2 + $0x50] sm:$0xf]
        %v835 = vld [vmem:[%s2 + $0x54] sm:$0xff]
        %v836 = vld [vmem:[%s2 + $0x5c] sm:$0xf]
        %v837 = vld [vmem:[%s2 + $0x60] sm:$0xff]
        %v838 = vld [vmem:[%s2 + $0x68] sm:$0xf]
        %v839 = vld [vmem:[%s2 + $0x6c] sm:$0xff]
        %v840 = vld [vmem:[%s2 + $0x74] sm:$0xf]
        %v841 = vld [vmem:[%s2 + $0x78] sm:$0xff]
        %v842 = vld [vmem:[%s2 + $0x80] sm:$0xf]
        %v843 = vld [vmem:[%s2 + $0x84] sm:$0xff]
        %v844 = vld [vmem:[%s2 + $0x8c] sm:$0xf]
        %v845 = vld [vmem:[%s2 + $0x90] sm:$0xff]
        %v846 = vld [vmem:[%s2 + $0x98] sm:$0xf]
        %v847 = vld [vmem:[%s2 + $0x9c] sm:$0xff]
        %v848 = vld [vmem:[%s2 + $0xa4] sm:$0xf]
        %v849 = vld [vmem:[%s2 + $0xa8] sm:$0xff]
        %v850 = vld [vmem:[%s2 + $0xb0] sm:$0xf]
        %v851 = vld [vmem:[%s2 + $0xb4] sm:$0xff]
        %v852 = vld [vmem:[%s2 + $0xbc] sm:$0xf]
        %v853 = vld [vmem:[%s2 + $0xc0] sm:$0xff]
        %v854 = vld [vmem:[%s2 + $0xc8] sm:$0xf]
        %v855 = vld [vmem:[%s2 + $0xcc] sm:$0xff]
        %v856 = vld [vmem:[%s2 + $0xd4] sm:$0xf]
        %v857 = vld [vmem:[%s2 + $0xd8] sm:$0xff]
        %v858 = vld [vmem:[%s2 + $0xe0] sm:$0xf]
        %v859 = vld [vmem:[%s2 + $0xe4] sm:$0xff]
        %v860 = vld [vmem:[%s2 + $0xec] sm:$0xf]
        %v861 = vld [vmem:[%s2 + $0xf0] sm:$0xff]
        %v862 = vld [vmem:[%s2 + $0xf8] sm:$0xf]
        %v863 = vld [vmem:[%s2 + $0xfc] sm:$0xff]
        %v864 = vld [vmem:[%s2 + $0x104] sm:$0xf]
        %v865 = vld [vmem:[%s2 + $0x108] sm:$0xff]
        %v866 = vld [vmem:[%s2 + $0x110] sm:$0xf]
        %v867 = vld [vmem:[%s2 + $0x114] sm:$0xff]
        %v868 = vld [vmem:[%s2 + $0x11c] sm:$0xf]
        %v869 = vld [vmem:[%s2 + $0x120] sm:$0xff]
        %v870 = vld [vmem:[%s2 + $0x128] sm:$0xf]
        %v871 = vld [vmem:[%s2 + $0x12c] sm:$0xff]
        %v872 = vld [vmem:[%s2 + $0x134] sm:$0xf]
        %v873 = vld [vmem:[%s2 + $0x138] sm:$0xff]
        %v874 = vld [vmem:[%s2 + $0x140] sm:$0xf]
        %v875 = vld [vmem:[%s2 + $0x144] sm:$0xff]
        %v876 = vld [vmem:[%s2 + $0x14c] sm:$0xf]
        %v877 = vld [vmem:[%s2 + $0x150] sm:$0xff]
        %v878 = vld [vmem:[%s2 + $0x158] sm:$0xf]
        %v879 = vld [vmem:[%s2 + $0x15c] sm:$0xff]
        %v880 = vld [vmem:[%s2 + $0x164] sm:$0xf]
        %v881 = vld [vmem:[%s2 + $0x168] sm:$0xff]
        %v882 = vld [vmem:[%s2 + $0x170] sm:$0xf]
        %v883 = vld [vmem:[%s2 + $0x174] sm:$0xff]
        %v884 = vld [vmem:[%s2 + $0x17c] sm:$0xf]
        %v885 = vld [vmem:[%s2 + $0x180] sm:$0xff]
        %v886 = vld [vmem:[%s2 + $0x188] sm:$0xf]
        %v887 = vld [vmem:[%s2 + $0x18c] sm:$0xff]
        %v888 = vld [vmem:[%s2 + $0x194] sm:$0xf]
        %v889 = vld [vmem:[%s2 + $0x198] sm:$0xff]
        %v890 = vld [vmem:[%s2 + $0x1a0] sm:$0xf]
        %v891 = vld [vmem:[%s2 + $0x1a4] sm:$0xff]
        %v892 = vld [vmem:[%s2 + $0x1ac] sm:$0xf]
        %v893 = vld [vmem:[%s2 + $0x1b0] sm:$0xff]
        %v894 = vld [vmem:[%s2 + $0x1b8] sm:$0xf]
        %v895 = vld [vmem:[%s2 + $0x1bc] sm:$0xff]
        %v896 = vld [vmem:[%s2 + $0x1c4] sm:$0xf]
        %v897 = vld [vmem:[%s2 + $0x1c8] sm:$0xff]
        %v898 = vld [vmem:[%s2 + $0x1d0] sm:$0xf]
        %v899 = vld [vmem:[%s2 + $0x1d4] sm:$0xff]
        %v900 = vld [vmem:[%s2 + $0x1dc] sm:$0xf]
        %v901 = vld [vmem:[%s2 + $0x1e0] sm:$0xff]
        %v902 = vld [vmem:[%s2 + $0x1e8] sm:$0xf]
        %v903 = vld [vmem:[%s2 + $0x1ec] sm:$0xff]
        %v904 = vld [vmem:[%s2 + $0x1f4] sm:$0xf]
        %v905 = vld [vmem:[%s2 + $0x1f8] sm:$0xff]
        %v906 = vld [vmem:[%s2 + $0x200] sm:$0xf]
        %v907 = vld [vmem:[%s2 + $0x204] sm:$0xff]
        %v908 = vld [vmem:[%s2 + $0x20c] sm:$0xf]
        %v909 = vld [vmem:[%s2 + $0x210] sm:$0xff]
        %v910 = vld [vmem:[%s2 + $0x218] sm:$0xf]
        %v911 = vld [vmem:[%s2 + $0x21c] sm:$0xff]
        %v912 = vld [vmem:[%s2 + $0x224] sm:$0xf]
        %v913 = vld [vmem:[%s2 + $0x228] sm:$0xff]
        %v914 = vld [vmem:[%s2 + $0x230] sm:$0xf]
        %v915 = vld [vmem:[%s2 + $0x234] sm:$0xff]
        %v916 = vld [vmem:[%s2 + $0x23c] sm:$0xf]
        %v917 = vld [vmem:[%s3] sm:$0x7]
        %v919 = vlaneseq
        %v920 = vshrl.u32 %v919, 7
        %v921 = vsub.s32 0, %v920
        %v922 = vrot.slane %v917, %v921
        %v923 = vlaneseq
        %v924 = vshrl.u32 %v923, 7
        %v925 = vsub.s32 1, %v924
        %v926 = vrot.slane %v917, %v925
        %v927 = vlaneseq
        %v928 = vshrl.u32 %v927, 7
        %v929 = vsub.s32 2, %v928
        %v930 = vrot.slane %v917, %v929
        %v1030 = vunpack.c.l.b16 %v821
        %v1031 = vunpack.c.h.b16 %v821
        %v1032 = vunpack.c.l.b16 %v822
        %v1033 = vunpack.c.l.b16 %v823
        %v1034 = vunpack.c.h.b16 %v823
        %v1035 = vunpack.c.l.b16 %v824
        %v1036 = vunpack.c.l.b16 %v825
        %v1037 = vunpack.c.h.b16 %v825
        %v1038 = vunpack.c.l.b16 %v826
        %v1039 = vunpack.c.l.b16 %v827
        %v1040 = vunpack.c.h.b16 %v827
        %v1041 = vunpack.c.l.b16 %v828
        %v1042 = vunpack.c.l.b16 %v829
        %v1043 = vunpack.c.h.b16 %v829
        %v1044 = vunpack.c.l.b16 %v830
        %v1045 = vunpack.c.l.b16 %v831
        %v1046 = vunpack.c.h.b16 %v831
        %v1047 = vunpack.c.l.b16 %v832
        %v1048 = vunpack.c.l.b16 %v833
        %v1049 = vunpack.c.h.b16 %v833
        %v1050 = vunpack.c.l.b16 %v834
        %v1051 = vunpack.c.l.b16 %v835
        %v1052 = vunpack.c.h.b16 %v835
        %v1053 = vunpack.c.l.b16 %v836
        %v1054 = vunpack.c.l.b16 %v837
        %v1055 = vunpack.c.h.b16 %v837
        %v1056 = vunpack.c.l.b16 %v838
        %v1057 = vunpack.c.l.b16 %v839
        %v1058 = vunpack.c.h.b16 %v839
        %v1059 = vunpack.c.l.b16 %v840
        %v1060 = vunpack.c.l.b16 %v841
        %v1061 = vunpack.c.h.b16 %v841
        %v1062 = vunpack.c.l.b16 %v842
        %v1063 = vunpack.c.l.b16 %v843
        %v1064 = vunpack.c.h.b16 %v843
        %v1065 = vunpack.c.l.b16 %v844
        %v1066 = vunpack.c.l.b16 %v845
        %v1067 = vunpack.c.h.b16 %v845
        %v1068 = vunpack.c.l.b16 %v846
        %v1069 = vunpack.c.l.b16 %v847
        %v1070 = vunpack.c.h.b16 %v847
        %v1071 = vunpack.c.l.b16 %v848
        %v1072 = vunpack.c.l.b16 %v849
        %v1073 = vunpack.c.h.b16 %v849
        %v1074 = vunpack.c.l.b16 %v850
        %v1075 = vunpack.c.l.b16 %v851
        %v1076 = vunpack.c.h.b16 %v851
        %v1077 = vunpack.c.l.b16 %v852
        %v1078 = vunpack.c.l.b16 %v853
        %v1079 = vunpack.c.h.b16 %v853
        %v1080 = vunpack.c.l.b16 %v854
        %v1081 = vunpack.c.l.b16 %v855
        %v1082 = vunpack.c.h.b16 %v855
        %v1083 = vunpack.c.l.b16 %v856
        %v1084 = vunpack.c.l.b16 %v857
        %v1085 = vunpack.c.h.b16 %v857
        %v1086 = vunpack.c.l.b16 %v858
        %v1087 = vunpack.c.l.b16 %v859
        %v1088 = vunpack.c.h.b16 %v859
        %v1089 = vunpack.c.l.b16 %v860
        %v1090 = vunpack.c.l.b16 %v861
        %v1091 = vunpack.c.h.b16 %v861
        %v1092 = vunpack.c.l.b16 %v862
        %v1093 = vunpack.c.l.b16 %v863
        %v1094 = vunpack.c.h.b16 %v863
        %v1095 = vunpack.c.l.b16 %v864
        %v1096 = vunpack.c.l.b16 %v865
        %v1097 = vunpack.c.h.b16 %v865
        %v1098 = vunpack.c.l.b16 %v866
        %v1099 = vunpack.c.l.b16 %v867
        %v1100 = vunpack.c.h.b16 %v867
        %v1101 = vunpack.c.l.b16 %v868
        %v1102 = vunpack.c.l.b16 %v869
        %v1103 = vunpack.c.h.b16 %v869
        %v1104 = vunpack.c.l.b16 %v870
        %v1105 = vunpack.c.l.b16 %v871
        %v1106 = vunpack.c.h.b16 %v871
        %v1107 = vunpack.c.l.b16 %v872
        %v1108 = vunpack.c.l.b16 %v873
        %v1109 = vunpack.c.h.b16 %v873
        %v1110 = vunpack.c.l.b16 %v874
        %v1111 = vunpack.c.l.b16 %v875
        %v1112 = vunpack.c.h.b16 %v875
        %v1113 = vunpack.c.l.b16 %v876
        %v1114 = vunpack.c.l.b16 %v877
        %v1115 = vunpack.c.h.b16 %v877
        %v1116 = vunpack.c.l.b16 %v878
        %v1117 = vunpack.c.l.b16 %v879
        %v1118 = vunpack.c.h.b16 %v879
        %v1119 = vunpack.c.l.b16 %v880
        %v1120 = vunpack.c.l.b16 %v881
        %v1121 = vunpack.c.h.b16 %v881
        %v1122 = vunpack.c.l.b16 %v882
        %v1123 = vunpack.c.l.b16 %v883
        %v1124 = vunpack.c.h.b16 %v883
        %v1125 = vunpack.c.l.b16 %v884
        %v1126 = vunpack.c.l.b16 %v885
        %v1127 = vunpack.c.h.b16 %v885
        %v1128 = vunpack.c.l.b16 %v886
        %v1129 = vunpack.c.l.b16 %v887
        %v1130 = vunpack.c.h.b16 %v887
        %v1131 = vunpack.c.l.b16 %v888
        %v1132 = vunpack.c.l.b16 %v889
        %v1133 = vunpack.c.h.b16 %v889
        %v1134 = vunpack.c.l.b16 %v890
        %v1135 = vunpack.c.l.b16 %v891
        %v1136 = vunpack.c.h.b16 %v891
        %v1137 = vunpack.c.l.b16 %v892
        %v1138 = vunpack.c.l.b16 %v893
        %v1139 = vunpack.c.h.b16 %v893
        %v1140 = vunpack.c.l.b16 %v894
        %v1141 = vunpack.c.l.b16 %v895
        %v1142 = vunpack.c.h.b16 %v895
        %v1143 = vunpack.c.l.b16 %v896
        %v1144 = vunpack.c.l.b16 %v897
        %v1145 = vunpack.c.h.b16 %v897
        %v1146 = vunpack.c.l.b16 %v898
        %v1147 = vunpack.c.l.b16 %v899
        %v1148 = vunpack.c.h.b16 %v899
        %v1149 = vunpack.c.l.b16 %v900
        %v1150 = vunpack.c.l.b16 %v901
        %v1151 = vunpack.c.h.b16 %v901
        %v1152 = vunpack.c.l.b16 %v902
        %v1153 = vunpack.c.l.b16 %v903
        %v1154 = vunpack.c.h.b16 %v903
        %v1155 = vunpack.c.l.b16 %v904
        %v1156 = vunpack.c.l.b16 %v905
        %v1157 = vunpack.c.h.b16 %v905
        %v1158 = vunpack.c.l.b16 %v906
        %v1159 = vunpack.c.l.b16 %v907
        %v1160 = vunpack.c.h.b16 %v907
        %v1161 = vunpack.c.l.b16 %v908
        %v1162 = vunpack.c.l.b16 %v909
        %v1163 = vunpack.c.h.b16 %v909
        %v1164 = vunpack.c.l.b16 %v910
        %v1165 = vunpack.c.l.b16 %v911
        %v1166 = vunpack.c.h.b16 %v911
        %v1167 = vunpack.c.l.b16 %v912
        %v1168 = vunpack.c.l.b16 %v913
        %v1169 = vunpack.c.h.b16 %v913
        %v1170 = vunpack.c.l.b16 %v914
        %v1171 = vunpack.c.l.b16 %v915
        %v1172 = vunpack.c.h.b16 %v915
        %v1173 = vunpack.c.l.b16 %v916
        %v1174 = vpack.c.b16 %v1033, %v1030
        %v1175 = vpack.c.b16 %v1034, %v1031
        %v1176 = vpack.c.b16 %v1035, %v1032
        %v1177 = vpack.c.b16 %v1039, %v1036
        %v1178 = vpack.c.b16 %v1040, %v1037
        %v1179 = vpack.c.b16 %v1041, %v1038
        %v1180 = vpack.c.b16 %v1045, %v1042
        %v1181 = vpack.c.b16 %v1046, %v1043
        %v1182 = vpack.c.b16 %v1047, %v1044
        %v1183 = vpack.c.b16 %v1051, %v1048
        %v1184 = vpack.c.b16 %v1052, %v1049
        %v1185 = vpack.c.b16 %v1053, %v1050
        %v1186 = vpack.c.b16 %v1057, %v1054
        %v1187 = vpack.c.b16 %v1058, %v1055
        %v1188 = vpack.c.b16 %v1059, %v1056
        %v1189 = vpack.c.b16 %v1063, %v1060
        %v1190 = vpack.c.b16 %v1064, %v1061
        %v1191 = vpack.c.b16 %v1065, %v1062
        %v1192 = vpack.c.b16 %v1069, %v1066
        %v1193 = vpack.c.b16 %v1070, %v1067
        %v1194 = vpack.c.b16 %v1071, %v1068
        %v1195 = vpack.c.b16 %v1075, %v1072
        %v1196 = vpack.c.b16 %v1076, %v1073
        %v1197 = vpack.c.b16 %v1077, %v1074
        %v1198 = vpack.c.b16 %v1081, %v1078
        %v1199 = vpack.c.b16 %v1082, %v1079
        %v1200 = vpack.c.b16 %v1083, %v1080
        %v1201 = vpack.c.b16 %v1087, %v1084
        %v1202 = vpack.c.b16 %v1088, %v1085
        %v1203 = vpack.c.b16 %v1089, %v1086
        %v1204 = vpack.c.b16 %v1093, %v1090
        %v1205 = vpack.c.b16 %v1094, %v1091
        %v1206 = vpack.c.b16 %v1095, %v1092
        %v1207 = vpack.c.b16 %v1099, %v1096
        %v1208 = vpack.c.b16 %v1100, %v1097
        %v1209 = vpack.c.b16 %v1101, %v1098
        %v1210 = vpack.c.b16 %v1105, %v1102
        %v1211 = vpack.c.b16 %v1106, %v1103
        %v1212 = vpack.c.b16 %v1107, %v1104
        %v1213 = vpack.c.b16 %v1111, %v1108
        %v1214 = vpack.c.b16 %v1112, %v1109
        %v1215 = vpack.c.b16 %v1113, %v1110
        %v1216 = vpack.c.b16 %v1117, %v1114
        %v1217 = vpack.c.b16 %v1118, %v1115
        %v1218 = vpack.c.b16 %v1119, %v1116
        %v1219 = vpack.c.b16 %v1123, %v1120
        %v1220 = vpack.c.b16 %v1124, %v1121
        %v1221 = vpack.c.b16 %v1125, %v1122
        %v1222 = vpack.c.b16 %v1129, %v1126
        %v1223 = vpack.c.b16 %v1130, %v1127
        %v1224 = vpack.c.b16 %v1131, %v1128
        %v1225 = vpack.c.b16 %v1135, %v1132
        %v1226 = vpack.c.b16 %v1136, %v1133
        %v1227 = vpack.c.b16 %v1137, %v1134
        %v1228 = vpack.c.b16 %v1141, %v1138
        %v1229 = vpack.c.b16 %v1142, %v1139
        %v1230 = vpack.c.b16 %v1143, %v1140
        %v1231 = vpack.c.b16 %v1147, %v1144
        %v1232 = vpack.c.b16 %v1148, %v1145
        %v1233 = vpack.c.b16 %v1149, %v1146
        %v1234 = vpack.c.b16 %v1153, %v1150
        %v1235 = vpack.c.b16 %v1154, %v1151
        %v1236 = vpack.c.b16 %v1155, %v1152
        %v1237 = vpack.c.b16 %v1159, %v1156
        %v1238 = vpack.c.b16 %v1160, %v1157
        %v1239 = vpack.c.b16 %v1161, %v1158
        %v1240 = vpack.c.b16 %v1165, %v1162
        %v1241 = vpack.c.b16 %v1166, %v1163
        %v1242 = vpack.c.b16 %v1167, %v1164
        %v1243 = vpack.c.b16 %v1171, %v1168
        %v1244 = vpack.c.b16 %v1172, %v1169
        %v1245 = vpack.c.b16 %v1173, %v1170
        %1318 = vmatprep.subr.bf16.mxu0 %v1175
        %1319 = vmatpush1.bf16.msra.mxu0 %v1174
        %1320 = vmatprep.subr.bf16.mxu0 %v1178
        %1321 = vmatpush1.bf16.msra.mxu0 %v1177
        %1322 = vmatprep.subr.bf16.mxu0 %v1181
        %1323 = vmatpush1.bf16.msra.mxu0 %v1180
        %1324 = vmatprep.subr.bf16.mxu0 %v1184
        %1325 = vmatpush1.bf16.msra.mxu0 %v1183
        %1326 = vmatprep.subr.bf16.mxu0 %v1187
        %1327 = vmatpush1.bf16.msra.mxu0 %v1186
        %1328 = vmatprep.subr.bf16.mxu0 %v1190
        %1329 = vmatpush1.bf16.msra.mxu0 %v1189
        %1330 = vmatprep.subr.bf16.mxu0 %v1193
        %1331 = vmatpush1.bf16.msra.mxu0 %v1192
        %1332 = vmatprep.subr.bf16.mxu0 %v1196
        %1333 = vmatpush1.bf16.msra.mxu0 %v1195
        %1334 = vmatprep.subr.bf16.mxu0 %v1199
        %1335 = vmatpush1.bf16.msra.mxu0 %v1198
        %1336 = vmatprep.subr.bf16.mxu0 %v1202
        %1337 = vmatpush1.bf16.msra.mxu0 %v1201
        %1338 = vmatprep.subr.bf16.mxu0 %v1205
        %1339 = vmatpush1.bf16.msra.mxu0 %v1204
        %1340 = vmatprep.subr.bf16.mxu0 %v1208
        %1341 = vmatpush1.bf16.msra.mxu0 %v1207
        %1342 = vmatprep.subr.bf16.mxu0 %v1211
        %1343 = vmatpush1.bf16.msra.mxu0 %v1210
        %1344 = vmatprep.subr.bf16.mxu0 %v1214
        %1345 = vmatpush1.bf16.msra.mxu0 %v1213
        %1346 = vmatprep.subr.bf16.mxu0 %v1217
        %1347 = vmatpush1.bf16.msra.mxu0 %v1216
        %1348 = vmatprep.subr.bf16.mxu0 %v1220
        %1349 = vmatpush1.bf16.msra.mxu0 %v1219
        %1350 = vmatprep.mubr.bf16.mxu0 %v808
        %1351 = vmatmul.mubr.bf16.gmra.mrb[0].mxu0 %v807
        %v1352 = vpop.f32.mrb[0].mxu0
        %v1353 = vadd.f32 %v922, %v1352
        %v1354 = vpop.f32.mrb[0].mxu0
        %v1355 = vadd.f32 %v926, %v1354
        %v1356 = vpop.f32.mrb[0].mxu0
        %v1357 = vadd.f32 %v922, %v1356
        %v1358 = vpop.f32.mrb[0].mxu0
        %v1359 = vadd.f32 %v926, %v1358
        %1360 = vmatprep.mubr.bf16.mxu0 %v809
        %1361 = vmatmul.mubr.bf16.gmra.mrb[0].mxu0 %v808
        %v1362 = vpop.f32.mrb[0].mxu0
        %v1363 = vadd.f32 %v922, %v1362
        %v1364 = vpop.f32.mrb[0].mxu0
        %v1365 = vadd.f32 %v926, %v1364
        %v1366 = vpop.f32.mrb[0].mxu0
        %v1367 = vadd.f32 %v922, %v1366
        %v1368 = vpop.f32.mrb[0].mxu0
        %v1369 = vadd.f32 %v926, %v1368
        %1370 = vmatprep.mubr.bf16.mxu0 %v810
        %1371 = vmatmul.mubr.bf16.gmra.mrb[0].mxu0 %v809
        %v1372 = vpop.f32.mrb[0].mxu0
        %v1373 = vadd.f32 %v922, %v1372
        %v1374 = vpop.f32.mrb[0].mxu0
        %v1375 = vadd.f32 %v926, %v1374
        %v1376 = vpop.f32.mrb[0].mxu0
        %v1377 = vadd.f32 %v922, %v1376
        %v1378 = vpop.f32.mrb[0].mxu0
        %v1379 = vadd.f32 %v926, %v1378
        %1380 = vmatprep.mubr.bf16.mxu0 %v811
        %1381 = vmatmul.mubr.bf16.gmra.mrb[0].mxu0 %v810
        %v1382 = vpop.f32.mrb[0].mxu0
        %v1383 = vadd.f32 %v922, %v1382
        %v1384 = vpop.f32.mrb[0].mxu0
        %v1385 = vadd.f32 %v926, %v1384
        %v1386 = vpop.f32.mrb[0].mxu0
        %v1387 = vadd.f32 %v922, %v1386
        %v1388 = vpop.f32.mrb[0].mxu0
        %v1389 = vadd.f32 %v926, %v1388
        %1390 = vmatprep.mubr.bf16.mxu0 %v812
        %1391 = vmatmul.mubr.bf16.gmra.mrb[0].mxu0 %v811
        %v1392 = vpop.f32.mrb[0].mxu0
        %v1393 = vadd.f32 %v922, %v1392
        %v1394 = vpop.f32.mrb[0].mxu0
        %v1395 = vadd.f32 %v926, %v1394
        %v1396 = vpop.f32.mrb[0].mxu0
        %v1397 = vadd.f32 %v922, %v1396
        %v1398 = vpop.f32.mrb[0].mxu0
        %v1399 = vadd.f32 %v926, %v1398
        %1400 = vmatprep.mubr.bf16.mxu0 %v813
        %1401 = vmatmul.mubr.bf16.gmra.mrb[0].mxu0 %v812
        %v1402 = vpop.f32.mrb[0].mxu0
        %v1403 = vadd.f32 %v922, %v1402
        %v1404 = vpop.f32.mrb[0].mxu0
        %v1405 = vadd.f32 %v926, %v1404
        %v1406 = vpop.f32.mrb[0].mxu0
        %v1407 = vadd.f32 %v922, %v1406
        %v1408 = vpop.f32.mrb[0].mxu0
        %v1409 = vadd.f32 %v926, %v1408
        %1410 = vmatprep.mubr.bf16.mxu0 %v814
        %1411 = vmatmul.mubr.bf16.gmra.mrb[0].mxu0 %v813
        %v1412 = vpop.f32.mrb[0].mxu0
        %v1413 = vadd.f32 %v922, %v1412
        %v1414 = vpop.f32.mrb[0].mxu0
        %v1415 = vadd.f32 %v926, %v1414
        %v1416 = vpop.f32.mrb[0].mxu0
        %v1417 = vadd.f32 %v922, %v1416
        %v1418 = vpop.f32.mrb[0].mxu0
        %v1419 = vadd.f32 %v926, %v1418
        %1420 = vmatprep.mubr.bf16.mxu0 %v815
        %1421 = vmatmul.mubr.bf16.gmra.mrb[0].mxu0 %v814
        %v1422 = vpop.f32.mrb[0].mxu0
        %v1423 = vadd.f32 %v922, %v1422
        %v1424 = vpop.f32.mrb[0].mxu0
        %v1425 = vadd.f32 %v926, %v1424
        %v1426 = vpop.f32.mrb[0].mxu0
        %v1427 = vadd.f32 %v922, %v1426
        %v1428 = vpop.f32.mrb[0].mxu0
        %v1429 = vadd.f32 %v926, %v1428
        %1430 = vmatprep.mubr.bf16.mxu0 %v816
        %1431 = vmatmul.mubr.bf16.gmra.mrb[0].mxu0 %v815
        %v1432 = vpop.f32.mrb[0].mxu0
        %v1433 = vadd.f32 %v922, %v1432
        %v1434 = vpop.f32.mrb[0].mxu0
        %v1435 = vadd.f32 %v926, %v1434
        %v1436 = vpop.f32.mrb[0].mxu0
        %v1437 = vadd.f32 %v922, %v1436
        %v1438 = vpop.f32.mrb[0].mxu0
        %v1439 = vadd.f32 %v926, %v1438
        %1440 = vmatprep.mubr.bf16.mxu0 %v817
        %1441 = vmatmul.mubr.bf16.gmra.mrb[0].mxu0 %v816
        %v1442 = vpop.f32.mrb[0].mxu0
        %v1443 = vadd.f32 %v922, %v1442
        %v1444 = vpop.f32.mrb[0].mxu0
        %v1445 = vadd.f32 %v926, %v1444
        %v1446 = vpop.f32.mrb[0].mxu0
        %v1447 = vadd.f32 %v922, %v1446
        %v1448 = vpop.f32.mrb[0].mxu0
        %v1449 = vadd.f32 %v926, %v1448
        %1450 = vmatprep.mubr.bf16.mxu0 %v818
        %1451 = vmatmul.mubr.bf16.gmra.mrb[0].mxu0 %v817
        %v1452 = vpop.f32.mrb[0].mxu0
        %v1453 = vadd.f32 %v922, %v1452
        %v1454 = vpop.f32.mrb[0].mxu0
        %v1455 = vadd.f32 %v926, %v1454
        %v1456 = vpop.f32.mrb[0].mxu0
        %v1457 = vadd.f32 %v922, %v1456
        %v1458 = vpop.f32.mrb[0].mxu0
        %v1459 = vadd.f32 %v926, %v1458
        %1460 = vmatprep.mubr.bf16.mxu0 %v819
        %1461 = vmatmul.mubr.bf16.gmra.mrb[0].mxu0 %v818
        %v1462 = vpop.f32.mrb[0].mxu0
        %v1463 = vpop.f32.mrb[0].mxu0
        %v1464 = vpop.f32.mrb[0].mxu0
        %v1465 = vpop.f32.mrb[0].mxu0
        %1466 = vdwg.mxu0
        %1467 = vmatprep.subr.bf16.mxu0 %v1223
        %1468 = vmatpush1.bf16.msra.mxu0 %v1222
        %1469 = vmatprep.subr.bf16.mxu0 %v1226
        %1470 = vmatpush1.bf16.msra.mxu0 %v1225
        %1471 = vmatprep.subr.bf16.mxu0 %v1229
        %1472 = vmatpush1.bf16.msra.mxu0 %v1228
        %1473 = vmatprep.subr.bf16.mxu0 %v1232
        %1474 = vmatpush1.bf16.msra.mxu0 %v1231
        %1475 = vmatprep.subr.bf16.mxu0 %v1235
        %1476 = vmatpush1.bf16.msra.mxu0 %v1234
        %1477 = vmatprep.subr.bf16.mxu0 %v1238
        %1478 = vmatpush1.bf16.msra.mxu0 %v1237
        %1479 = vmatprep.subr.bf16.mxu0 %v1241
        %1480 = vmatpush1.bf16.msra.mxu0 %v1240
        %1481 = vmatprep.subr.bf16.mxu0 %v1244
        %1482 = vmatpush1.bf16.msra.mxu0 %v1243
        %1483 = vmatprep.subr.bf16.mxu0 0
        %1484 = vmatpush1.bf16.msra.mxu0 0
        %1485 = vmatprep.subr.bf16.mxu0 0
        %1486 = vmatpush1.bf16.msra.mxu0 0
        %1487 = vmatprep.subr.bf16.mxu0 0
        %1488 = vmatpush1.bf16.msra.mxu0 0
        %1489 = vmatprep.subr.bf16.mxu0 0
        %1490 = vmatpush1.bf16.msra.mxu0 0
        %1491 = vmatprep.subr.bf16.mxu0 0
        %1492 = vmatpush1.bf16.msra.mxu0 0
        %1493 = vmatprep.subr.bf16.mxu0 0
        %1494 = vmatpush1.bf16.msra.mxu0 0
        %1495 = vmatprep.subr.bf16.mxu0 0
        %1496 = vmatpush1.bf16.msra.mxu0 0
        %1497 = vmatprep.subr.bf16.mxu0 0
        %1498 = vmatpush1.bf16.msra.mxu0 0
        %1499 = vmatprep.mubr.bf16.mxu0 0
        %1500 = vmatmul.mubr.bf16.gmra.mrb[0].mxu0 %v809
        %v1501 = vpop.f32.mrb[0].mxu0
        %v1502 = vadd.f32 %v1353, %v1501
        %v1503 = vpop.f32.mrb[0].mxu0
        %v1504 = vadd.f32 %v1355, %v1503
        %v1505 = vpop.f32.mrb[0].mxu0
        %v1506 = vadd.f32 %v1357, %v1505
        %v1507 = vpop.f32.mrb[0].mxu0
        %v1508 = vadd.f32 %v1359, %v1507
        %1509 = vmatprep.mubr.bf16.mxu0 0
        %1510 = vmatmul.mubr.bf16.gmra.mrb[0].mxu0 %v810
        %v1511 = vpop.f32.mrb[0].mxu0
        %v1512 = vadd.f32 %v1363, %v1511
        %v1513 = vpop.f32.mrb[0].mxu0
        %v1514 = vadd.f32 %v1365, %v1513
        %v1515 = vpop.f32.mrb[0].mxu0
        %v1516 = vadd.f32 %v1367, %v1515
        %v1517 = vpop.f32.mrb[0].mxu0
        %v1518 = vadd.f32 %v1369, %v1517
        %1519 = vmatprep.mubr.bf16.mxu0 0
        %1520 = vmatmul.mubr.bf16.gmra.mrb[0].mxu0 %v811
        %v1521 = vpop.f32.mrb[0].mxu0
        %v1522 = vadd.f32 %v1373, %v1521
        %v1523 = vpop.f32.mrb[0].mxu0
        %v1524 = vadd.f32 %v1375, %v1523
        %v1525 = vpop.f32.mrb[0].mxu0
        %v1526 = vadd.f32 %v1377, %v1525
        %v1527 = vpop.f32.mrb[0].mxu0
        %v1528 = vadd.f32 %v1379, %v1527
        %1529 = vmatprep.mubr.bf16.mxu0 0
        %1530 = vmatmul.mubr.bf16.gmra.mrb[0].mxu0 %v812
        %v1531 = vpop.f32.mrb[0].mxu0
        %v1532 = vadd.f32 %v1383, %v1531
        %v1533 = vpop.f32.mrb[0].mxu0
        %v1534 = vadd.f32 %v1385, %v1533
        %v1535 = vpop.f32.mrb[0].mxu0
        %v1536 = vadd.f32 %v1387, %v1535
        %v1537 = vpop.f32.mrb[0].mxu0
        %v1538 = vadd.f32 %v1389, %v1537
        %1539 = vmatprep.mubr.bf16.mxu0 0
        %1540 = vmatmul.mubr.bf16.gmra.mrb[0].mxu0 %v813
        %v1541 = vpop.f32.mrb[0].mxu0
        %v1542 = vadd.f32 %v1393, %v1541
        %v1543 = vpop.f32.mrb[0].mxu0
        %v1544 = vadd.f32 %v1395, %v1543
        %v1545 = vpop.f32.mrb[0].mxu0
        %v1546 = vadd.f32 %v1397, %v1545
        %v1547 = vpop.f32.mrb[0].mxu0
        %v1548 = vadd.f32 %v1399, %v1547
        %1549 = vmatprep.mubr.bf16.mxu0 0
        %1550 = vmatmul.mubr.bf16.gmra.mrb[0].mxu0 %v814
        %v1551 = vpop.f32.mrb[0].mxu0
        %v1552 = vadd.f32 %v1403, %v1551
        %v1553 = vpop.f32.mrb[0].mxu0
        %v1554 = vadd.f32 %v1405, %v1553
        %v1555 = vpop.f32.mrb[0].mxu0
        %v1556 = vadd.f32 %v1407, %v1555
        %v1557 = vpop.f32.mrb[0].mxu0
        %v1558 = vadd.f32 %v1409, %v1557
        %1559 = vmatprep.mubr.bf16.mxu0 0
        %1560 = vmatmul.mubr.bf16.gmra.mrb[0].mxu0 %v815
        %v1561 = vpop.f32.mrb[0].mxu0
        %v1562 = vadd.f32 %v1413, %v1561
        %v1563 = vpop.f32.mrb[0].mxu0
        %v1564 = vadd.f32 %v1415, %v1563
        %v1565 = vpop.f32.mrb[0].mxu0
        %v1566 = vadd.f32 %v1417, %v1565
        %v1567 = vpop.f32.mrb[0].mxu0
        %v1568 = vadd.f32 %v1419, %v1567
        %1569 = vmatprep.mubr.bf16.mxu0 0
        %1570 = vmatmul.mubr.bf16.gmra.mrb[0].mxu0 %v816
        %v1571 = vpop.f32.mrb[0].mxu0
        %v1572 = vadd.f32 %v1423, %v1571
        %v1573 = vpop.f32.mrb[0].mxu0
        %v1574 = vadd.f32 %v1425, %v1573
        %v1575 = vpop.f32.mrb[0].mxu0
        %v1576 = vadd.f32 %v1427, %v1575
        %v1577 = vpop.f32.mrb[0].mxu0
        %v1578 = vadd.f32 %v1429, %v1577
        %1579 = vmatprep.mubr.bf16.mxu0 0
        %1580 = vmatmul.mubr.bf16.gmra.mrb[0].mxu0 %v817
        %v1581 = vpop.f32.mrb[0].mxu0
        %v1582 = vadd.f32 %v1433, %v1581
        %v1583 = vpop.f32.mrb[0].mxu0
        %v1584 = vadd.f32 %v1435, %v1583
        %v1585 = vpop.f32.mrb[0].mxu0
        %v1586 = vadd.f32 %v1437, %v1585
        %v1587 = vpop.f32.mrb[0].mxu0
        %v1588 = vadd.f32 %v1439, %v1587
        %1589 = vmatprep.mubr.bf16.mxu0 0
        %1590 = vmatmul.mubr.bf16.gmra.mrb[0].mxu0 %v818
        %v1591 = vpop.f32.mrb[0].mxu0
        %v1592 = vadd.f32 %v1443, %v1591
        %v1593 = vpop.f32.mrb[0].mxu0
        %v1594 = vadd.f32 %v1445, %v1593
        %v1595 = vpop.f32.mrb[0].mxu0
        %v1596 = vadd.f32 %v1447, %v1595
        %v1597 = vpop.f32.mrb[0].mxu0
        %v1598 = vadd.f32 %v1449, %v1597
        %1599 = vmatprep.mubr.bf16.mxu0 0
        %1600 = vmatmul.mubr.bf16.gmra.mrb[0].mxu0 %v819
        %v1601 = vpop.f32.mrb[0].mxu0
        %v1602 = vadd.f32 %v1453, %v1601
        %v1603 = vpop.f32.mrb[0].mxu0
        %v1604 = vadd.f32 %v1455, %v1603
        %v1605 = vpop.f32.mrb[0].mxu0
        %v1606 = vadd.f32 %v1457, %v1605
        %v1607 = vpop.f32.mrb[0].mxu0
        %v1608 = vadd.f32 %v1459, %v1607
        %1609 = vmatprep.mubr.bf16.mxu0 0
        %1610 = vmatmul.mubr.bf16.gmra.mrb[0].mxu0 %v820
        %v1611 = vpop.f32.mrb[0].mxu0
        %v1612 = vpop.f32.mrb[0].mxu0
        %v1613 = vpop.f32.mrb[0].mxu0
        %v1614 = vpop.f32.mrb[0].mxu0
        %1615 = vdwg.mxu0
        %1616 = vmatprep.subr.bf16.mxu0 0
        %1617 = vmatpush1.bf16.msra.mxu0 %v1176
        %1618 = vmatprep.subr.bf16.mxu0 0
        %1619 = vmatpush1.bf16.msra.mxu0 %v1179
        %1620 = vmatprep.subr.bf16.mxu0 0
        %1621 = vmatpush1.bf16.msra.mxu0 %v1182
        %1622 = vmatprep.subr.bf16.mxu0 0
        %1623 = vmatpush1.bf16.msra.mxu0 %v1185
        %1624 = vmatprep.subr.bf16.mxu0 0
        %1625 = vmatpush1.bf16.msra.mxu0 %v1188
        %1626 = vmatprep.subr.bf16.mxu0 0
        %1627 = vmatpush1.bf16.msra.mxu0 %v1191
        %1628 = vmatprep.subr.bf16.mxu0 0
        %1629 = vmatpush1.bf16.msra.mxu0 %v1194
        %1630 = vmatprep.subr.bf16.mxu0 0
        %1631 = vmatpush1.bf16.msra.mxu0 %v1197
        %1632 = vmatprep.subr.bf16.mxu0 0
        %1633 = vmatpush1.bf16.msra.mxu0 %v1200
        %1634 = vmatprep.subr.bf16.mxu0 0
        %1635 = vmatpush1.bf16.msra.mxu0 %v1203
        %1636 = vmatprep.subr.bf16.mxu0 0
        %1637 = vmatpush1.bf16.msra.mxu0 %v1206
        %1638 = vmatprep.subr.bf16.mxu0 0
        %1639 = vmatpush1.bf16.msra.mxu0 %v1209
        %1640 = vmatprep.subr.bf16.mxu0 0
        %1641 = vmatpush1.bf16.msra.mxu0 %v1212
        %1642 = vmatprep.subr.bf16.mxu0 0
        %1643 = vmatpush1.bf16.msra.mxu0 %v1215
        %1644 = vmatprep.subr.bf16.mxu0 0
        %1645 = vmatpush1.bf16.msra.mxu0 %v1218
        %1646 = vmatprep.subr.bf16.mxu0 0
        %1647 = vmatpush1.bf16.msra.mxu0 %v1221
        %1648 = vmatprep.mubr.bf16.mxu0 %v808
        %1649 = vmatmul.mubr.bf16.gmra.mrb[0].mxu0 %v807
        %v1650 = vpop.f32.mrb[0].mxu0
        %v1651 = vadd.f32 %v930, %v1650
        %v1652 = vpop.f32.mrb[0].mxu0
        %v1653 = vpop.f32.mrb[0].mxu0
        %v1654 = vadd.f32 %v930, %v1653
        %v1655 = vpop.f32.mrb[0].mxu0
        %1656 = vmatprep.mubr.bf16.mxu0 %v809
        %1657 = vmatmul.mubr.bf16.gmra.mrb[0].mxu0 %v808
        %v1658 = vpop.f32.mrb[0].mxu0
        %v1659 = vadd.f32 %v930, %v1658
        %v1660 = vpop.f32.mrb[0].mxu0
        %v1661 = vpop.f32.mrb[0].mxu0
        %v1662 = vadd.f32 %v930, %v1661
        %v1663 = vpop.f32.mrb[0].mxu0
        %1664 = vmatprep.mubr.bf16.mxu0 %v810
        %1665 = vmatmul.mubr.bf16.gmra.mrb[0].mxu0 %v809
        %v1666 = vpop.f32.mrb[0].mxu0
        %v1667 = vadd.f32 %v930, %v1666
        %v1668 = vpop.f32.mrb[0].mxu0
        %v1669 = vpop.f32.mrb[0].mxu0
        %v1670 = vadd.f32 %v930, %v1669
        %v1671 = vpop.f32.mrb[0].mxu0
        %1672 = vmatprep.mubr.bf16.mxu0 %v811
        %1673 = vmatmul.mubr.bf16.gmra.mrb[0].mxu0 %v810
        %v1674 = vpop.f32.mrb[0].mxu0
        %v1675 = vadd.f32 %v930, %v1674
        %v1676 = vpop.f32.mrb[0].mxu0
        %v1677 = vpop.f32.mrb[0].mxu0
        %v1678 = vadd.f32 %v930, %v1677
        %v1679 = vpop.f32.mrb[0].mxu0
        %1680 = vmatprep.mubr.bf16.mxu0 %v812
        %1681 = vmatmul.mubr.bf16.gmra.mrb[0].mxu0 %v811
        %v1682 = vpop.f32.mrb[0].mxu0
        %v1683 = vadd.f32 %v930, %v1682
        %v1684 = vpop.f32.mrb[0].mxu0
        %v1685 = vpop.f32.mrb[0].mxu0
        %v1686 = vadd.f32 %v930, %v1685
        %v1687 = vpop.f32.mrb[0].mxu0
        %1688 = vmatprep.mubr.bf16.mxu0 %v813
        %1689 = vmatmul.mubr.bf16.gmra.mrb[0].mxu0 %v812
        %v1690 = vpop.f32.mrb[0].mxu0
        %v1691 = vadd.f32 %v930, %v1690
        %v1692 = vpop.f32.mrb[0].mxu0
        %v1693 = vpop.f32.mrb[0].mxu0
        %v1694 = vadd.f32 %v930, %v1693
        %v1695 = vpop.f32.mrb[0].mxu0
        %1696 = vmatprep.mubr.bf16.mxu0 %v814
        %1697 = vmatmul.mubr.bf16.gmra.mrb[0].mxu0 %v813
        %v1698 = vpop.f32.mrb[0].mxu0
        %v1699 = vadd.f32 %v930, %v1698
        %v1700 = vpop.f32.mrb[0].mxu0
        %v1701 = vpop.f32.mrb[0].mxu0
        %v1702 = vadd.f32 %v930, %v1701
        %v1703 = vpop.f32.mrb[0].mxu0
        %1704 = vmatprep.mubr.bf16.mxu0 %v815
        %1705 = vmatmul.mubr.bf16.gmra.mrb[0].mxu0 %v814
        %v1706 = vpop.f32.mrb[0].mxu0
        %v1707 = vadd.f32 %v930, %v1706
        %v1708 = vpop.f32.mrb[0].mxu0
        %v1709 = vpop.f32.mrb[0].mxu0
        %v1710 = vadd.f32 %v930, %v1709
        %v1711 = vpop.f32.mrb[0].mxu0
        %1712 = vmatprep.mubr.bf16.mxu0 %v816
        %1713 = vmatmul.mubr.bf16.gmra.mrb[0].mxu0 %v815
        %v1714 = vpop.f32.mrb[0].mxu0
        %v1715 = vadd.f32 %v930, %v1714
        %v1716 = vpop.f32.mrb[0].mxu0
        %v1717 = vpop.f32.mrb[0].mxu0
        %v1718 = vadd.f32 %v930, %v1717
        %v1719 = vpop.f32.mrb[0].mxu0
        %1720 = vmatprep.mubr.bf16.mxu0 %v817
        %1721 = vmatmul.mubr.bf16.gmra.mrb[0].mxu0 %v816
        %v1722 = vpop.f32.mrb[0].mxu0
        %v1723 = vadd.f32 %v930, %v1722
        %v1724 = vpop.f32.mrb[0].mxu0
        %v1725 = vpop.f32.mrb[0].mxu0
        %v1726 = vadd.f32 %v930, %v1725
        %v1727 = vpop.f32.mrb[0].mxu0
        %1728 = vmatprep.mubr.bf16.mxu0 %v818
        %1729 = vmatmul.mubr.bf16.gmra.mrb[0].mxu0 %v817
        %v1730 = vpop.f32.mrb[0].mxu0
        %v1731 = vadd.f32 %v930, %v1730
        %v1732 = vpop.f32.mrb[0].mxu0
        %v1733 = vpop.f32.mrb[0].mxu0
        %v1734 = vadd.f32 %v930, %v1733
        %v1735 = vpop.f32.mrb[0].mxu0
        %1736 = vmatprep.mubr.bf16.mxu0 %v819
        %1737 = vmatmul.mubr.bf16.gmra.mrb[0].mxu0 %v818
        %v1738 = vpop.f32.mrb[0].mxu0
        %v1739 = vpop.f32.mrb[0].mxu0
        %v1740 = vpop.f32.mrb[0].mxu0
        %v1741 = vpop.f32.mrb[0].mxu0
        %1742 = vdwg.mxu0
        %1743 = vmatprep.subr.bf16.mxu0 0
        %1744 = vmatpush1.bf16.msra.mxu0 %v1224
        %1745 = vmatprep.subr.bf16.mxu0 0
        %1746 = vmatpush1.bf16.msra.mxu0 %v1227
        %1747 = vmatprep.subr.bf16.mxu0 0
        %1748 = vmatpush1.bf16.msra.mxu0 %v1230
        %1749 = vmatprep.subr.bf16.mxu0 0
        %1750 = vmatpush1.bf16.msra.mxu0 %v1233
        %1751 = vmatprep.subr.bf16.mxu0 0
        %1752 = vmatpush1.bf16.msra.mxu0 %v1236
        %1753 = vmatprep.subr.bf16.mxu0 0
        %1754 = vmatpush1.bf16.msra.mxu0 %v1239
        %1755 = vmatprep.subr.bf16.mxu0 0
        %1756 = vmatpush1.bf16.msra.mxu0 %v1242
        %1757 = vmatprep.subr.bf16.mxu0 0
        %1758 = vmatpush1.bf16.msra.mxu0 %v1245
        %1759 = vmatprep.subr.bf16.mxu0 0
        %1760 = vmatpush1.bf16.msra.mxu0 0
        %1761 = vmatprep.subr.bf16.mxu0 0
        %1762 = vmatpush1.bf16.msra.mxu0 0
        %1763 = vmatprep.subr.bf16.mxu0 0
        %1764 = vmatpush1.bf16.msra.mxu0 0
        %1765 = vmatprep.subr.bf16.mxu0 0
        %1766 = vmatpush1.bf16.msra.mxu0 0
        %1767 = vmatprep.subr.bf16.mxu0 0
        %1768 = vmatpush1.bf16.msra.mxu0 0
        %1769 = vmatprep.subr.bf16.mxu0 0
        %1770 = vmatpush1.bf16.msra.mxu0 0
        %1771 = vmatprep.subr.bf16.mxu0 0
        %1772 = vmatpush1.bf16.msra.mxu0 0
        %1773 = vmatprep.subr.bf16.mxu0 0
        %1774 = vmatpush1.bf16.msra.mxu0 0
        %1775 = vmatprep.mubr.bf16.mxu0 0
        %1776 = vmatmul.mubr.bf16.gmra.mrb[0].mxu0 %v809
        %v1777 = vpop.f32.mrb[0].mxu0
        %v1778 = vadd.f32 %v1651, %v1777
        %v1779 = vpop.f32.mrb[0].mxu0
        %v1780 = vpop.f32.mrb[0].mxu0
        %v1781 = vadd.f32 %v1654, %v1780
        %v1782 = vpop.f32.mrb[0].mxu0
        %1783 = vmatprep.mubr.bf16.mxu0 0
        %1784 = vmatmul.mubr.bf16.gmra.mrb[0].mxu0 %v810
        %v1785 = vpop.f32.mrb[0].mxu0
        %v1786 = vadd.f32 %v1659, %v1785
        %v1787 = vpop.f32.mrb[0].mxu0
        %v1788 = vpop.f32.mrb[0].mxu0
        %v1789 = vadd.f32 %v1662, %v1788
        %v1790 = vpop.f32.mrb[0].mxu0
        %1791 = vmatprep.mubr.bf16.mxu0 0
        %1792 = vmatmul.mubr.bf16.gmra.mrb[0].mxu0 %v811
        %v1793 = vpop.f32.mrb[0].mxu0
        %v1794 = vadd.f32 %v1667, %v1793
        %v1795 = vpop.f32.mrb[0].mxu0
        %v1796 = vpop.f32.mrb[0].mxu0
        %v1797 = vadd.f32 %v1670, %v1796
        %v1798 = vpop.f32.mrb[0].mxu0
        %1799 = vmatprep.mubr.bf16.mxu0 0
        %1800 = vmatmul.mubr.bf16.gmra.mrb[0].mxu0 %v812
        %v1801 = vpop.f32.mrb[0].mxu0
        %v1802 = vadd.f32 %v1675, %v1801
        %v1803 = vpop.f32.mrb[0].mxu0
        %v1804 = vpop.f32.mrb[0].mxu0
        %v1805 = vadd.f32 %v1678, %v1804
        %v1806 = vpop.f32.mrb[0].mxu0
        %1807 = vmatprep.mubr.bf16.mxu0 0
        %1808 = vmatmul.mubr.bf16.gmra.mrb[0].mxu0 %v813
        %v1809 = vpop.f32.mrb[0].mxu0
        %v1810 = vadd.f32 %v1683, %v1809
        %v1811 = vpop.f32.mrb[0].mxu0
        %v1812 = vpop.f32.mrb[0].mxu0
        %v1813 = vadd.f32 %v1686, %v1812
        %v1814 = vpop.f32.mrb[0].mxu0
        %1815 = vmatprep.mubr.bf16.mxu0 0
        %1816 = vmatmul.mubr.bf16.gmra.mrb[0].mxu0 %v814
        %v1817 = vpop.f32.mrb[0].mxu0
        %v1818 = vadd.f32 %v1691, %v1817
        %v1819 = vpop.f32.mrb[0].mxu0
        %v1820 = vpop.f32.mrb[0].mxu0
        %v1821 = vadd.f32 %v1694, %v1820
        %v1822 = vpop.f32.mrb[0].mxu0
        %1823 = vmatprep.mubr.bf16.mxu0 0
        %1824 = vmatmul.mubr.bf16.gmra.mrb[0].mxu0 %v815
        %v1825 = vpop.f32.mrb[0].mxu0
        %v1826 = vadd.f32 %v1699, %v1825
        %v1827 = vpop.f32.mrb[0].mxu0
        %v1828 = vpop.f32.mrb[0].mxu0
        %v1829 = vadd.f32 %v1702, %v1828
        %v1830 = vpop.f32.mrb[0].mxu0
        %1831 = vmatprep.mubr.bf16.mxu0 0
        %1832 = vmatmul.mubr.bf16.gmra.mrb[0].mxu0 %v816
        %v1833 = vpop.f32.mrb[0].mxu0
        %v1834 = vadd.f32 %v1707, %v1833
        %v1835 = vpop.f32.mrb[0].mxu0
        %v1836 = vpop.f32.mrb[0].mxu0
        %v1837 = vadd.f32 %v1710, %v1836
        %v1838 = vpop.f32.mrb[0].mxu0
        %1839 = vmatprep.mubr.bf16.mxu0 0
        %1840 = vmatmul.mubr.bf16.gmra.mrb[0].mxu0 %v817
        %v1841 = vpop.f32.mrb[0].mxu0
        %v1842 = vadd.f32 %v1715, %v1841
        %v1843 = vpop.f32.mrb[0].mxu0
        %v1844 = vpop.f32.mrb[0].mxu0
        %v1845 = vadd.f32 %v1718, %v1844
        %v1846 = vpop.f32.mrb[0].mxu0
        %1847 = vmatprep.mubr.bf16.mxu0 0
        %1848 = vmatmul.mubr.bf16.gmra.mrb[0].mxu0 %v818
        %v1849 = vpop.f32.mrb[0].mxu0
        %v1850 = vadd.f32 %v1723, %v1849
        %v1851 = vpop.f32.mrb[0].mxu0
        %v1852 = vpop.f32.mrb[0].mxu0
        %v1853 = vadd.f32 %v1726, %v1852
        %v1854 = vpop.f32.mrb[0].mxu0
        %1855 = vmatprep.mubr.bf16.mxu0 0
        %1856 = vmatmul.mubr.bf16.gmra.mrb[0].mxu0 %v819
        %v1857 = vpop.f32.mrb[0].mxu0
        %v1858 = vadd.f32 %v1731, %v1857
        %v1859 = vpop.f32.mrb[0].mxu0
        %v1860 = vpop.f32.mrb[0].mxu0
        %v1861 = vadd.f32 %v1734, %v1860
        %v1862 = vpop.f32.mrb[0].mxu0
        %1863 = vmatprep.mubr.bf16.mxu0 0
        %1864 = vmatmul.mubr.bf16.gmra.mrb[0].mxu0 %v820
        %v1865 = vpop.f32.mrb[0].mxu0
        %v1866 = vpop.f32.mrb[0].mxu0
        %v1867 = vpop.f32.mrb[0].mxu0
        %v1868 = vpop.f32.mrb[0].mxu0
        %1869 = vdwg.mxu0
        %v1870 = vmax.f32 %v1502, 0.0
        %v1871 = vmax.f32 %v1504, 0.0
        %v1872 = vmax.f32 %v1778, 0.0
        %v1873 = vmax.f32 %v1506, 0.0
        %v1874 = vmax.f32 %v1508, 0.0
        %v1875 = vmax.f32 %v1781, 0.0
        %v1876 = vmax.f32 %v1512, 0.0
        %v1877 = vmax.f32 %v1514, 0.0
        %v1878 = vmax.f32 %v1786, 0.0
        %v1879 = vmax.f32 %v1516, 0.0
        %v1880 = vmax.f32 %v1518, 0.0
        %v1881 = vmax.f32 %v1789, 0.0
        %v1882 = vmax.f32 %v1522, 0.0
        %v1883 = vmax.f32 %v1524, 0.0
        %v1884 = vmax.f32 %v1794, 0.0
        %v1885 = vmax.f32 %v1526, 0.0
        %v1886 = vmax.f32 %v1528, 0.0
        %v1887 = vmax.f32 %v1797, 0.0
        %v1888 = vmax.f32 %v1532, 0.0
        %v1889 = vmax.f32 %v1534, 0.0
        %v1890 = vmax.f32 %v1802, 0.0
        %v1891 = vmax.f32 %v1536, 0.0
        %v1892 = vmax.f32 %v1538, 0.0
        %v1893 = vmax.f32 %v1805, 0.0
        %v1894 = vmax.f32 %v1542, 0.0
        %v1895 = vmax.f32 %v1544, 0.0
        %v1896 = vmax.f32 %v1810, 0.0
        %v1897 = vmax.f32 %v1546, 0.0
        %v1898 = vmax.f32 %v1548, 0.0
        %v1899 = vmax.f32 %v1813, 0.0
        %v1900 = vmax.f32 %v1552, 0.0
        %v1901 = vmax.f32 %v1554, 0.0
        %v1902 = vmax.f32 %v1818, 0.0
        %v1903 = vmax.f32 %v1556, 0.0
        %v1904 = vmax.f32 %v1558, 0.0
        %v1905 = vmax.f32 %v1821, 0.0
        %v1906 = vmax.f32 %v1562, 0.0
        %v1907 = vmax.f32 %v1564, 0.0
        %v1908 = vmax.f32 %v1826, 0.0
        %v1909 = vmax.f32 %v1566, 0.0
        %v1910 = vmax.f32 %v1568, 0.0
        %v1911 = vmax.f32 %v1829, 0.0
        %v1912 = vmax.f32 %v1572, 0.0
        %v1913 = vmax.f32 %v1574, 0.0
        %v1914 = vmax.f32 %v1834, 0.0
        %v1915 = vmax.f32 %v1576, 0.0
        %v1916 = vmax.f32 %v1578, 0.0
        %v1917 = vmax.f32 %v1837, 0.0
        %v1918 = vmax.f32 %v1582, 0.0
        %v1919 = vmax.f32 %v1584, 0.0
        %v1920 = vmax.f32 %v1842, 0.0
        %v1921 = vmax.f32 %v1586, 0.0
        %v1922 = vmax.f32 %v1588, 0.0
        %v1923 = vmax.f32 %v1845, 0.0
        %v1924 = vmax.f32 %v1592, 0.0
        %v1925 = vmax.f32 %v1594, 0.0
        %v1926 = vmax.f32 %v1850, 0.0
        %v1927 = vmax.f32 %v1596, 0.0
        %v1928 = vmax.f32 %v1598, 0.0
        %v1929 = vmax.f32 %v1853, 0.0
        %v1930 = vmax.f32 %v1602, 0.0
        %v1931 = vmax.f32 %v1604, 0.0
        %v1932 = vmax.f32 %v1858, 0.0
        %v1933 = vmax.f32 %v1606, 0.0
        %v1934 = vmax.f32 %v1608, 0.0
        %v1935 = vmax.f32 %v1861, 0.0
        %v1936 = vpack.c.bf16 %v1873, %v1870
        %v1937 = vpack.c.bf16 %v1874, %v1871
        %v1938 = vpack.c.bf16 %v1875, %v1872
        %v1939 = vpack.c.bf16 %v1879, %v1876
        %v1940 = vpack.c.bf16 %v1880, %v1877
        %v1941 = vpack.c.bf16 %v1881, %v1878
        %v1942 = vpack.c.bf16 %v1885, %v1882
        %v1943 = vpack.c.bf16 %v1886, %v1883
        %v1944 = vpack.c.bf16 %v1887, %v1884
        %v1945 = vpack.c.bf16 %v1891, %v1888
        %v1946 = vpack.c.bf16 %v1892, %v1889
        %v1947 = vpack.c.bf16 %v1893, %v1890
        %v1948 = vpack.c.bf16 %v1897, %v1894
        %v1949 = vpack.c.bf16 %v1898, %v1895
        %v1950 = vpack.c.bf16 %v1899, %v1896
        %v1951 = vpack.c.bf16 %v1903, %v1900
        %v1952 = vpack.c.bf16 %v1904, %v1901
        %v1953 = vpack.c.bf16 %v1905, %v1902
        %v1954 = vpack.c.bf16 %v1909, %v1906
        %v1955 = vpack.c.bf16 %v1910, %v1907
        %v1956 = vpack.c.bf16 %v1911, %v1908
        %v1957 = vpack.c.bf16 %v1915, %v1912
        %v1958 = vpack.c.bf16 %v1916, %v1913
        %v1959 = vpack.c.bf16 %v1917, %v1914
        %v1960 = vpack.c.bf16 %v1921, %v1918
        %v1961 = vpack.c.bf16 %v1922, %v1919
        %v1962 = vpack.c.bf16 %v1923, %v1920
        %v1963 = vpack.c.bf16 %v1927, %v1924
        %v1964 = vpack.c.bf16 %v1928, %v1925
        %v1965 = vpack.c.bf16 %v1929, %v1926
        %v1966 = vpack.c.bf16 %v1933, %v1930
        %v1967 = vpack.c.bf16 %v1934, %v1931
        %v1968 = vpack.c.bf16 %v1935, %v1932
        %v1969 = vld [vmem:[%s4] sm:$0xf]
        %v1970 = vld [vmem:[%s4 + $0x4] sm:$0xf]
        %v1971 = vld [vmem:[%s4 + $0x8] sm:$0xf]
        %v1972 = vld [vmem:[%s4 + $0xc] sm:$0xf]
        %v1973 = vld [vmem:[%s4 + $0x10] sm:$0xf]
        %v1974 = vld [vmem:[%s4 + $0x14] sm:$0xf]
        %v1975 = vld [vmem:[%s4 + $0x18] sm:$0xf]
        %v1976 = vld [vmem:[%s4 + $0x1c] sm:$0xf]
        %v1977 = vld [vmem:[%s4 + $0x20] sm:$0xf]
        %v1978 = vld [vmem:[%s4 + $0x24] sm:$0xf]
        %v1979 = vld [vmem:[%s4 + $0x28] sm:$0xf]
        %v1980 = vld [vmem:[%s4 + $0x2c] sm:$0xf]
        %v1981 = vld [vmem:[%s4 + $0x30] sm:$0xf]
        %v1982 = vld [vmem:[%s4 + $0x34] sm:$0xf]
        %v1983 = vld [vmem:[%s4 + $0x38] sm:$0xf]
        %v1984 = vld [vmem:[%s4 + $0x3c] sm:$0xf]
        %v1985 = vld [vmem:[%s4 + $0x40] sm:$0xf]
        %v1986 = vld [vmem:[%s4 + $0x44] sm:$0xf]
        %v1987 = vld [vmem:[%s4 + $0x48] sm:$0xf]
        %v1988 = vld [vmem:[%s4 + $0x4c] sm:$0xf]
        %v1989 = vld [vmem:[%s4 + $0x50] sm:$0xf]
        %v1990 = vld [vmem:[%s4 + $0x54] sm:$0xf]
        %v1991 = vld [vmem:[%s4 + $0x58] sm:$0xf]
        %v1992 = vld [vmem:[%s4 + $0x5c] sm:$0xf]
        %v1993 = vld [vmem:[%s4 + $0x60] sm:$0xf]
        %v1994 = vld [vmem:[%s4 + $0x64] sm:$0xf]
        %v1995 = vld [vmem:[%s4 + $0x68] sm:$0xf]
        %v1996 = vld [vmem:[%s4 + $0x6c] sm:$0xf]
        %v1997 = vld [vmem:[%s4 + $0x70] sm:$0xf]
        %v1998 = vld [vmem:[%s4 + $0x74] sm:$0xf]
        %v1999 = vld [vmem:[%s4 + $0x78] sm:$0xf]
        %v2000 = vld [vmem:[%s4 + $0x7c] sm:$0xf]
        %v2001 = vld [vmem:[%s4 + $0x80] sm:$0xf]
        %v2002 = vld [vmem:[%s4 + $0x84] sm:$0xf]
        %v2003 = vld [vmem:[%s4 + $0x88] sm:$0xf]
        %v2004 = vld [vmem:[%s4 + $0x8c] sm:$0xf]
        %v2005 = vld [vmem:[%s4 + $0x90] sm:$0xf]
        %v2006 = vld [vmem:[%s4 + $0x94] sm:$0xf]
        %v2007 = vld [vmem:[%s4 + $0x98] sm:$0xf]
        %v2008 = vld [vmem:[%s4 + $0x9c] sm:$0xf]
        %v2009 = vld [vmem:[%s4 + $0xa0] sm:$0xf]
        %v2010 = vld [vmem:[%s4 + $0xa4] sm:$0xf]
        %v2011 = vld [vmem:[%s4 + $0xa8] sm:$0xf]
        %v2012 = vld [vmem:[%s4 + $0xac] sm:$0xf]
        %v2013 = vld [vmem:[%s4 + $0xb0] sm:$0xf]
        %v2014 = vld [vmem:[%s4 + $0xb4] sm:$0xf]
        %v2015 = vld [vmem:[%s4 + $0xb8] sm:$0xf]
        %v2016 = vld [vmem:[%s4 + $0xbc] sm:$0xf]
        %v2017 = vld [vmem:[%s4 + $0xc0] sm:$0xf]
        %v2018 = vld [vmem:[%s4 + $0xc4] sm:$0xf]
        %v2019 = vld [vmem:[%s4 + $0xc8] sm:$0xf]
        %v2020 = vld [vmem:[%s4 + $0xcc] sm:$0xf]
        %v2021 = vld [vmem:[%s4 + $0xd0] sm:$0xf]
        %v2022 = vld [vmem:[%s4 + $0xd4] sm:$0xf]
        %v2023 = vld [vmem:[%s4 + $0xd8] sm:$0xf]
        %v2024 = vld [vmem:[%s4 + $0xdc] sm:$0xf]
        %v2025 = vld [vmem:[%s4 + $0xe0] sm:$0xf]
        %v2026 = vld [vmem:[%s4 + $0xe4] sm:$0xf]
        %v2027 = vld [vmem:[%s4 + $0xe8] sm:$0xf]
        %v2028 = vld [vmem:[%s4 + $0xec] sm:$0xf]
        %v2029 = vld [vmem:[%s4 + $0xf0] sm:$0xf]
        %v2030 = vld [vmem:[%s4 + $0xf4] sm:$0xf]
        %v2031 = vld [vmem:[%s4 + $0xf8] sm:$0xf]
        %v2032 = vld [vmem:[%s4 + $0xfc] sm:$0xf]
        %v2033 = vld [vmem:[%s4 + $0x100] sm:$0xf]
        %v2034 = vld [vmem:[%s4 + $0x104] sm:$0xf]
        %v2035 = vld [vmem:[%s4 + $0x108] sm:$0xf]
        %v2036 = vld [vmem:[%s4 + $0x10c] sm:$0xf]
        %v2037 = vld [vmem:[%s4 + $0x110] sm:$0xf]
        %v2038 = vld [vmem:[%s4 + $0x114] sm:$0xf]
        %v2039 = vld [vmem:[%s4 + $0x118] sm:$0xf]
        %v2040 = vld [vmem:[%s4 + $0x11c] sm:$0xf]
        %v2041 = vld [vmem:[%s4 + $0x120] sm:$0xf]
        %v2042 = vld [vmem:[%s4 + $0x124] sm:$0xf]
        %v2043 = vld [vmem:[%s4 + $0x128] sm:$0xf]
        %v2044 = vld [vmem:[%s4 + $0x12c] sm:$0xf]
        %v2045 = vld [vmem:[%s4 + $0x130] sm:$0xf]
        %v2046 = vld [vmem:[%s4 + $0x134] sm:$0xf]
        %v2047 = vld [vmem:[%s4 + $0x138] sm:$0xf]
        %v2048 = vld [vmem:[%s4 + $0x13c] sm:$0xf]
        %v2049 = vld [vmem:[%s4 + $0x140] sm:$0xf]
        %v2050 = vld [vmem:[%s4 + $0x144] sm:$0xf]
        %v2051 = vld [vmem:[%s4 + $0x148] sm:$0xf]
        %v2052 = vld [vmem:[%s4 + $0x14c] sm:$0xf]
        %v2053 = vld [vmem:[%s4 + $0x150] sm:$0xf]
        %v2054 = vld [vmem:[%s4 + $0x154] sm:$0xf]
        %v2055 = vld [vmem:[%s4 + $0x158] sm:$0xf]
        %v2056 = vld [vmem:[%s4 + $0x15c] sm:$0xf]
        %v2057 = vld [vmem:[%s4 + $0x160] sm:$0xf]
        %v2058 = vld [vmem:[%s4 + $0x164] sm:$0xf]
        %v2059 = vld [vmem:[%s4 + $0x168] sm:$0xf]
        %v2060 = vld [vmem:[%s4 + $0x16c] sm:$0xf]
        %v2061 = vld [vmem:[%s4 + $0x170] sm:$0xf]
        %v2062 = vld [vmem:[%s4 + $0x174] sm:$0xf]
        %v2063 = vld [vmem:[%s4 + $0x178] sm:$0xf]
        %v2064 = vld [vmem:[%s4 + $0x17c] sm:$0xf]
        %v2065 = vld [vmem:[%s4 + $0x180] sm:$0xf]
        %v2066 = vld [vmem:[%s4 + $0x184] sm:$0xf]
        %v2067 = vld [vmem:[%s4 + $0x188] sm:$0xf]
        %v2068 = vld [vmem:[%s4 + $0x18c] sm:$0xf]
        %v2069 = vld [vmem:[%s4 + $0x190] sm:$0xf]
        %v2070 = vld [vmem:[%s4 + $0x194] sm:$0xf]
        %v2071 = vld [vmem:[%s4 + $0x198] sm:$0xf]
        %v2072 = vld [vmem:[%s4 + $0x19c] sm:$0xf]
        %v2073 = vld [vmem:[%s4 + $0x1a0] sm:$0xf]
        %v2074 = vld [vmem:[%s4 + $0x1a4] sm:$0xf]
        %v2075 = vld [vmem:[%s4 + $0x1a8] sm:$0xf]
        %v2076 = vld [vmem:[%s4 + $0x1ac] sm:$0xf]
        %v2077 = vld [vmem:[%s4 + $0x1b0] sm:$0xf]
        %v2078 = vld [vmem:[%s4 + $0x1b4] sm:$0xf]
        %v2079 = vld [vmem:[%s4 + $0x1b8] sm:$0xf]
        %v2080 = vld [vmem:[%s4 + $0x1bc] sm:$0xf]
        %v2081 = vld [vmem:[%s4 + $0x1c0] sm:$0xf]
        %v2082 = vld [vmem:[%s4 + $0x1c4] sm:$0xf]
        %v2083 = vld [vmem:[%s4 + $0x1c8] sm:$0xf]
        %v2084 = vld [vmem:[%s4 + $0x1cc] sm:$0xf]
        %v2085 = vld [vmem:[%s4 + $0x1d0] sm:$0xf]
        %v2086 = vld [vmem:[%s4 + $0x1d4] sm:$0xf]
        %v2087 = vld [vmem:[%s4 + $0x1d8] sm:$0xf]
        %v2088 = vld [vmem:[%s4 + $0x1dc] sm:$0xf]
        %v2089 = vld [vmem:[%s4 + $0x1e0] sm:$0xf]
        %v2090 = vld [vmem:[%s4 + $0x1e4] sm:$0xf]
        %v2091 = vld [vmem:[%s4 + $0x1e8] sm:$0xf]
        %v2092 = vld [vmem:[%s4 + $0x1ec] sm:$0xf]
        %v2093 = vld [vmem:[%s4 + $0x1f0] sm:$0xf]
        %v2094 = vld [vmem:[%s4 + $0x1f4] sm:$0xf]
        %v2095 = vld [vmem:[%s4 + $0x1f8] sm:$0xf]
        %v2096 = vld [vmem:[%s4 + $0x1fc] sm:$0xf]
        %v2097 = vld [vmem:[%s4 + $0x200] sm:$0xf]
        %v2098 = vld [vmem:[%s4 + $0x204] sm:$0xf]
        %v2099 = vld [vmem:[%s4 + $0x208] sm:$0xf]
        %v2100 = vld [vmem:[%s4 + $0x20c] sm:$0xf]
        %v2101 = vld [vmem:[%s4 + $0x210] sm:$0xf]
        %v2102 = vld [vmem:[%s4 + $0x214] sm:$0xf]
        %v2103 = vld [vmem:[%s4 + $0x218] sm:$0xf]
        %v2104 = vld [vmem:[%s4 + $0x21c] sm:$0xf]
        %v2105 = vld [vmem:[%s4 + $0x220] sm:$0xf]
        %v2106 = vld [vmem:[%s4 + $0x224] sm:$0xf]
        %v2107 = vld [vmem:[%s4 + $0x228] sm:$0xf]
        %v2108 = vld [vmem:[%s4 + $0x22c] sm:$0xf]
        %v2109 = vld [vmem:[%s4 + $0x230] sm:$0xf]
        %v2110 = vld [vmem:[%s4 + $0x234] sm:$0xf]
        %v2111 = vld [vmem:[%s4 + $0x238] sm:$0xf]
        %v2112 = vld [vmem:[%s4 + $0x23c] sm:$0xf]
        %v2113 = vld [vmem:[%s4 + $0x240] sm:$0xf]
        %v2114 = vld [vmem:[%s4 + $0x244] sm:$0xf]
        %v2115 = vld [vmem:[%s4 + $0x248] sm:$0xf]
        %v2116 = vld [vmem:[%s4 + $0x24c] sm:$0xf]
        %v2117 = vld [vmem:[%s4 + $0x250] sm:$0xf]
        %v2118 = vld [vmem:[%s4 + $0x254] sm:$0xf]
        %v2119 = vld [vmem:[%s4 + $0x258] sm:$0xf]
        %v2120 = vld [vmem:[%s4 + $0x25c] sm:$0xf]
        %v2121 = vld [vmem:[%s4 + $0x260] sm:$0xf]
        %v2122 = vld [vmem:[%s4 + $0x264] sm:$0xf]
        %v2123 = vld [vmem:[%s4 + $0x268] sm:$0xf]
        %v2124 = vld [vmem:[%s4 + $0x26c] sm:$0xf]
        %v2125 = vld [vmem:[%s4 + $0x270] sm:$0xf]
        %v2126 = vld [vmem:[%s4 + $0x274] sm:$0xf]
        %v2127 = vld [vmem:[%s4 + $0x278] sm:$0xf]
        %v2128 = vld [vmem:[%s4 + $0x27c] sm:$0xf]
        %v2129 = vld [vmem:[%s4 + $0x280] sm:$0xf]
        %v2130 = vld [vmem:[%s4 + $0x284] sm:$0xf]
        %v2131 = vld [vmem:[%s4 + $0x288] sm:$0xf]
        %v2132 = vld [vmem:[%s4 + $0x28c] sm:$0xf]
        %v2133 = vld [vmem:[%s4 + $0x290] sm:$0xf]
        %v2134 = vld [vmem:[%s4 + $0x294] sm:$0xf]
        %v2135 = vld [vmem:[%s4 + $0x298] sm:$0xf]
        %v2136 = vld [vmem:[%s4 + $0x29c] sm:$0xf]
        %v2137 = vld [vmem:[%s4 + $0x2a0] sm:$0xf]
        %v2138 = vld [vmem:[%s4 + $0x2a4] sm:$0xf]
        %v2139 = vld [vmem:[%s4 + $0x2a8] sm:$0xf]
        %v2140 = vld [vmem:[%s4 + $0x2ac] sm:$0xf]
        %v2141 = vld [vmem:[%s4 + $0x2b0] sm:$0xf]
        %v2142 = vld [vmem:[%s4 + $0x2b4] sm:$0xf]
        %v2143 = vld [vmem:[%s4 + $0x2b8] sm:$0xf]
        %v2144 = vld [vmem:[%s4 + $0x2bc] sm:$0xf]
        %v2145 = vld [vmem:[%s4 + $0x2c0] sm:$0xf]
        %v2146 = vld [vmem:[%s4 + $0x2c4] sm:$0xf]
        %v2147 = vld [vmem:[%s4 + $0x2c8] sm:$0xf]
        %v2148 = vld [vmem:[%s4 + $0x2cc] sm:$0xf]
        %v2149 = vld [vmem:[%s4 + $0x2d0] sm:$0xf]
        %v2150 = vld [vmem:[%s4 + $0x2d4] sm:$0xf]
        %v2151 = vld [vmem:[%s4 + $0x2d8] sm:$0xf]
        %v2152 = vld [vmem:[%s4 + $0x2dc] sm:$0xf]
        %v2153 = vld [vmem:[%s4 + $0x2e0] sm:$0xf]
        %v2154 = vld [vmem:[%s4 + $0x2e4] sm:$0xf]
        %v2155 = vld [vmem:[%s4 + $0x2e8] sm:$0xf]
        %v2156 = vld [vmem:[%s4 + $0x2ec] sm:$0xf]
        %v2157 = vld [vmem:[%s4 + $0x2f0] sm:$0xf]
        %v2158 = vld [vmem:[%s4 + $0x2f4] sm:$0xf]
        %v2159 = vld [vmem:[%s4 + $0x2f8] sm:$0xf]
        %v2160 = vld [vmem:[%s4 + $0x2fc] sm:$0xf]
        %v2161 = vld [vmem:[%s4 + $0x300] sm:$0xf]
        %v2162 = vld [vmem:[%s4 + $0x304] sm:$0xf]
        %v2163 = vld [vmem:[%s4 + $0x308] sm:$0xf]
        %v2164 = vld [vmem:[%s4 + $0x30c] sm:$0xf]
        %v2165 = vld [vmem:[%s4 + $0x310] sm:$0xf]
        %v2166 = vld [vmem:[%s4 + $0x314] sm:$0xf]
        %v2167 = vld [vmem:[%s4 + $0x318] sm:$0xf]
        %v2168 = vld [vmem:[%s4 + $0x31c] sm:$0xf]
        %v2169 = vld [vmem:[%s4 + $0x320] sm:$0xf]
        %v2170 = vld [vmem:[%s4 + $0x324] sm:$0xf]
        %v2171 = vld [vmem:[%s4 + $0x328] sm:$0xf]
        %v2172 = vld [vmem:[%s4 + $0x32c] sm:$0xf]
        %v2173 = vld [vmem:[%s4 + $0x330] sm:$0xf]
        %v2174 = vld [vmem:[%s4 + $0x334] sm:$0xf]
        %v2175 = vld [vmem:[%s4 + $0x338] sm:$0xf]
        %v2176 = vld [vmem:[%s4 + $0x33c] sm:$0xf]
        %v2177 = vld [vmem:[%s4 + $0x340] sm:$0xf]
        %v2178 = vld [vmem:[%s4 + $0x344] sm:$0xf]
        %v2179 = vld [vmem:[%s4 + $0x348] sm:$0xf]
        %v2180 = vld [vmem:[%s4 + $0x34c] sm:$0xf]
        %v2181 = vld [vmem:[%s4 + $0x350] sm:$0xf]
        %v2182 = vld [vmem:[%s4 + $0x354] sm:$0xf]
        %v2183 = vld [vmem:[%s4 + $0x358] sm:$0xf]
        %v2184 = vld [vmem:[%s4 + $0x35c] sm:$0xf]
        %v2185 = vld [vmem:[%s4 + $0x360] sm:$0xf]
        %v2186 = vld [vmem:[%s4 + $0x364] sm:$0xf]
        %v2187 = vld [vmem:[%s4 + $0x368] sm:$0xf]
        %v2188 = vld [vmem:[%s4 + $0x36c] sm:$0xf]
        %v2189 = vld [vmem:[%s4 + $0x370] sm:$0xf]
        %v2190 = vld [vmem:[%s4 + $0x374] sm:$0xf]
        %v2191 = vld [vmem:[%s4 + $0x378] sm:$0xf]
        %v2192 = vld [vmem:[%s4 + $0x37c] sm:$0xf]
        %v2193 = vld [vmem:[%s4 + $0x380] sm:$0xf]
        %v2194 = vld [vmem:[%s4 + $0x384] sm:$0xf]
        %v2195 = vld [vmem:[%s4 + $0x388] sm:$0xf]
        %v2196 = vld [vmem:[%s4 + $0x38c] sm:$0xf]
        %v2197 = vld [vmem:[%s4 + $0x390] sm:$0xf]
        %v2198 = vld [vmem:[%s4 + $0x394] sm:$0xf]
        %v2199 = vld [vmem:[%s4 + $0x398] sm:$0xf]
        %v2200 = vld [vmem:[%s4 + $0x39c] sm:$0xf]
        %v2201 = vld [vmem:[%s4 + $0x3a0] sm:$0xf]
        %v2202 = vld [vmem:[%s4 + $0x3a4] sm:$0xf]
        %v2203 = vld [vmem:[%s4 + $0x3a8] sm:$0xf]
        %v2204 = vld [vmem:[%s4 + $0x3ac] sm:$0xf]
        %v2205 = vld [vmem:[%s4 + $0x3b0] sm:$0xf]
        %v2206 = vld [vmem:[%s4 + $0x3b4] sm:$0xf]
        %v2207 = vld [vmem:[%s4 + $0x3b8] sm:$0xf]
        %v2208 = vld [vmem:[%s4 + $0x3bc] sm:$0xf]
        %v2209 = vld [vmem:[%s5] sm:$0x1]
        %v2211 = vlaneseq
        %v2212 = vshrl.u32 %v2211, 7
        %v2213 = vsub.s32 0, %v2212
        %v2214 = vrot.slane %v2209, %v2213
        %v2456 = vunpack.c.l.b16 %v1969
        %v2457 = vunpack.c.l.b16 %v1970
        %v2458 = vunpack.c.l.b16 %v1971
        %v2459 = vunpack.c.l.b16 %v1972
        %v2460 = vunpack.c.l.b16 %v1973
        %v2461 = vunpack.c.l.b16 %v1974
        %v2462 = vunpack.c.l.b16 %v1975
        %v2463 = vunpack.c.l.b16 %v1976
        %v2464 = vunpack.c.l.b16 %v1977
        %v2465 = vunpack.c.l.b16 %v1978
        %v2466 = vunpack.c.l.b16 %v1979
        %v2467 = vunpack.c.l.b16 %v1980
        %v2468 = vunpack.c.l.b16 %v1981
        %v2469 = vunpack.c.l.b16 %v1982
        %v2470 = vunpack.c.l.b16 %v1983
        %v2471 = vunpack.c.l.b16 %v1984
        %v2472 = vunpack.c.l.b16 %v1985
        %v2473 = vunpack.c.l.b16 %v1986
        %v2474 = vunpack.c.l.b16 %v1987
        %v2475 = vunpack.c.l.b16 %v1988
        %v2476 = vunpack.c.l.b16 %v1989
        %v2477 = vunpack.c.l.b16 %v1990
        %v2478 = vunpack.c.l.b16 %v1991
        %v2479 = vunpack.c.l.b16 %v1992
        %v2480 = vunpack.c.l.b16 %v1993
        %v2481 = vunpack.c.l.b16 %v1994
        %v2482 = vunpack.c.l.b16 %v1995
        %v2483 = vunpack.c.l.b16 %v1996
        %v2484 = vunpack.c.l.b16 %v1997
        %v2485 = vunpack.c.l.b16 %v1998
        %v2486 = vunpack.c.l.b16 %v1999
        %v2487 = vunpack.c.l.b16 %v2000
        %v2488 = vunpack.c.l.b16 %v2001
        %v2489 = vunpack.c.l.b16 %v2002
        %v2490 = vunpack.c.l.b16 %v2003
        %v2491 = vunpack.c.l.b16 %v2004
        %v2492 = vunpack.c.l.b16 %v2005
        %v2493 = vunpack.c.l.b16 %v2006
        %v2494 = vunpack.c.l.b16 %v2007
        %v2495 = vunpack.c.l.b16 %v2008
        %v2496 = vunpack.c.l.b16 %v2009
        %v2497 = vunpack.c.l.b16 %v2010
        %v2498 = vunpack.c.l.b16 %v2011
        %v2499 = vunpack.c.l.b16 %v2012
        %v2500 = vunpack.c.l.b16 %v2013
        %v2501 = vunpack.c.l.b16 %v2014
        %v2502 = vunpack.c.l.b16 %v2015
        %v2503 = vunpack.c.l.b16 %v2016
        %v2504 = vunpack.c.l.b16 %v2017
        %v2505 = vunpack.c.l.b16 %v2018
        %v2506 = vunpack.c.l.b16 %v2019
        %v2507 = vunpack.c.l.b16 %v2020
        %v2508 = vunpack.c.l.b16 %v2021
        %v2509 = vunpack.c.l.b16 %v2022
        %v2510 = vunpack.c.l.b16 %v2023
        %v2511 = vunpack.c.l.b16 %v2024
        %v2512 = vunpack.c.l.b16 %v2025
        %v2513 = vunpack.c.l.b16 %v2026
        %v2514 = vunpack.c.l.b16 %v2027
        %v2515 = vunpack.c.l.b16 %v2028
        %v2516 = vunpack.c.l.b16 %v2029
        %v2517 = vunpack.c.l.b16 %v2030
        %v2518 = vunpack.c.l.b16 %v2031
        %v2519 = vunpack.c.l.b16 %v2032
        %v2520 = vunpack.c.l.b16 %v2033
        %v2521 = vunpack.c.l.b16 %v2034
        %v2522 = vunpack.c.l.b16 %v2035
        %v2523 = vunpack.c.l.b16 %v2036
        %v2524 = vunpack.c.l.b16 %v2037
        %v2525 = vunpack.c.l.b16 %v2038
        %v2526 = vunpack.c.l.b16 %v2039
        %v2527 = vunpack.c.l.b16 %v2040
        %v2528 = vunpack.c.l.b16 %v2041
        %v2529 = vunpack.c.l.b16 %v2042
        %v2530 = vunpack.c.l.b16 %v2043
        %v2531 = vunpack.c.l.b16 %v2044
        %v2532 = vunpack.c.l.b16 %v2045
        %v2533 = vunpack.c.l.b16 %v2046
        %v2534 = vunpack.c.l.b16 %v2047
        %v2535 = vunpack.c.l.b16 %v2048
        %v2536 = vunpack.c.l.b16 %v2049
        %v2537 = vunpack.c.l.b16 %v2050
        %v2538 = vunpack.c.l.b16 %v2051
        %v2539 = vunpack.c.l.b16 %v2052
        %v2540 = vunpack.c.l.b16 %v2053
        %v2541 = vunpack.c.l.b16 %v2054
        %v2542 = vunpack.c.l.b16 %v2055
        %v2543 = vunpack.c.l.b16 %v2056
        %v2544 = vunpack.c.l.b16 %v2057
        %v2545 = vunpack.c.l.b16 %v2058
        %v2546 = vunpack.c.l.b16 %v2059
        %v2547 = vunpack.c.l.b16 %v2060
        %v2548 = vunpack.c.l.b16 %v2061
        %v2549 = vunpack.c.l.b16 %v2062
        %v2550 = vunpack.c.l.b16 %v2063
        %v2551 = vunpack.c.l.b16 %v2064
        %v2552 = vunpack.c.l.b16 %v2065
        %v2553 = vunpack.c.l.b16 %v2066
        %v2554 = vunpack.c.l.b16 %v2067
        %v2555 = vunpack.c.l.b16 %v2068
        %v2556 = vunpack.c.l.b16 %v2069
        %v2557 = vunpack.c.l.b16 %v2070
        %v2558 = vunpack.c.l.b16 %v2071
        %v2559 = vunpack.c.l.b16 %v2072
        %v2560 = vunpack.c.l.b16 %v2073
        %v2561 = vunpack.c.l.b16 %v2074
        %v2562 = vunpack.c.l.b16 %v2075
        %v2563 = vunpack.c.l.b16 %v2076
        %v2564 = vunpack.c.l.b16 %v2077
        %v2565 = vunpack.c.l.b16 %v2078
        %v2566 = vunpack.c.l.b16 %v2079
        %v2567 = vunpack.c.l.b16 %v2080
        %v2568 = vunpack.c.l.b16 %v2081
        %v2569 = vunpack.c.l.b16 %v2082
        %v2570 = vunpack.c.l.b16 %v2083
        %v2571 = vunpack.c.l.b16 %v2084
        %v2572 = vunpack.c.l.b16 %v2085
        %v2573 = vunpack.c.l.b16 %v2086
        %v2574 = vunpack.c.l.b16 %v2087
        %v2575 = vunpack.c.l.b16 %v2088
        %v2576 = vunpack.c.l.b16 %v2089
        %v2577 = vunpack.c.l.b16 %v2090
        %v2578 = vunpack.c.l.b16 %v2091
        %v2579 = vunpack.c.l.b16 %v2092
        %v2580 = vunpack.c.l.b16 %v2093
        %v2581 = vunpack.c.l.b16 %v2094
        %v2582 = vunpack.c.l.b16 %v2095
        %v2583 = vunpack.c.l.b16 %v2096
        %v2584 = vunpack.c.l.b16 %v2097
        %v2585 = vunpack.c.l.b16 %v2098
        %v2586 = vunpack.c.l.b16 %v2099
        %v2587 = vunpack.c.l.b16 %v2100
        %v2588 = vunpack.c.l.b16 %v2101
        %v2589 = vunpack.c.l.b16 %v2102
        %v2590 = vunpack.c.l.b16 %v2103
        %v2591 = vunpack.c.l.b16 %v2104
        %v2592 = vunpack.c.l.b16 %v2105
        %v2593 = vunpack.c.l.b16 %v2106
        %v2594 = vunpack.c.l.b16 %v2107
        %v2595 = vunpack.c.l.b16 %v2108
        %v2596 = vunpack.c.l.b16 %v2109
        %v2597 = vunpack.c.l.b16 %v2110
        %v2598 = vunpack.c.l.b16 %v2111
        %v2599 = vunpack.c.l.b16 %v2112
        %v2600 = vunpack.c.l.b16 %v2113
        %v2601 = vunpack.c.l.b16 %v2114
        %v2602 = vunpack.c.l.b16 %v2115
        %v2603 = vunpack.c.l.b16 %v2116
        %v2604 = vunpack.c.l.b16 %v2117
        %v2605 = vunpack.c.l.b16 %v2118
        %v2606 = vunpack.c.l.b16 %v2119
        %v2607 = vunpack.c.l.b16 %v2120
        %v2608 = vunpack.c.l.b16 %v2121
        %v2609 = vunpack.c.l.b16 %v2122
        %v2610 = vunpack.c.l.b16 %v2123
        %v2611 = vunpack.c.l.b16 %v2124
        %v2612 = vunpack.c.l.b16 %v2125
        %v2613 = vunpack.c.l.b16 %v2126
        %v2614 = vunpack.c.l.b16 %v2127
        %v2615 = vunpack.c.l.b16 %v2128
        %v2616 = vunpack.c.l.b16 %v2129
        %v2617 = vunpack.c.l.b16 %v2130
        %v2618 = vunpack.c.l.b16 %v2131
        %v2619 = vunpack.c.l.b16 %v2132
        %v2620 = vunpack.c.l.b16 %v2133
        %v2621 = vunpack.c.l.b16 %v2134
        %v2622 = vunpack.c.l.b16 %v2135
        %v2623 = vunpack.c.l.b16 %v2136
        %v2624 = vunpack.c.l.b16 %v2137
        %v2625 = vunpack.c.l.b16 %v2138
        %v2626 = vunpack.c.l.b16 %v2139
        %v2627 = vunpack.c.l.b16 %v2140
        %v2628 = vunpack.c.l.b16 %v2141
        %v2629 = vunpack.c.l.b16 %v2142
        %v2630 = vunpack.c.l.b16 %v2143
        %v2631 = vunpack.c.l.b16 %v2144
        %v2632 = vunpack.c.l.b16 %v2145
        %v2633 = vunpack.c.l.b16 %v2146
        %v2634 = vunpack.c.l.b16 %v2147
        %v2635 = vunpack.c.l.b16 %v2148
        %v2636 = vunpack.c.l.b16 %v2149
        %v2637 = vunpack.c.l.b16 %v2150
        %v2638 = vunpack.c.l.b16 %v2151
        %v2639 = vunpack.c.l.b16 %v2152
        %v2640 = vunpack.c.l.b16 %v2153
        %v2641 = vunpack.c.l.b16 %v2154
        %v2642 = vunpack.c.l.b16 %v2155
        %v2643 = vunpack.c.l.b16 %v2156
        %v2644 = vunpack.c.l.b16 %v2157
        %v2645 = vunpack.c.l.b16 %v2158
        %v2646 = vunpack.c.l.b16 %v2159
        %v2647 = vunpack.c.l.b16 %v2160
        %v2648 = vunpack.c.l.b16 %v2161
        %v2649 = vunpack.c.l.b16 %v2162
        %v2650 = vunpack.c.l.b16 %v2163
        %v2651 = vunpack.c.l.b16 %v2164
        %v2652 = vunpack.c.l.b16 %v2165
        %v2653 = vunpack.c.l.b16 %v2166
        %v2654 = vunpack.c.l.b16 %v2167
        %v2655 = vunpack.c.l.b16 %v2168
        %v2656 = vunpack.c.l.b16 %v2169
        %v2657 = vunpack.c.l.b16 %v2170
        %v2658 = vunpack.c.l.b16 %v2171
        %v2659 = vunpack.c.l.b16 %v2172
        %v2660 = vunpack.c.l.b16 %v2173
        %v2661 = vunpack.c.l.b16 %v2174
        %v2662 = vunpack.c.l.b16 %v2175
        %v2663 = vunpack.c.l.b16 %v2176
        %v2664 = vunpack.c.l.b16 %v2177
        %v2665 = vunpack.c.l.b16 %v2178
        %v2666 = vunpack.c.l.b16 %v2179
        %v2667 = vunpack.c.l.b16 %v2180
        %v2668 = vunpack.c.l.b16 %v2181
        %v2669 = vunpack.c.l.b16 %v2182
        %v2670 = vunpack.c.l.b16 %v2183
        %v2671 = vunpack.c.l.b16 %v2184
        %v2672 = vunpack.c.l.b16 %v2185
        %v2673 = vunpack.c.l.b16 %v2186
        %v2674 = vunpack.c.l.b16 %v2187
        %v2675 = vunpack.c.l.b16 %v2188
        %v2676 = vunpack.c.l.b16 %v2189
        %v2677 = vunpack.c.l.b16 %v2190
        %v2678 = vunpack.c.l.b16 %v2191
        %v2679 = vunpack.c.l.b16 %v2192
        %v2680 = vunpack.c.l.b16 %v2193
        %v2681 = vunpack.c.l.b16 %v2194
        %v2682 = vunpack.c.l.b16 %v2195
        %v2683 = vunpack.c.l.b16 %v2196
        %v2684 = vunpack.c.l.b16 %v2197
        %v2685 = vunpack.c.l.b16 %v2198
        %v2686 = vunpack.c.l.b16 %v2199
        %v2687 = vunpack.c.l.b16 %v2200
        %v2688 = vunpack.c.l.b16 %v2201
        %v2689 = vunpack.c.l.b16 %v2202
        %v2690 = vunpack.c.l.b16 %v2203
        %v2691 = vunpack.c.l.b16 %v2204
        %v2692 = vunpack.c.l.b16 %v2205
        %v2693 = vunpack.c.l.b16 %v2206
        %v2694 = vunpack.c.l.b16 %v2207
        %v2695 = vunpack.c.l.b16 %v2208
        %v2696 = vpack.c.b16 %v2457, %v2456
        %v2697 = vpack.c.b16 %v2459, %v2458
        %v2698 = vpack.c.b16 %v2461, %v2460
        %v2699 = vpack.c.b16 %v2463, %v2462
        %v2700 = vpack.c.b16 %v2465, %v2464
        %v2701 = vpack.c.b16 %v2467, %v2466
        %v2702 = vpack.c.b16 %v2469, %v2468
        %v2703 = vpack.c.b16 %v2471, %v2470
        %v2704 = vpack.c.b16 %v2473, %v2472
        %v2705 = vpack.c.b16 %v2475, %v2474
        %v2706 = vpack.c.b16 %v2477, %v2476
        %v2707 = vpack.c.b16 %v2479, %v2478
        %v2708 = vpack.c.b16 %v2481, %v2480
        %v2709 = vpack.c.b16 %v2483, %v2482
        %v2710 = vpack.c.b16 %v2485, %v2484
        %v2711 = vpack.c.b16 %v2487, %v2486
        %v2712 = vpack.c.b16 %v2489, %v2488
        %v2713 = vpack.c.b16 %v2491, %v2490
        %v2714 = vpack.c.b16 %v2493, %v2492
        %v2715 = vpack.c.b16 %v2495, %v2494
        %v2716 = vpack.c.b16 %v2497, %v2496
        %v2717 = vpack.c.b16 %v2499, %v2498
        %v2718 = vpack.c.b16 %v2501, %v2500
        %v2719 = vpack.c.b16 %v2503, %v2502
        %v2720 = vpack.c.b16 %v2505, %v2504
        %v2721 = vpack.c.b16 %v2507, %v2506
        %v2722 = vpack.c.b16 %v2509, %v2508
        %v2723 = vpack.c.b16 %v2511, %v2510
        %v2724 = vpack.c.b16 %v2513, %v2512
        %v2725 = vpack.c.b16 %v2515, %v2514
        %v2726 = vpack.c.b16 %v2517, %v2516
        %v2727 = vpack.c.b16 %v2519, %v2518
        %v2728 = vpack.c.b16 %v2521, %v2520
        %v2729 = vpack.c.b16 %v2523, %v2522
        %v2730 = vpack.c.b16 %v2525, %v2524
        %v2731 = vpack.c.b16 %v2527, %v2526
        %v2732 = vpack.c.b16 %v2529, %v2528
        %v2733 = vpack.c.b16 %v2531, %v2530
        %v2734 = vpack.c.b16 %v2533, %v2532
        %v2735 = vpack.c.b16 %v2535, %v2534
        %v2736 = vpack.c.b16 %v2537, %v2536
        %v2737 = vpack.c.b16 %v2539, %v2538
        %v2738 = vpack.c.b16 %v2541, %v2540
        %v2739 = vpack.c.b16 %v2543, %v2542
        %v2740 = vpack.c.b16 %v2545, %v2544
        %v2741 = vpack.c.b16 %v2547, %v2546
        %v2742 = vpack.c.b16 %v2549, %v2548
        %v2743 = vpack.c.b16 %v2551, %v2550
        %v2744 = vpack.c.b16 %v2553, %v2552
        %v2745 = vpack.c.b16 %v2555, %v2554
        %v2746 = vpack.c.b16 %v2557, %v2556
        %v2747 = vpack.c.b16 %v2559, %v2558
        %v2748 = vpack.c.b16 %v2561, %v2560
        %v2749 = vpack.c.b16 %v2563, %v2562
        %v2750 = vpack.c.b16 %v2565, %v2564
        %v2751 = vpack.c.b16 %v2567, %v2566
        %v2752 = vpack.c.b16 %v2569, %v2568
        %v2753 = vpack.c.b16 %v2571, %v2570
        %v2754 = vpack.c.b16 %v2573, %v2572
        %v2755 = vpack.c.b16 %v2575, %v2574
        %v2756 = vpack.c.b16 %v2577, %v2576
        %v2757 = vpack.c.b16 %v2579, %v2578
        %v2758 = vpack.c.b16 %v2581, %v2580
        %v2759 = vpack.c.b16 %v2583, %v2582
        %v2760 = vpack.c.b16 %v2585, %v2584
        %v2761 = vpack.c.b16 %v2587, %v2586
        %v2762 = vpack.c.b16 %v2589, %v2588
        %v2763 = vpack.c.b16 %v2591, %v2590
        %v2764 = vpack.c.b16 %v2593, %v2592
        %v2765 = vpack.c.b16 %v2595, %v2594
        %v2766 = vpack.c.b16 %v2597, %v2596
        %v2767 = vpack.c.b16 %v2599, %v2598
        %v2768 = vpack.c.b16 %v2601, %v2600
        %v2769 = vpack.c.b16 %v2603, %v2602
        %v2770 = vpack.c.b16 %v2605, %v2604
        %v2771 = vpack.c.b16 %v2607, %v2606
        %v2772 = vpack.c.b16 %v2609, %v2608
        %v2773 = vpack.c.b16 %v2611, %v2610
        %v2774 = vpack.c.b16 %v2613, %v2612
        %v2775 = vpack.c.b16 %v2615, %v2614
        %v2776 = vpack.c.b16 %v2617, %v2616
        %v2777 = vpack.c.b16 %v2619, %v2618
        %v2778 = vpack.c.b16 %v2621, %v2620
        %v2779 = vpack.c.b16 %v2623, %v2622
        %v2780 = vpack.c.b16 %v2625, %v2624
        %v2781 = vpack.c.b16 %v2627, %v2626
        %v2782 = vpack.c.b16 %v2629, %v2628
        %v2783 = vpack.c.b16 %v2631, %v2630
        %v2784 = vpack.c.b16 %v2633, %v2632
        %v2785 = vpack.c.b16 %v2635, %v2634
        %v2786 = vpack.c.b16 %v2637, %v2636
        %v2787 = vpack.c.b16 %v2639, %v2638
        %v2788 = vpack.c.b16 %v2641, %v2640
        %v2789 = vpack.c.b16 %v2643, %v2642
        %v2790 = vpack.c.b16 %v2645, %v2644
        %v2791 = vpack.c.b16 %v2647, %v2646
        %v2792 = vpack.c.b16 %v2649, %v2648
        %v2793 = vpack.c.b16 %v2651, %v2650
        %v2794 = vpack.c.b16 %v2653, %v2652
        %v2795 = vpack.c.b16 %v2655, %v2654
        %v2796 = vpack.c.b16 %v2657, %v2656
        %v2797 = vpack.c.b16 %v2659, %v2658
        %v2798 = vpack.c.b16 %v2661, %v2660
        %v2799 = vpack.c.b16 %v2663, %v2662
        %v2800 = vpack.c.b16 %v2665, %v2664
        %v2801 = vpack.c.b16 %v2667, %v2666
        %v2802 = vpack.c.b16 %v2669, %v2668
        %v2803 = vpack.c.b16 %v2671, %v2670
        %v2804 = vpack.c.b16 %v2673, %v2672
        %v2805 = vpack.c.b16 %v2675, %v2674
        %v2806 = vpack.c.b16 %v2677, %v2676
        %v2807 = vpack.c.b16 %v2679, %v2678
        %v2808 = vpack.c.b16 %v2681, %v2680
        %v2809 = vpack.c.b16 %v2683, %v2682
        %v2810 = vpack.c.b16 %v2685, %v2684
        %v2811 = vpack.c.b16 %v2687, %v2686
        %v2812 = vpack.c.b16 %v2689, %v2688
        %v2813 = vpack.c.b16 %v2691, %v2690
        %v2814 = vpack.c.b16 %v2693, %v2692
        %v2815 = vpack.c.b16 %v2695, %v2694
        %2936 = vmatprep.subr.bf16.mxu0 0
        %2937 = vmatpush1.bf16.msra.mxu0 %v2696
        %2938 = vmatprep.subr.bf16.mxu0 0
        %2939 = vmatpush1.bf16.msra.mxu0 %v2697
        %2940 = vmatprep.subr.bf16.mxu0 0
        %2941 = vmatpush1.bf16.msra.mxu0 %v2698
        %2942 = vmatprep.subr.bf16.mxu0 0
        %2943 = vmatpush1.bf16.msra.mxu0 %v2699
        %2944 = vmatprep.subr.bf16.mxu0 0
        %2945 = vmatpush1.bf16.msra.mxu0 %v2700
        %2946 = vmatprep.subr.bf16.mxu0 0
        %2947 = vmatpush1.bf16.msra.mxu0 %v2701
        %2948 = vmatprep.subr.bf16.mxu0 0
        %2949 = vmatpush1.bf16.msra.mxu0 %v2702
        %2950 = vmatprep.subr.bf16.mxu0 0
        %2951 = vmatpush1.bf16.msra.mxu0 %v2703
        %2952 = vmatprep.subr.bf16.mxu0 0
        %2953 = vmatpush1.bf16.msra.mxu0 %v2704
        %2954 = vmatprep.subr.bf16.mxu0 0
        %2955 = vmatpush1.bf16.msra.mxu0 %v2705
        %2956 = vmatprep.subr.bf16.mxu0 0
        %2957 = vmatpush1.bf16.msra.mxu0 %v2706
        %2958 = vmatprep.subr.bf16.mxu0 0
        %2959 = vmatpush1.bf16.msra.mxu0 %v2707
        %2960 = vmatprep.subr.bf16.mxu0 0
        %2961 = vmatpush1.bf16.msra.mxu0 %v2708
        %2962 = vmatprep.subr.bf16.mxu0 0
        %2963 = vmatpush1.bf16.msra.mxu0 %v2709
        %2964 = vmatprep.subr.bf16.mxu0 0
        %2965 = vmatpush1.bf16.msra.mxu0 %v2710
        %2966 = vmatprep.subr.bf16.mxu0 0
        %2967 = vmatpush1.bf16.msra.mxu0 %v2711
        %2968 = vmatprep.mubr.bf16.mxu0 %v1937
        %2969 = vmatmul.mubr.bf16.gmra.mrb[0].mxu0 %v1936
        %v2970 = vpop.f32.mrb[0].mxu0
        %v2971 = vadd.f32 %v2214, %v2970
        %v2972 = vpop.f32.mrb[0].mxu0
        %v2973 = vpop.f32.mrb[0].mxu0
        %v2974 = vadd.f32 %v2214, %v2973
        %v2975 = vpop.f32.mrb[0].mxu0
        %2976 = vmatprep.mubr.bf16.mxu0 %v1943
        %2977 = vmatmul.mubr.bf16.gmra.mrb[0].mxu0 %v1942
        %v2978 = vpop.f32.mrb[0].mxu0
        %v2979 = vadd.f32 %v2214, %v2978
        %v2980 = vpop.f32.mrb[0].mxu0
        %v2981 = vpop.f32.mrb[0].mxu0
        %v2982 = vadd.f32 %v2214, %v2981
        %v2983 = vpop.f32.mrb[0].mxu0
        %2984 = vmatprep.mubr.bf16.mxu0 %v1949
        %2985 = vmatmul.mubr.bf16.gmra.mrb[0].mxu0 %v1948
        %v2986 = vpop.f32.mrb[0].mxu0
        %v2987 = vadd.f32 %v2214, %v2986
        %v2988 = vpop.f32.mrb[0].mxu0
        %v2989 = vpop.f32.mrb[0].mxu0
        %v2990 = vadd.f32 %v2214, %v2989
        %v2991 = vpop.f32.mrb[0].mxu0
        %2992 = vmatprep.mubr.bf16.mxu0 %v1955
        %2993 = vmatmul.mubr.bf16.gmra.mrb[0].mxu0 %v1954
        %v2994 = vpop.f32.mrb[0].mxu0
        %v2995 = vadd.f32 %v2214, %v2994
        %v2996 = vpop.f32.mrb[0].mxu0
        %v2997 = vpop.f32.mrb[0].mxu0
        %v2998 = vadd.f32 %v2214, %v2997
        %v2999 = vpop.f32.mrb[0].mxu0
        %3000 = vdwg.mxu0
        %3001 = vmatprep.subr.bf16.mxu0 0
        %3002 = vmatpush1.bf16.msra.mxu0 %v2712
        %3003 = vmatprep.subr.bf16.mxu0 0
        %3004 = vmatpush1.bf16.msra.mxu0 %v2713
        %3005 = vmatprep.subr.bf16.mxu0 0
        %3006 = vmatpush1.bf16.msra.mxu0 %v2714
        %3007 = vmatprep.subr.bf16.mxu0 0
        %3008 = vmatpush1.bf16.msra.mxu0 %v2715
        %3009 = vmatprep.subr.bf16.mxu0 0
        %3010 = vmatpush1.bf16.msra.mxu0 %v2716
        %3011 = vmatprep.subr.bf16.mxu0 0
        %3012 = vmatpush1.bf16.msra.mxu0 %v2717
        %3013 = vmatprep.subr.bf16.mxu0 0
        %3014 = vmatpush1.bf16.msra.mxu0 %v2718
        %3015 = vmatprep.subr.bf16.mxu0 0
        %3016 = vmatpush1.bf16.msra.mxu0 %v2719
        %3017 = vmatprep.subr.bf16.mxu0 0
        %3018 = vmatpush1.bf16.msra.mxu0 %v2720
        %3019 = vmatprep.subr.bf16.mxu0 0
        %3020 = vmatpush1.bf16.msra.mxu0 %v2721
        %3021 = vmatprep.subr.bf16.mxu0 0
        %3022 = vmatpush1.bf16.msra.mxu0 %v2722
        %3023 = vmatprep.subr.bf16.mxu0 0
        %3024 = vmatpush1.bf16.msra.mxu0 %v2723
        %3025 = vmatprep.subr.bf16.mxu0 0
        %3026 = vmatpush1.bf16.msra.mxu0 %v2724
        %3027 = vmatprep.subr.bf16.mxu0 0
        %3028 = vmatpush1.bf16.msra.mxu0 %v2725
        %3029 = vmatprep.subr.bf16.mxu0 0
        %3030 = vmatpush1.bf16.msra.mxu0 %v2726
        %3031 = vmatprep.subr.bf16.mxu0 0
        %3032 = vmatpush1.bf16.msra.mxu0 %v2727
        %3033 = vmatprep.mubr.bf16.mxu0 %v1939
        %3034 = vmatmul.mubr.bf16.gmra.mrb[0].mxu0 %v1938
        %v3035 = vpop.f32.mrb[0].mxu0
        %v3036 = vadd.f32 %v2971, %v3035
        %v3037 = vpop.f32.mrb[0].mxu0
        %v3038 = vpop.f32.mrb[0].mxu0
        %v3039 = vadd.f32 %v2974, %v3038
        %v3040 = vpop.f32.mrb[0].mxu0
        %3041 = vmatprep.mubr.bf16.mxu0 %v1945
        %3042 = vmatmul.mubr.bf16.gmra.mrb[0].mxu0 %v1944
        %v3043 = vpop.f32.mrb[0].mxu0
        %v3044 = vadd.f32 %v2979, %v3043
        %v3045 = vpop.f32.mrb[0].mxu0
        %v3046 = vpop.f32.mrb[0].mxu0
        %v3047 = vadd.f32 %v2982, %v3046
        %v3048 = vpop.f32.mrb[0].mxu0
        %3049 = vmatprep.mubr.bf16.mxu0 %v1951
        %3050 = vmatmul.mubr.bf16.gmra.mrb[0].mxu0 %v1950
        %v3051 = vpop.f32.mrb[0].mxu0
        %v3052 = vadd.f32 %v2987, %v3051
        %v3053 = vpop.f32.mrb[0].mxu0
        %v3054 = vpop.f32.mrb[0].mxu0
        %v3055 = vadd.f32 %v2990, %v3054
        %v3056 = vpop.f32.mrb[0].mxu0
        %3057 = vmatprep.mubr.bf16.mxu0 %v1957
        %3058 = vmatmul.mubr.bf16.gmra.mrb[0].mxu0 %v1956
        %v3059 = vpop.f32.mrb[0].mxu0
        %v3060 = vadd.f32 %v2995, %v3059
        %v3061 = vpop.f32.mrb[0].mxu0
        %v3062 = vpop.f32.mrb[0].mxu0
        %v3063 = vadd.f32 %v2998, %v3062
        %v3064 = vpop.f32.mrb[0].mxu0
        %3065 = vdwg.mxu0
        %3066 = vmatprep.subr.bf16.mxu0 0
        %3067 = vmatpush1.bf16.msra.mxu0 %v2728
        %3068 = vmatprep.subr.bf16.mxu0 0
        %3069 = vmatpush1.bf16.msra.mxu0 %v2729
        %3070 = vmatprep.subr.bf16.mxu0 0
        %3071 = vmatpush1.bf16.msra.mxu0 %v2730
        %3072 = vmatprep.subr.bf16.mxu0 0
        %3073 = vmatpush1.bf16.msra.mxu0 %v2731
        %3074 = vmatprep.subr.bf16.mxu0 0
        %3075 = vmatpush1.bf16.msra.mxu0 %v2732
        %3076 = vmatprep.subr.bf16.mxu0 0
        %3077 = vmatpush1.bf16.msra.mxu0 %v2733
        %3078 = vmatprep.subr.bf16.mxu0 0
        %3079 = vmatpush1.bf16.msra.mxu0 %v2734
        %3080 = vmatprep.subr.bf16.mxu0 0
        %3081 = vmatpush1.bf16.msra.mxu0 %v2735
        %3082 = vmatprep.subr.bf16.mxu0 0
        %3083 = vmatpush1.bf16.msra.mxu0 %v2736
        %3084 = vmatprep.subr.bf16.mxu0 0
        %3085 = vmatpush1.bf16.msra.mxu0 %v2737
        %3086 = vmatprep.subr.bf16.mxu0 0
        %3087 = vmatpush1.bf16.msra.mxu0 %v2738
        %3088 = vmatprep.subr.bf16.mxu0 0
        %3089 = vmatpush1.bf16.msra.mxu0 %v2739
        %3090 = vmatprep.subr.bf16.mxu0 0
        %3091 = vmatpush1.bf16.msra.mxu0 %v2740
        %3092 = vmatprep.subr.bf16.mxu0 0
        %3093 = vmatpush1.bf16.msra.mxu0 %v2741
        %3094 = vmatprep.subr.bf16.mxu0 0
        %3095 = vmatpush1.bf16.msra.mxu0 %v2742
        %3096 = vmatprep.subr.bf16.mxu0 0
        %3097 = vmatpush1.bf16.msra.mxu0 %v2743
        %3098 = vmatprep.mubr.bf16.mxu0 %v1941
        %3099 = vmatmul.mubr.bf16.gmra.mrb[0].mxu0 %v1940
        %v3100 = vpop.f32.mrb[0].mxu0
        %v3101 = vadd.f32 %v3036, %v3100
        %v3102 = vpop.f32.mrb[0].mxu0
        %v3103 = vpop.f32.mrb[0].mxu0
        %v3104 = vadd.f32 %v3039, %v3103
        %v3105 = vpop.f32.mrb[0].mxu0
        %3106 = vmatprep.mubr.bf16.mxu0 %v1947
        %3107 = vmatmul.mubr.bf16.gmra.mrb[0].mxu0 %v1946
        %v3108 = vpop.f32.mrb[0].mxu0
        %v3109 = vadd.f32 %v3044, %v3108
        %v3110 = vpop.f32.mrb[0].mxu0
        %v3111 = vpop.f32.mrb[0].mxu0
        %v3112 = vadd.f32 %v3047, %v3111
        %v3113 = vpop.f32.mrb[0].mxu0
        %3114 = vmatprep.mubr.bf16.mxu0 %v1953
        %3115 = vmatmul.mubr.bf16.gmra.mrb[0].mxu0 %v1952
        %v3116 = vpop.f32.mrb[0].mxu0
        %v3117 = vadd.f32 %v3052, %v3116
        %v3118 = vpop.f32.mrb[0].mxu0
        %v3119 = vpop.f32.mrb[0].mxu0
        %v3120 = vadd.f32 %v3055, %v3119
        %v3121 = vpop.f32.mrb[0].mxu0
        %3122 = vmatprep.mubr.bf16.mxu0 %v1959
        %3123 = vmatmul.mubr.bf16.gmra.mrb[0].mxu0 %v1958
        %v3124 = vpop.f32.mrb[0].mxu0
        %v3125 = vadd.f32 %v3060, %v3124
        %v3126 = vpop.f32.mrb[0].mxu0
        %v3127 = vpop.f32.mrb[0].mxu0
        %v3128 = vadd.f32 %v3063, %v3127
        %v3129 = vpop.f32.mrb[0].mxu0
        %3130 = vdwg.mxu0
        %3131 = vmatprep.subr.bf16.mxu0 0
        %3132 = vmatpush1.bf16.msra.mxu0 %v2744
        %3133 = vmatprep.subr.bf16.mxu0 0
        %3134 = vmatpush1.bf16.msra.mxu0 %v2745
        %3135 = vmatprep.subr.bf16.mxu0 0
        %3136 = vmatpush1.bf16.msra.mxu0 %v2746
        %3137 = vmatprep.subr.bf16.mxu0 0
        %3138 = vmatpush1.bf16.msra.mxu0 %v2747
        %3139 = vmatprep.subr.bf16.mxu0 0
        %3140 = vmatpush1.bf16.msra.mxu0 %v2748
        %3141 = vmatprep.subr.bf16.mxu0 0
        %3142 = vmatpush1.bf16.msra.mxu0 %v2749
        %3143 = vmatprep.subr.bf16.mxu0 0
        %3144 = vmatpush1.bf16.msra.mxu0 %v2750
        %3145 = vmatprep.subr.bf16.mxu0 0
        %3146 = vmatpush1.bf16.msra.mxu0 %v2751
        %3147 = vmatprep.subr.bf16.mxu0 0
        %3148 = vmatpush1.bf16.msra.mxu0 %v2752
        %3149 = vmatprep.subr.bf16.mxu0 0
        %3150 = vmatpush1.bf16.msra.mxu0 %v2753
        %3151 = vmatprep.subr.bf16.mxu0 0
        %3152 = vmatpush1.bf16.msra.mxu0 %v2754
        %3153 = vmatprep.subr.bf16.mxu0 0
        %3154 = vmatpush1.bf16.msra.mxu0 %v2755
        %3155 = vmatprep.subr.bf16.mxu0 0
        %3156 = vmatpush1.bf16.msra.mxu0 %v2756
        %3157 = vmatprep.subr.bf16.mxu0 0
        %3158 = vmatpush1.bf16.msra.mxu0 %v2757
        %3159 = vmatprep.subr.bf16.mxu0 0
        %3160 = vmatpush1.bf16.msra.mxu0 %v2758
        %3161 = vmatprep.subr.bf16.mxu0 0
        %3162 = vmatpush1.bf16.msra.mxu0 %v2759
        %3163 = vmatprep.mubr.bf16.mxu0 %v1943
        %3164 = vmatmul.mubr.bf16.gmra.mrb[0].mxu0 %v1942
        %v3165 = vpop.f32.mrb[0].mxu0
        %v3166 = vadd.f32 %v3101, %v3165
        %v3167 = vpop.f32.mrb[0].mxu0
        %v3168 = vpop.f32.mrb[0].mxu0
        %v3169 = vadd.f32 %v3104, %v3168
        %v3170 = vpop.f32.mrb[0].mxu0
        %3171 = vmatprep.mubr.bf16.mxu0 %v1949
        %3172 = vmatmul.mubr.bf16.gmra.mrb[0].mxu0 %v1948
        %v3173 = vpop.f32.mrb[0].mxu0
        %v3174 = vadd.f32 %v3109, %v3173
        %v3175 = vpop.f32.mrb[0].mxu0
        %v3176 = vpop.f32.mrb[0].mxu0
        %v3177 = vadd.f32 %v3112, %v3176
        %v3178 = vpop.f32.mrb[0].mxu0
        %3179 = vmatprep.mubr.bf16.mxu0 %v1955
        %3180 = vmatmul.mubr.bf16.gmra.mrb[0].mxu0 %v1954
        %v3181 = vpop.f32.mrb[0].mxu0
        %v3182 = vadd.f32 %v3117, %v3181
        %v3183 = vpop.f32.mrb[0].mxu0
        %v3184 = vpop.f32.mrb[0].mxu0
        %v3185 = vadd.f32 %v3120, %v3184
        %v3186 = vpop.f32.mrb[0].mxu0
        %3187 = vmatprep.mubr.bf16.mxu0 %v1961
        %3188 = vmatmul.mubr.bf16.gmra.mrb[0].mxu0 %v1960
        %v3189 = vpop.f32.mrb[0].mxu0
        %v3190 = vadd.f32 %v3125, %v3189
        %v3191 = vpop.f32.mrb[0].mxu0
        %v3192 = vpop.f32.mrb[0].mxu0
        %v3193 = vadd.f32 %v3128, %v3192
        %v3194 = vpop.f32.mrb[0].mxu0
        %3195 = vdwg.mxu0
        %3196 = vmatprep.subr.bf16.mxu0 0
        %3197 = vmatpush1.bf16.msra.mxu0 %v2760
        %3198 = vmatprep.subr.bf16.mxu0 0
        %3199 = vmatpush1.bf16.msra.mxu0 %v2761
        %3200 = vmatprep.subr.bf16.mxu0 0
        %3201 = vmatpush1.bf16.msra.mxu0 %v2762
        %3202 = vmatprep.subr.bf16.mxu0 0
        %3203 = vmatpush1.bf16.msra.mxu0 %v2763
        %3204 = vmatprep.subr.bf16.mxu0 0
        %3205 = vmatpush1.bf16.msra.mxu0 %v2764
        %3206 = vmatprep.subr.bf16.mxu0 0
        %3207 = vmatpush1.bf16.msra.mxu0 %v2765
        %3208 = vmatprep.subr.bf16.mxu0 0
        %3209 = vmatpush1.bf16.msra.mxu0 %v2766
        %3210 = vmatprep.subr.bf16.mxu0 0
        %3211 = vmatpush1.bf16.msra.mxu0 %v2767
        %3212 = vmatprep.subr.bf16.mxu0 0
        %3213 = vmatpush1.bf16.msra.mxu0 %v2768
        %3214 = vmatprep.subr.bf16.mxu0 0
        %3215 = vmatpush1.bf16.msra.mxu0 %v2769
        %3216 = vmatprep.subr.bf16.mxu0 0
        %3217 = vmatpush1.bf16.msra.mxu0 %v2770
        %3218 = vmatprep.subr.bf16.mxu0 0
        %3219 = vmatpush1.bf16.msra.mxu0 %v2771
        %3220 = vmatprep.subr.bf16.mxu0 0
        %3221 = vmatpush1.bf16.msra.mxu0 %v2772
        %3222 = vmatprep.subr.bf16.mxu0 0
        %3223 = vmatpush1.bf16.msra.mxu0 %v2773
        %3224 = vmatprep.subr.bf16.mxu0 0
        %3225 = vmatpush1.bf16.msra.mxu0 %v2774
        %3226 = vmatprep.subr.bf16.mxu0 0
        %3227 = vmatpush1.bf16.msra.mxu0 %v2775
        %3228 = vmatprep.mubr.bf16.mxu0 %v1945
        %3229 = vmatmul.mubr.bf16.gmra.mrb[0].mxu0 %v1944
        %v3230 = vpop.f32.mrb[0].mxu0
        %v3231 = vadd.f32 %v3166, %v3230
        %v3232 = vpop.f32.mrb[0].mxu0
        %v3233 = vpop.f32.mrb[0].mxu0
        %v3234 = vadd.f32 %v3169, %v3233
        %v3235 = vpop.f32.mrb[0].mxu0
        %3236 = vmatprep.mubr.bf16.mxu0 %v1951
        %3237 = vmatmul.mubr.bf16.gmra.mrb[0].mxu0 %v1950
        %v3238 = vpop.f32.mrb[0].mxu0
        %v3239 = vadd.f32 %v3174, %v3238
        %v3240 = vpop.f32.mrb[0].mxu0
        %v3241 = vpop.f32.mrb[0].mxu0
        %v3242 = vadd.f32 %v3177, %v3241
        %v3243 = vpop.f32.mrb[0].mxu0
        %3244 = vmatprep.mubr.bf16.mxu0 %v1957
        %3245 = vmatmul.mubr.bf16.gmra.mrb[0].mxu0 %v1956
        %v3246 = vpop.f32.mrb[0].mxu0
        %v3247 = vadd.f32 %v3182, %v3246
        %v3248 = vpop.f32.mrb[0].mxu0
        %v3249 = vpop.f32.mrb[0].mxu0
        %v3250 = vadd.f32 %v3185, %v3249
        %v3251 = vpop.f32.mrb[0].mxu0
        %3252 = vmatprep.mubr.bf16.mxu0 %v1963
        %3253 = vmatmul.mubr.bf16.gmra.mrb[0].mxu0 %v1962
        %v3254 = vpop.f32.mrb[0].mxu0
        %v3255 = vadd.f32 %v3190, %v3254
        %v3256 = vpop.f32.mrb[0].mxu0
        %v3257 = vpop.f32.mrb[0].mxu0
        %v3258 = vadd.f32 %v3193, %v3257
        %v3259 = vpop.f32.mrb[0].mxu0
        %3260 = vdwg.mxu0
        %3261 = vmatprep.subr.bf16.mxu0 0
        %3262 = vmatpush1.bf16.msra.mxu0 %v2776
        %3263 = vmatprep.subr.bf16.mxu0 0
        %3264 = vmatpush1.bf16.msra.mxu0 %v2777
        %3265 = vmatprep.subr.bf16.mxu0 0
        %3266 = vmatpush1.bf16.msra.mxu0 %v2778
        %3267 = vmatprep.subr.bf16.mxu0 0
        %3268 = vmatpush1.bf16.msra.mxu0 %v2779
        %3269 = vmatprep.subr.bf16.mxu0 0
        %3270 = vmatpush1.bf16.msra.mxu0 %v2780
        %3271 = vmatprep.subr.bf16.mxu0 0
        %3272 = vmatpush1.bf16.msra.mxu0 %v2781
        %3273 = vmatprep.subr.bf16.mxu0 0
        %3274 = vmatpush1.bf16.msra.mxu0 %v2782
        %3275 = vmatprep.subr.bf16.mxu0 0
        %3276 = vmatpush1.bf16.msra.mxu0 %v2783
        %3277 = vmatprep.subr.bf16.mxu0 0
        %3278 = vmatpush1.bf16.msra.mxu0 %v2784
        %3279 = vmatprep.subr.bf16.mxu0 0
        %3280 = vmatpush1.bf16.msra.mxu0 %v2785
        %3281 = vmatprep.subr.bf16.mxu0 0
        %3282 = vmatpush1.bf16.msra.mxu0 %v2786
        %3283 = vmatprep.subr.bf16.mxu0 0
        %3284 = vmatpush1.bf16.msra.mxu0 %v2787
        %3285 = vmatprep.subr.bf16.mxu0 0
        %3286 = vmatpush1.bf16.msra.mxu0 %v2788
        %3287 = vmatprep.subr.bf16.mxu0 0
        %3288 = vmatpush1.bf16.msra.mxu0 %v2789
        %3289 = vmatprep.subr.bf16.mxu0 0
        %3290 = vmatpush1.bf16.msra.mxu0 %v2790
        %3291 = vmatprep.subr.bf16.mxu0 0
        %3292 = vmatpush1.bf16.msra.mxu0 %v2791
        %3293 = vmatprep.mubr.bf16.mxu0 %v1947
        %3294 = vmatmul.mubr.bf16.gmra.mrb[0].mxu0 %v1946
        %v3295 = vpop.f32.mrb[0].mxu0
        %v3296 = vadd.f32 %v3231, %v3295
        %v3297 = vpop.f32.mrb[0].mxu0
        %v3298 = vpop.f32.mrb[0].mxu0
        %v3299 = vadd.f32 %v3234, %v3298
        %v3300 = vpop.f32.mrb[0].mxu0
        %3301 = vmatprep.mubr.bf16.mxu0 %v1953
        %3302 = vmatmul.mubr.bf16.gmra.mrb[0].mxu0 %v1952
        %v3303 = vpop.f32.mrb[0].mxu0
        %v3304 = vadd.f32 %v3239, %v3303
        %v3305 = vpop.f32.mrb[0].mxu0
        %v3306 = vpop.f32.mrb[0].mxu0
        %v3307 = vadd.f32 %v3242, %v3306
        %v3308 = vpop.f32.mrb[0].mxu0
        %3309 = vmatprep.mubr.bf16.mxu0 %v1959
        %3310 = vmatmul.mubr.bf16.gmra.mrb[0].mxu0 %v1958
        %v3311 = vpop.f32.mrb[0].mxu0
        %v3312 = vadd.f32 %v3247, %v3311
        %v3313 = vpop.f32.mrb[0].mxu0
        %v3314 = vpop.f32.mrb[0].mxu0
        %v3315 = vadd.f32 %v3250, %v3314
        %v3316 = vpop.f32.mrb[0].mxu0
        %3317 = vmatprep.mubr.bf16.mxu0 %v1965
        %3318 = vmatmul.mubr.bf16.gmra.mrb[0].mxu0 %v1964
        %v3319 = vpop.f32.mrb[0].mxu0
        %v3320 = vadd.f32 %v3255, %v3319
        %v3321 = vpop.f32.mrb[0].mxu0
        %v3322 = vpop.f32.mrb[0].mxu0
        %v3323 = vadd.f32 %v3258, %v3322
        %v3324 = vpop.f32.mrb[0].mxu0
        %3325 = vdwg.mxu0
        %3326 = vmatprep.subr.bf16.mxu0 0
        %3327 = vmatpush1.bf16.msra.mxu0 %v2792
        %3328 = vmatprep.subr.bf16.mxu0 0
        %3329 = vmatpush1.bf16.msra.mxu0 %v2793
        %3330 = vmatprep.subr.bf16.mxu0 0
        %3331 = vmatpush1.bf16.msra.mxu0 %v2794
        %3332 = vmatprep.subr.bf16.mxu0 0
        %3333 = vmatpush1.bf16.msra.mxu0 %v2795
        %3334 = vmatprep.subr.bf16.mxu0 0
        %3335 = vmatpush1.bf16.msra.mxu0 %v2796
        %3336 = vmatprep.subr.bf16.mxu0 0
        %3337 = vmatpush1.bf16.msra.mxu0 %v2797
        %3338 = vmatprep.subr.bf16.mxu0 0
        %3339 = vmatpush1.bf16.msra.mxu0 %v2798
        %3340 = vmatprep.subr.bf16.mxu0 0
        %3341 = vmatpush1.bf16.msra.mxu0 %v2799
        %3342 = vmatprep.subr.bf16.mxu0 0
        %3343 = vmatpush1.bf16.msra.mxu0 %v2800
        %3344 = vmatprep.subr.bf16.mxu0 0
        %3345 = vmatpush1.bf16.msra.mxu0 %v2801
        %3346 = vmatprep.subr.bf16.mxu0 0
        %3347 = vmatpush1.bf16.msra.mxu0 %v2802
        %3348 = vmatprep.subr.bf16.mxu0 0
        %3349 = vmatpush1.bf16.msra.mxu0 %v2803
        %3350 = vmatprep.subr.bf16.mxu0 0
        %3351 = vmatpush1.bf16.msra.mxu0 %v2804
        %3352 = vmatprep.subr.bf16.mxu0 0
        %3353 = vmatpush1.bf16.msra.mxu0 %v2805
        %3354 = vmatprep.subr.bf16.mxu0 0
        %3355 = vmatpush1.bf16.msra.mxu0 %v2806
        %3356 = vmatprep.subr.bf16.mxu0 0
        %3357 = vmatpush1.bf16.msra.mxu0 %v2807
        %3358 = vmatprep.mubr.bf16.mxu0 %v1949
        %3359 = vmatmul.mubr.bf16.gmra.mrb[0].mxu0 %v1948
        %v3360 = vpop.f32.mrb[0].mxu0
        %v3361 = vadd.f32 %v3296, %v3360
        %v3362 = vpop.f32.mrb[0].mxu0
        %v3363 = vpop.f32.mrb[0].mxu0
        %v3364 = vadd.f32 %v3299, %v3363
        %v3365 = vpop.f32.mrb[0].mxu0
        %3366 = vmatprep.mubr.bf16.mxu0 %v1955
        %3367 = vmatmul.mubr.bf16.gmra.mrb[0].mxu0 %v1954
        %v3368 = vpop.f32.mrb[0].mxu0
        %v3369 = vadd.f32 %v3304, %v3368
        %v3370 = vpop.f32.mrb[0].mxu0
        %v3371 = vpop.f32.mrb[0].mxu0
        %v3372 = vadd.f32 %v3307, %v3371
        %v3373 = vpop.f32.mrb[0].mxu0
        %3374 = vmatprep.mubr.bf16.mxu0 %v1961
        %3375 = vmatmul.mubr.bf16.gmra.mrb[0].mxu0 %v1960
        %v3376 = vpop.f32.mrb[0].mxu0
        %v3377 = vadd.f32 %v3312, %v3376
        %v3378 = vpop.f32.mrb[0].mxu0
        %v3379 = vpop.f32.mrb[0].mxu0
        %v3380 = vadd.f32 %v3315, %v3379
        %v3381 = vpop.f32.mrb[0].mxu0
        %3382 = vmatprep.mubr.bf16.mxu0 %v1967
        %3383 = vmatmul.mubr.bf16.gmra.mrb[0].mxu0 %v1966
        %v3384 = vpop.f32.mrb[0].mxu0
        %v3385 = vadd.f32 %v3320, %v3384
        %v3386 = vpop.f32.mrb[0].mxu0
        %v3387 = vpop.f32.mrb[0].mxu0
        %v3388 = vadd.f32 %v3323, %v3387
        %v3389 = vpop.f32.mrb[0].mxu0
        %3390 = vdwg.mxu0
        %3391 = vmatprep.subr.bf16.mxu0 0
        %3392 = vmatpush1.bf16.msra.mxu0 %v2808
        %3393 = vmatprep.subr.bf16.mxu0 0
        %3394 = vmatpush1.bf16.msra.mxu0 %v2809
        %3395 = vmatprep.subr.bf16.mxu0 0
        %3396 = vmatpush1.bf16.msra.mxu0 %v2810
        %3397 = vmatprep.subr.bf16.mxu0 0
        %3398 = vmatpush1.bf16.msra.mxu0 %v2811
        %3399 = vmatprep.subr.bf16.mxu0 0
        %3400 = vmatpush1.bf16.msra.mxu0 %v2812
        %3401 = vmatprep.subr.bf16.mxu0 0
        %3402 = vmatpush1.bf16.msra.mxu0 %v2813
        %3403 = vmatprep.subr.bf16.mxu0 0
        %3404 = vmatpush1.bf16.msra.mxu0 %v2814
        %3405 = vmatprep.subr.bf16.mxu0 0
        %3406 = vmatpush1.bf16.msra.mxu0 %v2815
        %3407 = vmatprep.subr.bf16.mxu0 0
        %3408 = vmatpush1.bf16.msra.mxu0 0
        %3409 = vmatprep.subr.bf16.mxu0 0
        %3410 = vmatpush1.bf16.msra.mxu0 0
        %3411 = vmatprep.subr.bf16.mxu0 0
        %3412 = vmatpush1.bf16.msra.mxu0 0
        %3413 = vmatprep.subr.bf16.mxu0 0
        %3414 = vmatpush1.bf16.msra.mxu0 0
        %3415 = vmatprep.subr.bf16.mxu0 0
        %3416 = vmatpush1.bf16.msra.mxu0 0
        %3417 = vmatprep.subr.bf16.mxu0 0
        %3418 = vmatpush1.bf16.msra.mxu0 0
        %3419 = vmatprep.subr.bf16.mxu0 0
        %3420 = vmatpush1.bf16.msra.mxu0 0
        %3421 = vmatprep.subr.bf16.mxu0 0
        %3422 = vmatpush1.bf16.msra.mxu0 0
        %3423 = vmatprep.mubr.bf16.mxu0 0
        %3424 = vmatmul.mubr.bf16.gmra.mrb[0].mxu0 %v1950
        %v3425 = vpop.f32.mrb[0].mxu0
        %v3426 = vadd.f32 %v3361, %v3425
        %v3427 = vpop.f32.mrb[0].mxu0
        %v3428 = vpop.f32.mrb[0].mxu0
        %v3429 = vadd.f32 %v3364, %v3428
        %v3430 = vpop.f32.mrb[0].mxu0
        %3431 = vmatprep.mubr.bf16.mxu0 0
        %3432 = vmatmul.mubr.bf16.gmra.mrb[0].mxu0 %v1956
        %v3433 = vpop.f32.mrb[0].mxu0
        %v3434 = vadd.f32 %v3369, %v3433
        %v3435 = vpop.f32.mrb[0].mxu0
        %v3436 = vpop.f32.mrb[0].mxu0
        %v3437 = vadd.f32 %v3372, %v3436
        %v3438 = vpop.f32.mrb[0].mxu0
        %3439 = vmatprep.mubr.bf16.mxu0 0
        %3440 = vmatmul.mubr.bf16.gmra.mrb[0].mxu0 %v1962
        %v3441 = vpop.f32.mrb[0].mxu0
        %v3442 = vadd.f32 %v3377, %v3441
        %v3443 = vpop.f32.mrb[0].mxu0
        %v3444 = vpop.f32.mrb[0].mxu0
        %v3445 = vadd.f32 %v3380, %v3444
        %v3446 = vpop.f32.mrb[0].mxu0
        %3447 = vmatprep.mubr.bf16.mxu0 0
        %3448 = vmatmul.mubr.bf16.gmra.mrb[0].mxu0 %v1968
        %v3449 = vpop.f32.mrb[0].mxu0
        %v3450 = vadd.f32 %v3385, %v3449
        %v3451 = vpop.f32.mrb[0].mxu0
        %v3452 = vpop.f32.mrb[0].mxu0
        %v3453 = vadd.f32 %v3388, %v3452
        %v3454 = vpop.f32.mrb[0].mxu0
        %3455 = vdwg.mxu0
        %v3456 = vmax.f32 %v3426, 0.0
        %v3457 = vmax.f32 %v3429, 0.0
        %v3458 = vmax.f32 %v3434, 0.0
        %v3459 = vmax.f32 %v3437, 0.0
        %v3460 = vmax.f32 %v3442, 0.0
        %v3461 = vmax.f32 %v3445, 0.0
        %v3462 = vmax.f32 %v3450, 0.0
        %v3463 = vmax.f32 %v3453, 0.0
        %v3464 = vpack.c.bf16 %v3457, %v3456
        %v3465 = vpack.c.bf16 %v3459, %v3458
        %v3466 = vpack.c.bf16 %v3461, %v3460
        %v3467 = vpack.c.bf16 %v3463, %v3462
        %v3468 = vld [vmem:[%s6] sm:$0xf]
        %v3469 = vld [vmem:[%s6 + $0x4] sm:$0xf]
        %v3470 = vld [vmem:[%s6 + $0x8] sm:$0xf]
        %v3471 = vld [vmem:[%s6 + $0xc] sm:$0xf]
        %v3472 = vld [vmem:[%s6 + $0x10] sm:$0xf]
        %v3473 = vld [vmem:[%s6 + $0x14] sm:$0xf]
        %v3474 = vld [vmem:[%s6 + $0x18] sm:$0xf]
        %v3475 = vld [vmem:[%s6 + $0x1c] sm:$0xf]
        %v3476 = vld [vmem:[%s6 + $0x20] sm:$0xf]
        %v3477 = vld [vmem:[%s6 + $0x24] sm:$0xf]
        %v3478 = vld [vmem:[%s6 + $0x28] sm:$0xf]
        %v3479 = vld [vmem:[%s6 + $0x2c] sm:$0xf]
        %v3480 = vld [vmem:[%s6 + $0x30] sm:$0xf]
        %v3481 = vld [vmem:[%s6 + $0x34] sm:$0xf]
        %v3482 = vld [vmem:[%s6 + $0x38] sm:$0xf]
        %v3483 = vld [vmem:[%s6 + $0x3c] sm:$0xf]
        %v3484 = vld [vmem:[%s6 + $0x40] sm:$0xf]
        %v3485 = vld [vmem:[%s6 + $0x44] sm:$0xf]
        %v3486 = vld [vmem:[%s6 + $0x48] sm:$0xf]
        %v3487 = vld [vmem:[%s6 + $0x4c] sm:$0xf]
        %v3488 = vld [vmem:[%s6 + $0x50] sm:$0xf]
        %v3489 = vld [vmem:[%s6 + $0x54] sm:$0xf]
        %v3490 = vld [vmem:[%s6 + $0x58] sm:$0xf]
        %v3491 = vld [vmem:[%s6 + $0x5c] sm:$0xf]
        %v3492 = vld [vmem:[%s6 + $0x60] sm:$0xf]
        %v3493 = vld [vmem:[%s6 + $0x64] sm:$0xf]
        %v3494 = vld [vmem:[%s6 + $0x68] sm:$0xf]
        %v3495 = vld [vmem:[%s6 + $0x6c] sm:$0xf]
        %v3496 = vld [vmem:[%s6 + $0x70] sm:$0xf]
        %v3497 = vld [vmem:[%s6 + $0x74] sm:$0xf]
        %v3498 = vld [vmem:[%s6 + $0x78] sm:$0xf]
        %v3499 = vld [vmem:[%s6 + $0x7c] sm:$0xf]
        %v3500 = vld [vmem:[%s6 + $0x80] sm:$0xf]
        %v3501 = vld [vmem:[%s6 + $0x84] sm:$0xf]
        %v3502 = vld [vmem:[%s6 + $0x88] sm:$0xf]
        %v3503 = vld [vmem:[%s6 + $0x8c] sm:$0xf]
        %v3504 = vld [vmem:[%s6 + $0x90] sm:$0xf]
        %v3505 = vld [vmem:[%s6 + $0x94] sm:$0xf]
        %v3506 = vld [vmem:[%s6 + $0x98] sm:$0xf]
        %v3507 = vld [vmem:[%s6 + $0x9c] sm:$0xf]
        %v3508 = vld [vmem:[%s6 + $0xa0] sm:$0xf]
        %v3509 = vld [vmem:[%s6 + $0xa4] sm:$0xf]
        %v3510 = vld [vmem:[%s6 + $0xa8] sm:$0xf]
        %v3511 = vld [vmem:[%s6 + $0xac] sm:$0xf]
        %v3512 = vld [vmem:[%s6 + $0xb0] sm:$0xf]
        %v3513 = vld [vmem:[%s6 + $0xb4] sm:$0xf]
        %v3514 = vld [vmem:[%s6 + $0xb8] sm:$0xf]
        %v3515 = vld [vmem:[%s6 + $0xbc] sm:$0xf]
        %v3516 = vld [vmem:[%s7] sm:$0x1]
        %v3518 = vlaneseq
        %v3519 = vshrl.u32 %v3518, 7
        %v3520 = vsub.s32 0, %v3519
        %v3521 = vrot.slane %v3516, %v3520
        %v3571 = vunpack.c.l.b16 %v3468
        %v3572 = vunpack.c.l.b16 %v3469
        %v3573 = vunpack.c.l.b16 %v3470
        %v3574 = vunpack.c.l.b16 %v3471
        %v3575 = vunpack.c.l.b16 %v3472
        %v3576 = vunpack.c.l.b16 %v3473
        %v3577 = vunpack.c.l.b16 %v3474
        %v3578 = vunpack.c.l.b16 %v3475
        %v3579 = vunpack.c.l.b16 %v3476
        %v3580 = vunpack.c.l.b16 %v3477
        %v3581 = vunpack.c.l.b16 %v3478
        %v3582 = vunpack.c.l.b16 %v3479
        %v3583 = vunpack.c.l.b16 %v3480
        %v3584 = vunpack.c.l.b16 %v3481
        %v3585 = vunpack.c.l.b16 %v3482
        %v3586 = vunpack.c.l.b16 %v3483
        %v3587 = vunpack.c.l.b16 %v3484
        %v3588 = vunpack.c.l.b16 %v3485
        %v3589 = vunpack.c.l.b16 %v3486
        %v3590 = vunpack.c.l.b16 %v3487
        %v3591 = vunpack.c.l.b16 %v3488
        %v3592 = vunpack.c.l.b16 %v3489
        %v3593 = vunpack.c.l.b16 %v3490
        %v3594 = vunpack.c.l.b16 %v3491
        %v3595 = vunpack.c.l.b16 %v3492
        %v3596 = vunpack.c.l.b16 %v3493
        %v3597 = vunpack.c.l.b16 %v3494
        %v3598 = vunpack.c.l.b16 %v3495
        %v3599 = vunpack.c.l.b16 %v3496
        %v3600 = vunpack.c.l.b16 %v3497
        %v3601 = vunpack.c.l.b16 %v3498
        %v3602 = vunpack.c.l.b16 %v3499
        %v3603 = vunpack.c.l.b16 %v3500
        %v3604 = vunpack.c.l.b16 %v3501
        %v3605 = vunpack.c.l.b16 %v3502
        %v3606 = vunpack.c.l.b16 %v3503
        %v3607 = vunpack.c.l.b16 %v3504
        %v3608 = vunpack.c.l.b16 %v3505
        %v3609 = vunpack.c.l.b16 %v3506
        %v3610 = vunpack.c.l.b16 %v3507
        %v3611 = vunpack.c.l.b16 %v3508
        %v3612 = vunpack.c.l.b16 %v3509
        %v3613 = vunpack.c.l.b16 %v3510
        %v3614 = vunpack.c.l.b16 %v3511
        %v3615 = vunpack.c.l.b16 %v3512
        %v3616 = vunpack.c.l.b16 %v3513
        %v3617 = vunpack.c.l.b16 %v3514
        %v3618 = vunpack.c.l.b16 %v3515
        %v3619 = vpack.c.b16 %v3572, %v3571
        %v3620 = vpack.c.b16 %v3574, %v3573
        %v3621 = vpack.c.b16 %v3576, %v3575
        %v3622 = vpack.c.b16 %v3578, %v3577
        %v3623 = vpack.c.b16 %v3580, %v3579
        %v3624 = vpack.c.b16 %v3582, %v3581
        %v3625 = vpack.c.b16 %v3584, %v3583
        %v3626 = vpack.c.b16 %v3586, %v3585
        %v3627 = vpack.c.b16 %v3588, %v3587
        %v3628 = vpack.c.b16 %v3590, %v3589
        %v3629 = vpack.c.b16 %v3592, %v3591
        %v3630 = vpack.c.b16 %v3594, %v3593
        %v3631 = vpack.c.b16 %v3596, %v3595
        %v3632 = vpack.c.b16 %v3598, %v3597
        %v3633 = vpack.c.b16 %v3600, %v3599
        %v3634 = vpack.c.b16 %v3602, %v3601
        %v3635 = vpack.c.b16 %v3604, %v3603
        %v3636 = vpack.c.b16 %v3606, %v3605
        %v3637 = vpack.c.b16 %v3608, %v3607
        %v3638 = vpack.c.b16 %v3610, %v3609
        %v3639 = vpack.c.b16 %v3612, %v3611
        %v3640 = vpack.c.b16 %v3614, %v3613
        %v3641 = vpack.c.b16 %v3616, %v3615
        %v3642 = vpack.c.b16 %v3618, %v3617
        %3667 = vmatprep.subr.bf16.mxu0 0
        %3668 = vmatpush1.bf16.msra.mxu0 %v3619
        %3669 = vmatprep.subr.bf16.mxu0 0
        %3670 = vmatpush1.bf16.msra.mxu0 %v3620
        %3671 = vmatprep.subr.bf16.mxu0 0
        %3672 = vmatpush1.bf16.msra.mxu0 %v3621
        %3673 = vmatprep.subr.bf16.mxu0 0
        %3674 = vmatpush1.bf16.msra.mxu0 %v3622
        %3675 = vmatprep.subr.bf16.mxu0 0
        %3676 = vmatpush1.bf16.msra.mxu0 %v3623
        %3677 = vmatprep.subr.bf16.mxu0 0
        %3678 = vmatpush1.bf16.msra.mxu0 %v3624
        %3679 = vmatprep.subr.bf16.mxu0 0
        %3680 = vmatpush1.bf16.msra.mxu0 %v3625
        %3681 = vmatprep.subr.bf16.mxu0 0
        %3682 = vmatpush1.bf16.msra.mxu0 %v3626
        %3683 = vmatprep.subr.bf16.mxu0 0
        %3684 = vmatpush1.bf16.msra.mxu0 %v3627
        %3685 = vmatprep.subr.bf16.mxu0 0
        %3686 = vmatpush1.bf16.msra.mxu0 %v3628
        %3687 = vmatprep.subr.bf16.mxu0 0
        %3688 = vmatpush1.bf16.msra.mxu0 %v3629
        %3689 = vmatprep.subr.bf16.mxu0 0
        %3690 = vmatpush1.bf16.msra.mxu0 %v3630
        %3691 = vmatprep.subr.bf16.mxu0 0
        %3692 = vmatpush1.bf16.msra.mxu0 %v3631
        %3693 = vmatprep.subr.bf16.mxu0 0
        %3694 = vmatpush1.bf16.msra.mxu0 %v3632
        %3695 = vmatprep.subr.bf16.mxu0 0
        %3696 = vmatpush1.bf16.msra.mxu0 %v3633
        %3697 = vmatprep.subr.bf16.mxu0 0
        %3698 = vmatpush1.bf16.msra.mxu0 %v3634
        %3699 = vmatprep.mubr.bf16.mxu0 %v3465
        %3700 = vmatmul.mubr.bf16.gmra.mrb[0].mxu0 %v3464
        %v3701 = vpop.f32.mrb[0].mxu0
        %v3702 = vadd.f32 %v3521, %v3701
        %v3703 = vpop.f32.mrb[0].mxu0
        %v3704 = vpop.f32.mrb[0].mxu0
        %v3705 = vadd.f32 %v3521, %v3704
        %v3706 = vpop.f32.mrb[0].mxu0
        %3707 = vmatprep.mubr.bf16.mxu0 %v3466
        %3708 = vmatmul.mubr.bf16.gmra.mrb[0].mxu0 %v3465
        %v3709 = vpop.f32.mrb[0].mxu0
        %v3710 = vadd.f32 %v3521, %v3709
        %v3711 = vpop.f32.mrb[0].mxu0
        %v3712 = vpop.f32.mrb[0].mxu0
        %v3713 = vadd.f32 %v3521, %v3712
        %v3714 = vpop.f32.mrb[0].mxu0
        %3715 = vdwg.mxu0
        %3716 = vmatprep.subr.bf16.mxu0 0
        %3717 = vmatpush1.bf16.msra.mxu0 %v3635
        %3718 = vmatprep.subr.bf16.mxu0 0
        %3719 = vmatpush1.bf16.msra.mxu0 %v3636
        %3720 = vmatprep.subr.bf16.mxu0 0
        %3721 = vmatpush1.bf16.msra.mxu0 %v3637
        %3722 = vmatprep.subr.bf16.mxu0 0
        %3723 = vmatpush1.bf16.msra.mxu0 %v3638
        %3724 = vmatprep.subr.bf16.mxu0 0
        %3725 = vmatpush1.bf16.msra.mxu0 %v3639
        %3726 = vmatprep.subr.bf16.mxu0 0
        %3727 = vmatpush1.bf16.msra.mxu0 %v3640
        %3728 = vmatprep.subr.bf16.mxu0 0
        %3729 = vmatpush1.bf16.msra.mxu0 %v3641
        %3730 = vmatprep.subr.bf16.mxu0 0
        %3731 = vmatpush1.bf16.msra.mxu0 %v3642
        %3732 = vmatprep.subr.bf16.mxu0 0
        %3733 = vmatpush1.bf16.msra.mxu0 0
        %3734 = vmatprep.subr.bf16.mxu0 0
        %3735 = vmatpush1.bf16.msra.mxu0 0
        %3736 = vmatprep.subr.bf16.mxu0 0
        %3737 = vmatpush1.bf16.msra.mxu0 0
        %3738 = vmatprep.subr.bf16.mxu0 0
        %3739 = vmatpush1.bf16.msra.mxu0 0
        %3740 = vmatprep.subr.bf16.mxu0 0
        %3741 = vmatpush1.bf16.msra.mxu0 0
        %3742 = vmatprep.subr.bf16.mxu0 0
        %3743 = vmatpush1.bf16.msra.mxu0 0
        %3744 = vmatprep.subr.bf16.mxu0 0
        %3745 = vmatpush1.bf16.msra.mxu0 0
        %3746 = vmatprep.subr.bf16.mxu0 0
        %3747 = vmatpush1.bf16.msra.mxu0 0
        %3748 = vmatprep.mubr.bf16.mxu0 0
        %3749 = vmatmul.mubr.bf16.gmra.mrb[0].mxu0 %v3466
        %v3750 = vpop.f32.mrb[0].mxu0
        %v3751 = vadd.f32 %v3702, %v3750
        %v3752 = vpop.f32.mrb[0].mxu0
        %v3753 = vpop.f32.mrb[0].mxu0
        %v3754 = vadd.f32 %v3705, %v3753
        %v3755 = vpop.f32.mrb[0].mxu0
        %3756 = vmatprep.mubr.bf16.mxu0 0
        %3757 = vmatmul.mubr.bf16.gmra.mrb[0].mxu0 %v3467
        %v3758 = vpop.f32.mrb[0].mxu0
        %v3759 = vadd.f32 %v3710, %v3758
        %v3760 = vpop.f32.mrb[0].mxu0
        %v3761 = vpop.f32.mrb[0].mxu0
        %v3762 = vadd.f32 %v3713, %v3761
        %v3763 = vpop.f32.mrb[0].mxu0
        %3764 = vdwg.mxu0
        %v3765 = vmax.f32 %v3751, 0.0
        %v3766 = vmax.f32 %v3754, 0.0
        %v3767 = vmax.f32 %v3759, 0.0
        %v3768 = vmax.f32 %v3762, 0.0
        %v3769 = vpack.c.bf16 %v3766, %v3765
        %v3770 = vpack.c.bf16 %v3768, %v3767
        %v3771 = vld [vmem:[%s8] sm:$0xf]
        %v3772 = vld [vmem:[%s8 + $0x4] sm:$0xf]
        %v3773 = vld [vmem:[%s8 + $0x8] sm:$0xf]
        %v3774 = vld [vmem:[%s8 + $0xc] sm:$0xf]
        %v3775 = vld [vmem:[%s8 + $0x10] sm:$0xf]
        %v3776 = vld [vmem:[%s8 + $0x14] sm:$0xf]
        %v3777 = vld [vmem:[%s8 + $0x18] sm:$0xf]
        %v3778 = vld [vmem:[%s8 + $0x1c] sm:$0xf]
        %s3779 = scalar_lea.vmem %s8, 32
        %v3780 = vld [vmem:[%s3779] sm:$0xf]
        %v3781 = vld [vmem:[%s3779 + $0x4] sm:$0xf]
        %v3782 = vld [vmem:[%s3779 + $0x8] sm:$0xf]
        %v3783 = vld [vmem:[%s3779 + $0xc] sm:$0xf]
        %v3784 = vld [vmem:[%s3779 + $0x10] sm:$0xf]
        %v3785 = vld [vmem:[%s3779 + $0x14] sm:$0xf]
        %v3786 = vld [vmem:[%s3779 + $0x18] sm:$0xf]
        %v3787 = vld [vmem:[%s3779 + $0x1c] sm:$0xf]
        %v3796 = vunpack.c.l.b16 %v3780
        %v3797 = vunpack.c.l.b16 %v3781
        %v3798 = vunpack.c.l.b16 %v3782
        %v3799 = vunpack.c.l.b16 %v3783
        %v3800 = vunpack.c.l.b16 %v3784
        %v3801 = vunpack.c.l.b16 %v3785
        %v3802 = vunpack.c.l.b16 %v3786
        %v3803 = vunpack.c.l.b16 %v3787
        %v3804 = vpack.c.b16 %v3797, %v3796
        %v3805 = vpack.c.b16 %v3799, %v3798
        %v3806 = vpack.c.b16 %v3801, %v3800
        %v3807 = vpack.c.b16 %v3803, %v3802
        %vm3812 = vcmask 523264
        %v3814 = vsel %vm3812, %v3770, 0
        %3816 = vmatprep.subr.bf16.mxu0 0
        %3817 = vmatpush1.bf16.msra.mxu0 %v3804
        %3818 = vmatprep.subr.bf16.mxu0 0
        %3819 = vmatpush1.bf16.msra.mxu0 %v3805
        %3820 = vmatprep.subr.bf16.mxu0 0
        %3821 = vmatpush1.bf16.msra.mxu0 %v3806
        %3822 = vmatprep.subr.bf16.mxu0 0
        %3823 = vmatpush1.bf16.msra.mxu0 %v3807
        %3824 = vmatprep.subr.bf16.mxu0 0
        %3825 = vmatpush1.bf16.msra.mxu0 0
        %3826 = vmatprep.subr.bf16.mxu0 0
        %3827 = vmatpush1.bf16.msra.mxu0 0
        %3828 = vmatprep.subr.bf16.mxu0 0
        %3829 = vmatpush1.bf16.msra.mxu0 0
        %3830 = vmatprep.subr.bf16.mxu0 0
        %3831 = vmatpush1.bf16.msra.mxu0 0
        %3832 = vmatprep.subr.bf16.mxu0 0
        %3833 = vmatpush1.bf16.msra.mxu0 0
        %3834 = vmatprep.subr.bf16.mxu0 0
        %3835 = vmatpush1.bf16.msra.mxu0 0
        %3836 = vmatprep.subr.bf16.mxu0 0
        %3837 = vmatpush1.bf16.msra.mxu0 0
        %3838 = vmatprep.subr.bf16.mxu0 0
        %3839 = vmatpush1.bf16.msra.mxu0 0
        %3840 = vmatprep.subr.bf16.mxu0 0
        %3841 = vmatpush1.bf16.msra.mxu0 0
        %3842 = vmatprep.subr.bf16.mxu0 0
        %3843 = vmatpush1.bf16.msra.mxu0 0
        %3844 = vmatprep.subr.bf16.mxu0 0
        %3845 = vmatpush1.bf16.msra.mxu0 0
        %3846 = vmatprep.subr.bf16.mxu0 0
        %3847 = vmatpush1.bf16.msra.mxu0 0
        %3848 = vmatprep.mubr.bf16.mxu0 0
        %3849 = vmatmul.mubr.bf16.gmra.mrb[0].mxu0 %v3814
        %v3850 = vpop.f32.mrb[0].mxu0
        %v3851 = vadd.f32 0.0, %v3850
        %v3852 = vpop.f32.mrb[0].mxu0
        %v3853 = vpop.f32.mrb[0].mxu0
        %v3854 = vadd.f32 0.0, %v3853
        %v3855 = vpop.f32.mrb[0].mxu0
        %3856 = vdwg.mxu0
        %v3865 = vunpack.c.l.b16 %v3771
        %v3866 = vunpack.c.l.b16 %v3772
        %v3867 = vunpack.c.l.b16 %v3773
        %v3868 = vunpack.c.l.b16 %v3774
        %v3869 = vunpack.c.l.b16 %v3775
        %v3870 = vunpack.c.l.b16 %v3776
        %v3871 = vunpack.c.l.b16 %v3777
        %v3872 = vunpack.c.l.b16 %v3778
        %v3873 = vpack.c.b16 %v3866, %v3865
        %v3874 = vpack.c.b16 %v3868, %v3867
        %v3875 = vpack.c.b16 %v3870, %v3869
        %v3876 = vpack.c.b16 %v3872, %v3871
        %v3882 = vsel %vm3812, %v3769, 0
        %3884 = vmatprep.subr.bf16.mxu0 0
        %3885 = vmatpush1.bf16.msra.mxu0 %v3873
        %3886 = vmatprep.subr.bf16.mxu0 0
        %3887 = vmatpush1.bf16.msra.mxu0 %v3874
        %3888 = vmatprep.subr.bf16.mxu0 0
        %3889 = vmatpush1.bf16.msra.mxu0 %v3875
        %3890 = vmatprep.subr.bf16.mxu0 0
        %3891 = vmatpush1.bf16.msra.mxu0 %v3876
        %3892 = vmatprep.subr.bf16.mxu0 0
        %3893 = vmatpush1.bf16.msra.mxu0 0
        %3894 = vmatprep.subr.bf16.mxu0 0
        %3895 = vmatpush1.bf16.msra.mxu0 0
        %3896 = vmatprep.subr.bf16.mxu0 0
        %3897 = vmatpush1.bf16.msra.mxu0 0
        %3898 = vmatprep.subr.bf16.mxu0 0
        %3899 = vmatpush1.bf16.msra.mxu0 0
        %3900 = vmatprep.subr.bf16.mxu0 0
        %3901 = vmatpush1.bf16.msra.mxu0 0
        %3902 = vmatprep.subr.bf16.mxu0 0
        %3903 = vmatpush1.bf16.msra.mxu0 0
        %3904 = vmatprep.subr.bf16.mxu0 0
        %3905 = vmatpush1.bf16.msra.mxu0 0
        %3906 = vmatprep.subr.bf16.mxu0 0
        %3907 = vmatpush1.bf16.msra.mxu0 0
        %3908 = vmatprep.subr.bf16.mxu0 0
        %3909 = vmatpush1.bf16.msra.mxu0 0
        %3910 = vmatprep.subr.bf16.mxu0 0
        %3911 = vmatpush1.bf16.msra.mxu0 0
        %3912 = vmatprep.subr.bf16.mxu0 0
        %3913 = vmatpush1.bf16.msra.mxu0 0
        %3914 = vmatprep.subr.bf16.mxu0 0
        %3915 = vmatpush1.bf16.msra.mxu0 0
        %3916 = vmatprep.mubr.bf16.mxu0 0
        %3917 = vmatmul.mubr.bf16.gmra.mrb[0].mxu0 %v3882
        %v3918 = vpop.f32.mrb[0].mxu0
        %v3919 = vadd.f32 %v3851, %v3918
        %v3920 = vpop.f32.mrb[0].mxu0
        %v3921 = vpop.f32.mrb[0].mxu0
        %v3922 = vadd.f32 %v3854, %v3921
        %v3923 = vpop.f32.mrb[0].mxu0
        %3924 = vdwg.mxu0
        %v3925 = vld [vmem:[%s9] sm:$0x1]
        %v3927 = vlaneseq
        %v3928 = vshrl.u32 %v3927, 7
        %v3929 = vsub.s32 0, %v3928
        %v3930 = vrot.slane %v3925, %v3929
        %v3932 = vadd.f32 %v3919, %v3930
        %v3933 = vadd.f32 %v3922, %v3930
        %vm3934 = vcmask 162816
        %3935 = vst.msk [vmem:[%s776] sm:$0xff] %vm3934, %v3932
        %3936 = vst.msk [vmem:[%s776 + $0x8] sm:$0xff] %vm3934, %v3933
        %v3937 = vmul.f32 %v3932, 0.5
        %v3938 = vmul.f32 %v3933, 0.5
        %v3939 = vmul.f32 %v3937, 1.442695
        %v3940 = vpow.pop %v3939
        %v3941 = vmul.f32 %v3938, 1.442695
        %v3942 = vpow.pop %v3941
        %v3943 = vld [vmem:[%s769] sm:$0xff]
        %v3944 = vld [vmem:[%s769 + $0x8] sm:$0xff]
        %3947 = vrot.lane.b32.xlu0 %v3943, 10
        %v3948 = vpop.permute.xlu0 %3947
        %3949 = vrot.lane.b32.xlu0 %v3944, 10
        %v3950 = vpop.permute.xlu0 %3949
        %v3953 = vmul.f32 %v3940, %v3948
        %v3954 = vmul.f32 %v3942, %v3950
        %3957 = vrot.lane.b32.xlu0 %v3953, 118
        %v3958 = vpop.permute.xlu0 %3957
        %3959 = vrot.lane.b32.xlu0 %v3954, 118
        %v3960 = vpop.permute.xlu0 %3959
        %v3963 = vadd.f32 %v3932, %v3958
        %v3964 = vadd.f32 %v3933, %v3960
        %v3965 = vpack.c.bf16 %v3964, %v3963
        %v3966 = vld [vmem:[%s10] sm:$0xf]
        %v3967 = vld [vmem:[%s10 + $0x4] sm:$0x1]
        %v3968 = vld [vmem:[%s11] sm:$0x1]
        %v3970 = vlaneseq
        %v3971 = vshrl.u32 %v3970, 7
        %v3972 = vsub.s32 0, %v3971
        %v3973 = vrot.slane %v3968, %v3972
        %v3977 = vunpack.c.l.b16 %v3966
        %v3978 = vunpack.c.l.b16 %v3967
        %v3979 = vpack.c.b16 %v3978, %v3977
        %vm3980 = vcmask 80896
        %v3982 = vsel %vm3980, %v3965, 0
        %vm3984 = vcmask 1044480
        %v3986 = vsel %vm3984, %v3979, 0
        %3988 = vmatprep.subr.bf16.mxu0 0
        %3989 = vmatpush1.bf16.msra.mxu0 %v3986
        %3990 = vmatprep.subr.bf16.mxu0 0
        %3991 = vmatpush1.bf16.msra.mxu0 0
        %3992 = vmatprep.subr.bf16.mxu0 0
        %3993 = vmatpush1.bf16.msra.mxu0 0
        %3994 = vmatprep.subr.bf16.mxu0 0
        %3995 = vmatpush1.bf16.msra.mxu0 0
        %3996 = vmatprep.subr.bf16.mxu0 0
        %3997 = vmatpush1.bf16.msra.mxu0 0
        %3998 = vmatprep.subr.bf16.mxu0 0
        %3999 = vmatpush1.bf16.msra.mxu0 0
        %4000 = vmatprep.subr.bf16.mxu0 0
        %4001 = vmatpush1.bf16.msra.mxu0 0
        %4002 = vmatprep.subr.bf16.mxu0 0
        %4003 = vmatpush1.bf16.msra.mxu0 0
        %4004 = vmatprep.subr.bf16.mxu0 0
        %4005 = vmatpush1.bf16.msra.mxu0 0
        %4006 = vmatprep.subr.bf16.mxu0 0
        %4007 = vmatpush1.bf16.msra.mxu0 0
        %4008 = vmatprep.subr.bf16.mxu0 0
        %4009 = vmatpush1.bf16.msra.mxu0 0
        %4010 = vmatprep.subr.bf16.mxu0 0
        %4011 = vmatpush1.bf16.msra.mxu0 0
        %4012 = vmatprep.subr.bf16.mxu0 0
        %4013 = vmatpush1.bf16.msra.mxu0 0
        %4014 = vmatprep.subr.bf16.mxu0 0
        %4015 = vmatpush1.bf16.msra.mxu0 0
        %4016 = vmatprep.subr.bf16.mxu0 0
        %4017 = vmatpush1.bf16.msra.mxu0 0
        %4018 = vmatprep.subr.bf16.mxu0 0
        %4019 = vmatpush1.bf16.msra.mxu0 0
        %4020 = vmatprep.mubr.bf16.mxu0 0
        %4021 = vmatmul.mubr.bf16.gmra.mrb[0].mxu0 %v3982
        %v4022 = vpop.f32.mrb[0].mxu0
        %v4023 = vadd.f32 %v3973, %v4022
        %v4024 = vpop.f32.mrb[0].mxu0
        %v4025 = vpop.f32.mrb[0].mxu0
        %v4026 = vadd.f32 %v3973, %v4025
        %v4027 = vpop.f32.mrb[0].mxu0
        %4028 = vdwg.mxu0
        %v4029 = vmax.f32 %v4023, 0.0
        %v4030 = vmax.f32 %v4026, 0.0
        %s4031 = scalar_lea.vmem %s10, 8
        %v4032 = vld [vmem:[%s4031] sm:$0xf]
        %v4033 = vld [vmem:[%s4031 + $0x4] sm:$0x1]
        %s4034 = scalar_lea.vmem %s11, 1
        %v4035 = vld [vmem:[%s4034] sm:$0x1]
        %v4037 = vlaneseq
        %v4038 = vshrl.u32 %v4037, 7
        %v4039 = vsub.s32 0, %v4038
        %v4040 = vrot.slane %v4035, %v4039
        %v4044 = vunpack.c.l.b16 %v4032
        %v4045 = vunpack.c.l.b16 %v4033
        %v4046 = vpack.c.b16 %v4045, %v4044
        %v4048 = vsel %vm3984, %v4046, 0
        %4050 = vmatprep.subr.bf16.mxu0 0
        %4051 = vmatpush1.bf16.msra.mxu0 %v4048
        %4052 = vmatprep.subr.bf16.mxu0 0
        %4053 = vmatpush1.bf16.msra.mxu0 0
        %4054 = vmatprep.subr.bf16.mxu0 0
        %4055 = vmatpush1.bf16.msra.mxu0 0
        %4056 = vmatprep.subr.bf16.mxu0 0
        %4057 = vmatpush1.bf16.msra.mxu0 0
        %4058 = vmatprep.subr.bf16.mxu0 0
        %4059 = vmatpush1.bf16.msra.mxu0 0
        %4060 = vmatprep.subr.bf16.mxu0 0
        %4061 = vmatpush1.bf16.msra.mxu0 0
        %4062 = vmatprep.subr.bf16.mxu0 0
        %4063 = vmatpush1.bf16.msra.mxu0 0
        %4064 = vmatprep.subr.bf16.mxu0 0
        %4065 = vmatpush1.bf16.msra.mxu0 0
        %4066 = vmatprep.subr.bf16.mxu0 0
        %4067 = vmatpush1.bf16.msra.mxu0 0
        %4068 = vmatprep.subr.bf16.mxu0 0
        %4069 = vmatpush1.bf16.msra.mxu0 0
        %4070 = vmatprep.subr.bf16.mxu0 0
        %4071 = vmatpush1.bf16.msra.mxu0 0
        %4072 = vmatprep.subr.bf16.mxu0 0
        %4073 = vmatpush1.bf16.msra.mxu0 0
        %4074 = vmatprep.subr.bf16.mxu0 0
        %4075 = vmatpush1.bf16.msra.mxu0 0
        %4076 = vmatprep.subr.bf16.mxu0 0
        %4077 = vmatpush1.bf16.msra.mxu0 0
        %4078 = vmatprep.subr.bf16.mxu0 0
        %4079 = vmatpush1.bf16.msra.mxu0 0
        %4080 = vmatprep.subr.bf16.mxu0 0
        %4081 = vmatpush1.bf16.msra.mxu0 0
        %4082 = vmatprep.mubr.bf16.mxu0 0
        %4083 = vmatmul.mubr.bf16.gmra.mrb[0].mxu0 %v3982
        %v4084 = vpop.f32.mrb[0].mxu0
        %v4085 = vadd.f32 %v4040, %v4084
        %v4086 = vpop.f32.mrb[0].mxu0
        %v4087 = vpop.f32.mrb[0].mxu0
        %v4088 = vadd.f32 %v4040, %v4087
        %v4089 = vpop.f32.mrb[0].mxu0
        %4090 = vdwg.mxu0
        %v4091 = vmax.f32 %v4085, 0.0
        %v4092 = vmax.f32 %v4088, 0.0
        %v4093 = vpack.c.bf16 %v4030, %v4029
        %v4094 = vpack.c.bf16 %v4092, %v4091
        %v4095 = vld [vmem:[%s12] sm:$0xf]
        %v4096 = vld [vmem:[%s12 + $0x4] sm:$0xf]
        %v4097 = vld [vmem:[%s12 + $0x8] sm:$0xf]
        %v4098 = vld [vmem:[%s12 + $0xc] sm:$0xf]
        %v4099 = vld [vmem:[%s12 + $0x10] sm:$0xf]
        %v4100 = vld [vmem:[%s12 + $0x14] sm:$0xf]
        %v4101 = vld [vmem:[%s12 + $0x18] sm:$0xf]
        %v4102 = vld [vmem:[%s12 + $0x1c] sm:$0xf]
        %v4103 = vld [vmem:[%s12 + $0x20] sm:$0xf]
        %v4104 = vld [vmem:[%s12 + $0x24] sm:$0xf]
        %v4105 = vld [vmem:[%s12 + $0x28] sm:$0xf]
        %v4106 = vld [vmem:[%s12 + $0x2c] sm:$0xf]
        %v4107 = vld [vmem:[%s12 + $0x30] sm:$0xf]
        %v4108 = vld [vmem:[%s12 + $0x34] sm:$0xf]
        %v4109 = vld [vmem:[%s12 + $0x38] sm:$0xf]
        %v4110 = vld [vmem:[%s12 + $0x3c] sm:$0xf]
        %v4111 = vld [vmem:[%s12 + $0x40] sm:$0xf]
        %v4112 = vld [vmem:[%s12 + $0x44] sm:$0xf]
        %v4113 = vld [vmem:[%s12 + $0x48] sm:$0xf]
        %v4114 = vld [vmem:[%s12 + $0x4c] sm:$0xf]
        %v4115 = vld [vmem:[%s12 + $0x50] sm:$0xf]
        %v4116 = vld [vmem:[%s12 + $0x54] sm:$0xf]
        %v4117 = vld [vmem:[%s12 + $0x58] sm:$0xf]
        %v4118 = vld [vmem:[%s12 + $0x5c] sm:$0xf]
        %v4119 = vld [vmem:[%s12 + $0x60] sm:$0xf]
        %v4120 = vld [vmem:[%s12 + $0x64] sm:$0xf]
        %v4121 = vld [vmem:[%s12 + $0x68] sm:$0xf]
        %v4122 = vld [vmem:[%s12 + $0x6c] sm:$0xf]
        %v4123 = vld [vmem:[%s12 + $0x70] sm:$0xf]
        %v4124 = vld [vmem:[%s12 + $0x74] sm:$0xf]
        %v4125 = vld [vmem:[%s12 + $0x78] sm:$0xf]
        %v4126 = vld [vmem:[%s12 + $0x7c] sm:$0xf]
        %v4127 = vld [vmem:[%s12 + $0x80] sm:$0xf]
        %v4128 = vld [vmem:[%s12 + $0x84] sm:$0xf]
        %v4129 = vld [vmem:[%s12 + $0x88] sm:$0xf]
        %v4130 = vld [vmem:[%s12 + $0x8c] sm:$0xf]
        %v4131 = vld [vmem:[%s12 + $0x90] sm:$0xf]
        %v4132 = vld [vmem:[%s12 + $0x94] sm:$0xf]
        %v4133 = vld [vmem:[%s12 + $0x98] sm:$0xf]
        %v4134 = vld [vmem:[%s12 + $0x9c] sm:$0xf]
        %v4135 = vld [vmem:[%s12 + $0xa0] sm:$0xf]
        %v4136 = vld [vmem:[%s12 + $0xa4] sm:$0xf]
        %v4137 = vld [vmem:[%s12 + $0xa8] sm:$0xf]
        %v4138 = vld [vmem:[%s12 + $0xac] sm:$0xf]
        %v4139 = vld [vmem:[%s12 + $0xb0] sm:$0xf]
        %v4140 = vld [vmem:[%s12 + $0xb4] sm:$0xf]
        %v4141 = vld [vmem:[%s12 + $0xb8] sm:$0xf]
        %v4142 = vld [vmem:[%s12 + $0xbc] sm:$0xf]
        %v4143 = vld [vmem:[%s13] sm:$0x1]
        %v4145 = vlaneseq
        %v4146 = vshrl.u32 %v4145, 7
        %v4147 = vsub.s32 0, %v4146
        %v4148 = vrot.slane %v4143, %v4147
        %v4198 = vunpack.c.l.b16 %v4095
        %v4199 = vunpack.c.l.b16 %v4096
        %v4200 = vunpack.c.l.b16 %v4097
        %v4201 = vunpack.c.l.b16 %v4098
        %v4202 = vunpack.c.l.b16 %v4099
        %v4203 = vunpack.c.l.b16 %v4100
        %v4204 = vunpack.c.l.b16 %v4101
        %v4205 = vunpack.c.l.b16 %v4102
        %v4206 = vunpack.c.l.b16 %v4103
        %v4207 = vunpack.c.l.b16 %v4104
        %v4208 = vunpack.c.l.b16 %v4105
        %v4209 = vunpack.c.l.b16 %v4106
        %v4210 = vunpack.c.l.b16 %v4107
        %v4211 = vunpack.c.l.b16 %v4108
        %v4212 = vunpack.c.l.b16 %v4109
        %v4213 = vunpack.c.l.b16 %v4110
        %v4214 = vunpack.c.l.b16 %v4111
        %v4215 = vunpack.c.l.b16 %v4112
        %v4216 = vunpack.c.l.b16 %v4113
        %v4217 = vunpack.c.l.b16 %v4114
        %v4218 = vunpack.c.l.b16 %v4115
        %v4219 = vunpack.c.l.b16 %v4116
        %v4220 = vunpack.c.l.b16 %v4117
        %v4221 = vunpack.c.l.b16 %v4118
        %v4222 = vunpack.c.l.b16 %v4119
        %v4223 = vunpack.c.l.b16 %v4120
        %v4224 = vunpack.c.l.b16 %v4121
        %v4225 = vunpack.c.l.b16 %v4122
        %v4226 = vunpack.c.l.b16 %v4123
        %v4227 = vunpack.c.l.b16 %v4124
        %v4228 = vunpack.c.l.b16 %v4125
        %v4229 = vunpack.c.l.b16 %v4126
        %v4230 = vunpack.c.l.b16 %v4127
        %v4231 = vunpack.c.l.b16 %v4128
        %v4232 = vunpack.c.l.b16 %v4129
        %v4233 = vunpack.c.l.b16 %v4130
        %v4234 = vunpack.c.l.b16 %v4131
        %v4235 = vunpack.c.l.b16 %v4132
        %v4236 = vunpack.c.l.b16 %v4133
        %v4237 = vunpack.c.l.b16 %v4134
        %v4238 = vunpack.c.l.b16 %v4135
        %v4239 = vunpack.c.l.b16 %v4136
        %v4240 = vunpack.c.l.b16 %v4137
        %v4241 = vunpack.c.l.b16 %v4138
        %v4242 = vunpack.c.l.b16 %v4139
        %v4243 = vunpack.c.l.b16 %v4140
        %v4244 = vunpack.c.l.b16 %v4141
        %v4245 = vunpack.c.l.b16 %v4142
        %v4246 = vpack.c.b16 %v4199, %v4198
        %v4247 = vpack.c.b16 %v4201, %v4200
        %v4248 = vpack.c.b16 %v4203, %v4202
        %v4249 = vpack.c.b16 %v4205, %v4204
        %v4250 = vpack.c.b16 %v4207, %v4206
        %v4251 = vpack.c.b16 %v4209, %v4208
        %v4252 = vpack.c.b16 %v4211, %v4210
        %v4253 = vpack.c.b16 %v4213, %v4212
        %v4254 = vpack.c.b16 %v4215, %v4214
        %v4255 = vpack.c.b16 %v4217, %v4216
        %v4256 = vpack.c.b16 %v4219, %v4218
        %v4257 = vpack.c.b16 %v4221, %v4220
        %v4258 = vpack.c.b16 %v4223, %v4222
        %v4259 = vpack.c.b16 %v4225, %v4224
        %v4260 = vpack.c.b16 %v4227, %v4226
        %v4261 = vpack.c.b16 %v4229, %v4228
        %v4262 = vpack.c.b16 %v4231, %v4230
        %v4263 = vpack.c.b16 %v4233, %v4232
        %v4264 = vpack.c.b16 %v4235, %v4234
        %v4265 = vpack.c.b16 %v4237, %v4236
        %v4266 = vpack.c.b16 %v4239, %v4238
        %v4267 = vpack.c.b16 %v4241, %v4240
        %v4268 = vpack.c.b16 %v4243, %v4242
        %v4269 = vpack.c.b16 %v4245, %v4244
        %4294 = vmatprep.subr.bf16.mxu0 0
        %4295 = vmatpush1.bf16.msra.mxu0 %v4246
        %4296 = vmatprep.subr.bf16.mxu0 0
        %4297 = vmatpush1.bf16.msra.mxu0 %v4247
        %4298 = vmatprep.subr.bf16.mxu0 0
        %4299 = vmatpush1.bf16.msra.mxu0 %v4248
        %4300 = vmatprep.subr.bf16.mxu0 0
        %4301 = vmatpush1.bf16.msra.mxu0 %v4249
        %4302 = vmatprep.subr.bf16.mxu0 0
        %4303 = vmatpush1.bf16.msra.mxu0 %v4250
        %4304 = vmatprep.subr.bf16.mxu0 0
        %4305 = vmatpush1.bf16.msra.mxu0 %v4251
        %4306 = vmatprep.subr.bf16.mxu0 0
        %4307 = vmatpush1.bf16.msra.mxu0 %v4252
        %4308 = vmatprep.subr.bf16.mxu0 0
        %4309 = vmatpush1.bf16.msra.mxu0 %v4253
        %4310 = vmatprep.subr.bf16.mxu0 0
        %4311 = vmatpush1.bf16.msra.mxu0 %v4254
        %4312 = vmatprep.subr.bf16.mxu0 0
        %4313 = vmatpush1.bf16.msra.mxu0 %v4255
        %4314 = vmatprep.subr.bf16.mxu0 0
        %4315 = vmatpush1.bf16.msra.mxu0 %v4256
        %4316 = vmatprep.subr.bf16.mxu0 0
        %4317 = vmatpush1.bf16.msra.mxu0 %v4257
        %4318 = vmatprep.subr.bf16.mxu0 0
        %4319 = vmatpush1.bf16.msra.mxu0 %v4258
        %4320 = vmatprep.subr.bf16.mxu0 0
        %4321 = vmatpush1.bf16.msra.mxu0 %v4259
        %4322 = vmatprep.subr.bf16.mxu0 0
        %4323 = vmatpush1.bf16.msra.mxu0 %v4260
        %4324 = vmatprep.subr.bf16.mxu0 0
        %4325 = vmatpush1.bf16.msra.mxu0 %v4261
        %4326 = vmatprep.mubr.bf16.mxu0 0
        %4327 = vmatmul.mubr.bf16.gmra.mrb[0].mxu0 0
        %v4328 = vpop.f32.mrb[0].mxu0
        %v4329 = vadd.f32 %v4148, %v4328
        %v4330 = vpop.f32.mrb[0].mxu0
        %v4331 = vpop.f32.mrb[0].mxu0
        %v4332 = vadd.f32 %v4148, %v4331
        %v4333 = vpop.f32.mrb[0].mxu0
        %4334 = vmatprep.mubr.bf16.mxu0 %v4093
        %4335 = vmatmul.mubr.bf16.gmra.mrb[0].mxu0 0
        %v4336 = vpop.f32.mrb[0].mxu0
        %v4337 = vadd.f32 %v4148, %v4336
        %v4338 = vpop.f32.mrb[0].mxu0
        %v4339 = vpop.f32.mrb[0].mxu0
        %v4340 = vadd.f32 %v4148, %v4339
        %v4341 = vpop.f32.mrb[0].mxu0
        %4342 = vmatprep.mubr.bf16.mxu0 %v4094
        %4343 = vmatmul.mubr.bf16.gmra.mrb[0].mxu0 %v4093
        %v4344 = vpop.f32.mrb[0].mxu0
        %v4345 = vadd.f32 %v4148, %v4344
        %v4346 = vpop.f32.mrb[0].mxu0
        %v4347 = vpop.f32.mrb[0].mxu0
        %v4348 = vadd.f32 %v4148, %v4347
        %v4349 = vpop.f32.mrb[0].mxu0
        %4350 = vmatprep.mubr.bf16.mxu0 0
        %4351 = vmatmul.mubr.bf16.gmra.mrb[0].mxu0 %v4094
        %v4352 = vpop.f32.mrb[0].mxu0
        %v4353 = vadd.f32 %v4148, %v4352
        %v4354 = vpop.f32.mrb[0].mxu0
        %v4355 = vpop.f32.mrb[0].mxu0
        %v4356 = vadd.f32 %v4148, %v4355
        %v4357 = vpop.f32.mrb[0].mxu0
        %4358 = vdwg.mxu0
        %4359 = vmatprep.subr.bf16.mxu0 0
        %4360 = vmatpush1.bf16.msra.mxu0 %v4262
        %4361 = vmatprep.subr.bf16.mxu0 0
        %4362 = vmatpush1.bf16.msra.mxu0 %v4263
        %4363 = vmatprep.subr.bf16.mxu0 0
        %4364 = vmatpush1.bf16.msra.mxu0 %v4264
        %4365 = vmatprep.subr.bf16.mxu0 0
        %4366 = vmatpush1.bf16.msra.mxu0 %v4265
        %4367 = vmatprep.subr.bf16.mxu0 0
        %4368 = vmatpush1.bf16.msra.mxu0 %v4266
        %4369 = vmatprep.subr.bf16.mxu0 0
        %4370 = vmatpush1.bf16.msra.mxu0 %v4267
        %4371 = vmatprep.subr.bf16.mxu0 0
        %4372 = vmatpush1.bf16.msra.mxu0 %v4268
        %4373 = vmatprep.subr.bf16.mxu0 0
        %4374 = vmatpush1.bf16.msra.mxu0 %v4269
        %4375 = vmatprep.subr.bf16.mxu0 0
        %4376 = vmatpush1.bf16.msra.mxu0 0
        %4377 = vmatprep.subr.bf16.mxu0 0
        %4378 = vmatpush1.bf16.msra.mxu0 0
        %4379 = vmatprep.subr.bf16.mxu0 0
        %4380 = vmatpush1.bf16.msra.mxu0 0
        %4381 = vmatprep.subr.bf16.mxu0 0
        %4382 = vmatpush1.bf16.msra.mxu0 0
        %4383 = vmatprep.subr.bf16.mxu0 0
        %4384 = vmatpush1.bf16.msra.mxu0 0
        %4385 = vmatprep.subr.bf16.mxu0 0
        %4386 = vmatpush1.bf16.msra.mxu0 0
        %4387 = vmatprep.subr.bf16.mxu0 0
        %4388 = vmatpush1.bf16.msra.mxu0 0
        %4389 = vmatprep.subr.bf16.mxu0 0
        %4390 = vmatpush1.bf16.msra.mxu0 0
        %4391 = vmatprep.mubr.bf16.mxu0 0
        %4392 = vmatmul.mubr.bf16.gmra.mrb[0].mxu0 %v4093
        %v4393 = vpop.f32.mrb[0].mxu0
        %v4394 = vadd.f32 %v4329, %v4393
        %v4395 = vpop.f32.mrb[0].mxu0
        %v4396 = vpop.f32.mrb[0].mxu0
        %v4397 = vadd.f32 %v4332, %v4396
        %v4398 = vpop.f32.mrb[0].mxu0
        %4399 = vmatprep.mubr.bf16.mxu0 0
        %4400 = vmatmul.mubr.bf16.gmra.mrb[0].mxu0 %v4094
        %v4401 = vpop.f32.mrb[0].mxu0
        %v4402 = vadd.f32 %v4337, %v4401
        %v4403 = vpop.f32.mrb[0].mxu0
        %v4404 = vpop.f32.mrb[0].mxu0
        %v4405 = vadd.f32 %v4340, %v4404
        %v4406 = vpop.f32.mrb[0].mxu0
        %4407 = vmatprep.mubr.bf16.mxu0 0
        %4408 = vmatmul.mubr.bf16.gmra.mrb[0].mxu0 0
        %v4409 = vpop.f32.mrb[0].mxu0
        %v4410 = vadd.f32 %v4345, %v4409
        %v4411 = vpop.f32.mrb[0].mxu0
        %v4412 = vpop.f32.mrb[0].mxu0
        %v4413 = vadd.f32 %v4348, %v4412
        %v4414 = vpop.f32.mrb[0].mxu0
        %4415 = vmatprep.mubr.bf16.mxu0 0
        %4416 = vmatmul.mubr.bf16.gmra.mrb[0].mxu0 0
        %v4417 = vpop.f32.mrb[0].mxu0
        %v4418 = vadd.f32 %v4353, %v4417
        %v4419 = vpop.f32.mrb[0].mxu0
        %v4420 = vpop.f32.mrb[0].mxu0
        %v4421 = vadd.f32 %v4356, %v4420
        %v4422 = vpop.f32.mrb[0].mxu0
        %4423 = vdwg.mxu0
        %v4424 = vmax.f32 %v4394, 0.0
        %v4425 = vmax.f32 %v4397, 0.0
        %v4426 = vmax.f32 %v4402, 0.0
        %v4427 = vmax.f32 %v4405, 0.0
        %v4428 = vmax.f32 %v4410, 0.0
        %v4429 = vmax.f32 %v4413, 0.0
        %v4430 = vmax.f32 %v4418, 0.0
        %v4431 = vmax.f32 %v4421, 0.0
        %v4432 = vpack.c.bf16 %v4425, %v4424
        %v4433 = vpack.c.bf16 %v4427, %v4426
        %v4434 = vpack.c.bf16 %v4429, %v4428
        %v4435 = vpack.c.bf16 %v4431, %v4430
        %v4436 = vld [vmem:[%s14] sm:$0xff]
        %v4437 = vld [vmem:[%s14 + $0x8] sm:$0xf]
        %v4438 = vld [vmem:[%s14 + $0xc] sm:$0xff]
        %v4439 = vld [vmem:[%s14 + $0x14] sm:$0xf]
        %v4440 = vld [vmem:[%s14 + $0x18] sm:$0xff]
        %v4441 = vld [vmem:[%s14 + $0x20] sm:$0xf]
        %v4442 = vld [vmem:[%s14 + $0x24] sm:$0xff]
        %v4443 = vld [vmem:[%s14 + $0x2c] sm:$0xf]
        %v4444 = vld [vmem:[%s14 + $0x30] sm:$0xff]
        %v4445 = vld [vmem:[%s14 + $0x38] sm:$0xf]
        %v4446 = vld [vmem:[%s14 + $0x3c] sm:$0xff]
        %v4447 = vld [vmem:[%s14 + $0x44] sm:$0xf]
        %v4448 = vld [vmem:[%s14 + $0x48] sm:$0xff]
        %v4449 = vld [vmem:[%s14 + $0x50] sm:$0xf]
        %v4450 = vld [vmem:[%s14 + $0x54] sm:$0xff]
        %v4451 = vld [vmem:[%s14 + $0x5c] sm:$0xf]
        %v4452 = vld [vmem:[%s14 + $0x60] sm:$0xff]
        %v4453 = vld [vmem:[%s14 + $0x68] sm:$0xf]
        %v4454 = vld [vmem:[%s14 + $0x6c] sm:$0xff]
        %v4455 = vld [vmem:[%s14 + $0x74] sm:$0xf]
        %v4456 = vld [vmem:[%s14 + $0x78] sm:$0xff]
        %v4457 = vld [vmem:[%s14 + $0x80] sm:$0xf]
        %v4458 = vld [vmem:[%s14 + $0x84] sm:$0xff]
        %v4459 = vld [vmem:[%s14 + $0x8c] sm:$0xf]
        %v4460 = vld [vmem:[%s14 + $0x90] sm:$0xff]
        %v4461 = vld [vmem:[%s14 + $0x98] sm:$0xf]
        %v4462 = vld [vmem:[%s14 + $0x9c] sm:$0xff]
        %v4463 = vld [vmem:[%s14 + $0xa4] sm:$0xf]
        %v4464 = vld [vmem:[%s14 + $0xa8] sm:$0xff]
        %v4465 = vld [vmem:[%s14 + $0xb0] sm:$0xf]
        %v4466 = vld [vmem:[%s14 + $0xb4] sm:$0xff]
        %v4467 = vld [vmem:[%s14 + $0xbc] sm:$0xf]
        %v4468 = vld [vmem:[%s14 + $0xc0] sm:$0xff]
        %v4469 = vld [vmem:[%s14 + $0xc8] sm:$0xf]
        %v4470 = vld [vmem:[%s14 + $0xcc] sm:$0xff]
        %v4471 = vld [vmem:[%s14 + $0xd4] sm:$0xf]
        %v4472 = vld [vmem:[%s14 + $0xd8] sm:$0xff]
        %v4473 = vld [vmem:[%s14 + $0xe0] sm:$0xf]
        %v4474 = vld [vmem:[%s14 + $0xe4] sm:$0xff]
        %v4475 = vld [vmem:[%s14 + $0xec] sm:$0xf]
        %v4476 = vld [vmem:[%s14 + $0xf0] sm:$0xff]
        %v4477 = vld [vmem:[%s14 + $0xf8] sm:$0xf]
        %v4478 = vld [vmem:[%s14 + $0xfc] sm:$0xff]
        %v4479 = vld [vmem:[%s14 + $0x104] sm:$0xf]
        %v4480 = vld [vmem:[%s14 + $0x108] sm:$0xff]
        %v4481 = vld [vmem:[%s14 + $0x110] sm:$0xf]
        %v4482 = vld [vmem:[%s14 + $0x114] sm:$0xff]
        %v4483 = vld [vmem:[%s14 + $0x11c] sm:$0xf]
        %v4484 = vld [vmem:[%s14 + $0x120] sm:$0xff]
        %v4485 = vld [vmem:[%s14 + $0x128] sm:$0xf]
        %v4486 = vld [vmem:[%s14 + $0x12c] sm:$0xff]
        %v4487 = vld [vmem:[%s14 + $0x134] sm:$0xf]
        %v4488 = vld [vmem:[%s14 + $0x138] sm:$0xff]
        %v4489 = vld [vmem:[%s14 + $0x140] sm:$0xf]
        %v4490 = vld [vmem:[%s14 + $0x144] sm:$0xff]
        %v4491 = vld [vmem:[%s14 + $0x14c] sm:$0xf]
        %v4492 = vld [vmem:[%s14 + $0x150] sm:$0xff]
        %v4493 = vld [vmem:[%s14 + $0x158] sm:$0xf]
        %v4494 = vld [vmem:[%s14 + $0x15c] sm:$0xff]
        %v4495 = vld [vmem:[%s14 + $0x164] sm:$0xf]
        %v4496 = vld [vmem:[%s14 + $0x168] sm:$0xff]
        %v4497 = vld [vmem:[%s14 + $0x170] sm:$0xf]
        %v4498 = vld [vmem:[%s14 + $0x174] sm:$0xff]
        %v4499 = vld [vmem:[%s14 + $0x17c] sm:$0xf]
        %v4500 = vld [vmem:[%s14 + $0x180] sm:$0xff]
        %v4501 = vld [vmem:[%s14 + $0x188] sm:$0xf]
        %v4502 = vld [vmem:[%s14 + $0x18c] sm:$0xff]
        %v4503 = vld [vmem:[%s14 + $0x194] sm:$0xf]
        %v4504 = vld [vmem:[%s14 + $0x198] sm:$0xff]
        %v4505 = vld [vmem:[%s14 + $0x1a0] sm:$0xf]
        %v4506 = vld [vmem:[%s14 + $0x1a4] sm:$0xff]
        %v4507 = vld [vmem:[%s14 + $0x1ac] sm:$0xf]
        %v4508 = vld [vmem:[%s14 + $0x1b0] sm:$0xff]
        %v4509 = vld [vmem:[%s14 + $0x1b8] sm:$0xf]
        %v4510 = vld [vmem:[%s14 + $0x1bc] sm:$0xff]
        %v4511 = vld [vmem:[%s14 + $0x1c4] sm:$0xf]
        %v4512 = vld [vmem:[%s14 + $0x1c8] sm:$0xff]
        %v4513 = vld [vmem:[%s14 + $0x1d0] sm:$0xf]
        %v4514 = vld [vmem:[%s14 + $0x1d4] sm:$0xff]
        %v4515 = vld [vmem:[%s14 + $0x1dc] sm:$0xf]
        %v4516 = vld [vmem:[%s14 + $0x1e0] sm:$0xff]
        %v4517 = vld [vmem:[%s14 + $0x1e8] sm:$0xf]
        %v4518 = vld [vmem:[%s14 + $0x1ec] sm:$0xff]
        %v4519 = vld [vmem:[%s14 + $0x1f4] sm:$0xf]
        %v4520 = vld [vmem:[%s14 + $0x1f8] sm:$0xff]
        %v4521 = vld [vmem:[%s14 + $0x200] sm:$0xf]
        %v4522 = vld [vmem:[%s14 + $0x204] sm:$0xff]
        %v4523 = vld [vmem:[%s14 + $0x20c] sm:$0xf]
        %v4524 = vld [vmem:[%s14 + $0x210] sm:$0xff]
        %v4525 = vld [vmem:[%s14 + $0x218] sm:$0xf]
        %v4526 = vld [vmem:[%s14 + $0x21c] sm:$0xff]
        %v4527 = vld [vmem:[%s14 + $0x224] sm:$0xf]
        %v4528 = vld [vmem:[%s14 + $0x228] sm:$0xff]
        %v4529 = vld [vmem:[%s14 + $0x230] sm:$0xf]
        %v4530 = vld [vmem:[%s14 + $0x234] sm:$0xff]
        %v4531 = vld [vmem:[%s14 + $0x23c] sm:$0xf]
        %v4532 = vld [vmem:[%s14 + $0x240] sm:$0xff]
        %v4533 = vld [vmem:[%s14 + $0x248] sm:$0xf]
        %v4534 = vld [vmem:[%s14 + $0x24c] sm:$0xff]
        %v4535 = vld [vmem:[%s14 + $0x254] sm:$0xf]
        %v4536 = vld [vmem:[%s14 + $0x258] sm:$0xff]
        %v4537 = vld [vmem:[%s14 + $0x260] sm:$0xf]
        %v4538 = vld [vmem:[%s14 + $0x264] sm:$0xff]
        %v4539 = vld [vmem:[%s14 + $0x26c] sm:$0xf]
        %v4540 = vld [vmem:[%s14 + $0x270] sm:$0xff]
        %v4541 = vld [vmem:[%s14 + $0x278] sm:$0xf]
        %v4542 = vld [vmem:[%s14 + $0x27c] sm:$0xff]
        %v4543 = vld [vmem:[%s14 + $0x284] sm:$0xf]
        %v4544 = vld [vmem:[%s14 + $0x288] sm:$0xff]
        %v4545 = vld [vmem:[%s14 + $0x290] sm:$0xf]
        %v4546 = vld [vmem:[%s14 + $0x294] sm:$0xff]
        %v4547 = vld [vmem:[%s14 + $0x29c] sm:$0xf]
        %v4548 = vld [vmem:[%s14 + $0x2a0] sm:$0xff]
        %v4549 = vld [vmem:[%s14 + $0x2a8] sm:$0xf]
        %v4550 = vld [vmem:[%s14 + $0x2ac] sm:$0xff]
        %v4551 = vld [vmem:[%s14 + $0x2b4] sm:$0xf]
        %v4552 = vld [vmem:[%s14 + $0x2b8] sm:$0xff]
        %v4553 = vld [vmem:[%s14 + $0x2c0] sm:$0xf]
        %v4554 = vld [vmem:[%s14 + $0x2c4] sm:$0xff]
        %v4555 = vld [vmem:[%s14 + $0x2cc] sm:$0xf]
        %v4556 = vld [vmem:[%s14 + $0x2d0] sm:$0xff]
        %v4557 = vld [vmem:[%s14 + $0x2d8] sm:$0xf]
        %v4558 = vld [vmem:[%s14 + $0x2dc] sm:$0xff]
        %v4559 = vld [vmem:[%s14 + $0x2e4] sm:$0xf]
        %v4560 = vld [vmem:[%s14 + $0x2e8] sm:$0xff]
        %v4561 = vld [vmem:[%s14 + $0x2f0] sm:$0xf]
        %v4562 = vld [vmem:[%s14 + $0x2f4] sm:$0xff]
        %v4563 = vld [vmem:[%s14 + $0x2fc] sm:$0xf]
        %v4564 = vld [vmem:[%s14 + $0x300] sm:$0xff]
        %v4565 = vld [vmem:[%s14 + $0x308] sm:$0xf]
        %v4566 = vld [vmem:[%s14 + $0x30c] sm:$0xff]
        %v4567 = vld [vmem:[%s14 + $0x314] sm:$0xf]
        %v4568 = vld [vmem:[%s14 + $0x318] sm:$0xff]
        %v4569 = vld [vmem:[%s14 + $0x320] sm:$0xf]
        %v4570 = vld [vmem:[%s14 + $0x324] sm:$0xff]
        %v4571 = vld [vmem:[%s14 + $0x32c] sm:$0xf]
        %v4572 = vld [vmem:[%s14 + $0x330] sm:$0xff]
        %v4573 = vld [vmem:[%s14 + $0x338] sm:$0xf]
        %v4574 = vld [vmem:[%s14 + $0x33c] sm:$0xff]
        %v4575 = vld [vmem:[%s14 + $0x344] sm:$0xf]
        %v4576 = vld [vmem:[%s14 + $0x348] sm:$0xff]
        %v4577 = vld [vmem:[%s14 + $0x350] sm:$0xf]
        %v4578 = vld [vmem:[%s14 + $0x354] sm:$0xff]
        %v4579 = vld [vmem:[%s14 + $0x35c] sm:$0xf]
        %v4580 = vld [vmem:[%s14 + $0x360] sm:$0xff]
        %v4581 = vld [vmem:[%s14 + $0x368] sm:$0xf]
        %v4582 = vld [vmem:[%s14 + $0x36c] sm:$0xff]
        %v4583 = vld [vmem:[%s14 + $0x374] sm:$0xf]
        %v4584 = vld [vmem:[%s14 + $0x378] sm:$0xff]
        %v4585 = vld [vmem:[%s14 + $0x380] sm:$0xf]
        %v4586 = vld [vmem:[%s14 + $0x384] sm:$0xff]
        %v4587 = vld [vmem:[%s14 + $0x38c] sm:$0xf]
        %v4588 = vld [vmem:[%s14 + $0x390] sm:$0xff]
        %v4589 = vld [vmem:[%s14 + $0x398] sm:$0xf]
        %v4590 = vld [vmem:[%s14 + $0x39c] sm:$0xff]
        %v4591 = vld [vmem:[%s14 + $0x3a4] sm:$0xf]
        %v4592 = vld [vmem:[%s14 + $0x3a8] sm:$0xff]
        %v4593 = vld [vmem:[%s14 + $0x3b0] sm:$0xf]
        %v4594 = vld [vmem:[%s14 + $0x3b4] sm:$0xff]
        %v4595 = vld [vmem:[%s14 + $0x3bc] sm:$0xf]
        %v4596 = vld [vmem:[%s15] sm:$0x7]
        %v4598 = vlaneseq
        %v4599 = vshrl.u32 %v4598, 7
        %v4600 = vsub.s32 0, %v4599
        %v4601 = vrot.slane %v4596, %v4600
        %v4602 = vlaneseq
        %v4603 = vshrl.u32 %v4602, 7
        %v4604 = vsub.s32 1, %v4603
        %v4605 = vrot.slane %v4596, %v4604
        %v4606 = vlaneseq
        %v4607 = vshrl.u32 %v4606, 7
        %v4608 = vsub.s32 2, %v4607
        %v4609 = vrot.slane %v4596, %v4608
        %v4773 = vunpack.c.l.b16 %v4436
        %v4774 = vunpack.c.h.b16 %v4436
        %v4775 = vunpack.c.l.b16 %v4437
        %v4776 = vunpack.c.l.b16 %v4438
        %v4777 = vunpack.c.h.b16 %v4438
        %v4778 = vunpack.c.l.b16 %v4439
        %v4779 = vunpack.c.l.b16 %v4440
        %v4780 = vunpack.c.h.b16 %v4440
        %v4781 = vunpack.c.l.b16 %v4441
        %v4782 = vunpack.c.l.b16 %v4442
        %v4783 = vunpack.c.h.b16 %v4442
        %v4784 = vunpack.c.l.b16 %v4443
        %v4785 = vunpack.c.l.b16 %v4444
        %v4786 = vunpack.c.h.b16 %v4444
        %v4787 = vunpack.c.l.b16 %v4445
        %v4788 = vunpack.c.l.b16 %v4446
        %v4789 = vunpack.c.h.b16 %v4446
        %v4790 = vunpack.c.l.b16 %v4447
        %v4791 = vunpack.c.l.b16 %v4448
        %v4792 = vunpack.c.h.b16 %v4448
        %v4793 = vunpack.c.l.b16 %v4449
        %v4794 = vunpack.c.l.b16 %v4450
        %v4795 = vunpack.c.h.b16 %v4450
        %v4796 = vunpack.c.l.b16 %v4451
        %v4797 = vunpack.c.l.b16 %v4452
        %v4798 = vunpack.c.h.b16 %v4452
        %v4799 = vunpack.c.l.b16 %v4453
        %v4800 = vunpack.c.l.b16 %v4454
        %v4801 = vunpack.c.h.b16 %v4454
        %v4802 = vunpack.c.l.b16 %v4455
        %v4803 = vunpack.c.l.b16 %v4456
        %v4804 = vunpack.c.h.b16 %v4456
        %v4805 = vunpack.c.l.b16 %v4457
        %v4806 = vunpack.c.l.b16 %v4458
        %v4807 = vunpack.c.h.b16 %v4458
        %v4808 = vunpack.c.l.b16 %v4459
        %v4809 = vunpack.c.l.b16 %v4460
        %v4810 = vunpack.c.h.b16 %v4460
        %v4811 = vunpack.c.l.b16 %v4461
        %v4812 = vunpack.c.l.b16 %v4462
        %v4813 = vunpack.c.h.b16 %v4462
        %v4814 = vunpack.c.l.b16 %v4463
        %v4815 = vunpack.c.l.b16 %v4464
        %v4816 = vunpack.c.h.b16 %v4464
        %v4817 = vunpack.c.l.b16 %v4465
        %v4818 = vunpack.c.l.b16 %v4466
        %v4819 = vunpack.c.h.b16 %v4466
        %v4820 = vunpack.c.l.b16 %v4467
        %v4821 = vunpack.c.l.b16 %v4468
        %v4822 = vunpack.c.h.b16 %v4468
        %v4823 = vunpack.c.l.b16 %v4469
        %v4824 = vunpack.c.l.b16 %v4470
        %v4825 = vunpack.c.h.b16 %v4470
        %v4826 = vunpack.c.l.b16 %v4471
        %v4827 = vunpack.c.l.b16 %v4472
        %v4828 = vunpack.c.h.b16 %v4472
        %v4829 = vunpack.c.l.b16 %v4473
        %v4830 = vunpack.c.l.b16 %v4474
        %v4831 = vunpack.c.h.b16 %v4474
        %v4832 = vunpack.c.l.b16 %v4475
        %v4833 = vunpack.c.l.b16 %v4476
        %v4834 = vunpack.c.h.b16 %v4476
        %v4835 = vunpack.c.l.b16 %v4477
        %v4836 = vunpack.c.l.b16 %v4478
        %v4837 = vunpack.c.h.b16 %v4478
        %v4838 = vunpack.c.l.b16 %v4479
        %v4839 = vunpack.c.l.b16 %v4480
        %v4840 = vunpack.c.h.b16 %v4480
        %v4841 = vunpack.c.l.b16 %v4481
        %v4842 = vunpack.c.l.b16 %v4482
        %v4843 = vunpack.c.h.b16 %v4482
        %v4844 = vunpack.c.l.b16 %v4483
        %v4845 = vunpack.c.l.b16 %v4484
        %v4846 = vunpack.c.h.b16 %v4484
        %v4847 = vunpack.c.l.b16 %v4485
        %v4848 = vunpack.c.l.b16 %v4486
        %v4849 = vunpack.c.h.b16 %v4486
        %v4850 = vunpack.c.l.b16 %v4487
        %v4851 = vunpack.c.l.b16 %v4488
        %v4852 = vunpack.c.h.b16 %v4488
        %v4853 = vunpack.c.l.b16 %v4489
        %v4854 = vunpack.c.l.b16 %v4490
        %v4855 = vunpack.c.h.b16 %v4490
        %v4856 = vunpack.c.l.b16 %v4491
        %v4857 = vunpack.c.l.b16 %v4492
        %v4858 = vunpack.c.h.b16 %v4492
        %v4859 = vunpack.c.l.b16 %v4493
        %v4860 = vunpack.c.l.b16 %v4494
        %v4861 = vunpack.c.h.b16 %v4494
        %v4862 = vunpack.c.l.b16 %v4495
        %v4863 = vunpack.c.l.b16 %v4496
        %v4864 = vunpack.c.h.b16 %v4496
        %v4865 = vunpack.c.l.b16 %v4497
        %v4866 = vunpack.c.l.b16 %v4498
        %v4867 = vunpack.c.h.b16 %v4498
        %v4868 = vunpack.c.l.b16 %v4499
        %v4869 = vunpack.c.l.b16 %v4500
        %v4870 = vunpack.c.h.b16 %v4500
        %v4871 = vunpack.c.l.b16 %v4501
        %v4872 = vunpack.c.l.b16 %v4502
        %v4873 = vunpack.c.h.b16 %v4502
        %v4874 = vunpack.c.l.b16 %v4503
        %v4875 = vunpack.c.l.b16 %v4504
        %v4876 = vunpack.c.h.b16 %v4504
        %v4877 = vunpack.c.l.b16 %v4505
        %v4878 = vunpack.c.l.b16 %v4506
        %v4879 = vunpack.c.h.b16 %v4506
        %v4880 = vunpack.c.l.b16 %v4507
        %v4881 = vunpack.c.l.b16 %v4508
        %v4882 = vunpack.c.h.b16 %v4508
        %v4883 = vunpack.c.l.b16 %v4509
        %v4884 = vunpack.c.l.b16 %v4510
        %v4885 = vunpack.c.h.b16 %v4510
        %v4886 = vunpack.c.l.b16 %v4511
        %v4887 = vunpack.c.l.b16 %v4512
        %v4888 = vunpack.c.h.b16 %v4512
        %v4889 = vunpack.c.l.b16 %v4513
        %v4890 = vunpack.c.l.b16 %v4514
        %v4891 = vunpack.c.h.b16 %v4514
        %v4892 = vunpack.c.l.b16 %v4515
        %v4893 = vunpack.c.l.b16 %v4516
        %v4894 = vunpack.c.h.b16 %v4516
        %v4895 = vunpack.c.l.b16 %v4517
        %v4896 = vunpack.c.l.b16 %v4518
        %v4897 = vunpack.c.h.b16 %v4518
        %v4898 = vunpack.c.l.b16 %v4519
        %v4899 = vunpack.c.l.b16 %v4520
        %v4900 = vunpack.c.h.b16 %v4520
        %v4901 = vunpack.c.l.b16 %v4521
        %v4902 = vunpack.c.l.b16 %v4522
        %v4903 = vunpack.c.h.b16 %v4522
        %v4904 = vunpack.c.l.b16 %v4523
        %v4905 = vunpack.c.l.b16 %v4524
        %v4906 = vunpack.c.h.b16 %v4524
        %v4907 = vunpack.c.l.b16 %v4525
        %v4908 = vunpack.c.l.b16 %v4526
        %v4909 = vunpack.c.h.b16 %v4526
        %v4910 = vunpack.c.l.b16 %v4527
        %v4911 = vunpack.c.l.b16 %v4528
        %v4912 = vunpack.c.h.b16 %v4528
        %v4913 = vunpack.c.l.b16 %v4529
        %v4914 = vunpack.c.l.b16 %v4530
        %v4915 = vunpack.c.h.b16 %v4530
        %v4916 = vunpack.c.l.b16 %v4531
        %v4917 = vunpack.c.l.b16 %v4532
        %v4918 = vunpack.c.h.b16 %v4532
        %v4919 = vunpack.c.l.b16 %v4533
        %v4920 = vunpack.c.l.b16 %v4534
        %v4921 = vunpack.c.h.b16 %v4534
        %v4922 = vunpack.c.l.b16 %v4535
        %v4923 = vunpack.c.l.b16 %v4536
        %v4924 = vunpack.c.h.b16 %v4536
        %v4925 = vunpack.c.l.b16 %v4537
        %v4926 = vunpack.c.l.b16 %v4538
        %v4927 = vunpack.c.h.b16 %v4538
        %v4928 = vunpack.c.l.b16 %v4539
        %v4929 = vunpack.c.l.b16 %v4540
        %v4930 = vunpack.c.h.b16 %v4540
        %v4931 = vunpack.c.l.b16 %v4541
        %v4932 = vunpack.c.l.b16 %v4542
        %v4933 = vunpack.c.h.b16 %v4542
        %v4934 = vunpack.c.l.b16 %v4543
        %v4935 = vunpack.c.l.b16 %v4544
        %v4936 = vunpack.c.h.b16 %v4544
        %v4937 = vunpack.c.l.b16 %v4545
        %v4938 = vunpack.c.l.b16 %v4546
        %v4939 = vunpack.c.h.b16 %v4546
        %v4940 = vunpack.c.l.b16 %v4547
        %v4941 = vunpack.c.l.b16 %v4548
        %v4942 = vunpack.c.h.b16 %v4548
        %v4943 = vunpack.c.l.b16 %v4549
        %v4944 = vunpack.c.l.b16 %v4550
        %v4945 = vunpack.c.h.b16 %v4550
        %v4946 = vunpack.c.l.b16 %v4551
        %v4947 = vunpack.c.l.b16 %v4552
        %v4948 = vunpack.c.h.b16 %v4552
        %v4949 = vunpack.c.l.b16 %v4553
        %v4950 = vunpack.c.l.b16 %v4554
        %v4951 = vunpack.c.h.b16 %v4554
        %v4952 = vunpack.c.l.b16 %v4555
        %v4953 = vunpack.c.l.b16 %v4556
        %v4954 = vunpack.c.h.b16 %v4556
        %v4955 = vunpack.c.l.b16 %v4557
        %v4956 = vunpack.c.l.b16 %v4558
        %v4957 = vunpack.c.h.b16 %v4558
        %v4958 = vunpack.c.l.b16 %v4559
        %v4959 = vunpack.c.l.b16 %v4560
        %v4960 = vunpack.c.h.b16 %v4560
        %v4961 = vunpack.c.l.b16 %v4561
        %v4962 = vunpack.c.l.b16 %v4562
        %v4963 = vunpack.c.h.b16 %v4562
        %v4964 = vunpack.c.l.b16 %v4563
        %v4965 = vunpack.c.l.b16 %v4564
        %v4966 = vunpack.c.h.b16 %v4564
        %v4967 = vunpack.c.l.b16 %v4565
        %v4968 = vunpack.c.l.b16 %v4566
        %v4969 = vunpack.c.h.b16 %v4566
        %v4970 = vunpack.c.l.b16 %v4567
        %v4971 = vunpack.c.l.b16 %v4568
        %v4972 = vunpack.c.h.b16 %v4568
        %v4973 = vunpack.c.l.b16 %v4569
        %v4974 = vunpack.c.l.b16 %v4570
        %v4975 = vunpack.c.h.b16 %v4570
        %v4976 = vunpack.c.l.b16 %v4571
        %v4977 = vunpack.c.l.b16 %v4572
        %v4978 = vunpack.c.h.b16 %v4572
        %v4979 = vunpack.c.l.b16 %v4573
        %v4980 = vunpack.c.l.b16 %v4574
        %v4981 = vunpack.c.h.b16 %v4574
        %v4982 = vunpack.c.l.b16 %v4575
        %v4983 = vunpack.c.l.b16 %v4576
        %v4984 = vunpack.c.h.b16 %v4576
        %v4985 = vunpack.c.l.b16 %v4577
        %v4986 = vunpack.c.l.b16 %v4578
        %v4987 = vunpack.c.h.b16 %v4578
        %v4988 = vunpack.c.l.b16 %v4579
        %v4989 = vunpack.c.l.b16 %v4580
        %v4990 = vunpack.c.h.b16 %v4580
        %v4991 = vunpack.c.l.b16 %v4581
        %v4992 = vunpack.c.l.b16 %v4582
        %v4993 = vunpack.c.h.b16 %v4582
        %v4994 = vunpack.c.l.b16 %v4583
        %v4995 = vunpack.c.l.b16 %v4584
        %v4996 = vunpack.c.h.b16 %v4584
        %v4997 = vunpack.c.l.b16 %v4585
        %v4998 = vunpack.c.l.b16 %v4586
        %v4999 = vunpack.c.h.b16 %v4586
        %v5000 = vunpack.c.l.b16 %v4587
        %v5001 = vunpack.c.l.b16 %v4588
        %v5002 = vunpack.c.h.b16 %v4588
        %v5003 = vunpack.c.l.b16 %v4589
        %v5004 = vunpack.c.l.b16 %v4590
        %v5005 = vunpack.c.h.b16 %v4590
        %v5006 = vunpack.c.l.b16 %v4591
        %v5007 = vunpack.c.l.b16 %v4592
        %v5008 = vunpack.c.h.b16 %v4592
        %v5009 = vunpack.c.l.b16 %v4593
        %v5010 = vunpack.c.l.b16 %v4594
        %v5011 = vunpack.c.h.b16 %v4594
        %v5012 = vunpack.c.l.b16 %v4595
        %v5013 = vpack.c.b16 %v4776, %v4773
        %v5014 = vpack.c.b16 %v4777, %v4774
        %v5015 = vpack.c.b16 %v4778, %v4775
        %v5016 = vpack.c.b16 %v4782, %v4779
        %v5017 = vpack.c.b16 %v4783, %v4780
        %v5018 = vpack.c.b16 %v4784, %v4781
        %v5019 = vpack.c.b16 %v4788, %v4785
        %v5020 = vpack.c.b16 %v4789, %v4786
        %v5021 = vpack.c.b16 %v4790, %v4787
        %v5022 = vpack.c.b16 %v4794, %v4791
        %v5023 = vpack.c.b16 %v4795, %v4792
        %v5024 = vpack.c.b16 %v4796, %v4793
        %v5025 = vpack.c.b16 %v4800, %v4797
        %v5026 = vpack.c.b16 %v4801, %v4798
        %v5027 = vpack.c.b16 %v4802, %v4799
        %v5028 = vpack.c.b16 %v4806, %v4803
        %v5029 = vpack.c.b16 %v4807, %v4804
        %v5030 = vpack.c.b16 %v4808, %v4805
        %v5031 = vpack.c.b16 %v4812, %v4809
        %v5032 = vpack.c.b16 %v4813, %v4810
        %v5033 = vpack.c.b16 %v4814, %v4811
        %v5034 = vpack.c.b16 %v4818, %v4815
        %v5035 = vpack.c.b16 %v4819, %v4816
        %v5036 = vpack.c.b16 %v4820, %v4817
        %v5037 = vpack.c.b16 %v4824, %v4821
        %v5038 = vpack.c.b16 %v4825, %v4822
        %v5039 = vpack.c.b16 %v4826, %v4823
        %v5040 = vpack.c.b16 %v4830, %v4827
        %v5041 = vpack.c.b16 %v4831, %v4828
        %v5042 = vpack.c.b16 %v4832, %v4829
        %v5043 = vpack.c.b16 %v4836, %v4833
        %v5044 = vpack.c.b16 %v4837, %v4834
        %v5045 = vpack.c.b16 %v4838, %v4835
        %v5046 = vpack.c.b16 %v4842, %v4839
        %v5047 = vpack.c.b16 %v4843, %v4840
        %v5048 = vpack.c.b16 %v4844, %v4841
        %v5049 = vpack.c.b16 %v4848, %v4845
        %v5050 = vpack.c.b16 %v4849, %v4846
        %v5051 = vpack.c.b16 %v4850, %v4847
        %v5052 = vpack.c.b16 %v4854, %v4851
        %v5053 = vpack.c.b16 %v4855, %v4852
        %v5054 = vpack.c.b16 %v4856, %v4853
        %v5055 = vpack.c.b16 %v4860, %v4857
        %v5056 = vpack.c.b16 %v4861, %v4858
        %v5057 = vpack.c.b16 %v4862, %v4859
        %v5058 = vpack.c.b16 %v4866, %v4863
        %v5059 = vpack.c.b16 %v4867, %v4864
        %v5060 = vpack.c.b16 %v4868, %v4865
        %v5061 = vpack.c.b16 %v4872, %v4869
        %v5062 = vpack.c.b16 %v4873, %v4870
        %v5063 = vpack.c.b16 %v4874, %v4871
        %v5064 = vpack.c.b16 %v4878, %v4875
        %v5065 = vpack.c.b16 %v4879, %v4876
        %v5066 = vpack.c.b16 %v4880, %v4877
        %v5067 = vpack.c.b16 %v4884, %v4881
        %v5068 = vpack.c.b16 %v4885, %v4882
        %v5069 = vpack.c.b16 %v4886, %v4883
        %v5070 = vpack.c.b16 %v4890, %v4887
        %v5071 = vpack.c.b16 %v4891, %v4888
        %v5072 = vpack.c.b16 %v4892, %v4889
        %v5073 = vpack.c.b16 %v4896, %v4893
        %v5074 = vpack.c.b16 %v4897, %v4894
        %v5075 = vpack.c.b16 %v4898, %v4895
        %v5076 = vpack.c.b16 %v4902, %v4899
        %v5077 = vpack.c.b16 %v4903, %v4900
        %v5078 = vpack.c.b16 %v4904, %v4901
        %v5079 = vpack.c.b16 %v4908, %v4905
        %v5080 = vpack.c.b16 %v4909, %v4906
        %v5081 = vpack.c.b16 %v4910, %v4907
        %v5082 = vpack.c.b16 %v4914, %v4911
        %v5083 = vpack.c.b16 %v4915, %v4912
        %v5084 = vpack.c.b16 %v4916, %v4913
        %v5085 = vpack.c.b16 %v4920, %v4917
        %v5086 = vpack.c.b16 %v4921, %v4918
        %v5087 = vpack.c.b16 %v4922, %v4919
        %v5088 = vpack.c.b16 %v4926, %v4923
        %v5089 = vpack.c.b16 %v4927, %v4924
        %v5090 = vpack.c.b16 %v4928, %v4925
        %v5091 = vpack.c.b16 %v4932, %v4929
        %v5092 = vpack.c.b16 %v4933, %v4930
        %v5093 = vpack.c.b16 %v4934, %v4931
        %v5094 = vpack.c.b16 %v4938, %v4935
        %v5095 = vpack.c.b16 %v4939, %v4936
        %v5096 = vpack.c.b16 %v4940, %v4937
        %v5097 = vpack.c.b16 %v4944, %v4941
        %v5098 = vpack.c.b16 %v4945, %v4942
        %v5099 = vpack.c.b16 %v4946, %v4943
        %v5100 = vpack.c.b16 %v4950, %v4947
        %v5101 = vpack.c.b16 %v4951, %v4948
        %v5102 = vpack.c.b16 %v4952, %v4949
        %v5103 = vpack.c.b16 %v4956, %v4953
        %v5104 = vpack.c.b16 %v4957, %v4954
        %v5105 = vpack.c.b16 %v4958, %v4955
        %v5106 = vpack.c.b16 %v4962, %v4959
        %v5107 = vpack.c.b16 %v4963, %v4960
        %v5108 = vpack.c.b16 %v4964, %v4961
        %v5109 = vpack.c.b16 %v4968, %v4965
        %v5110 = vpack.c.b16 %v4969, %v4966
        %v5111 = vpack.c.b16 %v4970, %v4967
        %v5112 = vpack.c.b16 %v4974, %v4971
        %v5113 = vpack.c.b16 %v4975, %v4972
        %v5114 = vpack.c.b16 %v4976, %v4973
        %v5115 = vpack.c.b16 %v4980, %v4977
        %v5116 = vpack.c.b16 %v4981, %v4978
        %v5117 = vpack.c.b16 %v4982, %v4979
        %v5118 = vpack.c.b16 %v4986, %v4983
        %v5119 = vpack.c.b16 %v4987, %v4984
        %v5120 = vpack.c.b16 %v4988, %v4985
        %v5121 = vpack.c.b16 %v4992, %v4989
        %v5122 = vpack.c.b16 %v4993, %v4990
        %v5123 = vpack.c.b16 %v4994, %v4991
        %v5124 = vpack.c.b16 %v4998, %v4995
        %v5125 = vpack.c.b16 %v4999, %v4996
        %v5126 = vpack.c.b16 %v5000, %v4997
        %v5127 = vpack.c.b16 %v5004, %v5001
        %v5128 = vpack.c.b16 %v5005, %v5002
        %v5129 = vpack.c.b16 %v5006, %v5003
        %v5130 = vpack.c.b16 %v5010, %v5007
        %v5131 = vpack.c.b16 %v5011, %v5008
        %v5132 = vpack.c.b16 %v5012, %v5009
        %5253 = vmatprep.subr.bf16.mxu0 %v5014
        %5254 = vmatpush1.bf16.msra.mxu0 %v5013
        %5255 = vmatprep.subr.bf16.mxu0 %v5017
        %5256 = vmatpush1.bf16.msra.mxu0 %v5016
        %5257 = vmatprep.subr.bf16.mxu0 %v5020
        %5258 = vmatpush1.bf16.msra.mxu0 %v5019
        %5259 = vmatprep.subr.bf16.mxu0 %v5023
        %5260 = vmatpush1.bf16.msra.mxu0 %v5022
        %5261 = vmatprep.subr.bf16.mxu0 %v5026
        %5262 = vmatpush1.bf16.msra.mxu0 %v5025
        %5263 = vmatprep.subr.bf16.mxu0 %v5029
        %5264 = vmatpush1.bf16.msra.mxu0 %v5028
        %5265 = vmatprep.subr.bf16.mxu0 %v5032
        %5266 = vmatpush1.bf16.msra.mxu0 %v5031
        %5267 = vmatprep.subr.bf16.mxu0 %v5035
        %5268 = vmatpush1.bf16.msra.mxu0 %v5034
        %5269 = vmatprep.subr.bf16.mxu0 %v5038
        %5270 = vmatpush1.bf16.msra.mxu0 %v5037
        %5271 = vmatprep.subr.bf16.mxu0 %v5041
        %5272 = vmatpush1.bf16.msra.mxu0 %v5040
        %5273 = vmatprep.subr.bf16.mxu0 %v5044
        %5274 = vmatpush1.bf16.msra.mxu0 %v5043
        %5275 = vmatprep.subr.bf16.mxu0 %v5047
        %5276 = vmatpush1.bf16.msra.mxu0 %v5046
        %5277 = vmatprep.subr.bf16.mxu0 %v5050
        %5278 = vmatpush1.bf16.msra.mxu0 %v5049
        %5279 = vmatprep.subr.bf16.mxu0 %v5053
        %5280 = vmatpush1.bf16.msra.mxu0 %v5052
        %5281 = vmatprep.subr.bf16.mxu0 %v5056
        %5282 = vmatpush1.bf16.msra.mxu0 %v5055
        %5283 = vmatprep.subr.bf16.mxu0 %v5059
        %5284 = vmatpush1.bf16.msra.mxu0 %v5058
        %5285 = vmatprep.mubr.bf16.mxu0 0
        %5286 = vmatmul.mubr.bf16.gmra.mrb[0].mxu0 0
        %v5287 = vpop.f32.mrb[0].mxu0
        %v5288 = vadd.f32 %v4601, %v5287
        %v5289 = vpop.f32.mrb[0].mxu0
        %v5290 = vadd.f32 %v4605, %v5289
        %v5291 = vpop.f32.mrb[0].mxu0
        %v5292 = vadd.f32 %v4601, %v5291
        %v5293 = vpop.f32.mrb[0].mxu0
        %v5294 = vadd.f32 %v4605, %v5293
        %5295 = vmatprep.mubr.bf16.mxu0 0
        %5296 = vmatmul.mubr.bf16.gmra.mrb[0].mxu0 0
        %v5297 = vpop.f32.mrb[0].mxu0
        %v5298 = vadd.f32 %v4601, %v5297
        %v5299 = vpop.f32.mrb[0].mxu0
        %v5300 = vadd.f32 %v4605, %v5299
        %v5301 = vpop.f32.mrb[0].mxu0
        %v5302 = vadd.f32 %v4601, %v5301
        %v5303 = vpop.f32.mrb[0].mxu0
        %v5304 = vadd.f32 %v4605, %v5303
        %5305 = vmatprep.mubr.bf16.mxu0 0
        %5306 = vmatmul.mubr.bf16.gmra.mrb[0].mxu0 0
        %v5307 = vpop.f32.mrb[0].mxu0
        %v5308 = vadd.f32 %v4601, %v5307
        %v5309 = vpop.f32.mrb[0].mxu0
        %v5310 = vadd.f32 %v4605, %v5309
        %v5311 = vpop.f32.mrb[0].mxu0
        %v5312 = vadd.f32 %v4601, %v5311
        %v5313 = vpop.f32.mrb[0].mxu0
        %v5314 = vadd.f32 %v4605, %v5313
        %5315 = vmatprep.mubr.bf16.mxu0 %v4432
        %5316 = vmatmul.mubr.bf16.gmra.mrb[0].mxu0 0
        %v5317 = vpop.f32.mrb[0].mxu0
        %v5318 = vadd.f32 %v4601, %v5317
        %v5319 = vpop.f32.mrb[0].mxu0
        %v5320 = vadd.f32 %v4605, %v5319
        %v5321 = vpop.f32.mrb[0].mxu0
        %v5322 = vadd.f32 %v4601, %v5321
        %v5323 = vpop.f32.mrb[0].mxu0
        %v5324 = vadd.f32 %v4605, %v5323
        %5325 = vmatprep.mubr.bf16.mxu0 0
        %5326 = vmatmul.mubr.bf16.gmra.mrb[0].mxu0 %v4432
        %v5327 = vpop.f32.mrb[0].mxu0
        %v5328 = vadd.f32 %v4601, %v5327
        %v5329 = vpop.f32.mrb[0].mxu0
        %v5330 = vadd.f32 %v4605, %v5329
        %v5331 = vpop.f32.mrb[0].mxu0
        %v5332 = vadd.f32 %v4601, %v5331
        %v5333 = vpop.f32.mrb[0].mxu0
        %v5334 = vadd.f32 %v4605, %v5333
        %5335 = vmatprep.mubr.bf16.mxu0 %v4433
        %5336 = vmatmul.mubr.bf16.gmra.mrb[0].mxu0 0
        %v5337 = vpop.f32.mrb[0].mxu0
        %v5338 = vadd.f32 %v4601, %v5337
        %v5339 = vpop.f32.mrb[0].mxu0
        %v5340 = vadd.f32 %v4605, %v5339
        %v5341 = vpop.f32.mrb[0].mxu0
        %v5342 = vadd.f32 %v4601, %v5341
        %v5343 = vpop.f32.mrb[0].mxu0
        %v5344 = vadd.f32 %v4605, %v5343
        %5345 = vmatprep.mubr.bf16.mxu0 0
        %5346 = vmatmul.mubr.bf16.gmra.mrb[0].mxu0 %v4433
        %v5347 = vpop.f32.mrb[0].mxu0
        %v5348 = vadd.f32 %v4601, %v5347
        %v5349 = vpop.f32.mrb[0].mxu0
        %v5350 = vadd.f32 %v4605, %v5349
        %v5351 = vpop.f32.mrb[0].mxu0
        %v5352 = vadd.f32 %v4601, %v5351
        %v5353 = vpop.f32.mrb[0].mxu0
        %v5354 = vadd.f32 %v4605, %v5353
        %5355 = vmatprep.mubr.bf16.mxu0 %v4434
        %5356 = vmatmul.mubr.bf16.gmra.mrb[0].mxu0 0
        %v5357 = vpop.f32.mrb[0].mxu0
        %v5358 = vadd.f32 %v4601, %v5357
        %v5359 = vpop.f32.mrb[0].mxu0
        %v5360 = vadd.f32 %v4605, %v5359
        %v5361 = vpop.f32.mrb[0].mxu0
        %v5362 = vadd.f32 %v4601, %v5361
        %v5363 = vpop.f32.mrb[0].mxu0
        %v5364 = vadd.f32 %v4605, %v5363
        %5365 = vmatprep.mubr.bf16.mxu0 0
        %5366 = vmatmul.mubr.bf16.gmra.mrb[0].mxu0 %v4434
        %v5367 = vpop.f32.mrb[0].mxu0
        %v5368 = vadd.f32 %v4601, %v5367
        %v5369 = vpop.f32.mrb[0].mxu0
        %v5370 = vadd.f32 %v4605, %v5369
        %v5371 = vpop.f32.mrb[0].mxu0
        %v5372 = vadd.f32 %v4601, %v5371
        %v5373 = vpop.f32.mrb[0].mxu0
        %v5374 = vadd.f32 %v4605, %v5373
        %5375 = vmatprep.mubr.bf16.mxu0 %v4435
        %5376 = vmatmul.mubr.bf16.gmra.mrb[0].mxu0 0
        %v5377 = vpop.f32.mrb[0].mxu0
        %v5378 = vadd.f32 %v4601, %v5377
        %v5379 = vpop.f32.mrb[0].mxu0
        %v5380 = vadd.f32 %v4605, %v5379
        %v5381 = vpop.f32.mrb[0].mxu0
        %v5382 = vadd.f32 %v4601, %v5381
        %v5383 = vpop.f32.mrb[0].mxu0
        %v5384 = vadd.f32 %v4605, %v5383
        %5385 = vmatprep.mubr.bf16.mxu0 0
        %5386 = vmatmul.mubr.bf16.gmra.mrb[0].mxu0 %v4435
        %v5387 = vpop.f32.mrb[0].mxu0
        %v5388 = vadd.f32 %v4601, %v5387
        %v5389 = vpop.f32.mrb[0].mxu0
        %v5390 = vadd.f32 %v4605, %v5389
        %v5391 = vpop.f32.mrb[0].mxu0
        %v5392 = vadd.f32 %v4601, %v5391
        %v5393 = vpop.f32.mrb[0].mxu0
        %v5394 = vadd.f32 %v4605, %v5393
        %5395 = vmatprep.mubr.bf16.mxu0 0
        %5396 = vmatmul.mubr.bf16.gmra.mrb[0].mxu0 0
        %v5397 = vpop.f32.mrb[0].mxu0
        %v5398 = vadd.f32 %v4601, %v5397
        %v5399 = vpop.f32.mrb[0].mxu0
        %v5400 = vadd.f32 %v4605, %v5399
        %v5401 = vpop.f32.mrb[0].mxu0
        %v5402 = vadd.f32 %v4601, %v5401
        %v5403 = vpop.f32.mrb[0].mxu0
        %v5404 = vadd.f32 %v4605, %v5403
        %5405 = vdwg.mxu0
        %5406 = vmatprep.subr.bf16.mxu0 %v5062
        %5407 = vmatpush1.bf16.msra.mxu0 %v5061
        %5408 = vmatprep.subr.bf16.mxu0 %v5065
        %5409 = vmatpush1.bf16.msra.mxu0 %v5064
        %5410 = vmatprep.subr.bf16.mxu0 %v5068
        %5411 = vmatpush1.bf16.msra.mxu0 %v5067
        %5412 = vmatprep.subr.bf16.mxu0 %v5071
        %5413 = vmatpush1.bf16.msra.mxu0 %v5070
        %5414 = vmatprep.subr.bf16.mxu0 %v5074
        %5415 = vmatpush1.bf16.msra.mxu0 %v5073
        %5416 = vmatprep.subr.bf16.mxu0 %v5077
        %5417 = vmatpush1.bf16.msra.mxu0 %v5076
        %5418 = vmatprep.subr.bf16.mxu0 %v5080
        %5419 = vmatpush1.bf16.msra.mxu0 %v5079
        %5420 = vmatprep.subr.bf16.mxu0 %v5083
        %5421 = vmatpush1.bf16.msra.mxu0 %v5082
        %5422 = vmatprep.subr.bf16.mxu0 %v5086
        %5423 = vmatpush1.bf16.msra.mxu0 %v5085
        %5424 = vmatprep.subr.bf16.mxu0 %v5089
        %5425 = vmatpush1.bf16.msra.mxu0 %v5088
        %5426 = vmatprep.subr.bf16.mxu0 %v5092
        %5427 = vmatpush1.bf16.msra.mxu0 %v5091
        %5428 = vmatprep.subr.bf16.mxu0 %v5095
        %5429 = vmatpush1.bf16.msra.mxu0 %v5094
        %5430 = vmatprep.subr.bf16.mxu0 %v5098
        %5431 = vmatpush1.bf16.msra.mxu0 %v5097
        %5432 = vmatprep.subr.bf16.mxu0 %v5101
        %5433 = vmatpush1.bf16.msra.mxu0 %v5100
        %5434 = vmatprep.subr.bf16.mxu0 %v5104
        %5435 = vmatpush1.bf16.msra.mxu0 %v5103
        %5436 = vmatprep.subr.bf16.mxu0 %v5107
        %5437 = vmatpush1.bf16.msra.mxu0 %v5106
        %5438 = vmatprep.mubr.bf16.mxu0 0
        %5439 = vmatmul.mubr.bf16.gmra.mrb[0].mxu0 0
        %v5440 = vpop.f32.mrb[0].mxu0
        %v5441 = vadd.f32 %v5288, %v5440
        %v5442 = vpop.f32.mrb[0].mxu0
        %v5443 = vadd.f32 %v5290, %v5442
        %v5444 = vpop.f32.mrb[0].mxu0
        %v5445 = vadd.f32 %v5292, %v5444
        %v5446 = vpop.f32.mrb[0].mxu0
        %v5447 = vadd.f32 %v5294, %v5446
        %5448 = vmatprep.mubr.bf16.mxu0 %v4432
        %5449 = vmatmul.mubr.bf16.gmra.mrb[0].mxu0 0
        %v5450 = vpop.f32.mrb[0].mxu0
        %v5451 = vadd.f32 %v5298, %v5450
        %v5452 = vpop.f32.mrb[0].mxu0
        %v5453 = vadd.f32 %v5300, %v5452
        %v5454 = vpop.f32.mrb[0].mxu0
        %v5455 = vadd.f32 %v5302, %v5454
        %v5456 = vpop.f32.mrb[0].mxu0
        %v5457 = vadd.f32 %v5304, %v5456
        %5458 = vmatprep.mubr.bf16.mxu0 0
        %5459 = vmatmul.mubr.bf16.gmra.mrb[0].mxu0 %v4432
        %v5460 = vpop.f32.mrb[0].mxu0
        %v5461 = vadd.f32 %v5308, %v5460
        %v5462 = vpop.f32.mrb[0].mxu0
        %v5463 = vadd.f32 %v5310, %v5462
        %v5464 = vpop.f32.mrb[0].mxu0
        %v5465 = vadd.f32 %v5312, %v5464
        %v5466 = vpop.f32.mrb[0].mxu0
        %v5467 = vadd.f32 %v5314, %v5466
        %5468 = vmatprep.mubr.bf16.mxu0 %v4433
        %5469 = vmatmul.mubr.bf16.gmra.mrb[0].mxu0 0
        %v5470 = vpop.f32.mrb[0].mxu0
        %v5471 = vadd.f32 %v5318, %v5470
        %v5472 = vpop.f32.mrb[0].mxu0
        %v5473 = vadd.f32 %v5320, %v5472
        %v5474 = vpop.f32.mrb[0].mxu0
        %v5475 = vadd.f32 %v5322, %v5474
        %v5476 = vpop.f32.mrb[0].mxu0
        %v5477 = vadd.f32 %v5324, %v5476
        %5478 = vmatprep.mubr.bf16.mxu0 0
        %5479 = vmatmul.mubr.bf16.gmra.mrb[0].mxu0 %v4433
        %v5480 = vpop.f32.mrb[0].mxu0
        %v5481 = vadd.f32 %v5328, %v5480
        %v5482 = vpop.f32.mrb[0].mxu0
        %v5483 = vadd.f32 %v5330, %v5482
        %v5484 = vpop.f32.mrb[0].mxu0
        %v5485 = vadd.f32 %v5332, %v5484
        %v5486 = vpop.f32.mrb[0].mxu0
        %v5487 = vadd.f32 %v5334, %v5486
        %5488 = vmatprep.mubr.bf16.mxu0 %v4434
        %5489 = vmatmul.mubr.bf16.gmra.mrb[0].mxu0 0
        %v5490 = vpop.f32.mrb[0].mxu0
        %v5491 = vadd.f32 %v5338, %v5490
        %v5492 = vpop.f32.mrb[0].mxu0
        %v5493 = vadd.f32 %v5340, %v5492
        %v5494 = vpop.f32.mrb[0].mxu0
        %v5495 = vadd.f32 %v5342, %v5494
        %v5496 = vpop.f32.mrb[0].mxu0
        %v5497 = vadd.f32 %v5344, %v5496
        %5498 = vmatprep.mubr.bf16.mxu0 0
        %5499 = vmatmul.mubr.bf16.gmra.mrb[0].mxu0 %v4434
        %v5500 = vpop.f32.mrb[0].mxu0
        %v5501 = vadd.f32 %v5348, %v5500
        %v5502 = vpop.f32.mrb[0].mxu0
        %v5503 = vadd.f32 %v5350, %v5502
        %v5504 = vpop.f32.mrb[0].mxu0
        %v5505 = vadd.f32 %v5352, %v5504
        %v5506 = vpop.f32.mrb[0].mxu0
        %v5507 = vadd.f32 %v5354, %v5506
        %5508 = vmatprep.mubr.bf16.mxu0 %v4435
        %5509 = vmatmul.mubr.bf16.gmra.mrb[0].mxu0 0
        %v5510 = vpop.f32.mrb[0].mxu0
        %v5511 = vadd.f32 %v5358, %v5510
        %v5512 = vpop.f32.mrb[0].mxu0
        %v5513 = vadd.f32 %v5360, %v5512
        %v5514 = vpop.f32.mrb[0].mxu0
        %v5515 = vadd.f32 %v5362, %v5514
        %v5516 = vpop.f32.mrb[0].mxu0
        %v5517 = vadd.f32 %v5364, %v5516
        %5518 = vmatprep.mubr.bf16.mxu0 0
        %5519 = vmatmul.mubr.bf16.gmra.mrb[0].mxu0 %v4435
        %v5520 = vpop.f32.mrb[0].mxu0
        %v5521 = vadd.f32 %v5368, %v5520
        %v5522 = vpop.f32.mrb[0].mxu0
        %v5523 = vadd.f32 %v5370, %v5522
        %v5524 = vpop.f32.mrb[0].mxu0
        %v5525 = vadd.f32 %v5372, %v5524
        %v5526 = vpop.f32.mrb[0].mxu0
        %v5527 = vadd.f32 %v5374, %v5526
        %5528 = vmatprep.mubr.bf16.mxu0 0
        %5529 = vmatmul.mubr.bf16.gmra.mrb[0].mxu0 0
        %v5530 = vpop.f32.mrb[0].mxu0
        %v5531 = vadd.f32 %v5378, %v5530
        %v5532 = vpop.f32.mrb[0].mxu0
        %v5533 = vadd.f32 %v5380, %v5532
        %v5534 = vpop.f32.mrb[0].mxu0
        %v5535 = vadd.f32 %v5382, %v5534
        %v5536 = vpop.f32.mrb[0].mxu0
        %v5537 = vadd.f32 %v5384, %v5536
        %5538 = vmatprep.mubr.bf16.mxu0 0
        %5539 = vmatmul.mubr.bf16.gmra.mrb[0].mxu0 0
        %v5540 = vpop.f32.mrb[0].mxu0
        %v5541 = vadd.f32 %v5388, %v5540
        %v5542 = vpop.f32.mrb[0].mxu0
        %v5543 = vadd.f32 %v5390, %v5542
        %v5544 = vpop.f32.mrb[0].mxu0
        %v5545 = vadd.f32 %v5392, %v5544
        %v5546 = vpop.f32.mrb[0].mxu0
        %v5547 = vadd.f32 %v5394, %v5546
        %5548 = vmatprep.mubr.bf16.mxu0 0
        %5549 = vmatmul.mubr.bf16.gmra.mrb[0].mxu0 0
        %v5550 = vpop.f32.mrb[0].mxu0
        %v5551 = vadd.f32 %v5398, %v5550
        %v5552 = vpop.f32.mrb[0].mxu0
        %v5553 = vadd.f32 %v5400, %v5552
        %v5554 = vpop.f32.mrb[0].mxu0
        %v5555 = vadd.f32 %v5402, %v5554
        %v5556 = vpop.f32.mrb[0].mxu0
        %v5557 = vadd.f32 %v5404, %v5556
        %5558 = vdwg.mxu0
        %5559 = vmatprep.subr.bf16.mxu0 %v5110
        %5560 = vmatpush1.bf16.msra.mxu0 %v5109
        %5561 = vmatprep.subr.bf16.mxu0 %v5113
        %5562 = vmatpush1.bf16.msra.mxu0 %v5112
        %5563 = vmatprep.subr.bf16.mxu0 %v5116
        %5564 = vmatpush1.bf16.msra.mxu0 %v5115
        %5565 = vmatprep.subr.bf16.mxu0 %v5119
        %5566 = vmatpush1.bf16.msra.mxu0 %v5118
        %5567 = vmatprep.subr.bf16.mxu0 %v5122
        %5568 = vmatpush1.bf16.msra.mxu0 %v5121
        %5569 = vmatprep.subr.bf16.mxu0 %v5125
        %5570 = vmatpush1.bf16.msra.mxu0 %v5124
        %5571 = vmatprep.subr.bf16.mxu0 %v5128
        %5572 = vmatpush1.bf16.msra.mxu0 %v5127
        %5573 = vmatprep.subr.bf16.mxu0 %v5131
        %5574 = vmatpush1.bf16.msra.mxu0 %v5130
        %5575 = vmatprep.subr.bf16.mxu0 0
        %5576 = vmatpush1.bf16.msra.mxu0 0
        %5577 = vmatprep.subr.bf16.mxu0 0
        %5578 = vmatpush1.bf16.msra.mxu0 0
        %5579 = vmatprep.subr.bf16.mxu0 0
        %5580 = vmatpush1.bf16.msra.mxu0 0
        %5581 = vmatprep.subr.bf16.mxu0 0
        %5582 = vmatpush1.bf16.msra.mxu0 0
        %5583 = vmatprep.subr.bf16.mxu0 0
        %5584 = vmatpush1.bf16.msra.mxu0 0
        %5585 = vmatprep.subr.bf16.mxu0 0
        %5586 = vmatpush1.bf16.msra.mxu0 0
        %5587 = vmatprep.subr.bf16.mxu0 0
        %5588 = vmatpush1.bf16.msra.mxu0 0
        %5589 = vmatprep.subr.bf16.mxu0 0
        %5590 = vmatpush1.bf16.msra.mxu0 0
        %5591 = vmatprep.mubr.bf16.mxu0 0
        %5592 = vmatmul.mubr.bf16.gmra.mrb[0].mxu0 %v4432
        %v5593 = vpop.f32.mrb[0].mxu0
        %v5594 = vadd.f32 %v5441, %v5593
        %v5595 = vpop.f32.mrb[0].mxu0
        %v5596 = vadd.f32 %v5443, %v5595
        %v5597 = vpop.f32.mrb[0].mxu0
        %v5598 = vadd.f32 %v5445, %v5597
        %v5599 = vpop.f32.mrb[0].mxu0
        %v5600 = vadd.f32 %v5447, %v5599
        %5601 = vmatprep.mubr.bf16.mxu0 0
        %5602 = vmatmul.mubr.bf16.gmra.mrb[0].mxu0 0
        %v5603 = vpop.f32.mrb[0].mxu0
        %v5604 = vadd.f32 %v5451, %v5603
        %v5605 = vpop.f32.mrb[0].mxu0
        %v5606 = vadd.f32 %v5453, %v5605
        %v5607 = vpop.f32.mrb[0].mxu0
        %v5608 = vadd.f32 %v5455, %v5607
        %v5609 = vpop.f32.mrb[0].mxu0
        %v5610 = vadd.f32 %v5457, %v5609
        %5611 = vmatprep.mubr.bf16.mxu0 0
        %5612 = vmatmul.mubr.bf16.gmra.mrb[0].mxu0 %v4433
        %v5613 = vpop.f32.mrb[0].mxu0
        %v5614 = vadd.f32 %v5461, %v5613
        %v5615 = vpop.f32.mrb[0].mxu0
        %v5616 = vadd.f32 %v5463, %v5615
        %v5617 = vpop.f32.mrb[0].mxu0
        %v5618 = vadd.f32 %v5465, %v5617
        %v5619 = vpop.f32.mrb[0].mxu0
        %v5620 = vadd.f32 %v5467, %v5619
        %5621 = vmatprep.mubr.bf16.mxu0 0
        %5622 = vmatmul.mubr.bf16.gmra.mrb[0].mxu0 0
        %v5623 = vpop.f32.mrb[0].mxu0
        %v5624 = vadd.f32 %v5471, %v5623
        %v5625 = vpop.f32.mrb[0].mxu0
        %v5626 = vadd.f32 %v5473, %v5625
        %v5627 = vpop.f32.mrb[0].mxu0
        %v5628 = vadd.f32 %v5475, %v5627
        %v5629 = vpop.f32.mrb[0].mxu0
        %v5630 = vadd.f32 %v5477, %v5629
        %5631 = vmatprep.mubr.bf16.mxu0 0
        %5632 = vmatmul.mubr.bf16.gmra.mrb[0].mxu0 %v4434
        %v5633 = vpop.f32.mrb[0].mxu0
        %v5634 = vadd.f32 %v5481, %v5633
        %v5635 = vpop.f32.mrb[0].mxu0
        %v5636 = vadd.f32 %v5483, %v5635
        %v5637 = vpop.f32.mrb[0].mxu0
        %v5638 = vadd.f32 %v5485, %v5637
        %v5639 = vpop.f32.mrb[0].mxu0
        %v5640 = vadd.f32 %v5487, %v5639
        %5641 = vmatprep.mubr.bf16.mxu0 0
        %5642 = vmatmul.mubr.bf16.gmra.mrb[0].mxu0 0
        %v5643 = vpop.f32.mrb[0].mxu0
        %v5644 = vadd.f32 %v5491, %v5643
        %v5645 = vpop.f32.mrb[0].mxu0
        %v5646 = vadd.f32 %v5493, %v5645
        %v5647 = vpop.f32.mrb[0].mxu0
        %v5648 = vadd.f32 %v5495, %v5647
        %v5649 = vpop.f32.mrb[0].mxu0
        %v5650 = vadd.f32 %v5497, %v5649
        %5651 = vmatprep.mubr.bf16.mxu0 0
        %5652 = vmatmul.mubr.bf16.gmra.mrb[0].mxu0 %v4435
        %v5653 = vpop.f32.mrb[0].mxu0
        %v5654 = vadd.f32 %v5501, %v5653
        %v5655 = vpop.f32.mrb[0].mxu0
        %v5656 = vadd.f32 %v5503, %v5655
        %v5657 = vpop.f32.mrb[0].mxu0
        %v5658 = vadd.f32 %v5505, %v5657
        %v5659 = vpop.f32.mrb[0].mxu0
        %v5660 = vadd.f32 %v5507, %v5659
        %5661 = vmatprep.mubr.bf16.mxu0 0
        %5662 = vmatmul.mubr.bf16.gmra.mrb[0].mxu0 0
        %v5663 = vpop.f32.mrb[0].mxu0
        %v5664 = vadd.f32 %v5511, %v5663
        %v5665 = vpop.f32.mrb[0].mxu0
        %v5666 = vadd.f32 %v5513, %v5665
        %v5667 = vpop.f32.mrb[0].mxu0
        %v5668 = vadd.f32 %v5515, %v5667
        %v5669 = vpop.f32.mrb[0].mxu0
        %v5670 = vadd.f32 %v5517, %v5669
        %5671 = vmatprep.mubr.bf16.mxu0 0
        %5672 = vmatmul.mubr.bf16.gmra.mrb[0].mxu0 0
        %v5673 = vpop.f32.mrb[0].mxu0
        %v5674 = vadd.f32 %v5521, %v5673
        %v5675 = vpop.f32.mrb[0].mxu0
        %v5676 = vadd.f32 %v5523, %v5675
        %v5677 = vpop.f32.mrb[0].mxu0
        %v5678 = vadd.f32 %v5525, %v5677
        %v5679 = vpop.f32.mrb[0].mxu0
        %v5680 = vadd.f32 %v5527, %v5679
        %5681 = vmatprep.mubr.bf16.mxu0 0
        %5682 = vmatmul.mubr.bf16.gmra.mrb[0].mxu0 0
        %v5683 = vpop.f32.mrb[0].mxu0
        %v5684 = vadd.f32 %v5531, %v5683
        %v5685 = vpop.f32.mrb[0].mxu0
        %v5686 = vadd.f32 %v5533, %v5685
        %v5687 = vpop.f32.mrb[0].mxu0
        %v5688 = vadd.f32 %v5535, %v5687
        %v5689 = vpop.f32.mrb[0].mxu0
        %v5690 = vadd.f32 %v5537, %v5689
        %5691 = vmatprep.mubr.bf16.mxu0 0
        %5692 = vmatmul.mubr.bf16.gmra.mrb[0].mxu0 0
        %v5693 = vpop.f32.mrb[0].mxu0
        %v5694 = vadd.f32 %v5541, %v5693
        %v5695 = vpop.f32.mrb[0].mxu0
        %v5696 = vadd.f32 %v5543, %v5695
        %v5697 = vpop.f32.mrb[0].mxu0
        %v5698 = vadd.f32 %v5545, %v5697
        %v5699 = vpop.f32.mrb[0].mxu0
        %v5700 = vadd.f32 %v5547, %v5699
        %5701 = vmatprep.mubr.bf16.mxu0 0
        %5702 = vmatmul.mubr.bf16.gmra.mrb[0].mxu0 0
        %v5703 = vpop.f32.mrb[0].mxu0
        %v5704 = vadd.f32 %v5551, %v5703
        %v5705 = vpop.f32.mrb[0].mxu0
        %v5706 = vadd.f32 %v5553, %v5705
        %v5707 = vpop.f32.mrb[0].mxu0
        %v5708 = vadd.f32 %v5555, %v5707
        %v5709 = vpop.f32.mrb[0].mxu0
        %v5710 = vadd.f32 %v5557, %v5709
        %5711 = vdwg.mxu0
        %5712 = vmatprep.subr.bf16.mxu0 0
        %5713 = vmatpush1.bf16.msra.mxu0 %v5015
        %5714 = vmatprep.subr.bf16.mxu0 0
        %5715 = vmatpush1.bf16.msra.mxu0 %v5018
        %5716 = vmatprep.subr.bf16.mxu0 0
        %5717 = vmatpush1.bf16.msra.mxu0 %v5021
        %5718 = vmatprep.subr.bf16.mxu0 0
        %5719 = vmatpush1.bf16.msra.mxu0 %v5024
        %5720 = vmatprep.subr.bf16.mxu0 0
        %5721 = vmatpush1.bf16.msra.mxu0 %v5027
        %5722 = vmatprep.subr.bf16.mxu0 0
        %5723 = vmatpush1.bf16.msra.mxu0 %v5030
        %5724 = vmatprep.subr.bf16.mxu0 0
        %5725 = vmatpush1.bf16.msra.mxu0 %v5033
        %5726 = vmatprep.subr.bf16.mxu0 0
        %5727 = vmatpush1.bf16.msra.mxu0 %v5036
        %5728 = vmatprep.subr.bf16.mxu0 0
        %5729 = vmatpush1.bf16.msra.mxu0 %v5039
        %5730 = vmatprep.subr.bf16.mxu0 0
        %5731 = vmatpush1.bf16.msra.mxu0 %v5042
        %5732 = vmatprep.subr.bf16.mxu0 0
        %5733 = vmatpush1.bf16.msra.mxu0 %v5045
        %5734 = vmatprep.subr.bf16.mxu0 0
        %5735 = vmatpush1.bf16.msra.mxu0 %v5048
        %5736 = vmatprep.subr.bf16.mxu0 0
        %5737 = vmatpush1.bf16.msra.mxu0 %v5051
        %5738 = vmatprep.subr.bf16.mxu0 0
        %5739 = vmatpush1.bf16.msra.mxu0 %v5054
        %5740 = vmatprep.subr.bf16.mxu0 0
        %5741 = vmatpush1.bf16.msra.mxu0 %v5057
        %5742 = vmatprep.subr.bf16.mxu0 0
        %5743 = vmatpush1.bf16.msra.mxu0 %v5060
        %5744 = vmatprep.mubr.bf16.mxu0 0
        %5745 = vmatmul.mubr.bf16.gmra.mrb[0].mxu0 0
        %v5746 = vpop.f32.mrb[0].mxu0
        %v5747 = vadd.f32 %v4609, %v5746
        %v5748 = vpop.f32.mrb[0].mxu0
        %v5749 = vpop.f32.mrb[0].mxu0
        %v5750 = vadd.f32 %v4609, %v5749
        %v5751 = vpop.f32.mrb[0].mxu0
        %5752 = vmatprep.mubr.bf16.mxu0 0
        %5753 = vmatmul.mubr.bf16.gmra.mrb[0].mxu0 0
        %v5754 = vpop.f32.mrb[0].mxu0
        %v5755 = vadd.f32 %v4609, %v5754
        %v5756 = vpop.f32.mrb[0].mxu0
        %v5757 = vpop.f32.mrb[0].mxu0
        %v5758 = vadd.f32 %v4609, %v5757
        %v5759 = vpop.f32.mrb[0].mxu0
        %5760 = vmatprep.mubr.bf16.mxu0 0
        %5761 = vmatmul.mubr.bf16.gmra.mrb[0].mxu0 0
        %v5762 = vpop.f32.mrb[0].mxu0
        %v5763 = vadd.f32 %v4609, %v5762
        %v5764 = vpop.f32.mrb[0].mxu0
        %v5765 = vpop.f32.mrb[0].mxu0
        %v5766 = vadd.f32 %v4609, %v5765
        %v5767 = vpop.f32.mrb[0].mxu0
        %5768 = vmatprep.mubr.bf16.mxu0 %v4432
        %5769 = vmatmul.mubr.bf16.gmra.mrb[0].mxu0 0
        %v5770 = vpop.f32.mrb[0].mxu0
        %v5771 = vadd.f32 %v4609, %v5770
        %v5772 = vpop.f32.mrb[0].mxu0
        %v5773 = vpop.f32.mrb[0].mxu0
        %v5774 = vadd.f32 %v4609, %v5773
        %v5775 = vpop.f32.mrb[0].mxu0
        %5776 = vmatprep.mubr.bf16.mxu0 0
        %5777 = vmatmul.mubr.bf16.gmra.mrb[0].mxu0 %v4432
        %v5778 = vpop.f32.mrb[0].mxu0
        %v5779 = vadd.f32 %v4609, %v5778
        %v5780 = vpop.f32.mrb[0].mxu0
        %v5781 = vpop.f32.mrb[0].mxu0
        %v5782 = vadd.f32 %v4609, %v5781
        %v5783 = vpop.f32.mrb[0].mxu0
        %5784 = vmatprep.mubr.bf16.mxu0 %v4433
        %5785 = vmatmul.mubr.bf16.gmra.mrb[0].mxu0 0
        %v5786 = vpop.f32.mrb[0].mxu0
        %v5787 = vadd.f32 %v4609, %v5786
        %v5788 = vpop.f32.mrb[0].mxu0
        %v5789 = vpop.f32.mrb[0].mxu0
        %v5790 = vadd.f32 %v4609, %v5789
        %v5791 = vpop.f32.mrb[0].mxu0
        %5792 = vmatprep.mubr.bf16.mxu0 0
        %5793 = vmatmul.mubr.bf16.gmra.mrb[0].mxu0 %v4433
        %v5794 = vpop.f32.mrb[0].mxu0
        %v5795 = vadd.f32 %v4609, %v5794
        %v5796 = vpop.f32.mrb[0].mxu0
        %v5797 = vpop.f32.mrb[0].mxu0
        %v5798 = vadd.f32 %v4609, %v5797
        %v5799 = vpop.f32.mrb[0].mxu0
        %5800 = vmatprep.mubr.bf16.mxu0 %v4434
        %5801 = vmatmul.mubr.bf16.gmra.mrb[0].mxu0 0
        %v5802 = vpop.f32.mrb[0].mxu0
        %v5803 = vadd.f32 %v4609, %v5802
        %v5804 = vpop.f32.mrb[0].mxu0
        %v5805 = vpop.f32.mrb[0].mxu0
        %v5806 = vadd.f32 %v4609, %v5805
        %v5807 = vpop.f32.mrb[0].mxu0
        %5808 = vmatprep.mubr.bf16.mxu0 0
        %5809 = vmatmul.mubr.bf16.gmra.mrb[0].mxu0 %v4434
        %v5810 = vpop.f32.mrb[0].mxu0
        %v5811 = vadd.f32 %v4609, %v5810
        %v5812 = vpop.f32.mrb[0].mxu0
        %v5813 = vpop.f32.mrb[0].mxu0
        %v5814 = vadd.f32 %v4609, %v5813
        %v5815 = vpop.f32.mrb[0].mxu0
        %5816 = vmatprep.mubr.bf16.mxu0 %v4435
        %5817 = vmatmul.mubr.bf16.gmra.mrb[0].mxu0 0
        %v5818 = vpop.f32.mrb[0].mxu0
        %v5819 = vadd.f32 %v4609, %v5818
        %v5820 = vpop.f32.mrb[0].mxu0
        %v5821 = vpop.f32.mrb[0].mxu0
        %v5822 = vadd.f32 %v4609, %v5821
        %v5823 = vpop.f32.mrb[0].mxu0
        %5824 = vmatprep.mubr.bf16.mxu0 0
        %5825 = vmatmul.mubr.bf16.gmra.mrb[0].mxu0 %v4435
        %v5826 = vpop.f32.mrb[0].mxu0
        %v5827 = vadd.f32 %v4609, %v5826
        %v5828 = vpop.f32.mrb[0].mxu0
        %v5829 = vpop.f32.mrb[0].mxu0
        %v5830 = vadd.f32 %v4609, %v5829
        %v5831 = vpop.f32.mrb[0].mxu0
        %5832 = vmatprep.mubr.bf16.mxu0 0
        %5833 = vmatmul.mubr.bf16.gmra.mrb[0].mxu0 0
        %v5834 = vpop.f32.mrb[0].mxu0
        %v5835 = vadd.f32 %v4609, %v5834
        %v5836 = vpop.f32.mrb[0].mxu0
        %v5837 = vpop.f32.mrb[0].mxu0
        %v5838 = vadd.f32 %v4609, %v5837
        %v5839 = vpop.f32.mrb[0].mxu0
        %5840 = vdwg.mxu0
        %5841 = vmatprep.subr.bf16.mxu0 0
        %5842 = vmatpush1.bf16.msra.mxu0 %v5063
        %5843 = vmatprep.subr.bf16.mxu0 0
        %5844 = vmatpush1.bf16.msra.mxu0 %v5066
        %5845 = vmatprep.subr.bf16.mxu0 0
        %5846 = vmatpush1.bf16.msra.mxu0 %v5069
        %5847 = vmatprep.subr.bf16.mxu0 0
        %5848 = vmatpush1.bf16.msra.mxu0 %v5072
        %5849 = vmatprep.subr.bf16.mxu0 0
        %5850 = vmatpush1.bf16.msra.mxu0 %v5075
        %5851 = vmatprep.subr.bf16.mxu0 0
        %5852 = vmatpush1.bf16.msra.mxu0 %v5078
        %5853 = vmatprep.subr.bf16.mxu0 0
        %5854 = vmatpush1.bf16.msra.mxu0 %v5081
        %5855 = vmatprep.subr.bf16.mxu0 0
        %5856 = vmatpush1.bf16.msra.mxu0 %v5084
        %5857 = vmatprep.subr.bf16.mxu0 0
        %5858 = vmatpush1.bf16.msra.mxu0 %v5087
        %5859 = vmatprep.subr.bf16.mxu0 0
        %5860 = vmatpush1.bf16.msra.mxu0 %v5090
        %5861 = vmatprep.subr.bf16.mxu0 0
        %5862 = vmatpush1.bf16.msra.mxu0 %v5093
        %5863 = vmatprep.subr.bf16.mxu0 0
        %5864 = vmatpush1.bf16.msra.mxu0 %v5096
        %5865 = vmatprep.subr.bf16.mxu0 0
        %5866 = vmatpush1.bf16.msra.mxu0 %v5099
        %5867 = vmatprep.subr.bf16.mxu0 0
        %5868 = vmatpush1.bf16.msra.mxu0 %v5102
        %5869 = vmatprep.subr.bf16.mxu0 0
        %5870 = vmatpush1.bf16.msra.mxu0 %v5105
        %5871 = vmatprep.subr.bf16.mxu0 0
        %5872 = vmatpush1.bf16.msra.mxu0 %v5108
        %5873 = vmatprep.mubr.bf16.mxu0 0
        %5874 = vmatmul.mubr.bf16.gmra.mrb[0].mxu0 0
        %v5875 = vpop.f32.mrb[0].mxu0
        %v5876 = vadd.f32 %v5747, %v5875
        %v5877 = vpop.f32.mrb[0].mxu0
        %v5878 = vpop.f32.mrb[0].mxu0
        %v5879 = vadd.f32 %v5750, %v5878
        %v5880 = vpop.f32.mrb[0].mxu0
        %5881 = vmatprep.mubr.bf16.mxu0 %v4432
        %5882 = vmatmul.mubr.bf16.gmra.mrb[0].mxu0 0
        %v5883 = vpop.f32.mrb[0].mxu0
        %v5884 = vadd.f32 %v5755, %v5883
        %v5885 = vpop.f32.mrb[0].mxu0
        %v5886 = vpop.f32.mrb[0].mxu0
        %v5887 = vadd.f32 %v5758, %v5886
        %v5888 = vpop.f32.mrb[0].mxu0
        %5889 = vmatprep.mubr.bf16.mxu0 0
        %5890 = vmatmul.mubr.bf16.gmra.mrb[0].mxu0 %v4432
        %v5891 = vpop.f32.mrb[0].mxu0
        %v5892 = vadd.f32 %v5763, %v5891
        %v5893 = vpop.f32.mrb[0].mxu0
        %v5894 = vpop.f32.mrb[0].mxu0
        %v5895 = vadd.f32 %v5766, %v5894
        %v5896 = vpop.f32.mrb[0].mxu0
        %5897 = vmatprep.mubr.bf16.mxu0 %v4433
        %5898 = vmatmul.mubr.bf16.gmra.mrb[0].mxu0 0
        %v5899 = vpop.f32.mrb[0].mxu0
        %v5900 = vadd.f32 %v5771, %v5899
        %v5901 = vpop.f32.mrb[0].mxu0
        %v5902 = vpop.f32.mrb[0].mxu0
        %v5903 = vadd.f32 %v5774, %v5902
        %v5904 = vpop.f32.mrb[0].mxu0
        %5905 = vmatprep.mubr.bf16.mxu0 0
        %5906 = vmatmul.mubr.bf16.gmra.mrb[0].mxu0 %v4433
        %v5907 = vpop.f32.mrb[0].mxu0
        %v5908 = vadd.f32 %v5779, %v5907
        %v5909 = vpop.f32.mrb[0].mxu0
        %v5910 = vpop.f32.mrb[0].mxu0
        %v5911 = vadd.f32 %v5782, %v5910
        %v5912 = vpop.f32.mrb[0].mxu0
        %5913 = vmatprep.mubr.bf16.mxu0 %v4434
        %5914 = vmatmul.mubr.bf16.gmra.mrb[0].mxu0 0
        %v5915 = vpop.f32.mrb[0].mxu0
        %v5916 = vadd.f32 %v5787, %v5915
        %v5917 = vpop.f32.mrb[0].mxu0
        %v5918 = vpop.f32.mrb[0].mxu0
        %v5919 = vadd.f32 %v5790, %v5918
        %v5920 = vpop.f32.mrb[0].mxu0
        %5921 = vmatprep.mubr.bf16.mxu0 0
        %5922 = vmatmul.mubr.bf16.gmra.mrb[0].mxu0 %v4434
        %v5923 = vpop.f32.mrb[0].mxu0
        %v5924 = vadd.f32 %v5795, %v5923
        %v5925 = vpop.f32.mrb[0].mxu0
        %v5926 = vpop.f32.mrb[0].mxu0
        %v5927 = vadd.f32 %v5798, %v5926
        %v5928 = vpop.f32.mrb[0].mxu0
        %5929 = vmatprep.mubr.bf16.mxu0 %v4435
        %5930 = vmatmul.mubr.bf16.gmra.mrb[0].mxu0 0
        %v5931 = vpop.f32.mrb[0].mxu0
        %v5932 = vadd.f32 %v5803, %v5931
        %v5933 = vpop.f32.mrb[0].mxu0
        %v5934 = vpop.f32.mrb[0].mxu0
        %v5935 = vadd.f32 %v5806, %v5934
        %v5936 = vpop.f32.mrb[0].mxu0
        %5937 = vmatprep.mubr.bf16.mxu0 0
        %5938 = vmatmul.mubr.bf16.gmra.mrb[0].mxu0 %v4435
        %v5939 = vpop.f32.mrb[0].mxu0
        %v5940 = vadd.f32 %v5811, %v5939
        %v5941 = vpop.f32.mrb[0].mxu0
        %v5942 = vpop.f32.mrb[0].mxu0
        %v5943 = vadd.f32 %v5814, %v5942
        %v5944 = vpop.f32.mrb[0].mxu0
        %5945 = vmatprep.mubr.bf16.mxu0 0
        %5946 = vmatmul.mubr.bf16.gmra.mrb[0].mxu0 0
        %v5947 = vpop.f32.mrb[0].mxu0
        %v5948 = vadd.f32 %v5819, %v5947
        %v5949 = vpop.f32.mrb[0].mxu0
        %v5950 = vpop.f32.mrb[0].mxu0
        %v5951 = vadd.f32 %v5822, %v5950
        %v5952 = vpop.f32.mrb[0].mxu0
        %5953 = vmatprep.mubr.bf16.mxu0 0
        %5954 = vmatmul.mubr.bf16.gmra.mrb[0].mxu0 0
        %v5955 = vpop.f32.mrb[0].mxu0
        %v5956 = vadd.f32 %v5827, %v5955
        %v5957 = vpop.f32.mrb[0].mxu0
        %v5958 = vpop.f32.mrb[0].mxu0
        %v5959 = vadd.f32 %v5830, %v5958
        %v5960 = vpop.f32.mrb[0].mxu0
        %5961 = vmatprep.mubr.bf16.mxu0 0
        %5962 = vmatmul.mubr.bf16.gmra.mrb[0].mxu0 0
        %v5963 = vpop.f32.mrb[0].mxu0
        %v5964 = vadd.f32 %v5835, %v5963
        %v5965 = vpop.f32.mrb[0].mxu0
        %v5966 = vpop.f32.mrb[0].mxu0
        %v5967 = vadd.f32 %v5838, %v5966
        %v5968 = vpop.f32.mrb[0].mxu0
        %5969 = vdwg.mxu0
        %5970 = vmatprep.subr.bf16.mxu0 0
        %5971 = vmatpush1.bf16.msra.mxu0 %v5111
        %5972 = vmatprep.subr.bf16.mxu0 0
        %5973 = vmatpush1.bf16.msra.mxu0 %v5114
        %5974 = vmatprep.subr.bf16.mxu0 0
        %5975 = vmatpush1.bf16.msra.mxu0 %v5117
        %5976 = vmatprep.subr.bf16.mxu0 0
        %5977 = vmatpush1.bf16.msra.mxu0 %v5120
        %5978 = vmatprep.subr.bf16.mxu0 0
        %5979 = vmatpush1.bf16.msra.mxu0 %v5123
        %5980 = vmatprep.subr.bf16.mxu0 0
        %5981 = vmatpush1.bf16.msra.mxu0 %v5126
        %5982 = vmatprep.subr.bf16.mxu0 0
        %5983 = vmatpush1.bf16.msra.mxu0 %v5129
        %5984 = vmatprep.subr.bf16.mxu0 0
        %5985 = vmatpush1.bf16.msra.mxu0 %v5132
        %5986 = vmatprep.subr.bf16.mxu0 0
        %5987 = vmatpush1.bf16.msra.mxu0 0
        %5988 = vmatprep.subr.bf16.mxu0 0
        %5989 = vmatpush1.bf16.msra.mxu0 0
        %5990 = vmatprep.subr.bf16.mxu0 0
        %5991 = vmatpush1.bf16.msra.mxu0 0
        %5992 = vmatprep.subr.bf16.mxu0 0
        %5993 = vmatpush1.bf16.msra.mxu0 0
        %5994 = vmatprep.subr.bf16.mxu0 0
        %5995 = vmatpush1.bf16.msra.mxu0 0
        %5996 = vmatprep.subr.bf16.mxu0 0
        %5997 = vmatpush1.bf16.msra.mxu0 0
        %5998 = vmatprep.subr.bf16.mxu0 0
        %5999 = vmatpush1.bf16.msra.mxu0 0
        %6000 = vmatprep.subr.bf16.mxu0 0
        %6001 = vmatpush1.bf16.msra.mxu0 0
        %6002 = vmatprep.mubr.bf16.mxu0 0
        %6003 = vmatmul.mubr.bf16.gmra.mrb[0].mxu0 %v4432
        %v6004 = vpop.f32.mrb[0].mxu0
        %v6005 = vadd.f32 %v5876, %v6004
        %v6006 = vpop.f32.mrb[0].mxu0
        %v6007 = vpop.f32.mrb[0].mxu0
        %v6008 = vadd.f32 %v5879, %v6007
        %v6009 = vpop.f32.mrb[0].mxu0
        %6010 = vmatprep.mubr.bf16.mxu0 0
        %6011 = vmatmul.mubr.bf16.gmra.mrb[0].mxu0 0
        %v6012 = vpop.f32.mrb[0].mxu0
        %v6013 = vadd.f32 %v5884, %v6012
        %v6014 = vpop.f32.mrb[0].mxu0
        %v6015 = vpop.f32.mrb[0].mxu0
        %v6016 = vadd.f32 %v5887, %v6015
        %v6017 = vpop.f32.mrb[0].mxu0
        %6018 = vmatprep.mubr.bf16.mxu0 0
        %6019 = vmatmul.mubr.bf16.gmra.mrb[0].mxu0 %v4433
        %v6020 = vpop.f32.mrb[0].mxu0
        %v6021 = vadd.f32 %v5892, %v6020
        %v6022 = vpop.f32.mrb[0].mxu0
        %v6023 = vpop.f32.mrb[0].mxu0
        %v6024 = vadd.f32 %v5895, %v6023
        %v6025 = vpop.f32.mrb[0].mxu0
        %6026 = vmatprep.mubr.bf16.mxu0 0
        %6027 = vmatmul.mubr.bf16.gmra.mrb[0].mxu0 0
        %v6028 = vpop.f32.mrb[0].mxu0
        %v6029 = vadd.f32 %v5900, %v6028
        %v6030 = vpop.f32.mrb[0].mxu0
        %v6031 = vpop.f32.mrb[0].mxu0
        %v6032 = vadd.f32 %v5903, %v6031
        %v6033 = vpop.f32.mrb[0].mxu0
        %6034 = vmatprep.mubr.bf16.mxu0 0
        %6035 = vmatmul.mubr.bf16.gmra.mrb[0].mxu0 %v4434
        %v6036 = vpop.f32.mrb[0].mxu0
        %v6037 = vadd.f32 %v5908, %v6036
        %v6038 = vpop.f32.mrb[0].mxu0
        %v6039 = vpop.f32.mrb[0].mxu0
        %v6040 = vadd.f32 %v5911, %v6039
        %v6041 = vpop.f32.mrb[0].mxu0
        %6042 = vmatprep.mubr.bf16.mxu0 0
        %6043 = vmatmul.mubr.bf16.gmra.mrb[0].mxu0 0
        %v6044 = vpop.f32.mrb[0].mxu0
        %v6045 = vadd.f32 %v5916, %v6044
        %v6046 = vpop.f32.mrb[0].mxu0
        %v6047 = vpop.f32.mrb[0].mxu0
        %v6048 = vadd.f32 %v5919, %v6047
        %v6049 = vpop.f32.mrb[0].mxu0
        %6050 = vmatprep.mubr.bf16.mxu0 0
        %6051 = vmatmul.mubr.bf16.gmra.mrb[0].mxu0 %v4435
        %v6052 = vpop.f32.mrb[0].mxu0
        %v6053 = vadd.f32 %v5924, %v6052
        %v6054 = vpop.f32.mrb[0].mxu0
        %v6055 = vpop.f32.mrb[0].mxu0
        %v6056 = vadd.f32 %v5927, %v6055
        %v6057 = vpop.f32.mrb[0].mxu0
        %6058 = vmatprep.mubr.bf16.mxu0 0
        %6059 = vmatmul.mubr.bf16.gmra.mrb[0].mxu0 0
        %v6060 = vpop.f32.mrb[0].mxu0
        %v6061 = vadd.f32 %v5932, %v6060
        %v6062 = vpop.f32.mrb[0].mxu0
        %v6063 = vpop.f32.mrb[0].mxu0
        %v6064 = vadd.f32 %v5935, %v6063
        %v6065 = vpop.f32.mrb[0].mxu0
        %6066 = vmatprep.mubr.bf16.mxu0 0
        %6067 = vmatmul.mubr.bf16.gmra.mrb[0].mxu0 0
        %v6068 = vpop.f32.mrb[0].mxu0
        %v6069 = vadd.f32 %v5940, %v6068
        %v6070 = vpop.f32.mrb[0].mxu0
        %v6071 = vpop.f32.mrb[0].mxu0
        %v6072 = vadd.f32 %v5943, %v6071
        %v6073 = vpop.f32.mrb[0].mxu0
        %6074 = vmatprep.mubr.bf16.mxu0 0
        %6075 = vmatmul.mubr.bf16.gmra.mrb[0].mxu0 0
        %v6076 = vpop.f32.mrb[0].mxu0
        %v6077 = vadd.f32 %v5948, %v6076
        %v6078 = vpop.f32.mrb[0].mxu0
        %v6079 = vpop.f32.mrb[0].mxu0
        %v6080 = vadd.f32 %v5951, %v6079
        %v6081 = vpop.f32.mrb[0].mxu0
        %6082 = vmatprep.mubr.bf16.mxu0 0
        %6083 = vmatmul.mubr.bf16.gmra.mrb[0].mxu0 0
        %v6084 = vpop.f32.mrb[0].mxu0
        %v6085 = vadd.f32 %v5956, %v6084
        %v6086 = vpop.f32.mrb[0].mxu0
        %v6087 = vpop.f32.mrb[0].mxu0
        %v6088 = vadd.f32 %v5959, %v6087
        %v6089 = vpop.f32.mrb[0].mxu0
        %6090 = vmatprep.mubr.bf16.mxu0 0
        %6091 = vmatmul.mubr.bf16.gmra.mrb[0].mxu0 0
        %v6092 = vpop.f32.mrb[0].mxu0
        %v6093 = vadd.f32 %v5964, %v6092
        %v6094 = vpop.f32.mrb[0].mxu0
        %v6095 = vpop.f32.mrb[0].mxu0
        %v6096 = vadd.f32 %v5967, %v6095
        %v6097 = vpop.f32.mrb[0].mxu0
        %6098 = vdwg.mxu0
        %v6099 = vmax.f32 %v5594, 0.0
        %v6100 = vmax.f32 %v5596, 0.0
        %v6101 = vmax.f32 %v6005, 0.0
        %v6102 = vmax.f32 %v5598, 0.0
        %v6103 = vmax.f32 %v5600, 0.0
        %v6104 = vmax.f32 %v6008, 0.0
        %v6105 = vmax.f32 %v5604, 0.0
        %v6106 = vmax.f32 %v5606, 0.0
        %v6107 = vmax.f32 %v6013, 0.0
        %v6108 = vmax.f32 %v5608, 0.0
        %v6109 = vmax.f32 %v5610, 0.0
        %v6110 = vmax.f32 %v6016, 0.0
        %v6111 = vmax.f32 %v5614, 0.0
        %v6112 = vmax.f32 %v5616, 0.0
        %v6113 = vmax.f32 %v6021, 0.0
        %v6114 = vmax.f32 %v5618, 0.0
        %v6115 = vmax.f32 %v5620, 0.0
        %v6116 = vmax.f32 %v6024, 0.0
        %v6117 = vmax.f32 %v5624, 0.0
        %v6118 = vmax.f32 %v5626, 0.0
        %v6119 = vmax.f32 %v6029, 0.0
        %v6120 = vmax.f32 %v5628, 0.0
        %v6121 = vmax.f32 %v5630, 0.0
        %v6122 = vmax.f32 %v6032, 0.0
        %v6123 = vmax.f32 %v5634, 0.0
        %v6124 = vmax.f32 %v5636, 0.0
        %v6125 = vmax.f32 %v6037, 0.0
        %v6126 = vmax.f32 %v5638, 0.0
        %v6127 = vmax.f32 %v5640, 0.0
        %v6128 = vmax.f32 %v6040, 0.0
        %v6129 = vmax.f32 %v5644, 0.0
        %v6130 = vmax.f32 %v5646, 0.0
        %v6131 = vmax.f32 %v6045, 0.0
        %v6132 = vmax.f32 %v5648, 0.0
        %v6133 = vmax.f32 %v5650, 0.0
        %v6134 = vmax.f32 %v6048, 0.0
        %v6135 = vmax.f32 %v5654, 0.0
        %v6136 = vmax.f32 %v5656, 0.0
        %v6137 = vmax.f32 %v6053, 0.0
        %v6138 = vmax.f32 %v5658, 0.0
        %v6139 = vmax.f32 %v5660, 0.0
        %v6140 = vmax.f32 %v6056, 0.0
        %v6141 = vmax.f32 %v5664, 0.0
        %v6142 = vmax.f32 %v5666, 0.0
        %v6143 = vmax.f32 %v6061, 0.0
        %v6144 = vmax.f32 %v5668, 0.0
        %v6145 = vmax.f32 %v5670, 0.0
        %v6146 = vmax.f32 %v6064, 0.0
        %v6147 = vmax.f32 %v5674, 0.0
        %v6148 = vmax.f32 %v5676, 0.0
        %v6149 = vmax.f32 %v6069, 0.0
        %v6150 = vmax.f32 %v5678, 0.0
        %v6151 = vmax.f32 %v5680, 0.0
        %v6152 = vmax.f32 %v6072, 0.0
        %v6153 = vmax.f32 %v5684, 0.0
        %v6154 = vmax.f32 %v5686, 0.0
        %v6155 = vmax.f32 %v6077, 0.0
        %v6156 = vmax.f32 %v5688, 0.0
        %v6157 = vmax.f32 %v5690, 0.0
        %v6158 = vmax.f32 %v6080, 0.0
        %v6159 = vmax.f32 %v5694, 0.0
        %v6160 = vmax.f32 %v5696, 0.0
        %v6161 = vmax.f32 %v6085, 0.0
        %v6162 = vmax.f32 %v5698, 0.0
        %v6163 = vmax.f32 %v5700, 0.0
        %v6164 = vmax.f32 %v6088, 0.0
        %v6165 = vmax.f32 %v5704, 0.0
        %v6166 = vmax.f32 %v5706, 0.0
        %v6167 = vmax.f32 %v6093, 0.0
        %v6168 = vmax.f32 %v5708, 0.0
        %v6169 = vmax.f32 %v5710, 0.0
        %v6170 = vmax.f32 %v6096, 0.0
        %v6171 = vpack.c.bf16 %v6102, %v6099
        %v6172 = vpack.c.bf16 %v6103, %v6100
        %v6173 = vpack.c.bf16 %v6104, %v6101
        %v6174 = vpack.c.bf16 %v6108, %v6105
        %v6175 = vpack.c.bf16 %v6109, %v6106
        %v6176 = vpack.c.bf16 %v6110, %v6107
        %v6177 = vpack.c.bf16 %v6114, %v6111
        %v6178 = vpack.c.bf16 %v6115, %v6112
        %v6179 = vpack.c.bf16 %v6116, %v6113
        %v6180 = vpack.c.bf16 %v6120, %v6117
        %v6181 = vpack.c.bf16 %v6121, %v6118
        %v6182 = vpack.c.bf16 %v6122, %v6119
        %v6183 = vpack.c.bf16 %v6126, %v6123
        %v6184 = vpack.c.bf16 %v6127, %v6124
        %v6185 = vpack.c.bf16 %v6128, %v6125
        %v6186 = vpack.c.bf16 %v6132, %v6129
        %v6187 = vpack.c.bf16 %v6133, %v6130
        %v6188 = vpack.c.bf16 %v6134, %v6131
        %v6189 = vpack.c.bf16 %v6138, %v6135
        %v6190 = vpack.c.bf16 %v6139, %v6136
        %v6191 = vpack.c.bf16 %v6140, %v6137
        %v6192 = vpack.c.bf16 %v6144, %v6141
        %v6193 = vpack.c.bf16 %v6145, %v6142
        %v6194 = vpack.c.bf16 %v6146, %v6143
        %v6195 = vpack.c.bf16 %v6150, %v6147
        %v6196 = vpack.c.bf16 %v6151, %v6148
        %v6197 = vpack.c.bf16 %v6152, %v6149
        %v6198 = vpack.c.bf16 %v6156, %v6153
        %v6199 = vpack.c.bf16 %v6157, %v6154
        %v6200 = vpack.c.bf16 %v6158, %v6155
        %v6201 = vpack.c.bf16 %v6162, %v6159
        %v6202 = vpack.c.bf16 %v6163, %v6160
        %v6203 = vpack.c.bf16 %v6164, %v6161
        %v6204 = vpack.c.bf16 %v6168, %v6165
        %v6205 = vpack.c.bf16 %v6169, %v6166
        %v6206 = vpack.c.bf16 %v6170, %v6167
        %v6207 = vld [vmem:[%s16] sm:$0xf]
        %v6208 = vld [vmem:[%s16 + $0x4] sm:$0xf]
        %v6209 = vld [vmem:[%s16 + $0x8] sm:$0xf]
        %v6210 = vld [vmem:[%s16 + $0xc] sm:$0xf]
        %v6211 = vld [vmem:[%s16 + $0x10] sm:$0xf]
        %v6212 = vld [vmem:[%s16 + $0x14] sm:$0xf]
        %v6213 = vld [vmem:[%s16 + $0x18] sm:$0xf]
        %v6214 = vld [vmem:[%s16 + $0x1c] sm:$0xf]
        %v6215 = vld [vmem:[%s16 + $0x20] sm:$0xf]
        %v6216 = vld [vmem:[%s16 + $0x24] sm:$0xf]
        %v6217 = vld [vmem:[%s16 + $0x28] sm:$0xf]
        %v6218 = vld [vmem:[%s16 + $0x2c] sm:$0xf]
        %v6219 = vld [vmem:[%s16 + $0x30] sm:$0xf]
        %v6220 = vld [vmem:[%s16 + $0x34] sm:$0xf]
        %v6221 = vld [vmem:[%s16 + $0x38] sm:$0xf]
        %v6222 = vld [vmem:[%s16 + $0x3c] sm:$0xf]
        %v6223 = vld [vmem:[%s16 + $0x40] sm:$0xf]
        %v6224 = vld [vmem:[%s16 + $0x44] sm:$0xf]
        %v6225 = vld [vmem:[%s16 + $0x48] sm:$0xf]
        %v6226 = vld [vmem:[%s16 + $0x4c] sm:$0xf]
        %v6227 = vld [vmem:[%s16 + $0x50] sm:$0xf]
        %v6228 = vld [vmem:[%s16 + $0x54] sm:$0xf]
        %v6229 = vld [vmem:[%s16 + $0x58] sm:$0xf]
        %v6230 = vld [vmem:[%s16 + $0x5c] sm:$0xf]
        %v6231 = vld [vmem:[%s16 + $0x60] sm:$0xf]
        %v6232 = vld [vmem:[%s16 + $0x64] sm:$0xf]
        %v6233 = vld [vmem:[%s16 + $0x68] sm:$0xf]
        %v6234 = vld [vmem:[%s16 + $0x6c] sm:$0xf]
        %v6235 = vld [vmem:[%s16 + $0x70] sm:$0xf]
        %v6236 = vld [vmem:[%s16 + $0x74] sm:$0xf]
        %v6237 = vld [vmem:[%s16 + $0x78] sm:$0xf]
        %v6238 = vld [vmem:[%s16 + $0x7c] sm:$0xf]
        %v6239 = vld [vmem:[%s16 + $0x80] sm:$0xf]
        %v6240 = vld [vmem:[%s16 + $0x84] sm:$0xf]
        %v6241 = vld [vmem:[%s16 + $0x88] sm:$0xf]
        %v6242 = vld [vmem:[%s16 + $0x8c] sm:$0xf]
        %v6243 = vld [vmem:[%s16 + $0x90] sm:$0xf]
        %v6244 = vld [vmem:[%s16 + $0x94] sm:$0xf]
        %v6245 = vld [vmem:[%s16 + $0x98] sm:$0xf]
        %v6246 = vld [vmem:[%s16 + $0x9c] sm:$0xf]
        %v6247 = vld [vmem:[%s16 + $0xa0] sm:$0xf]
        %v6248 = vld [vmem:[%s16 + $0xa4] sm:$0xf]
        %v6249 = vld [vmem:[%s16 + $0xa8] sm:$0xf]
        %v6250 = vld [vmem:[%s16 + $0xac] sm:$0xf]
        %v6251 = vld [vmem:[%s16 + $0xb0] sm:$0xf]
        %v6252 = vld [vmem:[%s16 + $0xb4] sm:$0xf]
        %v6253 = vld [vmem:[%s16 + $0xb8] sm:$0xf]
        %v6254 = vld [vmem:[%s16 + $0xbc] sm:$0xf]
        %v6255 = vld [vmem:[%s16 + $0xc0] sm:$0xf]
        %v6256 = vld [vmem:[%s16 + $0xc4] sm:$0xf]
        %v6257 = vld [vmem:[%s16 + $0xc8] sm:$0xf]
        %v6258 = vld [vmem:[%s16 + $0xcc] sm:$0xf]
        %v6259 = vld [vmem:[%s16 + $0xd0] sm:$0xf]
        %v6260 = vld [vmem:[%s16 + $0xd4] sm:$0xf]
        %v6261 = vld [vmem:[%s16 + $0xd8] sm:$0xf]
        %v6262 = vld [vmem:[%s16 + $0xdc] sm:$0xf]
        %v6263 = vld [vmem:[%s16 + $0xe0] sm:$0xf]
        %v6264 = vld [vmem:[%s16 + $0xe4] sm:$0xf]
        %v6265 = vld [vmem:[%s16 + $0xe8] sm:$0xf]
        %v6266 = vld [vmem:[%s16 + $0xec] sm:$0xf]
        %v6267 = vld [vmem:[%s16 + $0xf0] sm:$0xf]
        %v6268 = vld [vmem:[%s16 + $0xf4] sm:$0xf]
        %v6269 = vld [vmem:[%s16 + $0xf8] sm:$0xf]
        %v6270 = vld [vmem:[%s16 + $0xfc] sm:$0xf]
        %v6271 = vld [vmem:[%s16 + $0x100] sm:$0xf]
        %v6272 = vld [vmem:[%s16 + $0x104] sm:$0xf]
        %v6273 = vld [vmem:[%s16 + $0x108] sm:$0xf]
        %v6274 = vld [vmem:[%s16 + $0x10c] sm:$0xf]
        %v6275 = vld [vmem:[%s16 + $0x110] sm:$0xf]
        %v6276 = vld [vmem:[%s16 + $0x114] sm:$0xf]
        %v6277 = vld [vmem:[%s16 + $0x118] sm:$0xf]
        %v6278 = vld [vmem:[%s16 + $0x11c] sm:$0xf]
        %v6279 = vld [vmem:[%s16 + $0x120] sm:$0xf]
        %v6280 = vld [vmem:[%s16 + $0x124] sm:$0xf]
        %v6281 = vld [vmem:[%s16 + $0x128] sm:$0xf]
        %v6282 = vld [vmem:[%s16 + $0x12c] sm:$0xf]
        %v6283 = vld [vmem:[%s16 + $0x130] sm:$0xf]
        %v6284 = vld [vmem:[%s16 + $0x134] sm:$0xf]
        %v6285 = vld [vmem:[%s16 + $0x138] sm:$0xf]
        %v6286 = vld [vmem:[%s16 + $0x13c] sm:$0xf]
        %v6287 = vld [vmem:[%s16 + $0x140] sm:$0xf]
        %v6288 = vld [vmem:[%s16 + $0x144] sm:$0xf]
        %v6289 = vld [vmem:[%s16 + $0x148] sm:$0xf]
        %v6290 = vld [vmem:[%s16 + $0x14c] sm:$0xf]
        %v6291 = vld [vmem:[%s16 + $0x150] sm:$0xf]
        %v6292 = vld [vmem:[%s16 + $0x154] sm:$0xf]
        %v6293 = vld [vmem:[%s16 + $0x158] sm:$0xf]
        %v6294 = vld [vmem:[%s16 + $0x15c] sm:$0xf]
        %v6295 = vld [vmem:[%s16 + $0x160] sm:$0xf]
        %v6296 = vld [vmem:[%s16 + $0x164] sm:$0xf]
        %v6297 = vld [vmem:[%s16 + $0x168] sm:$0xf]
        %v6298 = vld [vmem:[%s16 + $0x16c] sm:$0xf]
        %v6299 = vld [vmem:[%s16 + $0x170] sm:$0xf]
        %v6300 = vld [vmem:[%s16 + $0x174] sm:$0xf]
        %v6301 = vld [vmem:[%s16 + $0x178] sm:$0xf]
        %v6302 = vld [vmem:[%s16 + $0x17c] sm:$0xf]
        %v6303 = vld [vmem:[%s16 + $0x180] sm:$0xf]
        %v6304 = vld [vmem:[%s16 + $0x184] sm:$0xf]
        %v6305 = vld [vmem:[%s16 + $0x188] sm:$0xf]
        %v6306 = vld [vmem:[%s16 + $0x18c] sm:$0xf]
        %v6307 = vld [vmem:[%s16 + $0x190] sm:$0xf]
        %v6308 = vld [vmem:[%s16 + $0x194] sm:$0xf]
        %v6309 = vld [vmem:[%s16 + $0x198] sm:$0xf]
        %v6310 = vld [vmem:[%s16 + $0x19c] sm:$0xf]
        %v6311 = vld [vmem:[%s16 + $0x1a0] sm:$0xf]
        %v6312 = vld [vmem:[%s16 + $0x1a4] sm:$0xf]
        %v6313 = vld [vmem:[%s16 + $0x1a8] sm:$0xf]
        %v6314 = vld [vmem:[%s16 + $0x1ac] sm:$0xf]
        %v6315 = vld [vmem:[%s16 + $0x1b0] sm:$0xf]
        %v6316 = vld [vmem:[%s16 + $0x1b4] sm:$0xf]
        %v6317 = vld [vmem:[%s16 + $0x1b8] sm:$0xf]
        %v6318 = vld [vmem:[%s16 + $0x1bc] sm:$0xf]
        %v6319 = vld [vmem:[%s16 + $0x1c0] sm:$0xf]
        %v6320 = vld [vmem:[%s16 + $0x1c4] sm:$0xf]
        %v6321 = vld [vmem:[%s16 + $0x1c8] sm:$0xf]
        %v6322 = vld [vmem:[%s16 + $0x1cc] sm:$0xf]
        %v6323 = vld [vmem:[%s16 + $0x1d0] sm:$0xf]
        %v6324 = vld [vmem:[%s16 + $0x1d4] sm:$0xf]
        %v6325 = vld [vmem:[%s16 + $0x1d8] sm:$0xf]
        %v6326 = vld [vmem:[%s16 + $0x1dc] sm:$0xf]
        %v6327 = vld [vmem:[%s16 + $0x1e0] sm:$0xf]
        %v6328 = vld [vmem:[%s16 + $0x1e4] sm:$0xf]
        %v6329 = vld [vmem:[%s16 + $0x1e8] sm:$0xf]
        %v6330 = vld [vmem:[%s16 + $0x1ec] sm:$0xf]
        %v6331 = vld [vmem:[%s16 + $0x1f0] sm:$0xf]
        %v6332 = vld [vmem:[%s16 + $0x1f4] sm:$0xf]
        %v6333 = vld [vmem:[%s16 + $0x1f8] sm:$0xf]
        %v6334 = vld [vmem:[%s16 + $0x1fc] sm:$0xf]
        %v6335 = vld [vmem:[%s16 + $0x200] sm:$0xf]
        %v6336 = vld [vmem:[%s16 + $0x204] sm:$0xf]
        %v6337 = vld [vmem:[%s16 + $0x208] sm:$0xf]
        %v6338 = vld [vmem:[%s16 + $0x20c] sm:$0xf]
        %v6339 = vld [vmem:[%s16 + $0x210] sm:$0xf]
        %v6340 = vld [vmem:[%s16 + $0x214] sm:$0xf]
        %v6341 = vld [vmem:[%s16 + $0x218] sm:$0xf]
        %v6342 = vld [vmem:[%s16 + $0x21c] sm:$0xf]
        %v6343 = vld [vmem:[%s16 + $0x220] sm:$0xf]
        %v6344 = vld [vmem:[%s16 + $0x224] sm:$0xf]
        %v6345 = vld [vmem:[%s16 + $0x228] sm:$0xf]
        %v6346 = vld [vmem:[%s16 + $0x22c] sm:$0xf]
        %v6347 = vld [vmem:[%s16 + $0x230] sm:$0xf]
        %v6348 = vld [vmem:[%s16 + $0x234] sm:$0xf]
        %v6349 = vld [vmem:[%s16 + $0x238] sm:$0xf]
        %v6350 = vld [vmem:[%s16 + $0x23c] sm:$0xf]
        %v6351 = vld [vmem:[%s16 + $0x240] sm:$0xf]
        %v6352 = vld [vmem:[%s16 + $0x244] sm:$0xf]
        %v6353 = vld [vmem:[%s16 + $0x248] sm:$0xf]
        %v6354 = vld [vmem:[%s16 + $0x24c] sm:$0xf]
        %v6355 = vld [vmem:[%s16 + $0x250] sm:$0xf]
        %v6356 = vld [vmem:[%s16 + $0x254] sm:$0xf]
        %v6357 = vld [vmem:[%s16 + $0x258] sm:$0xf]
        %v6358 = vld [vmem:[%s16 + $0x25c] sm:$0xf]
        %v6359 = vld [vmem:[%s16 + $0x260] sm:$0xf]
        %v6360 = vld [vmem:[%s16 + $0x264] sm:$0xf]
        %v6361 = vld [vmem:[%s16 + $0x268] sm:$0xf]
        %v6362 = vld [vmem:[%s16 + $0x26c] sm:$0xf]
        %v6363 = vld [vmem:[%s16 + $0x270] sm:$0xf]
        %v6364 = vld [vmem:[%s16 + $0x274] sm:$0xf]
        %v6365 = vld [vmem:[%s16 + $0x278] sm:$0xf]
        %v6366 = vld [vmem:[%s16 + $0x27c] sm:$0xf]
        %v6367 = vld [vmem:[%s16 + $0x280] sm:$0xf]
        %v6368 = vld [vmem:[%s16 + $0x284] sm:$0xf]
        %v6369 = vld [vmem:[%s16 + $0x288] sm:$0xf]
        %v6370 = vld [vmem:[%s16 + $0x28c] sm:$0xf]
        %v6371 = vld [vmem:[%s16 + $0x290] sm:$0xf]
        %v6372 = vld [vmem:[%s16 + $0x294] sm:$0xf]
        %v6373 = vld [vmem:[%s16 + $0x298] sm:$0xf]
        %v6374 = vld [vmem:[%s16 + $0x29c] sm:$0xf]
        %v6375 = vld [vmem:[%s16 + $0x2a0] sm:$0xf]
        %v6376 = vld [vmem:[%s16 + $0x2a4] sm:$0xf]
        %v6377 = vld [vmem:[%s16 + $0x2a8] sm:$0xf]
        %v6378 = vld [vmem:[%s16 + $0x2ac] sm:$0xf]
        %v6379 = vld [vmem:[%s16 + $0x2b0] sm:$0xf]
        %v6380 = vld [vmem:[%s16 + $0x2b4] sm:$0xf]
        %v6381 = vld [vmem:[%s16 + $0x2b8] sm:$0xf]
        %v6382 = vld [vmem:[%s16 + $0x2bc] sm:$0xf]
        %v6383 = vld [vmem:[%s16 + $0x2c0] sm:$0xf]
        %v6384 = vld [vmem:[%s16 + $0x2c4] sm:$0xf]
        %v6385 = vld [vmem:[%s16 + $0x2c8] sm:$0xf]
        %v6386 = vld [vmem:[%s16 + $0x2cc] sm:$0xf]
        %v6387 = vld [vmem:[%s16 + $0x2d0] sm:$0xf]
        %v6388 = vld [vmem:[%s16 + $0x2d4] sm:$0xf]
        %v6389 = vld [vmem:[%s16 + $0x2d8] sm:$0xf]
        %v6390 = vld [vmem:[%s16 + $0x2dc] sm:$0xf]
        %v6391 = vld [vmem:[%s16 + $0x2e0] sm:$0xf]
        %v6392 = vld [vmem:[%s16 + $0x2e4] sm:$0xf]
        %v6393 = vld [vmem:[%s16 + $0x2e8] sm:$0xf]
        %v6394 = vld [vmem:[%s16 + $0x2ec] sm:$0xf]
        %v6395 = vld [vmem:[%s16 + $0x2f0] sm:$0xf]
        %v6396 = vld [vmem:[%s16 + $0x2f4] sm:$0xf]
        %v6397 = vld [vmem:[%s16 + $0x2f8] sm:$0xf]
        %v6398 = vld [vmem:[%s16 + $0x2fc] sm:$0xf]
        %v6399 = vld [vmem:[%s16 + $0x300] sm:$0xf]
        %v6400 = vld [vmem:[%s16 + $0x304] sm:$0xf]
        %v6401 = vld [vmem:[%s16 + $0x308] sm:$0xf]
        %v6402 = vld [vmem:[%s16 + $0x30c] sm:$0xf]
        %v6403 = vld [vmem:[%s16 + $0x310] sm:$0xf]
        %v6404 = vld [vmem:[%s16 + $0x314] sm:$0xf]
        %v6405 = vld [vmem:[%s16 + $0x318] sm:$0xf]
        %v6406 = vld [vmem:[%s16 + $0x31c] sm:$0xf]
        %v6407 = vld [vmem:[%s16 + $0x320] sm:$0xf]
        %v6408 = vld [vmem:[%s16 + $0x324] sm:$0xf]
        %v6409 = vld [vmem:[%s16 + $0x328] sm:$0xf]
        %v6410 = vld [vmem:[%s16 + $0x32c] sm:$0xf]
        %v6411 = vld [vmem:[%s16 + $0x330] sm:$0xf]
        %v6412 = vld [vmem:[%s16 + $0x334] sm:$0xf]
        %v6413 = vld [vmem:[%s16 + $0x338] sm:$0xf]
        %v6414 = vld [vmem:[%s16 + $0x33c] sm:$0xf]
        %v6415 = vld [vmem:[%s16 + $0x340] sm:$0xf]
        %v6416 = vld [vmem:[%s16 + $0x344] sm:$0xf]
        %v6417 = vld [vmem:[%s16 + $0x348] sm:$0xf]
        %v6418 = vld [vmem:[%s16 + $0x34c] sm:$0xf]
        %v6419 = vld [vmem:[%s16 + $0x350] sm:$0xf]
        %v6420 = vld [vmem:[%s16 + $0x354] sm:$0xf]
        %v6421 = vld [vmem:[%s16 + $0x358] sm:$0xf]
        %v6422 = vld [vmem:[%s16 + $0x35c] sm:$0xf]
        %v6423 = vld [vmem:[%s16 + $0x360] sm:$0xf]
        %v6424 = vld [vmem:[%s16 + $0x364] sm:$0xf]
        %v6425 = vld [vmem:[%s16 + $0x368] sm:$0xf]
        %v6426 = vld [vmem:[%s16 + $0x36c] sm:$0xf]
        %v6427 = vld [vmem:[%s16 + $0x370] sm:$0xf]
        %v6428 = vld [vmem:[%s16 + $0x374] sm:$0xf]
        %v6429 = vld [vmem:[%s16 + $0x378] sm:$0xf]
        %v6430 = vld [vmem:[%s16 + $0x37c] sm:$0xf]
        %v6431 = vld [vmem:[%s16 + $0x380] sm:$0xf]
        %v6432 = vld [vmem:[%s16 + $0x384] sm:$0xf]
        %v6433 = vld [vmem:[%s16 + $0x388] sm:$0xf]
        %v6434 = vld [vmem:[%s16 + $0x38c] sm:$0xf]
        %v6435 = vld [vmem:[%s16 + $0x390] sm:$0xf]
        %v6436 = vld [vmem:[%s16 + $0x394] sm:$0xf]
        %v6437 = vld [vmem:[%s16 + $0x398] sm:$0xf]
        %v6438 = vld [vmem:[%s16 + $0x39c] sm:$0xf]
        %v6439 = vld [vmem:[%s16 + $0x3a0] sm:$0xf]
        %v6440 = vld [vmem:[%s16 + $0x3a4] sm:$0xf]
        %v6441 = vld [vmem:[%s16 + $0x3a8] sm:$0xf]
        %v6442 = vld [vmem:[%s16 + $0x3ac] sm:$0xf]
        %v6443 = vld [vmem:[%s16 + $0x3b0] sm:$0xf]
        %v6444 = vld [vmem:[%s16 + $0x3b4] sm:$0xf]
        %v6445 = vld [vmem:[%s16 + $0x3b8] sm:$0xf]
        %v6446 = vld [vmem:[%s16 + $0x3bc] sm:$0xf]
        %v6447 = vld [vmem:[%s17] sm:$0x1]
        %v6449 = vlaneseq
        %v6450 = vshrl.u32 %v6449, 7
        %v6451 = vsub.s32 0, %v6450
        %v6452 = vrot.slane %v6447, %v6451
        %v6694 = vunpack.c.l.b16 %v6207
        %v6695 = vunpack.c.l.b16 %v6208
        %v6696 = vunpack.c.l.b16 %v6209
        %v6697 = vunpack.c.l.b16 %v6210
        %v6698 = vunpack.c.l.b16 %v6211
        %v6699 = vunpack.c.l.b16 %v6212
        %v6700 = vunpack.c.l.b16 %v6213
        %v6701 = vunpack.c.l.b16 %v6214
        %v6702 = vunpack.c.l.b16 %v6215
        %v6703 = vunpack.c.l.b16 %v6216
        %v6704 = vunpack.c.l.b16 %v6217
        %v6705 = vunpack.c.l.b16 %v6218
        %v6706 = vunpack.c.l.b16 %v6219
        %v6707 = vunpack.c.l.b16 %v6220
        %v6708 = vunpack.c.l.b16 %v6221
        %v6709 = vunpack.c.l.b16 %v6222
        %v6710 = vunpack.c.l.b16 %v6223
        %v6711 = vunpack.c.l.b16 %v6224
        %v6712 = vunpack.c.l.b16 %v6225
        %v6713 = vunpack.c.l.b16 %v6226
        %v6714 = vunpack.c.l.b16 %v6227
        %v6715 = vunpack.c.l.b16 %v6228
        %v6716 = vunpack.c.l.b16 %v6229
        %v6717 = vunpack.c.l.b16 %v6230
        %v6718 = vunpack.c.l.b16 %v6231
        %v6719 = vunpack.c.l.b16 %v6232
        %v6720 = vunpack.c.l.b16 %v6233
        %v6721 = vunpack.c.l.b16 %v6234
        %v6722 = vunpack.c.l.b16 %v6235
        %v6723 = vunpack.c.l.b16 %v6236
        %v6724 = vunpack.c.l.b16 %v6237
        %v6725 = vunpack.c.l.b16 %v6238
        %v6726 = vunpack.c.l.b16 %v6239
        %v6727 = vunpack.c.l.b16 %v6240
        %v6728 = vunpack.c.l.b16 %v6241
        %v6729 = vunpack.c.l.b16 %v6242
        %v6730 = vunpack.c.l.b16 %v6243
        %v6731 = vunpack.c.l.b16 %v6244
        %v6732 = vunpack.c.l.b16 %v6245
        %v6733 = vunpack.c.l.b16 %v6246
        %v6734 = vunpack.c.l.b16 %v6247
        %v6735 = vunpack.c.l.b16 %v6248
        %v6736 = vunpack.c.l.b16 %v6249
        %v6737 = vunpack.c.l.b16 %v6250
        %v6738 = vunpack.c.l.b16 %v6251
        %v6739 = vunpack.c.l.b16 %v6252
        %v6740 = vunpack.c.l.b16 %v6253
        %v6741 = vunpack.c.l.b16 %v6254
        %v6742 = vunpack.c.l.b16 %v6255
        %v6743 = vunpack.c.l.b16 %v6256
        %v6744 = vunpack.c.l.b16 %v6257
        %v6745 = vunpack.c.l.b16 %v6258
        %v6746 = vunpack.c.l.b16 %v6259
        %v6747 = vunpack.c.l.b16 %v6260
        %v6748 = vunpack.c.l.b16 %v6261
        %v6749 = vunpack.c.l.b16 %v6262
        %v6750 = vunpack.c.l.b16 %v6263
        %v6751 = vunpack.c.l.b16 %v6264
        %v6752 = vunpack.c.l.b16 %v6265
        %v6753 = vunpack.c.l.b16 %v6266
        %v6754 = vunpack.c.l.b16 %v6267
        %v6755 = vunpack.c.l.b16 %v6268
        %v6756 = vunpack.c.l.b16 %v6269
        %v6757 = vunpack.c.l.b16 %v6270
        %v6758 = vunpack.c.l.b16 %v6271
        %v6759 = vunpack.c.l.b16 %v6272
        %v6760 = vunpack.c.l.b16 %v6273
        %v6761 = vunpack.c.l.b16 %v6274
        %v6762 = vunpack.c.l.b16 %v6275
        %v6763 = vunpack.c.l.b16 %v6276
        %v6764 = vunpack.c.l.b16 %v6277
        %v6765 = vunpack.c.l.b16 %v6278
        %v6766 = vunpack.c.l.b16 %v6279
        %v6767 = vunpack.c.l.b16 %v6280
        %v6768 = vunpack.c.l.b16 %v6281
        %v6769 = vunpack.c.l.b16 %v6282
        %v6770 = vunpack.c.l.b16 %v6283
        %v6771 = vunpack.c.l.b16 %v6284
        %v6772 = vunpack.c.l.b16 %v6285
        %v6773 = vunpack.c.l.b16 %v6286
        %v6774 = vunpack.c.l.b16 %v6287
        %v6775 = vunpack.c.l.b16 %v6288
        %v6776 = vunpack.c.l.b16 %v6289
        %v6777 = vunpack.c.l.b16 %v6290
        %v6778 = vunpack.c.l.b16 %v6291
        %v6779 = vunpack.c.l.b16 %v6292
        %v6780 = vunpack.c.l.b16 %v6293
        %v6781 = vunpack.c.l.b16 %v6294
        %v6782 = vunpack.c.l.b16 %v6295
        %v6783 = vunpack.c.l.b16 %v6296
        %v6784 = vunpack.c.l.b16 %v6297
        %v6785 = vunpack.c.l.b16 %v6298
        %v6786 = vunpack.c.l.b16 %v6299
        %v6787 = vunpack.c.l.b16 %v6300
        %v6788 = vunpack.c.l.b16 %v6301
        %v6789 = vunpack.c.l.b16 %v6302
        %v6790 = vunpack.c.l.b16 %v6303
        %v6791 = vunpack.c.l.b16 %v6304
        %v6792 = vunpack.c.l.b16 %v6305
        %v6793 = vunpack.c.l.b16 %v6306
        %v6794 = vunpack.c.l.b16 %v6307
        %v6795 = vunpack.c.l.b16 %v6308
        %v6796 = vunpack.c.l.b16 %v6309
        %v6797 = vunpack.c.l.b16 %v6310
        %v6798 = vunpack.c.l.b16 %v6311
        %v6799 = vunpack.c.l.b16 %v6312
        %v6800 = vunpack.c.l.b16 %v6313
        %v6801 = vunpack.c.l.b16 %v6314
        %v6802 = vunpack.c.l.b16 %v6315
        %v6803 = vunpack.c.l.b16 %v6316
        %v6804 = vunpack.c.l.b16 %v6317
        %v6805 = vunpack.c.l.b16 %v6318
        %v6806 = vunpack.c.l.b16 %v6319
        %v6807 = vunpack.c.l.b16 %v6320
        %v6808 = vunpack.c.l.b16 %v6321
        %v6809 = vunpack.c.l.b16 %v6322
        %v6810 = vunpack.c.l.b16 %v6323
        %v6811 = vunpack.c.l.b16 %v6324
        %v6812 = vunpack.c.l.b16 %v6325
        %v6813 = vunpack.c.l.b16 %v6326
        %v6814 = vunpack.c.l.b16 %v6327
        %v6815 = vunpack.c.l.b16 %v6328
        %v6816 = vunpack.c.l.b16 %v6329
        %v6817 = vunpack.c.l.b16 %v6330
        %v6818 = vunpack.c.l.b16 %v6331
        %v6819 = vunpack.c.l.b16 %v6332
        %v6820 = vunpack.c.l.b16 %v6333
        %v6821 = vunpack.c.l.b16 %v6334
        %v6822 = vunpack.c.l.b16 %v6335
        %v6823 = vunpack.c.l.b16 %v6336
        %v6824 = vunpack.c.l.b16 %v6337
        %v6825 = vunpack.c.l.b16 %v6338
        %v6826 = vunpack.c.l.b16 %v6339
        %v6827 = vunpack.c.l.b16 %v6340
        %v6828 = vunpack.c.l.b16 %v6341
        %v6829 = vunpack.c.l.b16 %v6342
        %v6830 = vunpack.c.l.b16 %v6343
        %v6831 = vunpack.c.l.b16 %v6344
        %v6832 = vunpack.c.l.b16 %v6345
        %v6833 = vunpack.c.l.b16 %v6346
        %v6834 = vunpack.c.l.b16 %v6347
        %v6835 = vunpack.c.l.b16 %v6348
        %v6836 = vunpack.c.l.b16 %v6349
        %v6837 = vunpack.c.l.b16 %v6350
        %v6838 = vunpack.c.l.b16 %v6351
        %v6839 = vunpack.c.l.b16 %v6352
        %v6840 = vunpack.c.l.b16 %v6353
        %v6841 = vunpack.c.l.b16 %v6354
        %v6842 = vunpack.c.l.b16 %v6355
        %v6843 = vunpack.c.l.b16 %v6356
        %v6844 = vunpack.c.l.b16 %v6357
        %v6845 = vunpack.c.l.b16 %v6358
        %v6846 = vunpack.c.l.b16 %v6359
        %v6847 = vunpack.c.l.b16 %v6360
        %v6848 = vunpack.c.l.b16 %v6361
        %v6849 = vunpack.c.l.b16 %v6362
        %v6850 = vunpack.c.l.b16 %v6363
        %v6851 = vunpack.c.l.b16 %v6364
        %v6852 = vunpack.c.l.b16 %v6365
        %v6853 = vunpack.c.l.b16 %v6366
        %v6854 = vunpack.c.l.b16 %v6367
        %v6855 = vunpack.c.l.b16 %v6368
        %v6856 = vunpack.c.l.b16 %v6369
        %v6857 = vunpack.c.l.b16 %v6370
        %v6858 = vunpack.c.l.b16 %v6371
        %v6859 = vunpack.c.l.b16 %v6372
        %v6860 = vunpack.c.l.b16 %v6373
        %v6861 = vunpack.c.l.b16 %v6374
        %v6862 = vunpack.c.l.b16 %v6375
        %v6863 = vunpack.c.l.b16 %v6376
        %v6864 = vunpack.c.l.b16 %v6377
        %v6865 = vunpack.c.l.b16 %v6378
        %v6866 = vunpack.c.l.b16 %v6379
        %v6867 = vunpack.c.l.b16 %v6380
        %v6868 = vunpack.c.l.b16 %v6381
        %v6869 = vunpack.c.l.b16 %v6382
        %v6870 = vunpack.c.l.b16 %v6383
        %v6871 = vunpack.c.l.b16 %v6384
        %v6872 = vunpack.c.l.b16 %v6385
        %v6873 = vunpack.c.l.b16 %v6386
        %v6874 = vunpack.c.l.b16 %v6387
        %v6875 = vunpack.c.l.b16 %v6388
        %v6876 = vunpack.c.l.b16 %v6389
        %v6877 = vunpack.c.l.b16 %v6390
        %v6878 = vunpack.c.l.b16 %v6391
        %v6879 = vunpack.c.l.b16 %v6392
        %v6880 = vunpack.c.l.b16 %v6393
        %v6881 = vunpack.c.l.b16 %v6394
        %v6882 = vunpack.c.l.b16 %v6395
        %v6883 = vunpack.c.l.b16 %v6396
        %v6884 = vunpack.c.l.b16 %v6397
        %v6885 = vunpack.c.l.b16 %v6398
        %v6886 = vunpack.c.l.b16 %v6399
        %v6887 = vunpack.c.l.b16 %v6400
        %v6888 = vunpack.c.l.b16 %v6401
        %v6889 = vunpack.c.l.b16 %v6402
        %v6890 = vunpack.c.l.b16 %v6403
        %v6891 = vunpack.c.l.b16 %v6404
        %v6892 = vunpack.c.l.b16 %v6405
        %v6893 = vunpack.c.l.b16 %v6406
        %v6894 = vunpack.c.l.b16 %v6407
        %v6895 = vunpack.c.l.b16 %v6408
        %v6896 = vunpack.c.l.b16 %v6409
        %v6897 = vunpack.c.l.b16 %v6410
        %v6898 = vunpack.c.l.b16 %v6411
        %v6899 = vunpack.c.l.b16 %v6412
        %v6900 = vunpack.c.l.b16 %v6413
        %v6901 = vunpack.c.l.b16 %v6414
        %v6902 = vunpack.c.l.b16 %v6415
        %v6903 = vunpack.c.l.b16 %v6416
        %v6904 = vunpack.c.l.b16 %v6417
        %v6905 = vunpack.c.l.b16 %v6418
        %v6906 = vunpack.c.l.b16 %v6419
        %v6907 = vunpack.c.l.b16 %v6420
        %v6908 = vunpack.c.l.b16 %v6421
        %v6909 = vunpack.c.l.b16 %v6422
        %v6910 = vunpack.c.l.b16 %v6423
        %v6911 = vunpack.c.l.b16 %v6424
        %v6912 = vunpack.c.l.b16 %v6425
        %v6913 = vunpack.c.l.b16 %v6426
        %v6914 = vunpack.c.l.b16 %v6427
        %v6915 = vunpack.c.l.b16 %v6428
        %v6916 = vunpack.c.l.b16 %v6429
        %v6917 = vunpack.c.l.b16 %v6430
        %v6918 = vunpack.c.l.b16 %v6431
        %v6919 = vunpack.c.l.b16 %v6432
        %v6920 = vunpack.c.l.b16 %v6433
        %v6921 = vunpack.c.l.b16 %v6434
        %v6922 = vunpack.c.l.b16 %v6435
        %v6923 = vunpack.c.l.b16 %v6436
        %v6924 = vunpack.c.l.b16 %v6437
        %v6925 = vunpack.c.l.b16 %v6438
        %v6926 = vunpack.c.l.b16 %v6439
        %v6927 = vunpack.c.l.b16 %v6440
        %v6928 = vunpack.c.l.b16 %v6441
        %v6929 = vunpack.c.l.b16 %v6442
        %v6930 = vunpack.c.l.b16 %v6443
        %v6931 = vunpack.c.l.b16 %v6444
        %v6932 = vunpack.c.l.b16 %v6445
        %v6933 = vunpack.c.l.b16 %v6446
        %v6934 = vpack.c.b16 %v6695, %v6694
        %v6935 = vpack.c.b16 %v6697, %v6696
        %v6936 = vpack.c.b16 %v6699, %v6698
        %v6937 = vpack.c.b16 %v6701, %v6700
        %v6938 = vpack.c.b16 %v6703, %v6702
        %v6939 = vpack.c.b16 %v6705, %v6704
        %v6940 = vpack.c.b16 %v6707, %v6706
        %v6941 = vpack.c.b16 %v6709, %v6708
        %v6942 = vpack.c.b16 %v6711, %v6710
        %v6943 = vpack.c.b16 %v6713, %v6712
        %v6944 = vpack.c.b16 %v6715, %v6714
        %v6945 = vpack.c.b16 %v6717, %v6716
        %v6946 = vpack.c.b16 %v6719, %v6718
        %v6947 = vpack.c.b16 %v6721, %v6720
        %v6948 = vpack.c.b16 %v6723, %v6722
        %v6949 = vpack.c.b16 %v6725, %v6724
        %v6950 = vpack.c.b16 %v6727, %v6726
        %v6951 = vpack.c.b16 %v6729, %v6728
        %v6952 = vpack.c.b16 %v6731, %v6730
        %v6953 = vpack.c.b16 %v6733, %v6732
        %v6954 = vpack.c.b16 %v6735, %v6734
        %v6955 = vpack.c.b16 %v6737, %v6736
        %v6956 = vpack.c.b16 %v6739, %v6738
        %v6957 = vpack.c.b16 %v6741, %v6740
        %v6958 = vpack.c.b16 %v6743, %v6742
        %v6959 = vpack.c.b16 %v6745, %v6744
        %v6960 = vpack.c.b16 %v6747, %v6746
        %v6961 = vpack.c.b16 %v6749, %v6748
        %v6962 = vpack.c.b16 %v6751, %v6750
        %v6963 = vpack.c.b16 %v6753, %v6752
        %v6964 = vpack.c.b16 %v6755, %v6754
        %v6965 = vpack.c.b16 %v6757, %v6756
        %v6966 = vpack.c.b16 %v6759, %v6758
        %v6967 = vpack.c.b16 %v6761, %v6760
        %v6968 = vpack.c.b16 %v6763, %v6762
        %v6969 = vpack.c.b16 %v6765, %v6764
        %v6970 = vpack.c.b16 %v6767, %v6766
        %v6971 = vpack.c.b16 %v6769, %v6768
        %v6972 = vpack.c.b16 %v6771, %v6770
        %v6973 = vpack.c.b16 %v6773, %v6772
        %v6974 = vpack.c.b16 %v6775, %v6774
        %v6975 = vpack.c.b16 %v6777, %v6776
        %v6976 = vpack.c.b16 %v6779, %v6778
        %v6977 = vpack.c.b16 %v6781, %v6780
        %v6978 = vpack.c.b16 %v6783, %v6782
        %v6979 = vpack.c.b16 %v6785, %v6784
        %v6980 = vpack.c.b16 %v6787, %v6786
        %v6981 = vpack.c.b16 %v6789, %v6788
        %v6982 = vpack.c.b16 %v6791, %v6790
        %v6983 = vpack.c.b16 %v6793, %v6792
        %v6984 = vpack.c.b16 %v6795, %v6794
        %v6985 = vpack.c.b16 %v6797, %v6796
        %v6986 = vpack.c.b16 %v6799, %v6798
        %v6987 = vpack.c.b16 %v6801, %v6800
        %v6988 = vpack.c.b16 %v6803, %v6802
        %v6989 = vpack.c.b16 %v6805, %v6804
        %v6990 = vpack.c.b16 %v6807, %v6806
        %v6991 = vpack.c.b16 %v6809, %v6808
        %v6992 = vpack.c.b16 %v6811, %v6810
        %v6993 = vpack.c.b16 %v6813, %v6812
        %v6994 = vpack.c.b16 %v6815, %v6814
        %v6995 = vpack.c.b16 %v6817, %v6816
        %v6996 = vpack.c.b16 %v6819, %v6818
        %v6997 = vpack.c.b16 %v6821, %v6820
        %v6998 = vpack.c.b16 %v6823, %v6822
        %v6999 = vpack.c.b16 %v6825, %v6824
        %v7000 = vpack.c.b16 %v6827, %v6826
        %v7001 = vpack.c.b16 %v6829, %v6828
        %v7002 = vpack.c.b16 %v6831, %v6830
        %v7003 = vpack.c.b16 %v6833, %v6832
        %v7004 = vpack.c.b16 %v6835, %v6834
        %v7005 = vpack.c.b16 %v6837, %v6836
        %v7006 = vpack.c.b16 %v6839, %v6838
        %v7007 = vpack.c.b16 %v6841, %v6840
        %v7008 = vpack.c.b16 %v6843, %v6842
        %v7009 = vpack.c.b16 %v6845, %v6844
        %v7010 = vpack.c.b16 %v6847, %v6846
        %v7011 = vpack.c.b16 %v6849, %v6848
        %v7012 = vpack.c.b16 %v6851, %v6850
        %v7013 = vpack.c.b16 %v6853, %v6852
        %v7014 = vpack.c.b16 %v6855, %v6854
        %v7015 = vpack.c.b16 %v6857, %v6856
        %v7016 = vpack.c.b16 %v6859, %v6858
        %v7017 = vpack.c.b16 %v6861, %v6860
        %v7018 = vpack.c.b16 %v6863, %v6862
        %v7019 = vpack.c.b16 %v6865, %v6864
        %v7020 = vpack.c.b16 %v6867, %v6866
        %v7021 = vpack.c.b16 %v6869, %v6868
        %v7022 = vpack.c.b16 %v6871, %v6870
        %v7023 = vpack.c.b16 %v6873, %v6872
        %v7024 = vpack.c.b16 %v6875, %v6874
        %v7025 = vpack.c.b16 %v6877, %v6876
        %v7026 = vpack.c.b16 %v6879, %v6878
        %v7027 = vpack.c.b16 %v6881, %v6880
        %v7028 = vpack.c.b16 %v6883, %v6882
        %v7029 = vpack.c.b16 %v6885, %v6884
        %v7030 = vpack.c.b16 %v6887, %v6886
        %v7031 = vpack.c.b16 %v6889, %v6888
        %v7032 = vpack.c.b16 %v6891, %v6890
        %v7033 = vpack.c.b16 %v6893, %v6892
        %v7034 = vpack.c.b16 %v6895, %v6894
        %v7035 = vpack.c.b16 %v6897, %v6896
        %v7036 = vpack.c.b16 %v6899, %v6898
        %v7037 = vpack.c.b16 %v6901, %v6900
        %v7038 = vpack.c.b16 %v6903, %v6902
        %v7039 = vpack.c.b16 %v6905, %v6904
        %v7040 = vpack.c.b16 %v6907, %v6906
        %v7041 = vpack.c.b16 %v6909, %v6908
        %v7042 = vpack.c.b16 %v6911, %v6910
        %v7043 = vpack.c.b16 %v6913, %v6912
        %v7044 = vpack.c.b16 %v6915, %v6914
        %v7045 = vpack.c.b16 %v6917, %v6916
        %v7046 = vpack.c.b16 %v6919, %v6918
        %v7047 = vpack.c.b16 %v6921, %v6920
        %v7048 = vpack.c.b16 %v6923, %v6922
        %v7049 = vpack.c.b16 %v6925, %v6924
        %v7050 = vpack.c.b16 %v6927, %v6926
        %v7051 = vpack.c.b16 %v6929, %v6928
        %v7052 = vpack.c.b16 %v6931, %v6930
        %v7053 = vpack.c.b16 %v6933, %v6932
        %7174 = vmatprep.subr.bf16.mxu0 0
        %7175 = vmatpush1.bf16.msra.mxu0 %v6934
        %7176 = vmatprep.subr.bf16.mxu0 0
        %7177 = vmatpush1.bf16.msra.mxu0 %v6935
        %7178 = vmatprep.subr.bf16.mxu0 0
        %7179 = vmatpush1.bf16.msra.mxu0 %v6936
        %7180 = vmatprep.subr.bf16.mxu0 0
        %7181 = vmatpush1.bf16.msra.mxu0 %v6937
        %7182 = vmatprep.subr.bf16.mxu0 0
        %7183 = vmatpush1.bf16.msra.mxu0 %v6938
        %7184 = vmatprep.subr.bf16.mxu0 0
        %7185 = vmatpush1.bf16.msra.mxu0 %v6939
        %7186 = vmatprep.subr.bf16.mxu0 0
        %7187 = vmatpush1.bf16.msra.mxu0 %v6940
        %7188 = vmatprep.subr.bf16.mxu0 0
        %7189 = vmatpush1.bf16.msra.mxu0 %v6941
        %7190 = vmatprep.subr.bf16.mxu0 0
        %7191 = vmatpush1.bf16.msra.mxu0 %v6942
        %7192 = vmatprep.subr.bf16.mxu0 0
        %7193 = vmatpush1.bf16.msra.mxu0 %v6943
        %7194 = vmatprep.subr.bf16.mxu0 0
        %7195 = vmatpush1.bf16.msra.mxu0 %v6944
        %7196 = vmatprep.subr.bf16.mxu0 0
        %7197 = vmatpush1.bf16.msra.mxu0 %v6945
        %7198 = vmatprep.subr.bf16.mxu0 0
        %7199 = vmatpush1.bf16.msra.mxu0 %v6946
        %7200 = vmatprep.subr.bf16.mxu0 0
        %7201 = vmatpush1.bf16.msra.mxu0 %v6947
        %7202 = vmatprep.subr.bf16.mxu0 0
        %7203 = vmatpush1.bf16.msra.mxu0 %v6948
        %7204 = vmatprep.subr.bf16.mxu0 0
        %7205 = vmatpush1.bf16.msra.mxu0 %v6949
        %7206 = vmatprep.mubr.bf16.mxu0 0
        %7207 = vmatmul.mubr.bf16.gmra.mrb[0].mxu0 0
        %v7208 = vpop.f32.mrb[0].mxu0
        %v7209 = vadd.f32 %v6452, %v7208
        %v7210 = vpop.f32.mrb[0].mxu0
        %v7211 = vpop.f32.mrb[0].mxu0
        %v7212 = vadd.f32 %v6452, %v7211
        %v7213 = vpop.f32.mrb[0].mxu0
        %7214 = vmatprep.mubr.bf16.mxu0 0
        %7215 = vmatmul.mubr.bf16.gmra.mrb[0].mxu0 0
        %v7216 = vpop.f32.mrb[0].mxu0
        %v7217 = vadd.f32 %v6452, %v7216
        %v7218 = vpop.f32.mrb[0].mxu0
        %v7219 = vpop.f32.mrb[0].mxu0
        %v7220 = vadd.f32 %v6452, %v7219
        %v7221 = vpop.f32.mrb[0].mxu0
        %7222 = vmatprep.mubr.bf16.mxu0 0
        %7223 = vmatmul.mubr.bf16.gmra.mrb[0].mxu0 0
        %v7224 = vpop.f32.mrb[0].mxu0
        %v7225 = vadd.f32 %v6452, %v7224
        %v7226 = vpop.f32.mrb[0].mxu0
        %v7227 = vpop.f32.mrb[0].mxu0
        %v7228 = vadd.f32 %v6452, %v7227
        %v7229 = vpop.f32.mrb[0].mxu0
        %7230 = vmatprep.mubr.bf16.mxu0 0
        %7231 = vmatmul.mubr.bf16.gmra.mrb[0].mxu0 0
        %v7232 = vpop.f32.mrb[0].mxu0
        %v7233 = vadd.f32 %v6452, %v7232
        %v7234 = vpop.f32.mrb[0].mxu0
        %v7235 = vpop.f32.mrb[0].mxu0
        %v7236 = vadd.f32 %v6452, %v7235
        %v7237 = vpop.f32.mrb[0].mxu0
        %7238 = vmatprep.mubr.bf16.mxu0 %v6172
        %7239 = vmatmul.mubr.bf16.gmra.mrb[0].mxu0 %v6171
        %v7240 = vpop.f32.mrb[0].mxu0
        %v7241 = vadd.f32 %v6452, %v7240
        %v7242 = vpop.f32.mrb[0].mxu0
        %v7243 = vpop.f32.mrb[0].mxu0
        %v7244 = vadd.f32 %v6452, %v7243
        %v7245 = vpop.f32.mrb[0].mxu0
        %7246 = vmatprep.mubr.bf16.mxu0 0
        %7247 = vmatmul.mubr.bf16.gmra.mrb[0].mxu0 0
        %v7248 = vpop.f32.mrb[0].mxu0
        %v7249 = vadd.f32 %v6452, %v7248
        %v7250 = vpop.f32.mrb[0].mxu0
        %v7251 = vpop.f32.mrb[0].mxu0
        %v7252 = vadd.f32 %v6452, %v7251
        %v7253 = vpop.f32.mrb[0].mxu0
        %7254 = vmatprep.mubr.bf16.mxu0 %v6175
        %7255 = vmatmul.mubr.bf16.gmra.mrb[0].mxu0 %v6174
        %v7256 = vpop.f32.mrb[0].mxu0
        %v7257 = vadd.f32 %v6452, %v7256
        %v7258 = vpop.f32.mrb[0].mxu0
        %v7259 = vpop.f32.mrb[0].mxu0
        %v7260 = vadd.f32 %v6452, %v7259
        %v7261 = vpop.f32.mrb[0].mxu0
        %7262 = vmatprep.mubr.bf16.mxu0 0
        %7263 = vmatmul.mubr.bf16.gmra.mrb[0].mxu0 0
        %v7264 = vpop.f32.mrb[0].mxu0
        %v7265 = vadd.f32 %v6452, %v7264
        %v7266 = vpop.f32.mrb[0].mxu0
        %v7267 = vpop.f32.mrb[0].mxu0
        %v7268 = vadd.f32 %v6452, %v7267
        %v7269 = vpop.f32.mrb[0].mxu0
        %7270 = vmatprep.mubr.bf16.mxu0 %v6178
        %7271 = vmatmul.mubr.bf16.gmra.mrb[0].mxu0 %v6177
        %v7272 = vpop.f32.mrb[0].mxu0
        %v7273 = vadd.f32 %v6452, %v7272
        %v7274 = vpop.f32.mrb[0].mxu0
        %v7275 = vpop.f32.mrb[0].mxu0
        %v7276 = vadd.f32 %v6452, %v7275
        %v7277 = vpop.f32.mrb[0].mxu0
        %7278 = vmatprep.mubr.bf16.mxu0 0
        %7279 = vmatmul.mubr.bf16.gmra.mrb[0].mxu0 0
        %v7280 = vpop.f32.mrb[0].mxu0
        %v7281 = vadd.f32 %v6452, %v7280
        %v7282 = vpop.f32.mrb[0].mxu0
        %v7283 = vpop.f32.mrb[0].mxu0
        %v7284 = vadd.f32 %v6452, %v7283
        %v7285 = vpop.f32.mrb[0].mxu0
        %7286 = vmatprep.mubr.bf16.mxu0 %v6181
        %7287 = vmatmul.mubr.bf16.gmra.mrb[0].mxu0 %v6180
        %v7288 = vpop.f32.mrb[0].mxu0
        %v7289 = vadd.f32 %v6452, %v7288
        %v7290 = vpop.f32.mrb[0].mxu0
        %v7291 = vpop.f32.mrb[0].mxu0
        %v7292 = vadd.f32 %v6452, %v7291
        %v7293 = vpop.f32.mrb[0].mxu0
        %7294 = vmatprep.mubr.bf16.mxu0 0
        %7295 = vmatmul.mubr.bf16.gmra.mrb[0].mxu0 0
        %v7296 = vpop.f32.mrb[0].mxu0
        %v7297 = vadd.f32 %v6452, %v7296
        %v7298 = vpop.f32.mrb[0].mxu0
        %v7299 = vpop.f32.mrb[0].mxu0
        %v7300 = vadd.f32 %v6452, %v7299
        %v7301 = vpop.f32.mrb[0].mxu0
        %7302 = vmatprep.mubr.bf16.mxu0 %v6184
        %7303 = vmatmul.mubr.bf16.gmra.mrb[0].mxu0 %v6183
        %v7304 = vpop.f32.mrb[0].mxu0
        %v7305 = vadd.f32 %v6452, %v7304
        %v7306 = vpop.f32.mrb[0].mxu0
        %v7307 = vpop.f32.mrb[0].mxu0
        %v7308 = vadd.f32 %v6452, %v7307
        %v7309 = vpop.f32.mrb[0].mxu0
        %7310 = vmatprep.mubr.bf16.mxu0 0
        %7311 = vmatmul.mubr.bf16.gmra.mrb[0].mxu0 0
        %v7312 = vpop.f32.mrb[0].mxu0
        %v7313 = vadd.f32 %v6452, %v7312
        %v7314 = vpop.f32.mrb[0].mxu0
        %v7315 = vpop.f32.mrb[0].mxu0
        %v7316 = vadd.f32 %v6452, %v7315
        %v7317 = vpop.f32.mrb[0].mxu0
        %7318 = vmatprep.mubr.bf16.mxu0 %v6187
        %7319 = vmatmul.mubr.bf16.gmra.mrb[0].mxu0 %v6186
        %v7320 = vpop.f32.mrb[0].mxu0
        %v7321 = vadd.f32 %v6452, %v7320
        %v7322 = vpop.f32.mrb[0].mxu0
        %v7323 = vpop.f32.mrb[0].mxu0
        %v7324 = vadd.f32 %v6452, %v7323
        %v7325 = vpop.f32.mrb[0].mxu0
        %7326 = vmatprep.mubr.bf16.mxu0 0
        %7327 = vmatmul.mubr.bf16.gmra.mrb[0].mxu0 0
        %v7328 = vpop.f32.mrb[0].mxu0
        %v7329 = vadd.f32 %v6452, %v7328
        %v7330 = vpop.f32.mrb[0].mxu0
        %v7331 = vpop.f32.mrb[0].mxu0
        %v7332 = vadd.f32 %v6452, %v7331
        %v7333 = vpop.f32.mrb[0].mxu0
        %7334 = vmatprep.mubr.bf16.mxu0 %v6190
        %7335 = vmatmul.mubr.bf16.gmra.mrb[0].mxu0 %v6189
        %v7336 = vpop.f32.mrb[0].mxu0
        %v7337 = vadd.f32 %v6452, %v7336
        %v7338 = vpop.f32.mrb[0].mxu0
        %v7339 = vpop.f32.mrb[0].mxu0
        %v7340 = vadd.f32 %v6452, %v7339
        %v7341 = vpop.f32.mrb[0].mxu0
        %7342 = vmatprep.mubr.bf16.mxu0 0
        %7343 = vmatmul.mubr.bf16.gmra.mrb[0].mxu0 0
        %v7344 = vpop.f32.mrb[0].mxu0
        %v7345 = vadd.f32 %v6452, %v7344
        %v7346 = vpop.f32.mrb[0].mxu0
        %v7347 = vpop.f32.mrb[0].mxu0
        %v7348 = vadd.f32 %v6452, %v7347
        %v7349 = vpop.f32.mrb[0].mxu0
        %7350 = vmatprep.mubr.bf16.mxu0 %v6193
        %7351 = vmatmul.mubr.bf16.gmra.mrb[0].mxu0 %v6192
        %v7352 = vpop.f32.mrb[0].mxu0
        %v7353 = vadd.f32 %v6452, %v7352
        %v7354 = vpop.f32.mrb[0].mxu0
        %v7355 = vpop.f32.mrb[0].mxu0
        %v7356 = vadd.f32 %v6452, %v7355
        %v7357 = vpop.f32.mrb[0].mxu0
        %7358 = vmatprep.mubr.bf16.mxu0 0
        %7359 = vmatmul.mubr.bf16.gmra.mrb[0].mxu0 0
        %v7360 = vpop.f32.mrb[0].mxu0
        %v7361 = vadd.f32 %v6452, %v7360
        %v7362 = vpop.f32.mrb[0].mxu0
        %v7363 = vpop.f32.mrb[0].mxu0
        %v7364 = vadd.f32 %v6452, %v7363
        %v7365 = vpop.f32.mrb[0].mxu0
        %7366 = vmatprep.mubr.bf16.mxu0 %v6196
        %7367 = vmatmul.mubr.bf16.gmra.mrb[0].mxu0 %v6195
        %v7368 = vpop.f32.mrb[0].mxu0
        %v7369 = vadd.f32 %v6452, %v7368
        %v7370 = vpop.f32.mrb[0].mxu0
        %v7371 = vpop.f32.mrb[0].mxu0
        %v7372 = vadd.f32 %v6452, %v7371
        %v7373 = vpop.f32.mrb[0].mxu0
        %7374 = vmatprep.mubr.bf16.mxu0 0
        %7375 = vmatmul.mubr.bf16.gmra.mrb[0].mxu0 0
        %v7376 = vpop.f32.mrb[0].mxu0
        %v7377 = vadd.f32 %v6452, %v7376
        %v7378 = vpop.f32.mrb[0].mxu0
        %v7379 = vpop.f32.mrb[0].mxu0
        %v7380 = vadd.f32 %v6452, %v7379
        %v7381 = vpop.f32.mrb[0].mxu0
        %7382 = vmatprep.mubr.bf16.mxu0 %v6199
        %7383 = vmatmul.mubr.bf16.gmra.mrb[0].mxu0 %v6198
        %v7384 = vpop.f32.mrb[0].mxu0
        %v7385 = vadd.f32 %v6452, %v7384
        %v7386 = vpop.f32.mrb[0].mxu0
        %v7387 = vpop.f32.mrb[0].mxu0
        %v7388 = vadd.f32 %v6452, %v7387
        %v7389 = vpop.f32.mrb[0].mxu0
        %7390 = vmatprep.mubr.bf16.mxu0 0
        %7391 = vmatmul.mubr.bf16.gmra.mrb[0].mxu0 0
        %v7392 = vpop.f32.mrb[0].mxu0
        %v7393 = vadd.f32 %v6452, %v7392
        %v7394 = vpop.f32.mrb[0].mxu0
        %v7395 = vpop.f32.mrb[0].mxu0
        %v7396 = vadd.f32 %v6452, %v7395
        %v7397 = vpop.f32.mrb[0].mxu0
        %7398 = vmatprep.mubr.bf16.mxu0 %v6202
        %7399 = vmatmul.mubr.bf16.gmra.mrb[0].mxu0 %v6201
        %v7400 = vpop.f32.mrb[0].mxu0
        %v7401 = vadd.f32 %v6452, %v7400
        %v7402 = vpop.f32.mrb[0].mxu0
        %v7403 = vpop.f32.mrb[0].mxu0
        %v7404 = vadd.f32 %v6452, %v7403
        %v7405 = vpop.f32.mrb[0].mxu0
        %7406 = vmatprep.mubr.bf16.mxu0 0
        %7407 = vmatmul.mubr.bf16.gmra.mrb[0].mxu0 0
        %v7408 = vpop.f32.mrb[0].mxu0
        %v7409 = vadd.f32 %v6452, %v7408
        %v7410 = vpop.f32.mrb[0].mxu0
        %v7411 = vpop.f32.mrb[0].mxu0
        %v7412 = vadd.f32 %v6452, %v7411
        %v7413 = vpop.f32.mrb[0].mxu0
        %7414 = vmatprep.mubr.bf16.mxu0 %v6205
        %7415 = vmatmul.mubr.bf16.gmra.mrb[0].mxu0 %v6204
        %v7416 = vpop.f32.mrb[0].mxu0
        %v7417 = vadd.f32 %v6452, %v7416
        %v7418 = vpop.f32.mrb[0].mxu0
        %v7419 = vpop.f32.mrb[0].mxu0
        %v7420 = vadd.f32 %v6452, %v7419
        %v7421 = vpop.f32.mrb[0].mxu0
        %7422 = vmatprep.mubr.bf16.mxu0 0
        %7423 = vmatmul.mubr.bf16.gmra.mrb[0].mxu0 0
        %v7424 = vpop.f32.mrb[0].mxu0
        %v7425 = vadd.f32 %v6452, %v7424
        %v7426 = vpop.f32.mrb[0].mxu0
        %v7427 = vpop.f32.mrb[0].mxu0
        %v7428 = vadd.f32 %v6452, %v7427
        %v7429 = vpop.f32.mrb[0].mxu0
        %7430 = vdwg.mxu0
        %7431 = vmatprep.subr.bf16.mxu0 0
        %7432 = vmatpush1.bf16.msra.mxu0 %v6950
        %7433 = vmatprep.subr.bf16.mxu0 0
        %7434 = vmatpush1.bf16.msra.mxu0 %v6951
        %7435 = vmatprep.subr.bf16.mxu0 0
        %7436 = vmatpush1.bf16.msra.mxu0 %v6952
        %7437 = vmatprep.subr.bf16.mxu0 0
        %7438 = vmatpush1.bf16.msra.mxu0 %v6953
        %7439 = vmatprep.subr.bf16.mxu0 0
        %7440 = vmatpush1.bf16.msra.mxu0 %v6954
        %7441 = vmatprep.subr.bf16.mxu0 0
        %7442 = vmatpush1.bf16.msra.mxu0 %v6955
        %7443 = vmatprep.subr.bf16.mxu0 0
        %7444 = vmatpush1.bf16.msra.mxu0 %v6956
        %7445 = vmatprep.subr.bf16.mxu0 0
        %7446 = vmatpush1.bf16.msra.mxu0 %v6957
        %7447 = vmatprep.subr.bf16.mxu0 0
        %7448 = vmatpush1.bf16.msra.mxu0 %v6958
        %7449 = vmatprep.subr.bf16.mxu0 0
        %7450 = vmatpush1.bf16.msra.mxu0 %v6959
        %7451 = vmatprep.subr.bf16.mxu0 0
        %7452 = vmatpush1.bf16.msra.mxu0 %v6960
        %7453 = vmatprep.subr.bf16.mxu0 0
        %7454 = vmatpush1.bf16.msra.mxu0 %v6961
        %7455 = vmatprep.subr.bf16.mxu0 0
        %7456 = vmatpush1.bf16.msra.mxu0 %v6962
        %7457 = vmatprep.subr.bf16.mxu0 0
        %7458 = vmatpush1.bf16.msra.mxu0 %v6963
        %7459 = vmatprep.subr.bf16.mxu0 0
        %7460 = vmatpush1.bf16.msra.mxu0 %v6964
        %7461 = vmatprep.subr.bf16.mxu0 0
        %7462 = vmatpush1.bf16.msra.mxu0 %v6965
        %7463 = vmatprep.mubr.bf16.mxu0 0
        %7464 = vmatmul.mubr.bf16.gmra.mrb[0].mxu0 0
        %v7465 = vpop.f32.mrb[0].mxu0
        %v7466 = vadd.f32 %v7209, %v7465
        %v7467 = vpop.f32.mrb[0].mxu0
        %v7468 = vpop.f32.mrb[0].mxu0
        %v7469 = vadd.f32 %v7212, %v7468
        %v7470 = vpop.f32.mrb[0].mxu0
        %7471 = vmatprep.mubr.bf16.mxu0 0
        %7472 = vmatmul.mubr.bf16.gmra.mrb[0].mxu0 0
        %v7473 = vpop.f32.mrb[0].mxu0
        %v7474 = vadd.f32 %v7217, %v7473
        %v7475 = vpop.f32.mrb[0].mxu0
        %v7476 = vpop.f32.mrb[0].mxu0
        %v7477 = vadd.f32 %v7220, %v7476
        %v7478 = vpop.f32.mrb[0].mxu0
        %7479 = vmatprep.mubr.bf16.mxu0 0
        %7480 = vmatmul.mubr.bf16.gmra.mrb[0].mxu0 0
        %v7481 = vpop.f32.mrb[0].mxu0
        %v7482 = vadd.f32 %v7225, %v7481
        %v7483 = vpop.f32.mrb[0].mxu0
        %v7484 = vpop.f32.mrb[0].mxu0
        %v7485 = vadd.f32 %v7228, %v7484
        %v7486 = vpop.f32.mrb[0].mxu0
        %7487 = vmatprep.mubr.bf16.mxu0 %v6171
        %7488 = vmatmul.mubr.bf16.gmra.mrb[0].mxu0 0
        %v7489 = vpop.f32.mrb[0].mxu0
        %v7490 = vadd.f32 %v7233, %v7489
        %v7491 = vpop.f32.mrb[0].mxu0
        %v7492 = vpop.f32.mrb[0].mxu0
        %v7493 = vadd.f32 %v7236, %v7492
        %v7494 = vpop.f32.mrb[0].mxu0
        %7495 = vmatprep.mubr.bf16.mxu0 0
        %7496 = vmatmul.mubr.bf16.gmra.mrb[0].mxu0 %v6173
        %v7497 = vpop.f32.mrb[0].mxu0
        %v7498 = vadd.f32 %v7241, %v7497
        %v7499 = vpop.f32.mrb[0].mxu0
        %v7500 = vpop.f32.mrb[0].mxu0
        %v7501 = vadd.f32 %v7244, %v7500
        %v7502 = vpop.f32.mrb[0].mxu0
        %7503 = vmatprep.mubr.bf16.mxu0 %v6174
        %7504 = vmatmul.mubr.bf16.gmra.mrb[0].mxu0 0
        %v7505 = vpop.f32.mrb[0].mxu0
        %v7506 = vadd.f32 %v7249, %v7505
        %v7507 = vpop.f32.mrb[0].mxu0
        %v7508 = vpop.f32.mrb[0].mxu0
        %v7509 = vadd.f32 %v7252, %v7508
        %v7510 = vpop.f32.mrb[0].mxu0
        %7511 = vmatprep.mubr.bf16.mxu0 0
        %7512 = vmatmul.mubr.bf16.gmra.mrb[0].mxu0 %v6176
        %v7513 = vpop.f32.mrb[0].mxu0
        %v7514 = vadd.f32 %v7257, %v7513
        %v7515 = vpop.f32.mrb[0].mxu0
        %v7516 = vpop.f32.mrb[0].mxu0
        %v7517 = vadd.f32 %v7260, %v7516
        %v7518 = vpop.f32.mrb[0].mxu0
        %7519 = vmatprep.mubr.bf16.mxu0 %v6177
        %7520 = vmatmul.mubr.bf16.gmra.mrb[0].mxu0 0
        %v7521 = vpop.f32.mrb[0].mxu0
        %v7522 = vadd.f32 %v7265, %v7521
        %v7523 = vpop.f32.mrb[0].mxu0
        %v7524 = vpop.f32.mrb[0].mxu0
        %v7525 = vadd.f32 %v7268, %v7524
        %v7526 = vpop.f32.mrb[0].mxu0
        %7527 = vmatprep.mubr.bf16.mxu0 0
        %7528 = vmatmul.mubr.bf16.gmra.mrb[0].mxu0 %v6179
        %v7529 = vpop.f32.mrb[0].mxu0
        %v7530 = vadd.f32 %v7273, %v7529
        %v7531 = vpop.f32.mrb[0].mxu0
        %v7532 = vpop.f32.mrb[0].mxu0
        %v7533 = vadd.f32 %v7276, %v7532
        %v7534 = vpop.f32.mrb[0].mxu0
        %7535 = vmatprep.mubr.bf16.mxu0 %v6180
        %7536 = vmatmul.mubr.bf16.gmra.mrb[0].mxu0 0
        %v7537 = vpop.f32.mrb[0].mxu0
        %v7538 = vadd.f32 %v7281, %v7537
        %v7539 = vpop.f32.mrb[0].mxu0
        %v7540 = vpop.f32.mrb[0].mxu0
        %v7541 = vadd.f32 %v7284, %v7540
        %v7542 = vpop.f32.mrb[0].mxu0
        %7543 = vmatprep.mubr.bf16.mxu0 0
        %7544 = vmatmul.mubr.bf16.gmra.mrb[0].mxu0 %v6182
        %v7545 = vpop.f32.mrb[0].mxu0
        %v7546 = vadd.f32 %v7289, %v7545
        %v7547 = vpop.f32.mrb[0].mxu0
        %v7548 = vpop.f32.mrb[0].mxu0
        %v7549 = vadd.f32 %v7292, %v7548
        %v7550 = vpop.f32.mrb[0].mxu0
        %7551 = vmatprep.mubr.bf16.mxu0 %v6183
        %7552 = vmatmul.mubr.bf16.gmra.mrb[0].mxu0 0
        %v7553 = vpop.f32.mrb[0].mxu0
        %v7554 = vadd.f32 %v7297, %v7553
        %v7555 = vpop.f32.mrb[0].mxu0
        %v7556 = vpop.f32.mrb[0].mxu0
        %v7557 = vadd.f32 %v7300, %v7556
        %v7558 = vpop.f32.mrb[0].mxu0
        %7559 = vmatprep.mubr.bf16.mxu0 0
        %7560 = vmatmul.mubr.bf16.gmra.mrb[0].mxu0 %v6185
        %v7561 = vpop.f32.mrb[0].mxu0
        %v7562 = vadd.f32 %v7305, %v7561
        %v7563 = vpop.f32.mrb[0].mxu0
        %v7564 = vpop.f32.mrb[0].mxu0
        %v7565 = vadd.f32 %v7308, %v7564
        %v7566 = vpop.f32.mrb[0].mxu0
        %7567 = vmatprep.mubr.bf16.mxu0 %v6186
        %7568 = vmatmul.mubr.bf16.gmra.mrb[0].mxu0 0
        %v7569 = vpop.f32.mrb[0].mxu0
        %v7570 = vadd.f32 %v7313, %v7569
        %v7571 = vpop.f32.mrb[0].mxu0
        %v7572 = vpop.f32.mrb[0].mxu0
        %v7573 = vadd.f32 %v7316, %v7572
        %v7574 = vpop.f32.mrb[0].mxu0
        %7575 = vmatprep.mubr.bf16.mxu0 0
        %7576 = vmatmul.mubr.bf16.gmra.mrb[0].mxu0 %v6188
        %v7577 = vpop.f32.mrb[0].mxu0
        %v7578 = vadd.f32 %v7321, %v7577
        %v7579 = vpop.f32.mrb[0].mxu0
        %v7580 = vpop.f32.mrb[0].mxu0
        %v7581 = vadd.f32 %v7324, %v7580
        %v7582 = vpop.f32.mrb[0].mxu0
        %7583 = vmatprep.mubr.bf16.mxu0 %v6189
        %7584 = vmatmul.mubr.bf16.gmra.mrb[0].mxu0 0
        %v7585 = vpop.f32.mrb[0].mxu0
        %v7586 = vadd.f32 %v7329, %v7585
        %v7587 = vpop.f32.mrb[0].mxu0
        %v7588 = vpop.f32.mrb[0].mxu0
        %v7589 = vadd.f32 %v7332, %v7588
        %v7590 = vpop.f32.mrb[0].mxu0
        %7591 = vmatprep.mubr.bf16.mxu0 0
        %7592 = vmatmul.mubr.bf16.gmra.mrb[0].mxu0 %v6191
        %v7593 = vpop.f32.mrb[0].mxu0
        %v7594 = vadd.f32 %v7337, %v7593
        %v7595 = vpop.f32.mrb[0].mxu0
        %v7596 = vpop.f32.mrb[0].mxu0
        %v7597 = vadd.f32 %v7340, %v7596
        %v7598 = vpop.f32.mrb[0].mxu0
        %7599 = vmatprep.mubr.bf16.mxu0 %v6192
        %7600 = vmatmul.mubr.bf16.gmra.mrb[0].mxu0 0
        %v7601 = vpop.f32.mrb[0].mxu0
        %v7602 = vadd.f32 %v7345, %v7601
        %v7603 = vpop.f32.mrb[0].mxu0
        %v7604 = vpop.f32.mrb[0].mxu0
        %v7605 = vadd.f32 %v7348, %v7604
        %v7606 = vpop.f32.mrb[0].mxu0
        %7607 = vmatprep.mubr.bf16.mxu0 0
        %7608 = vmatmul.mubr.bf16.gmra.mrb[0].mxu0 %v6194
        %v7609 = vpop.f32.mrb[0].mxu0
        %v7610 = vadd.f32 %v7353, %v7609
        %v7611 = vpop.f32.mrb[0].mxu0
        %v7612 = vpop.f32.mrb[0].mxu0
        %v7613 = vadd.f32 %v7356, %v7612
        %v7614 = vpop.f32.mrb[0].mxu0
        %7615 = vmatprep.mubr.bf16.mxu0 %v6195
        %7616 = vmatmul.mubr.bf16.gmra.mrb[0].mxu0 0
        %v7617 = vpop.f32.mrb[0].mxu0
        %v7618 = vadd.f32 %v7361, %v7617
        %v7619 = vpop.f32.mrb[0].mxu0
        %v7620 = vpop.f32.mrb[0].mxu0
        %v7621 = vadd.f32 %v7364, %v7620
        %v7622 = vpop.f32.mrb[0].mxu0
        %7623 = vmatprep.mubr.bf16.mxu0 0
        %7624 = vmatmul.mubr.bf16.gmra.mrb[0].mxu0 %v6197
        %v7625 = vpop.f32.mrb[0].mxu0
        %v7626 = vadd.f32 %v7369, %v7625
        %v7627 = vpop.f32.mrb[0].mxu0
        %v7628 = vpop.f32.mrb[0].mxu0
        %v7629 = vadd.f32 %v7372, %v7628
        %v7630 = vpop.f32.mrb[0].mxu0
        %7631 = vmatprep.mubr.bf16.mxu0 %v6198
        %7632 = vmatmul.mubr.bf16.gmra.mrb[0].mxu0 0
        %v7633 = vpop.f32.mrb[0].mxu0
        %v7634 = vadd.f32 %v7377, %v7633
        %v7635 = vpop.f32.mrb[0].mxu0
        %v7636 = vpop.f32.mrb[0].mxu0
        %v7637 = vadd.f32 %v7380, %v7636
        %v7638 = vpop.f32.mrb[0].mxu0
        %7639 = vmatprep.mubr.bf16.mxu0 0
        %7640 = vmatmul.mubr.bf16.gmra.mrb[0].mxu0 %v6200
        %v7641 = vpop.f32.mrb[0].mxu0
        %v7642 = vadd.f32 %v7385, %v7641
        %v7643 = vpop.f32.mrb[0].mxu0
        %v7644 = vpop.f32.mrb[0].mxu0
        %v7645 = vadd.f32 %v7388, %v7644
        %v7646 = vpop.f32.mrb[0].mxu0
        %7647 = vmatprep.mubr.bf16.mxu0 %v6201
        %7648 = vmatmul.mubr.bf16.gmra.mrb[0].mxu0 0
        %v7649 = vpop.f32.mrb[0].mxu0
        %v7650 = vadd.f32 %v7393, %v7649
        %v7651 = vpop.f32.mrb[0].mxu0
        %v7652 = vpop.f32.mrb[0].mxu0
        %v7653 = vadd.f32 %v7396, %v7652
        %v7654 = vpop.f32.mrb[0].mxu0
        %7655 = vmatprep.mubr.bf16.mxu0 0
        %7656 = vmatmul.mubr.bf16.gmra.mrb[0].mxu0 %v6203
        %v7657 = vpop.f32.mrb[0].mxu0
        %v7658 = vadd.f32 %v7401, %v7657
        %v7659 = vpop.f32.mrb[0].mxu0
        %v7660 = vpop.f32.mrb[0].mxu0
        %v7661 = vadd.f32 %v7404, %v7660
        %v7662 = vpop.f32.mrb[0].mxu0
        %7663 = vmatprep.mubr.bf16.mxu0 %v6204
        %7664 = vmatmul.mubr.bf16.gmra.mrb[0].mxu0 0
        %v7665 = vpop.f32.mrb[0].mxu0
        %v7666 = vadd.f32 %v7409, %v7665
        %v7667 = vpop.f32.mrb[0].mxu0
        %v7668 = vpop.f32.mrb[0].mxu0
        %v7669 = vadd.f32 %v7412, %v7668
        %v7670 = vpop.f32.mrb[0].mxu0
        %7671 = vmatprep.mubr.bf16.mxu0 0
        %7672 = vmatmul.mubr.bf16.gmra.mrb[0].mxu0 %v6206
        %v7673 = vpop.f32.mrb[0].mxu0
        %v7674 = vadd.f32 %v7417, %v7673
        %v7675 = vpop.f32.mrb[0].mxu0
        %v7676 = vpop.f32.mrb[0].mxu0
        %v7677 = vadd.f32 %v7420, %v7676
        %v7678 = vpop.f32.mrb[0].mxu0
        %7679 = vmatprep.mubr.bf16.mxu0 0
        %7680 = vmatmul.mubr.bf16.gmra.mrb[0].mxu0 0
        %v7681 = vpop.f32.mrb[0].mxu0
        %v7682 = vadd.f32 %v7425, %v7681
        %v7683 = vpop.f32.mrb[0].mxu0
        %v7684 = vpop.f32.mrb[0].mxu0
        %v7685 = vadd.f32 %v7428, %v7684
        %v7686 = vpop.f32.mrb[0].mxu0
        %7687 = vdwg.mxu0
        %7688 = vmatprep.subr.bf16.mxu0 0
        %7689 = vmatpush1.bf16.msra.mxu0 %v6966
        %7690 = vmatprep.subr.bf16.mxu0 0
        %7691 = vmatpush1.bf16.msra.mxu0 %v6967
        %7692 = vmatprep.subr.bf16.mxu0 0
        %7693 = vmatpush1.bf16.msra.mxu0 %v6968
        %7694 = vmatprep.subr.bf16.mxu0 0
        %7695 = vmatpush1.bf16.msra.mxu0 %v6969
        %7696 = vmatprep.subr.bf16.mxu0 0
        %7697 = vmatpush1.bf16.msra.mxu0 %v6970
        %7698 = vmatprep.subr.bf16.mxu0 0
        %7699 = vmatpush1.bf16.msra.mxu0 %v6971
        %7700 = vmatprep.subr.bf16.mxu0 0
        %7701 = vmatpush1.bf16.msra.mxu0 %v6972
        %7702 = vmatprep.subr.bf16.mxu0 0
        %7703 = vmatpush1.bf16.msra.mxu0 %v6973
        %7704 = vmatprep.subr.bf16.mxu0 0
        %7705 = vmatpush1.bf16.msra.mxu0 %v6974
        %7706 = vmatprep.subr.bf16.mxu0 0
        %7707 = vmatpush1.bf16.msra.mxu0 %v6975
        %7708 = vmatprep.subr.bf16.mxu0 0
        %7709 = vmatpush1.bf16.msra.mxu0 %v6976
        %7710 = vmatprep.subr.bf16.mxu0 0
        %7711 = vmatpush1.bf16.msra.mxu0 %v6977
        %7712 = vmatprep.subr.bf16.mxu0 0
        %7713 = vmatpush1.bf16.msra.mxu0 %v6978
        %7714 = vmatprep.subr.bf16.mxu0 0
        %7715 = vmatpush1.bf16.msra.mxu0 %v6979
        %7716 = vmatprep.subr.bf16.mxu0 0
        %7717 = vmatpush1.bf16.msra.mxu0 %v6980
        %7718 = vmatprep.subr.bf16.mxu0 0
        %7719 = vmatpush1.bf16.msra.mxu0 %v6981
        %7720 = vmatprep.mubr.bf16.mxu0 0
        %7721 = vmatmul.mubr.bf16.gmra.mrb[0].mxu0 0
        %v7722 = vpop.f32.mrb[0].mxu0
        %v7723 = vadd.f32 %v7466, %v7722
        %v7724 = vpop.f32.mrb[0].mxu0
        %v7725 = vpop.f32.mrb[0].mxu0
        %v7726 = vadd.f32 %v7469, %v7725
        %v7727 = vpop.f32.mrb[0].mxu0
        %7728 = vmatprep.mubr.bf16.mxu0 0
        %7729 = vmatmul.mubr.bf16.gmra.mrb[0].mxu0 0
        %v7730 = vpop.f32.mrb[0].mxu0
        %v7731 = vadd.f32 %v7474, %v7730
        %v7732 = vpop.f32.mrb[0].mxu0
        %v7733 = vpop.f32.mrb[0].mxu0
        %v7734 = vadd.f32 %v7477, %v7733
        %v7735 = vpop.f32.mrb[0].mxu0
        %7736 = vmatprep.mubr.bf16.mxu0 0
        %7737 = vmatmul.mubr.bf16.gmra.mrb[0].mxu0 0
        %v7738 = vpop.f32.mrb[0].mxu0
        %v7739 = vadd.f32 %v7482, %v7738
        %v7740 = vpop.f32.mrb[0].mxu0
        %v7741 = vpop.f32.mrb[0].mxu0
        %v7742 = vadd.f32 %v7485, %v7741
        %v7743 = vpop.f32.mrb[0].mxu0
        %7744 = vmatprep.mubr.bf16.mxu0 %v6173
        %7745 = vmatmul.mubr.bf16.gmra.mrb[0].mxu0 %v6172
        %v7746 = vpop.f32.mrb[0].mxu0
        %v7747 = vadd.f32 %v7490, %v7746
        %v7748 = vpop.f32.mrb[0].mxu0
        %v7749 = vpop.f32.mrb[0].mxu0
        %v7750 = vadd.f32 %v7493, %v7749
        %v7751 = vpop.f32.mrb[0].mxu0
        %7752 = vmatprep.mubr.bf16.mxu0 0
        %7753 = vmatmul.mubr.bf16.gmra.mrb[0].mxu0 0
        %v7754 = vpop.f32.mrb[0].mxu0
        %v7755 = vadd.f32 %v7498, %v7754
        %v7756 = vpop.f32.mrb[0].mxu0
        %v7757 = vpop.f32.mrb[0].mxu0
        %v7758 = vadd.f32 %v7501, %v7757
        %v7759 = vpop.f32.mrb[0].mxu0
        %7760 = vmatprep.mubr.bf16.mxu0 %v6176
        %7761 = vmatmul.mubr.bf16.gmra.mrb[0].mxu0 %v6175
        %v7762 = vpop.f32.mrb[0].mxu0
        %v7763 = vadd.f32 %v7506, %v7762
        %v7764 = vpop.f32.mrb[0].mxu0
        %v7765 = vpop.f32.mrb[0].mxu0
        %v7766 = vadd.f32 %v7509, %v7765
        %v7767 = vpop.f32.mrb[0].mxu0
        %7768 = vmatprep.mubr.bf16.mxu0 0
        %7769 = vmatmul.mubr.bf16.gmra.mrb[0].mxu0 0
        %v7770 = vpop.f32.mrb[0].mxu0
        %v7771 = vadd.f32 %v7514, %v7770
        %v7772 = vpop.f32.mrb[0].mxu0
        %v7773 = vpop.f32.mrb[0].mxu0
        %v7774 = vadd.f32 %v7517, %v7773
        %v7775 = vpop.f32.mrb[0].mxu0
        %7776 = vmatprep.mubr.bf16.mxu0 %v6179
        %7777 = vmatmul.mubr.bf16.gmra.mrb[0].mxu0 %v6178
        %v7778 = vpop.f32.mrb[0].mxu0
        %v7779 = vadd.f32 %v7522, %v7778
        %v7780 = vpop.f32.mrb[0].mxu0
        %v7781 = vpop.f32.mrb[0].mxu0
        %v7782 = vadd.f32 %v7525, %v7781
        %v7783 = vpop.f32.mrb[0].mxu0
        %7784 = vmatprep.mubr.bf16.mxu0 0
        %7785 = vmatmul.mubr.bf16.gmra.mrb[0].mxu0 0
        %v7786 = vpop.f32.mrb[0].mxu0
        %v7787 = vadd.f32 %v7530, %v7786
        %v7788 = vpop.f32.mrb[0].mxu0
        %v7789 = vpop.f32.mrb[0].mxu0
        %v7790 = vadd.f32 %v7533, %v7789
        %v7791 = vpop.f32.mrb[0].mxu0
        %7792 = vmatprep.mubr.bf16.mxu0 %v6182
        %7793 = vmatmul.mubr.bf16.gmra.mrb[0].mxu0 %v6181
        %v7794 = vpop.f32.mrb[0].mxu0
        %v7795 = vadd.f32 %v7538, %v7794
        %v7796 = vpop.f32.mrb[0].mxu0
        %v7797 = vpop.f32.mrb[0].mxu0
        %v7798 = vadd.f32 %v7541, %v7797
        %v7799 = vpop.f32.mrb[0].mxu0
        %7800 = vmatprep.mubr.bf16.mxu0 0
        %7801 = vmatmul.mubr.bf16.gmra.mrb[0].mxu0 0
        %v7802 = vpop.f32.mrb[0].mxu0
        %v7803 = vadd.f32 %v7546, %v7802
        %v7804 = vpop.f32.mrb[0].mxu0
        %v7805 = vpop.f32.mrb[0].mxu0
        %v7806 = vadd.f32 %v7549, %v7805
        %v7807 = vpop.f32.mrb[0].mxu0
        %7808 = vmatprep.mubr.bf16.mxu0 %v6185
        %7809 = vmatmul.mubr.bf16.gmra.mrb[0].mxu0 %v6184
        %v7810 = vpop.f32.mrb[0].mxu0
        %v7811 = vadd.f32 %v7554, %v7810
        %v7812 = vpop.f32.mrb[0].mxu0
        %v7813 = vpop.f32.mrb[0].mxu0
        %v7814 = vadd.f32 %v7557, %v7813
        %v7815 = vpop.f32.mrb[0].mxu0
        %7816 = vmatprep.mubr.bf16.mxu0 0
        %7817 = vmatmul.mubr.bf16.gmra.mrb[0].mxu0 0
        %v7818 = vpop.f32.mrb[0].mxu0
        %v7819 = vadd.f32 %v7562, %v7818
        %v7820 = vpop.f32.mrb[0].mxu0
        %v7821 = vpop.f32.mrb[0].mxu0
        %v7822 = vadd.f32 %v7565, %v7821
        %v7823 = vpop.f32.mrb[0].mxu0
        %7824 = vmatprep.mubr.bf16.mxu0 %v6188
        %7825 = vmatmul.mubr.bf16.gmra.mrb[0].mxu0 %v6187
        %v7826 = vpop.f32.mrb[0].mxu0
        %v7827 = vadd.f32 %v7570, %v7826
        %v7828 = vpop.f32.mrb[0].mxu0
        %v7829 = vpop.f32.mrb[0].mxu0
        %v7830 = vadd.f32 %v7573, %v7829
        %v7831 = vpop.f32.mrb[0].mxu0
        %7832 = vmatprep.mubr.bf16.mxu0 0
        %7833 = vmatmul.mubr.bf16.gmra.mrb[0].mxu0 0
        %v7834 = vpop.f32.mrb[0].mxu0
        %v7835 = vadd.f32 %v7578, %v7834
        %v7836 = vpop.f32.mrb[0].mxu0
        %v7837 = vpop.f32.mrb[0].mxu0
        %v7838 = vadd.f32 %v7581, %v7837
        %v7839 = vpop.f32.mrb[0].mxu0
        %7840 = vmatprep.mubr.bf16.mxu0 %v6191
        %7841 = vmatmul.mubr.bf16.gmra.mrb[0].mxu0 %v6190
        %v7842 = vpop.f32.mrb[0].mxu0
        %v7843 = vadd.f32 %v7586, %v7842
        %v7844 = vpop.f32.mrb[0].mxu0
        %v7845 = vpop.f32.mrb[0].mxu0
        %v7846 = vadd.f32 %v7589, %v7845
        %v7847 = vpop.f32.mrb[0].mxu0
        %7848 = vmatprep.mubr.bf16.mxu0 0
        %7849 = vmatmul.mubr.bf16.gmra.mrb[0].mxu0 0
        %v7850 = vpop.f32.mrb[0].mxu0
        %v7851 = vadd.f32 %v7594, %v7850
        %v7852 = vpop.f32.mrb[0].mxu0
        %v7853 = vpop.f32.mrb[0].mxu0
        %v7854 = vadd.f32 %v7597, %v7853
        %v7855 = vpop.f32.mrb[0].mxu0
        %7856 = vmatprep.mubr.bf16.mxu0 %v6194
        %7857 = vmatmul.mubr.bf16.gmra.mrb[0].mxu0 %v6193
        %v7858 = vpop.f32.mrb[0].mxu0
        %v7859 = vadd.f32 %v7602, %v7858
        %v7860 = vpop.f32.mrb[0].mxu0
        %v7861 = vpop.f32.mrb[0].mxu0
        %v7862 = vadd.f32 %v7605, %v7861
        %v7863 = vpop.f32.mrb[0].mxu0
        %7864 = vmatprep.mubr.bf16.mxu0 0
        %7865 = vmatmul.mubr.bf16.gmra.mrb[0].mxu0 0
        %v7866 = vpop.f32.mrb[0].mxu0
        %v7867 = vadd.f32 %v7610, %v7866
        %v7868 = vpop.f32.mrb[0].mxu0
        %v7869 = vpop.f32.mrb[0].mxu0
        %v7870 = vadd.f32 %v7613, %v7869
        %v7871 = vpop.f32.mrb[0].mxu0
        %7872 = vmatprep.mubr.bf16.mxu0 %v6197
        %7873 = vmatmul.mubr.bf16.gmra.mrb[0].mxu0 %v6196
        %v7874 = vpop.f32.mrb[0].mxu0
        %v7875 = vadd.f32 %v7618, %v7874
        %v7876 = vpop.f32.mrb[0].mxu0
        %v7877 = vpop.f32.mrb[0].mxu0
        %v7878 = vadd.f32 %v7621, %v7877
        %v7879 = vpop.f32.mrb[0].mxu0
        %7880 = vmatprep.mubr.bf16.mxu0 0
        %7881 = vmatmul.mubr.bf16.gmra.mrb[0].mxu0 0
        %v7882 = vpop.f32.mrb[0].mxu0
        %v7883 = vadd.f32 %v7626, %v7882
        %v7884 = vpop.f32.mrb[0].mxu0
        %v7885 = vpop.f32.mrb[0].mxu0
        %v7886 = vadd.f32 %v7629, %v7885
        %v7887 = vpop.f32.mrb[0].mxu0
        %7888 = vmatprep.mubr.bf16.mxu0 %v6200
        %7889 = vmatmul.mubr.bf16.gmra.mrb[0].mxu0 %v6199
        %v7890 = vpop.f32.mrb[0].mxu0
        %v7891 = vadd.f32 %v7634, %v7890
        %v7892 = vpop.f32.mrb[0].mxu0
        %v7893 = vpop.f32.mrb[0].mxu0
        %v7894 = vadd.f32 %v7637, %v7893
        %v7895 = vpop.f32.mrb[0].mxu0
        %7896 = vmatprep.mubr.bf16.mxu0 0
        %7897 = vmatmul.mubr.bf16.gmra.mrb[0].mxu0 0
        %v7898 = vpop.f32.mrb[0].mxu0
        %v7899 = vadd.f32 %v7642, %v7898
        %v7900 = vpop.f32.mrb[0].mxu0
        %v7901 = vpop.f32.mrb[0].mxu0
        %v7902 = vadd.f32 %v7645, %v7901
        %v7903 = vpop.f32.mrb[0].mxu0
        %7904 = vmatprep.mubr.bf16.mxu0 %v6203
        %7905 = vmatmul.mubr.bf16.gmra.mrb[0].mxu0 %v6202
        %v7906 = vpop.f32.mrb[0].mxu0
        %v7907 = vadd.f32 %v7650, %v7906
        %v7908 = vpop.f32.mrb[0].mxu0
        %v7909 = vpop.f32.mrb[0].mxu0
        %v7910 = vadd.f32 %v7653, %v7909
        %v7911 = vpop.f32.mrb[0].mxu0
        %7912 = vmatprep.mubr.bf16.mxu0 0
        %7913 = vmatmul.mubr.bf16.gmra.mrb[0].mxu0 0
        %v7914 = vpop.f32.mrb[0].mxu0
        %v7915 = vadd.f32 %v7658, %v7914
        %v7916 = vpop.f32.mrb[0].mxu0
        %v7917 = vpop.f32.mrb[0].mxu0
        %v7918 = vadd.f32 %v7661, %v7917
        %v7919 = vpop.f32.mrb[0].mxu0
        %7920 = vmatprep.mubr.bf16.mxu0 %v6206
        %7921 = vmatmul.mubr.bf16.gmra.mrb[0].mxu0 %v6205
        %v7922 = vpop.f32.mrb[0].mxu0
        %v7923 = vadd.f32 %v7666, %v7922
        %v7924 = vpop.f32.mrb[0].mxu0
        %v7925 = vpop.f32.mrb[0].mxu0
        %v7926 = vadd.f32 %v7669, %v7925
        %v7927 = vpop.f32.mrb[0].mxu0
        %7928 = vmatprep.mubr.bf16.mxu0 0
        %7929 = vmatmul.mubr.bf16.gmra.mrb[0].mxu0 0
        %v7930 = vpop.f32.mrb[0].mxu0
        %v7931 = vadd.f32 %v7674, %v7930
        %v7932 = vpop.f32.mrb[0].mxu0
        %v7933 = vpop.f32.mrb[0].mxu0
        %v7934 = vadd.f32 %v7677, %v7933
        %v7935 = vpop.f32.mrb[0].mxu0
        %7936 = vmatprep.mubr.bf16.mxu0 0
        %7937 = vmatmul.mubr.bf16.gmra.mrb[0].mxu0 0
        %v7938 = vpop.f32.mrb[0].mxu0
        %v7939 = vadd.f32 %v7682, %v7938
        %v7940 = vpop.f32.mrb[0].mxu0
        %v7941 = vpop.f32.mrb[0].mxu0
        %v7942 = vadd.f32 %v7685, %v7941
        %v7943 = vpop.f32.mrb[0].mxu0
        %7944 = vdwg.mxu0
        %7945 = vmatprep.subr.bf16.mxu0 0
        %7946 = vmatpush1.bf16.msra.mxu0 %v6982
        %7947 = vmatprep.subr.bf16.mxu0 0
        %7948 = vmatpush1.bf16.msra.mxu0 %v6983
        %7949 = vmatprep.subr.bf16.mxu0 0
        %7950 = vmatpush1.bf16.msra.mxu0 %v6984
        %7951 = vmatprep.subr.bf16.mxu0 0
        %7952 = vmatpush1.bf16.msra.mxu0 %v6985
        %7953 = vmatprep.subr.bf16.mxu0 0
        %7954 = vmatpush1.bf16.msra.mxu0 %v6986
        %7955 = vmatprep.subr.bf16.mxu0 0
        %7956 = vmatpush1.bf16.msra.mxu0 %v6987
        %7957 = vmatprep.subr.bf16.mxu0 0
        %7958 = vmatpush1.bf16.msra.mxu0 %v6988
        %7959 = vmatprep.subr.bf16.mxu0 0
        %7960 = vmatpush1.bf16.msra.mxu0 %v6989
        %7961 = vmatprep.subr.bf16.mxu0 0
        %7962 = vmatpush1.bf16.msra.mxu0 %v6990
        %7963 = vmatprep.subr.bf16.mxu0 0
        %7964 = vmatpush1.bf16.msra.mxu0 %v6991
        %7965 = vmatprep.subr.bf16.mxu0 0
        %7966 = vmatpush1.bf16.msra.mxu0 %v6992
        %7967 = vmatprep.subr.bf16.mxu0 0
        %7968 = vmatpush1.bf16.msra.mxu0 %v6993
        %7969 = vmatprep.subr.bf16.mxu0 0
        %7970 = vmatpush1.bf16.msra.mxu0 %v6994
        %7971 = vmatprep.subr.bf16.mxu0 0
        %7972 = vmatpush1.bf16.msra.mxu0 %v6995
        %7973 = vmatprep.subr.bf16.mxu0 0
        %7974 = vmatpush1.bf16.msra.mxu0 %v6996
        %7975 = vmatprep.subr.bf16.mxu0 0
        %7976 = vmatpush1.bf16.msra.mxu0 %v6997
        %7977 = vmatprep.mubr.bf16.mxu0 0
        %7978 = vmatmul.mubr.bf16.gmra.mrb[0].mxu0 0
        %v7979 = vpop.f32.mrb[0].mxu0
        %v7980 = vadd.f32 %v7723, %v7979
        %v7981 = vpop.f32.mrb[0].mxu0
        %v7982 = vpop.f32.mrb[0].mxu0
        %v7983 = vadd.f32 %v7726, %v7982
        %v7984 = vpop.f32.mrb[0].mxu0
        %7985 = vmatprep.mubr.bf16.mxu0 0
        %7986 = vmatmul.mubr.bf16.gmra.mrb[0].mxu0 0
        %v7987 = vpop.f32.mrb[0].mxu0
        %v7988 = vadd.f32 %v7731, %v7987
        %v7989 = vpop.f32.mrb[0].mxu0
        %v7990 = vpop.f32.mrb[0].mxu0
        %v7991 = vadd.f32 %v7734, %v7990
        %v7992 = vpop.f32.mrb[0].mxu0
        %7993 = vmatprep.mubr.bf16.mxu0 %v6172
        %7994 = vmatmul.mubr.bf16.gmra.mrb[0].mxu0 %v6171
        %v7995 = vpop.f32.mrb[0].mxu0
        %v7996 = vadd.f32 %v7739, %v7995
        %v7997 = vpop.f32.mrb[0].mxu0
        %v7998 = vpop.f32.mrb[0].mxu0
        %v7999 = vadd.f32 %v7742, %v7998
        %v8000 = vpop.f32.mrb[0].mxu0
        %8001 = vmatprep.mubr.bf16.mxu0 0
        %8002 = vmatmul.mubr.bf16.gmra.mrb[0].mxu0 0
        %v8003 = vpop.f32.mrb[0].mxu0
        %v8004 = vadd.f32 %v7747, %v8003
        %v8005 = vpop.f32.mrb[0].mxu0
        %v8006 = vpop.f32.mrb[0].mxu0
        %v8007 = vadd.f32 %v7750, %v8006
        %v8008 = vpop.f32.mrb[0].mxu0
        %8009 = vmatprep.mubr.bf16.mxu0 %v6175
        %8010 = vmatmul.mubr.bf16.gmra.mrb[0].mxu0 %v6174
        %v8011 = vpop.f32.mrb[0].mxu0
        %v8012 = vadd.f32 %v7755, %v8011
        %v8013 = vpop.f32.mrb[0].mxu0
        %v8014 = vpop.f32.mrb[0].mxu0
        %v8015 = vadd.f32 %v7758, %v8014
        %v8016 = vpop.f32.mrb[0].mxu0
        %8017 = vmatprep.mubr.bf16.mxu0 0
        %8018 = vmatmul.mubr.bf16.gmra.mrb[0].mxu0 0
        %v8019 = vpop.f32.mrb[0].mxu0
        %v8020 = vadd.f32 %v7763, %v8019
        %v8021 = vpop.f32.mrb[0].mxu0
        %v8022 = vpop.f32.mrb[0].mxu0
        %v8023 = vadd.f32 %v7766, %v8022
        %v8024 = vpop.f32.mrb[0].mxu0
        %8025 = vmatprep.mubr.bf16.mxu0 %v6178
        %8026 = vmatmul.mubr.bf16.gmra.mrb[0].mxu0 %v6177
        %v8027 = vpop.f32.mrb[0].mxu0
        %v8028 = vadd.f32 %v7771, %v8027
        %v8029 = vpop.f32.mrb[0].mxu0
        %v8030 = vpop.f32.mrb[0].mxu0
        %v8031 = vadd.f32 %v7774, %v8030
        %v8032 = vpop.f32.mrb[0].mxu0
        %8033 = vmatprep.mubr.bf16.mxu0 0
        %8034 = vmatmul.mubr.bf16.gmra.mrb[0].mxu0 0
        %v8035 = vpop.f32.mrb[0].mxu0
        %v8036 = vadd.f32 %v7779, %v8035
        %v8037 = vpop.f32.mrb[0].mxu0
        %v8038 = vpop.f32.mrb[0].mxu0
        %v8039 = vadd.f32 %v7782, %v8038
        %v8040 = vpop.f32.mrb[0].mxu0
        %8041 = vmatprep.mubr.bf16.mxu0 %v6181
        %8042 = vmatmul.mubr.bf16.gmra.mrb[0].mxu0 %v6180
        %v8043 = vpop.f32.mrb[0].mxu0
        %v8044 = vadd.f32 %v7787, %v8043
        %v8045 = vpop.f32.mrb[0].mxu0
        %v8046 = vpop.f32.mrb[0].mxu0
        %v8047 = vadd.f32 %v7790, %v8046
        %v8048 = vpop.f32.mrb[0].mxu0
        %8049 = vmatprep.mubr.bf16.mxu0 0
        %8050 = vmatmul.mubr.bf16.gmra.mrb[0].mxu0 0
        %v8051 = vpop.f32.mrb[0].mxu0
        %v8052 = vadd.f32 %v7795, %v8051
        %v8053 = vpop.f32.mrb[0].mxu0
        %v8054 = vpop.f32.mrb[0].mxu0
        %v8055 = vadd.f32 %v7798, %v8054
        %v8056 = vpop.f32.mrb[0].mxu0
        %8057 = vmatprep.mubr.bf16.mxu0 %v6184
        %8058 = vmatmul.mubr.bf16.gmra.mrb[0].mxu0 %v6183
        %v8059 = vpop.f32.mrb[0].mxu0
        %v8060 = vadd.f32 %v7803, %v8059
        %v8061 = vpop.f32.mrb[0].mxu0
        %v8062 = vpop.f32.mrb[0].mxu0
        %v8063 = vadd.f32 %v7806, %v8062
        %v8064 = vpop.f32.mrb[0].mxu0
        %8065 = vmatprep.mubr.bf16.mxu0 0
        %8066 = vmatmul.mubr.bf16.gmra.mrb[0].mxu0 0
        %v8067 = vpop.f32.mrb[0].mxu0
        %v8068 = vadd.f32 %v7811, %v8067
        %v8069 = vpop.f32.mrb[0].mxu0
        %v8070 = vpop.f32.mrb[0].mxu0
        %v8071 = vadd.f32 %v7814, %v8070
        %v8072 = vpop.f32.mrb[0].mxu0
        %8073 = vmatprep.mubr.bf16.mxu0 %v6187
        %8074 = vmatmul.mubr.bf16.gmra.mrb[0].mxu0 %v6186
        %v8075 = vpop.f32.mrb[0].mxu0
        %v8076 = vadd.f32 %v7819, %v8075
        %v8077 = vpop.f32.mrb[0].mxu0
        %v8078 = vpop.f32.mrb[0].mxu0
        %v8079 = vadd.f32 %v7822, %v8078
        %v8080 = vpop.f32.mrb[0].mxu0
        %8081 = vmatprep.mubr.bf16.mxu0 0
        %8082 = vmatmul.mubr.bf16.gmra.mrb[0].mxu0 0
        %v8083 = vpop.f32.mrb[0].mxu0
        %v8084 = vadd.f32 %v7827, %v8083
        %v8085 = vpop.f32.mrb[0].mxu0
        %v8086 = vpop.f32.mrb[0].mxu0
        %v8087 = vadd.f32 %v7830, %v8086
        %v8088 = vpop.f32.mrb[0].mxu0
        %8089 = vmatprep.mubr.bf16.mxu0 %v6190
        %8090 = vmatmul.mubr.bf16.gmra.mrb[0].mxu0 %v6189
        %v8091 = vpop.f32.mrb[0].mxu0
        %v8092 = vadd.f32 %v7835, %v8091
        %v8093 = vpop.f32.mrb[0].mxu0
        %v8094 = vpop.f32.mrb[0].mxu0
        %v8095 = vadd.f32 %v7838, %v8094
        %v8096 = vpop.f32.mrb[0].mxu0
        %8097 = vmatprep.mubr.bf16.mxu0 0
        %8098 = vmatmul.mubr.bf16.gmra.mrb[0].mxu0 0
        %v8099 = vpop.f32.mrb[0].mxu0
        %v8100 = vadd.f32 %v7843, %v8099
        %v8101 = vpop.f32.mrb[0].mxu0
        %v8102 = vpop.f32.mrb[0].mxu0
        %v8103 = vadd.f32 %v7846, %v8102
        %v8104 = vpop.f32.mrb[0].mxu0
        %8105 = vmatprep.mubr.bf16.mxu0 %v6193
        %8106 = vmatmul.mubr.bf16.gmra.mrb[0].mxu0 %v6192
        %v8107 = vpop.f32.mrb[0].mxu0
        %v8108 = vadd.f32 %v7851, %v8107
        %v8109 = vpop.f32.mrb[0].mxu0
        %v8110 = vpop.f32.mrb[0].mxu0
        %v8111 = vadd.f32 %v7854, %v8110
        %v8112 = vpop.f32.mrb[0].mxu0
        %8113 = vmatprep.mubr.bf16.mxu0 0
        %8114 = vmatmul.mubr.bf16.gmra.mrb[0].mxu0 0
        %v8115 = vpop.f32.mrb[0].mxu0
        %v8116 = vadd.f32 %v7859, %v8115
        %v8117 = vpop.f32.mrb[0].mxu0
        %v8118 = vpop.f32.mrb[0].mxu0
        %v8119 = vadd.f32 %v7862, %v8118
        %v8120 = vpop.f32.mrb[0].mxu0
        %8121 = vmatprep.mubr.bf16.mxu0 %v6196
        %8122 = vmatmul.mubr.bf16.gmra.mrb[0].mxu0 %v6195
        %v8123 = vpop.f32.mrb[0].mxu0
        %v8124 = vadd.f32 %v7867, %v8123
        %v8125 = vpop.f32.mrb[0].mxu0
        %v8126 = vpop.f32.mrb[0].mxu0
        %v8127 = vadd.f32 %v7870, %v8126
        %v8128 = vpop.f32.mrb[0].mxu0
        %8129 = vmatprep.mubr.bf16.mxu0 0
        %8130 = vmatmul.mubr.bf16.gmra.mrb[0].mxu0 0
        %v8131 = vpop.f32.mrb[0].mxu0
        %v8132 = vadd.f32 %v7875, %v8131
        %v8133 = vpop.f32.mrb[0].mxu0
        %v8134 = vpop.f32.mrb[0].mxu0
        %v8135 = vadd.f32 %v7878, %v8134
        %v8136 = vpop.f32.mrb[0].mxu0
        %8137 = vmatprep.mubr.bf16.mxu0 %v6199
        %8138 = vmatmul.mubr.bf16.gmra.mrb[0].mxu0 %v6198
        %v8139 = vpop.f32.mrb[0].mxu0
        %v8140 = vadd.f32 %v7883, %v8139
        %v8141 = vpop.f32.mrb[0].mxu0
        %v8142 = vpop.f32.mrb[0].mxu0
        %v8143 = vadd.f32 %v7886, %v8142
        %v8144 = vpop.f32.mrb[0].mxu0
        %8145 = vmatprep.mubr.bf16.mxu0 0
        %8146 = vmatmul.mubr.bf16.gmra.mrb[0].mxu0 0
        %v8147 = vpop.f32.mrb[0].mxu0
        %v8148 = vadd.f32 %v7891, %v8147
        %v8149 = vpop.f32.mrb[0].mxu0
        %v8150 = vpop.f32.mrb[0].mxu0
        %v8151 = vadd.f32 %v7894, %v8150
        %v8152 = vpop.f32.mrb[0].mxu0
        %8153 = vmatprep.mubr.bf16.mxu0 %v6202
        %8154 = vmatmul.mubr.bf16.gmra.mrb[0].mxu0 %v6201
        %v8155 = vpop.f32.mrb[0].mxu0
        %v8156 = vadd.f32 %v7899, %v8155
        %v8157 = vpop.f32.mrb[0].mxu0
        %v8158 = vpop.f32.mrb[0].mxu0
        %v8159 = vadd.f32 %v7902, %v8158
        %v8160 = vpop.f32.mrb[0].mxu0
        %8161 = vmatprep.mubr.bf16.mxu0 0
        %8162 = vmatmul.mubr.bf16.gmra.mrb[0].mxu0 0
        %v8163 = vpop.f32.mrb[0].mxu0
        %v8164 = vadd.f32 %v7907, %v8163
        %v8165 = vpop.f32.mrb[0].mxu0
        %v8166 = vpop.f32.mrb[0].mxu0
        %v8167 = vadd.f32 %v7910, %v8166
        %v8168 = vpop.f32.mrb[0].mxu0
        %8169 = vmatprep.mubr.bf16.mxu0 %v6205
        %8170 = vmatmul.mubr.bf16.gmra.mrb[0].mxu0 %v6204
        %v8171 = vpop.f32.mrb[0].mxu0
        %v8172 = vadd.f32 %v7915, %v8171
        %v8173 = vpop.f32.mrb[0].mxu0
        %v8174 = vpop.f32.mrb[0].mxu0
        %v8175 = vadd.f32 %v7918, %v8174
        %v8176 = vpop.f32.mrb[0].mxu0
        %8177 = vmatprep.mubr.bf16.mxu0 0
        %8178 = vmatmul.mubr.bf16.gmra.mrb[0].mxu0 0
        %v8179 = vpop.f32.mrb[0].mxu0
        %v8180 = vadd.f32 %v7923, %v8179
        %v8181 = vpop.f32.mrb[0].mxu0
        %v8182 = vpop.f32.mrb[0].mxu0
        %v8183 = vadd.f32 %v7926, %v8182
        %v8184 = vpop.f32.mrb[0].mxu0
        %8185 = vmatprep.mubr.bf16.mxu0 0
        %8186 = vmatmul.mubr.bf16.gmra.mrb[0].mxu0 0
        %v8187 = vpop.f32.mrb[0].mxu0
        %v8188 = vadd.f32 %v7931, %v8187
        %v8189 = vpop.f32.mrb[0].mxu0
        %v8190 = vpop.f32.mrb[0].mxu0
        %v8191 = vadd.f32 %v7934, %v8190
        %v8192 = vpop.f32.mrb[0].mxu0
        %8193 = vmatprep.mubr.bf16.mxu0 0
        %8194 = vmatmul.mubr.bf16.gmra.mrb[0].mxu0 0
        %v8195 = vpop.f32.mrb[0].mxu0
        %v8196 = vadd.f32 %v7939, %v8195
        %v8197 = vpop.f32.mrb[0].mxu0
        %v8198 = vpop.f32.mrb[0].mxu0
        %v8199 = vadd.f32 %v7942, %v8198
        %v8200 = vpop.f32.mrb[0].mxu0
        %8201 = vdwg.mxu0
        %8202 = vmatprep.subr.bf16.mxu0 0
        %8203 = vmatpush1.bf16.msra.mxu0 %v6998
        %8204 = vmatprep.subr.bf16.mxu0 0
        %8205 = vmatpush1.bf16.msra.mxu0 %v6999
        %8206 = vmatprep.subr.bf16.mxu0 0
        %8207 = vmatpush1.bf16.msra.mxu0 %v7000
        %8208 = vmatprep.subr.bf16.mxu0 0
        %8209 = vmatpush1.bf16.msra.mxu0 %v7001
        %8210 = vmatprep.subr.bf16.mxu0 0
        %8211 = vmatpush1.bf16.msra.mxu0 %v7002
        %8212 = vmatprep.subr.bf16.mxu0 0
        %8213 = vmatpush1.bf16.msra.mxu0 %v7003
        %8214 = vmatprep.subr.bf16.mxu0 0
        %8215 = vmatpush1.bf16.msra.mxu0 %v7004
        %8216 = vmatprep.subr.bf16.mxu0 0
        %8217 = vmatpush1.bf16.msra.mxu0 %v7005
        %8218 = vmatprep.subr.bf16.mxu0 0
        %8219 = vmatpush1.bf16.msra.mxu0 %v7006
        %8220 = vmatprep.subr.bf16.mxu0 0
        %8221 = vmatpush1.bf16.msra.mxu0 %v7007
        %8222 = vmatprep.subr.bf16.mxu0 0
        %8223 = vmatpush1.bf16.msra.mxu0 %v7008
        %8224 = vmatprep.subr.bf16.mxu0 0
        %8225 = vmatpush1.bf16.msra.mxu0 %v7009
        %8226 = vmatprep.subr.bf16.mxu0 0
        %8227 = vmatpush1.bf16.msra.mxu0 %v7010
        %8228 = vmatprep.subr.bf16.mxu0 0
        %8229 = vmatpush1.bf16.msra.mxu0 %v7011
        %8230 = vmatprep.subr.bf16.mxu0 0
        %8231 = vmatpush1.bf16.msra.mxu0 %v7012
        %8232 = vmatprep.subr.bf16.mxu0 0
        %8233 = vmatpush1.bf16.msra.mxu0 %v7013
        %8234 = vmatprep.mubr.bf16.mxu0 0
        %8235 = vmatmul.mubr.bf16.gmra.mrb[0].mxu0 0
        %v8236 = vpop.f32.mrb[0].mxu0
        %v8237 = vadd.f32 %v7980, %v8236
        %v8238 = vpop.f32.mrb[0].mxu0
        %v8239 = vpop.f32.mrb[0].mxu0
        %v8240 = vadd.f32 %v7983, %v8239
        %v8241 = vpop.f32.mrb[0].mxu0
        %8242 = vmatprep.mubr.bf16.mxu0 %v6171
        %8243 = vmatmul.mubr.bf16.gmra.mrb[0].mxu0 0
        %v8244 = vpop.f32.mrb[0].mxu0
        %v8245 = vadd.f32 %v7988, %v8244
        %v8246 = vpop.f32.mrb[0].mxu0
        %v8247 = vpop.f32.mrb[0].mxu0
        %v8248 = vadd.f32 %v7991, %v8247
        %v8249 = vpop.f32.mrb[0].mxu0
        %8250 = vmatprep.mubr.bf16.mxu0 0
        %8251 = vmatmul.mubr.bf16.gmra.mrb[0].mxu0 %v6173
        %v8252 = vpop.f32.mrb[0].mxu0
        %v8253 = vadd.f32 %v7996, %v8252
        %v8254 = vpop.f32.mrb[0].mxu0
        %v8255 = vpop.f32.mrb[0].mxu0
        %v8256 = vadd.f32 %v7999, %v8255
        %v8257 = vpop.f32.mrb[0].mxu0
        %8258 = vmatprep.mubr.bf16.mxu0 %v6174
        %8259 = vmatmul.mubr.bf16.gmra.mrb[0].mxu0 0
        %v8260 = vpop.f32.mrb[0].mxu0
        %v8261 = vadd.f32 %v8004, %v8260
        %v8262 = vpop.f32.mrb[0].mxu0
        %v8263 = vpop.f32.mrb[0].mxu0
        %v8264 = vadd.f32 %v8007, %v8263
        %v8265 = vpop.f32.mrb[0].mxu0
        %8266 = vmatprep.mubr.bf16.mxu0 0
        %8267 = vmatmul.mubr.bf16.gmra.mrb[0].mxu0 %v6176
        %v8268 = vpop.f32.mrb[0].mxu0
        %v8269 = vadd.f32 %v8012, %v8268
        %v8270 = vpop.f32.mrb[0].mxu0
        %v8271 = vpop.f32.mrb[0].mxu0
        %v8272 = vadd.f32 %v8015, %v8271
        %v8273 = vpop.f32.mrb[0].mxu0
        %8274 = vmatprep.mubr.bf16.mxu0 %v6177
        %8275 = vmatmul.mubr.bf16.gmra.mrb[0].mxu0 0
        %v8276 = vpop.f32.mrb[0].mxu0
        %v8277 = vadd.f32 %v8020, %v8276
        %v8278 = vpop.f32.mrb[0].mxu0
        %v8279 = vpop.f32.mrb[0].mxu0
        %v8280 = vadd.f32 %v8023, %v8279
        %v8281 = vpop.f32.mrb[0].mxu0
        %8282 = vmatprep.mubr.bf16.mxu0 0
        %8283 = vmatmul.mubr.bf16.gmra.mrb[0].mxu0 %v6179
        %v8284 = vpop.f32.mrb[0].mxu0
        %v8285 = vadd.f32 %v8028, %v8284
        %v8286 = vpop.f32.mrb[0].mxu0
        %v8287 = vpop.f32.mrb[0].mxu0
        %v8288 = vadd.f32 %v8031, %v8287
        %v8289 = vpop.f32.mrb[0].mxu0
        %8290 = vmatprep.mubr.bf16.mxu0 %v6180
        %8291 = vmatmul.mubr.bf16.gmra.mrb[0].mxu0 0
        %v8292 = vpop.f32.mrb[0].mxu0
        %v8293 = vadd.f32 %v8036, %v8292
        %v8294 = vpop.f32.mrb[0].mxu0
        %v8295 = vpop.f32.mrb[0].mxu0
        %v8296 = vadd.f32 %v8039, %v8295
        %v8297 = vpop.f32.mrb[0].mxu0
        %8298 = vmatprep.mubr.bf16.mxu0 0
        %8299 = vmatmul.mubr.bf16.gmra.mrb[0].mxu0 %v6182
        %v8300 = vpop.f32.mrb[0].mxu0
        %v8301 = vadd.f32 %v8044, %v8300
        %v8302 = vpop.f32.mrb[0].mxu0
        %v8303 = vpop.f32.mrb[0].mxu0
        %v8304 = vadd.f32 %v8047, %v8303
        %v8305 = vpop.f32.mrb[0].mxu0
        %8306 = vmatprep.mubr.bf16.mxu0 %v6183
        %8307 = vmatmul.mubr.bf16.gmra.mrb[0].mxu0 0
        %v8308 = vpop.f32.mrb[0].mxu0
        %v8309 = vadd.f32 %v8052, %v8308
        %v8310 = vpop.f32.mrb[0].mxu0
        %v8311 = vpop.f32.mrb[0].mxu0
        %v8312 = vadd.f32 %v8055, %v8311
        %v8313 = vpop.f32.mrb[0].mxu0
        %8314 = vmatprep.mubr.bf16.mxu0 0
        %8315 = vmatmul.mubr.bf16.gmra.mrb[0].mxu0 %v6185
        %v8316 = vpop.f32.mrb[0].mxu0
        %v8317 = vadd.f32 %v8060, %v8316
        %v8318 = vpop.f32.mrb[0].mxu0
        %v8319 = vpop.f32.mrb[0].mxu0
        %v8320 = vadd.f32 %v8063, %v8319
        %v8321 = vpop.f32.mrb[0].mxu0
        %8322 = vmatprep.mubr.bf16.mxu0 %v6186
        %8323 = vmatmul.mubr.bf16.gmra.mrb[0].mxu0 0
        %v8324 = vpop.f32.mrb[0].mxu0
        %v8325 = vadd.f32 %v8068, %v8324
        %v8326 = vpop.f32.mrb[0].mxu0
        %v8327 = vpop.f32.mrb[0].mxu0
        %v8328 = vadd.f32 %v8071, %v8327
        %v8329 = vpop.f32.mrb[0].mxu0
        %8330 = vmatprep.mubr.bf16.mxu0 0
        %8331 = vmatmul.mubr.bf16.gmra.mrb[0].mxu0 %v6188
        %v8332 = vpop.f32.mrb[0].mxu0
        %v8333 = vadd.f32 %v8076, %v8332
        %v8334 = vpop.f32.mrb[0].mxu0
        %v8335 = vpop.f32.mrb[0].mxu0
        %v8336 = vadd.f32 %v8079, %v8335
        %v8337 = vpop.f32.mrb[0].mxu0
        %8338 = vmatprep.mubr.bf16.mxu0 %v6189
        %8339 = vmatmul.mubr.bf16.gmra.mrb[0].mxu0 0
        %v8340 = vpop.f32.mrb[0].mxu0
        %v8341 = vadd.f32 %v8084, %v8340
        %v8342 = vpop.f32.mrb[0].mxu0
        %v8343 = vpop.f32.mrb[0].mxu0
        %v8344 = vadd.f32 %v8087, %v8343
        %v8345 = vpop.f32.mrb[0].mxu0
        %8346 = vmatprep.mubr.bf16.mxu0 0
        %8347 = vmatmul.mubr.bf16.gmra.mrb[0].mxu0 %v6191
        %v8348 = vpop.f32.mrb[0].mxu0
        %v8349 = vadd.f32 %v8092, %v8348
        %v8350 = vpop.f32.mrb[0].mxu0
        %v8351 = vpop.f32.mrb[0].mxu0
        %v8352 = vadd.f32 %v8095, %v8351
        %v8353 = vpop.f32.mrb[0].mxu0
        %8354 = vmatprep.mubr.bf16.mxu0 %v6192
        %8355 = vmatmul.mubr.bf16.gmra.mrb[0].mxu0 0
        %v8356 = vpop.f32.mrb[0].mxu0
        %v8357 = vadd.f32 %v8100, %v8356
        %v8358 = vpop.f32.mrb[0].mxu0
        %v8359 = vpop.f32.mrb[0].mxu0
        %v8360 = vadd.f32 %v8103, %v8359
        %v8361 = vpop.f32.mrb[0].mxu0
        %8362 = vmatprep.mubr.bf16.mxu0 0
        %8363 = vmatmul.mubr.bf16.gmra.mrb[0].mxu0 %v6194
        %v8364 = vpop.f32.mrb[0].mxu0
        %v8365 = vadd.f32 %v8108, %v8364
        %v8366 = vpop.f32.mrb[0].mxu0
        %v8367 = vpop.f32.mrb[0].mxu0
        %v8368 = vadd.f32 %v8111, %v8367
        %v8369 = vpop.f32.mrb[0].mxu0
        %8370 = vmatprep.mubr.bf16.mxu0 %v6195
        %8371 = vmatmul.mubr.bf16.gmra.mrb[0].mxu0 0
        %v8372 = vpop.f32.mrb[0].mxu0
        %v8373 = vadd.f32 %v8116, %v8372
        %v8374 = vpop.f32.mrb[0].mxu0
        %v8375 = vpop.f32.mrb[0].mxu0
        %v8376 = vadd.f32 %v8119, %v8375
        %v8377 = vpop.f32.mrb[0].mxu0
        %8378 = vmatprep.mubr.bf16.mxu0 0
        %8379 = vmatmul.mubr.bf16.gmra.mrb[0].mxu0 %v6197
        %v8380 = vpop.f32.mrb[0].mxu0
        %v8381 = vadd.f32 %v8124, %v8380
        %v8382 = vpop.f32.mrb[0].mxu0
        %v8383 = vpop.f32.mrb[0].mxu0
        %v8384 = vadd.f32 %v8127, %v8383
        %v8385 = vpop.f32.mrb[0].mxu0
        %8386 = vmatprep.mubr.bf16.mxu0 %v6198
        %8387 = vmatmul.mubr.bf16.gmra.mrb[0].mxu0 0
        %v8388 = vpop.f32.mrb[0].mxu0
        %v8389 = vadd.f32 %v8132, %v8388
        %v8390 = vpop.f32.mrb[0].mxu0
        %v8391 = vpop.f32.mrb[0].mxu0
        %v8392 = vadd.f32 %v8135, %v8391
        %v8393 = vpop.f32.mrb[0].mxu0
        %8394 = vmatprep.mubr.bf16.mxu0 0
        %8395 = vmatmul.mubr.bf16.gmra.mrb[0].mxu0 %v6200
        %v8396 = vpop.f32.mrb[0].mxu0
        %v8397 = vadd.f32 %v8140, %v8396
        %v8398 = vpop.f32.mrb[0].mxu0
        %v8399 = vpop.f32.mrb[0].mxu0
        %v8400 = vadd.f32 %v8143, %v8399
        %v8401 = vpop.f32.mrb[0].mxu0
        %8402 = vmatprep.mubr.bf16.mxu0 %v6201
        %8403 = vmatmul.mubr.bf16.gmra.mrb[0].mxu0 0
        %v8404 = vpop.f32.mrb[0].mxu0
        %v8405 = vadd.f32 %v8148, %v8404
        %v8406 = vpop.f32.mrb[0].mxu0
        %v8407 = vpop.f32.mrb[0].mxu0
        %v8408 = vadd.f32 %v8151, %v8407
        %v8409 = vpop.f32.mrb[0].mxu0
        %8410 = vmatprep.mubr.bf16.mxu0 0
        %8411 = vmatmul.mubr.bf16.gmra.mrb[0].mxu0 %v6203
        %v8412 = vpop.f32.mrb[0].mxu0
        %v8413 = vadd.f32 %v8156, %v8412
        %v8414 = vpop.f32.mrb[0].mxu0
        %v8415 = vpop.f32.mrb[0].mxu0
        %v8416 = vadd.f32 %v8159, %v8415
        %v8417 = vpop.f32.mrb[0].mxu0
        %8418 = vmatprep.mubr.bf16.mxu0 %v6204
        %8419 = vmatmul.mubr.bf16.gmra.mrb[0].mxu0 0
        %v8420 = vpop.f32.mrb[0].mxu0
        %v8421 = vadd.f32 %v8164, %v8420
        %v8422 = vpop.f32.mrb[0].mxu0
        %v8423 = vpop.f32.mrb[0].mxu0
        %v8424 = vadd.f32 %v8167, %v8423
        %v8425 = vpop.f32.mrb[0].mxu0
        %8426 = vmatprep.mubr.bf16.mxu0 0
        %8427 = vmatmul.mubr.bf16.gmra.mrb[0].mxu0 %v6206
        %v8428 = vpop.f32.mrb[0].mxu0
        %v8429 = vadd.f32 %v8172, %v8428
        %v8430 = vpop.f32.mrb[0].mxu0
        %v8431 = vpop.f32.mrb[0].mxu0
        %v8432 = vadd.f32 %v8175, %v8431
        %v8433 = vpop.f32.mrb[0].mxu0
        %8434 = vmatprep.mubr.bf16.mxu0 0
        %8435 = vmatmul.mubr.bf16.gmra.mrb[0].mxu0 0
        %v8436 = vpop.f32.mrb[0].mxu0
        %v8437 = vadd.f32 %v8180, %v8436
        %v8438 = vpop.f32.mrb[0].mxu0
        %v8439 = vpop.f32.mrb[0].mxu0
        %v8440 = vadd.f32 %v8183, %v8439
        %v8441 = vpop.f32.mrb[0].mxu0
        %8442 = vmatprep.mubr.bf16.mxu0 0
        %8443 = vmatmul.mubr.bf16.gmra.mrb[0].mxu0 0
        %v8444 = vpop.f32.mrb[0].mxu0
        %v8445 = vadd.f32 %v8188, %v8444
        %v8446 = vpop.f32.mrb[0].mxu0
        %v8447 = vpop.f32.mrb[0].mxu0
        %v8448 = vadd.f32 %v8191, %v8447
        %v8449 = vpop.f32.mrb[0].mxu0
        %8450 = vmatprep.mubr.bf16.mxu0 0
        %8451 = vmatmul.mubr.bf16.gmra.mrb[0].mxu0 0
        %v8452 = vpop.f32.mrb[0].mxu0
        %v8453 = vadd.f32 %v8196, %v8452
        %v8454 = vpop.f32.mrb[0].mxu0
        %v8455 = vpop.f32.mrb[0].mxu0
        %v8456 = vadd.f32 %v8199, %v8455
        %v8457 = vpop.f32.mrb[0].mxu0
        %8458 = vdwg.mxu0
        %8459 = vmatprep.subr.bf16.mxu0 0
        %8460 = vmatpush1.bf16.msra.mxu0 %v7014
        %8461 = vmatprep.subr.bf16.mxu0 0
        %8462 = vmatpush1.bf16.msra.mxu0 %v7015
        %8463 = vmatprep.subr.bf16.mxu0 0
        %8464 = vmatpush1.bf16.msra.mxu0 %v7016
        %8465 = vmatprep.subr.bf16.mxu0 0
        %8466 = vmatpush1.bf16.msra.mxu0 %v7017
        %8467 = vmatprep.subr.bf16.mxu0 0
        %8468 = vmatpush1.bf16.msra.mxu0 %v7018
        %8469 = vmatprep.subr.bf16.mxu0 0
        %8470 = vmatpush1.bf16.msra.mxu0 %v7019
        %8471 = vmatprep.subr.bf16.mxu0 0
        %8472 = vmatpush1.bf16.msra.mxu0 %v7020
        %8473 = vmatprep.subr.bf16.mxu0 0
        %8474 = vmatpush1.bf16.msra.mxu0 %v7021
        %8475 = vmatprep.subr.bf16.mxu0 0
        %8476 = vmatpush1.bf16.msra.mxu0 %v7022
        %8477 = vmatprep.subr.bf16.mxu0 0
        %8478 = vmatpush1.bf16.msra.mxu0 %v7023
        %8479 = vmatprep.subr.bf16.mxu0 0
        %8480 = vmatpush1.bf16.msra.mxu0 %v7024
        %8481 = vmatprep.subr.bf16.mxu0 0
        %8482 = vmatpush1.bf16.msra.mxu0 %v7025
        %8483 = vmatprep.subr.bf16.mxu0 0
        %8484 = vmatpush1.bf16.msra.mxu0 %v7026
        %8485 = vmatprep.subr.bf16.mxu0 0
        %8486 = vmatpush1.bf16.msra.mxu0 %v7027
        %8487 = vmatprep.subr.bf16.mxu0 0
        %8488 = vmatpush1.bf16.msra.mxu0 %v7028
        %8489 = vmatprep.subr.bf16.mxu0 0
        %8490 = vmatpush1.bf16.msra.mxu0 %v7029
        %8491 = vmatprep.mubr.bf16.mxu0 0
        %8492 = vmatmul.mubr.bf16.gmra.mrb[0].mxu0 0
        %v8493 = vpop.f32.mrb[0].mxu0
        %v8494 = vadd.f32 %v8237, %v8493
        %v8495 = vpop.f32.mrb[0].mxu0
        %v8496 = vpop.f32.mrb[0].mxu0
        %v8497 = vadd.f32 %v8240, %v8496
        %v8498 = vpop.f32.mrb[0].mxu0
        %8499 = vmatprep.mubr.bf16.mxu0 %v6173
        %8500 = vmatmul.mubr.bf16.gmra.mrb[0].mxu0 %v6172
        %v8501 = vpop.f32.mrb[0].mxu0
        %v8502 = vadd.f32 %v8245, %v8501
        %v8503 = vpop.f32.mrb[0].mxu0
        %v8504 = vpop.f32.mrb[0].mxu0
        %v8505 = vadd.f32 %v8248, %v8504
        %v8506 = vpop.f32.mrb[0].mxu0
        %8507 = vmatprep.mubr.bf16.mxu0 0
        %8508 = vmatmul.mubr.bf16.gmra.mrb[0].mxu0 0
        %v8509 = vpop.f32.mrb[0].mxu0
        %v8510 = vadd.f32 %v8253, %v8509
        %v8511 = vpop.f32.mrb[0].mxu0
        %v8512 = vpop.f32.mrb[0].mxu0
        %v8513 = vadd.f32 %v8256, %v8512
        %v8514 = vpop.f32.mrb[0].mxu0
        %8515 = vmatprep.mubr.bf16.mxu0 %v6176
        %8516 = vmatmul.mubr.bf16.gmra.mrb[0].mxu0 %v6175
        %v8517 = vpop.f32.mrb[0].mxu0
        %v8518 = vadd.f32 %v8261, %v8517
        %v8519 = vpop.f32.mrb[0].mxu0
        %v8520 = vpop.f32.mrb[0].mxu0
        %v8521 = vadd.f32 %v8264, %v8520
        %v8522 = vpop.f32.mrb[0].mxu0
        %8523 = vmatprep.mubr.bf16.mxu0 0
        %8524 = vmatmul.mubr.bf16.gmra.mrb[0].mxu0 0
        %v8525 = vpop.f32.mrb[0].mxu0
        %v8526 = vadd.f32 %v8269, %v8525
        %v8527 = vpop.f32.mrb[0].mxu0
        %v8528 = vpop.f32.mrb[0].mxu0
        %v8529 = vadd.f32 %v8272, %v8528
        %v8530 = vpop.f32.mrb[0].mxu0
        %8531 = vmatprep.mubr.bf16.mxu0 %v6179
        %8532 = vmatmul.mubr.bf16.gmra.mrb[0].mxu0 %v6178
        %v8533 = vpop.f32.mrb[0].mxu0
        %v8534 = vadd.f32 %v8277, %v8533
        %v8535 = vpop.f32.mrb[0].mxu0
        %v8536 = vpop.f32.mrb[0].mxu0
        %v8537 = vadd.f32 %v8280, %v8536
        %v8538 = vpop.f32.mrb[0].mxu0
        %8539 = vmatprep.mubr.bf16.mxu0 0
        %8540 = vmatmul.mubr.bf16.gmra.mrb[0].mxu0 0
        %v8541 = vpop.f32.mrb[0].mxu0
        %v8542 = vadd.f32 %v8285, %v8541
        %v8543 = vpop.f32.mrb[0].mxu0
        %v8544 = vpop.f32.mrb[0].mxu0
        %v8545 = vadd.f32 %v8288, %v8544
        %v8546 = vpop.f32.mrb[0].mxu0
        %8547 = vmatprep.mubr.bf16.mxu0 %v6182
        %8548 = vmatmul.mubr.bf16.gmra.mrb[0].mxu0 %v6181
        %v8549 = vpop.f32.mrb[0].mxu0
        %v8550 = vadd.f32 %v8293, %v8549
        %v8551 = vpop.f32.mrb[0].mxu0
        %v8552 = vpop.f32.mrb[0].mxu0
        %v8553 = vadd.f32 %v8296, %v8552
        %v8554 = vpop.f32.mrb[0].mxu0
        %8555 = vmatprep.mubr.bf16.mxu0 0
        %8556 = vmatmul.mubr.bf16.gmra.mrb[0].mxu0 0
        %v8557 = vpop.f32.mrb[0].mxu0
        %v8558 = vadd.f32 %v8301, %v8557
        %v8559 = vpop.f32.mrb[0].mxu0
        %v8560 = vpop.f32.mrb[0].mxu0
        %v8561 = vadd.f32 %v8304, %v8560
        %v8562 = vpop.f32.mrb[0].mxu0
        %8563 = vmatprep.mubr.bf16.mxu0 %v6185
        %8564 = vmatmul.mubr.bf16.gmra.mrb[0].mxu0 %v6184
        %v8565 = vpop.f32.mrb[0].mxu0
        %v8566 = vadd.f32 %v8309, %v8565
        %v8567 = vpop.f32.mrb[0].mxu0
        %v8568 = vpop.f32.mrb[0].mxu0
        %v8569 = vadd.f32 %v8312, %v8568
        %v8570 = vpop.f32.mrb[0].mxu0
        %8571 = vmatprep.mubr.bf16.mxu0 0
        %8572 = vmatmul.mubr.bf16.gmra.mrb[0].mxu0 0
        %v8573 = vpop.f32.mrb[0].mxu0
        %v8574 = vadd.f32 %v8317, %v8573
        %v8575 = vpop.f32.mrb[0].mxu0
        %v8576 = vpop.f32.mrb[0].mxu0
        %v8577 = vadd.f32 %v8320, %v8576
        %v8578 = vpop.f32.mrb[0].mxu0
        %8579 = vmatprep.mubr.bf16.mxu0 %v6188
        %8580 = vmatmul.mubr.bf16.gmra.mrb[0].mxu0 %v6187
        %v8581 = vpop.f32.mrb[0].mxu0
        %v8582 = vadd.f32 %v8325, %v8581
        %v8583 = vpop.f32.mrb[0].mxu0
        %v8584 = vpop.f32.mrb[0].mxu0
        %v8585 = vadd.f32 %v8328, %v8584
        %v8586 = vpop.f32.mrb[0].mxu0
        %8587 = vmatprep.mubr.bf16.mxu0 0
        %8588 = vmatmul.mubr.bf16.gmra.mrb[0].mxu0 0
        %v8589 = vpop.f32.mrb[0].mxu0
        %v8590 = vadd.f32 %v8333, %v8589
        %v8591 = vpop.f32.mrb[0].mxu0
        %v8592 = vpop.f32.mrb[0].mxu0
        %v8593 = vadd.f32 %v8336, %v8592
        %v8594 = vpop.f32.mrb[0].mxu0
        %8595 = vmatprep.mubr.bf16.mxu0 %v6191
        %8596 = vmatmul.mubr.bf16.gmra.mrb[0].mxu0 %v6190
        %v8597 = vpop.f32.mrb[0].mxu0
        %v8598 = vadd.f32 %v8341, %v8597
        %v8599 = vpop.f32.mrb[0].mxu0
        %v8600 = vpop.f32.mrb[0].mxu0
        %v8601 = vadd.f32 %v8344, %v8600
        %v8602 = vpop.f32.mrb[0].mxu0
        %8603 = vmatprep.mubr.bf16.mxu0 0
        %8604 = vmatmul.mubr.bf16.gmra.mrb[0].mxu0 0
        %v8605 = vpop.f32.mrb[0].mxu0
        %v8606 = vadd.f32 %v8349, %v8605
        %v8607 = vpop.f32.mrb[0].mxu0
        %v8608 = vpop.f32.mrb[0].mxu0
        %v8609 = vadd.f32 %v8352, %v8608
        %v8610 = vpop.f32.mrb[0].mxu0
        %8611 = vmatprep.mubr.bf16.mxu0 %v6194
        %8612 = vmatmul.mubr.bf16.gmra.mrb[0].mxu0 %v6193
        %v8613 = vpop.f32.mrb[0].mxu0
        %v8614 = vadd.f32 %v8357, %v8613
        %v8615 = vpop.f32.mrb[0].mxu0
        %v8616 = vpop.f32.mrb[0].mxu0
        %v8617 = vadd.f32 %v8360, %v8616
        %v8618 = vpop.f32.mrb[0].mxu0
        %8619 = vmatprep.mubr.bf16.mxu0 0
        %8620 = vmatmul.mubr.bf16.gmra.mrb[0].mxu0 0
        %v8621 = vpop.f32.mrb[0].mxu0
        %v8622 = vadd.f32 %v8365, %v8621
        %v8623 = vpop.f32.mrb[0].mxu0
        %v8624 = vpop.f32.mrb[0].mxu0
        %v8625 = vadd.f32 %v8368, %v8624
        %v8626 = vpop.f32.mrb[0].mxu0
        %8627 = vmatprep.mubr.bf16.mxu0 %v6197
        %8628 = vmatmul.mubr.bf16.gmra.mrb[0].mxu0 %v6196
        %v8629 = vpop.f32.mrb[0].mxu0
        %v8630 = vadd.f32 %v8373, %v8629
        %v8631 = vpop.f32.mrb[0].mxu0
        %v8632 = vpop.f32.mrb[0].mxu0
        %v8633 = vadd.f32 %v8376, %v8632
        %v8634 = vpop.f32.mrb[0].mxu0
        %8635 = vmatprep.mubr.bf16.mxu0 0
        %8636 = vmatmul.mubr.bf16.gmra.mrb[0].mxu0 0
        %v8637 = vpop.f32.mrb[0].mxu0
        %v8638 = vadd.f32 %v8381, %v8637
        %v8639 = vpop.f32.mrb[0].mxu0
        %v8640 = vpop.f32.mrb[0].mxu0
        %v8641 = vadd.f32 %v8384, %v8640
        %v8642 = vpop.f32.mrb[0].mxu0
        %8643 = vmatprep.mubr.bf16.mxu0 %v6200
        %8644 = vmatmul.mubr.bf16.gmra.mrb[0].mxu0 %v6199
        %v8645 = vpop.f32.mrb[0].mxu0
        %v8646 = vadd.f32 %v8389, %v8645
        %v8647 = vpop.f32.mrb[0].mxu0
        %v8648 = vpop.f32.mrb[0].mxu0
        %v8649 = vadd.f32 %v8392, %v8648
        %v8650 = vpop.f32.mrb[0].mxu0
        %8651 = vmatprep.mubr.bf16.mxu0 0
        %8652 = vmatmul.mubr.bf16.gmra.mrb[0].mxu0 0
        %v8653 = vpop.f32.mrb[0].mxu0
        %v8654 = vadd.f32 %v8397, %v8653
        %v8655 = vpop.f32.mrb[0].mxu0
        %v8656 = vpop.f32.mrb[0].mxu0
        %v8657 = vadd.f32 %v8400, %v8656
        %v8658 = vpop.f32.mrb[0].mxu0
        %8659 = vmatprep.mubr.bf16.mxu0 %v6203
        %8660 = vmatmul.mubr.bf16.gmra.mrb[0].mxu0 %v6202
        %v8661 = vpop.f32.mrb[0].mxu0
        %v8662 = vadd.f32 %v8405, %v8661
        %v8663 = vpop.f32.mrb[0].mxu0
        %v8664 = vpop.f32.mrb[0].mxu0
        %v8665 = vadd.f32 %v8408, %v8664
        %v8666 = vpop.f32.mrb[0].mxu0
        %8667 = vmatprep.mubr.bf16.mxu0 0
        %8668 = vmatmul.mubr.bf16.gmra.mrb[0].mxu0 0
        %v8669 = vpop.f32.mrb[0].mxu0
        %v8670 = vadd.f32 %v8413, %v8669
        %v8671 = vpop.f32.mrb[0].mxu0
        %v8672 = vpop.f32.mrb[0].mxu0
        %v8673 = vadd.f32 %v8416, %v8672
        %v8674 = vpop.f32.mrb[0].mxu0
        %8675 = vmatprep.mubr.bf16.mxu0 %v6206
        %8676 = vmatmul.mubr.bf16.gmra.mrb[0].mxu0 %v6205
        %v8677 = vpop.f32.mrb[0].mxu0
        %v8678 = vadd.f32 %v8421, %v8677
        %v8679 = vpop.f32.mrb[0].mxu0
        %v8680 = vpop.f32.mrb[0].mxu0
        %v8681 = vadd.f32 %v8424, %v8680
        %v8682 = vpop.f32.mrb[0].mxu0
        %8683 = vmatprep.mubr.bf16.mxu0 0
        %8684 = vmatmul.mubr.bf16.gmra.mrb[0].mxu0 0
        %v8685 = vpop.f32.mrb[0].mxu0
        %v8686 = vadd.f32 %v8429, %v8685
        %v8687 = vpop.f32.mrb[0].mxu0
        %v8688 = vpop.f32.mrb[0].mxu0
        %v8689 = vadd.f32 %v8432, %v8688
        %v8690 = vpop.f32.mrb[0].mxu0
        %8691 = vmatprep.mubr.bf16.mxu0 0
        %8692 = vmatmul.mubr.bf16.gmra.mrb[0].mxu0 0
        %v8693 = vpop.f32.mrb[0].mxu0
        %v8694 = vadd.f32 %v8437, %v8693
        %v8695 = vpop.f32.mrb[0].mxu0
        %v8696 = vpop.f32.mrb[0].mxu0
        %v8697 = vadd.f32 %v8440, %v8696
        %v8698 = vpop.f32.mrb[0].mxu0
        %8699 = vmatprep.mubr.bf16.mxu0 0
        %8700 = vmatmul.mubr.bf16.gmra.mrb[0].mxu0 0
        %v8701 = vpop.f32.mrb[0].mxu0
        %v8702 = vadd.f32 %v8445, %v8701
        %v8703 = vpop.f32.mrb[0].mxu0
        %v8704 = vpop.f32.mrb[0].mxu0
        %v8705 = vadd.f32 %v8448, %v8704
        %v8706 = vpop.f32.mrb[0].mxu0
        %8707 = vmatprep.mubr.bf16.mxu0 0
        %8708 = vmatmul.mubr.bf16.gmra.mrb[0].mxu0 0
        %v8709 = vpop.f32.mrb[0].mxu0
        %v8710 = vadd.f32 %v8453, %v8709
        %v8711 = vpop.f32.mrb[0].mxu0
        %v8712 = vpop.f32.mrb[0].mxu0
        %v8713 = vadd.f32 %v8456, %v8712
        %v8714 = vpop.f32.mrb[0].mxu0
        %8715 = vdwg.mxu0
        %8716 = vmatprep.subr.bf16.mxu0 0
        %8717 = vmatpush1.bf16.msra.mxu0 %v7030
        %8718 = vmatprep.subr.bf16.mxu0 0
        %8719 = vmatpush1.bf16.msra.mxu0 %v7031
        %8720 = vmatprep.subr.bf16.mxu0 0
        %8721 = vmatpush1.bf16.msra.mxu0 %v7032
        %8722 = vmatprep.subr.bf16.mxu0 0
        %8723 = vmatpush1.bf16.msra.mxu0 %v7033
        %8724 = vmatprep.subr.bf16.mxu0 0
        %8725 = vmatpush1.bf16.msra.mxu0 %v7034
        %8726 = vmatprep.subr.bf16.mxu0 0
        %8727 = vmatpush1.bf16.msra.mxu0 %v7035
        %8728 = vmatprep.subr.bf16.mxu0 0
        %8729 = vmatpush1.bf16.msra.mxu0 %v7036
        %8730 = vmatprep.subr.bf16.mxu0 0
        %8731 = vmatpush1.bf16.msra.mxu0 %v7037
        %8732 = vmatprep.subr.bf16.mxu0 0
        %8733 = vmatpush1.bf16.msra.mxu0 %v7038
        %8734 = vmatprep.subr.bf16.mxu0 0
        %8735 = vmatpush1.bf16.msra.mxu0 %v7039
        %8736 = vmatprep.subr.bf16.mxu0 0
        %8737 = vmatpush1.bf16.msra.mxu0 %v7040
        %8738 = vmatprep.subr.bf16.mxu0 0
        %8739 = vmatpush1.bf16.msra.mxu0 %v7041
        %8740 = vmatprep.subr.bf16.mxu0 0
        %8741 = vmatpush1.bf16.msra.mxu0 %v7042
        %8742 = vmatprep.subr.bf16.mxu0 0
        %8743 = vmatpush1.bf16.msra.mxu0 %v7043
        %8744 = vmatprep.subr.bf16.mxu0 0
        %8745 = vmatpush1.bf16.msra.mxu0 %v7044
        %8746 = vmatprep.subr.bf16.mxu0 0
        %8747 = vmatpush1.bf16.msra.mxu0 %v7045
        %8748 = vmatprep.mubr.bf16.mxu0 %v6172
        %8749 = vmatmul.mubr.bf16.gmra.mrb[0].mxu0 %v6171
        %v8750 = vpop.f32.mrb[0].mxu0
        %v8751 = vadd.f32 %v8494, %v8750
        %v8752 = vpop.f32.mrb[0].mxu0
        %v8753 = vpop.f32.mrb[0].mxu0
        %v8754 = vadd.f32 %v8497, %v8753
        %v8755 = vpop.f32.mrb[0].mxu0
        %8756 = vmatprep.mubr.bf16.mxu0 0
        %8757 = vmatmul.mubr.bf16.gmra.mrb[0].mxu0 0
        %v8758 = vpop.f32.mrb[0].mxu0
        %v8759 = vadd.f32 %v8502, %v8758
        %v8760 = vpop.f32.mrb[0].mxu0
        %v8761 = vpop.f32.mrb[0].mxu0
        %v8762 = vadd.f32 %v8505, %v8761
        %v8763 = vpop.f32.mrb[0].mxu0
        %8764 = vmatprep.mubr.bf16.mxu0 %v6175
        %8765 = vmatmul.mubr.bf16.gmra.mrb[0].mxu0 %v6174
        %v8766 = vpop.f32.mrb[0].mxu0
        %v8767 = vadd.f32 %v8510, %v8766
        %v8768 = vpop.f32.mrb[0].mxu0
        %v8769 = vpop.f32.mrb[0].mxu0
        %v8770 = vadd.f32 %v8513, %v8769
        %v8771 = vpop.f32.mrb[0].mxu0
        %8772 = vmatprep.mubr.bf16.mxu0 0
        %8773 = vmatmul.mubr.bf16.gmra.mrb[0].mxu0 0
        %v8774 = vpop.f32.mrb[0].mxu0
        %v8775 = vadd.f32 %v8518, %v8774
        %v8776 = vpop.f32.mrb[0].mxu0
        %v8777 = vpop.f32.mrb[0].mxu0
        %v8778 = vadd.f32 %v8521, %v8777
        %v8779 = vpop.f32.mrb[0].mxu0
        %8780 = vmatprep.mubr.bf16.mxu0 %v6178
        %8781 = vmatmul.mubr.bf16.gmra.mrb[0].mxu0 %v6177
        %v8782 = vpop.f32.mrb[0].mxu0
        %v8783 = vadd.f32 %v8526, %v8782
        %v8784 = vpop.f32.mrb[0].mxu0
        %v8785 = vpop.f32.mrb[0].mxu0
        %v8786 = vadd.f32 %v8529, %v8785
        %v8787 = vpop.f32.mrb[0].mxu0
        %8788 = vmatprep.mubr.bf16.mxu0 0
        %8789 = vmatmul.mubr.bf16.gmra.mrb[0].mxu0 0
        %v8790 = vpop.f32.mrb[0].mxu0
        %v8791 = vadd.f32 %v8534, %v8790
        %v8792 = vpop.f32.mrb[0].mxu0
        %v8793 = vpop.f32.mrb[0].mxu0
        %v8794 = vadd.f32 %v8537, %v8793
        %v8795 = vpop.f32.mrb[0].mxu0
        %8796 = vmatprep.mubr.bf16.mxu0 %v6181
        %8797 = vmatmul.mubr.bf16.gmra.mrb[0].mxu0 %v6180
        %v8798 = vpop.f32.mrb[0].mxu0
        %v8799 = vadd.f32 %v8542, %v8798
        %v8800 = vpop.f32.mrb[0].mxu0
        %v8801 = vpop.f32.mrb[0].mxu0
        %v8802 = vadd.f32 %v8545, %v8801
        %v8803 = vpop.f32.mrb[0].mxu0
        %8804 = vmatprep.mubr.bf16.mxu0 0
        %8805 = vmatmul.mubr.bf16.gmra.mrb[0].mxu0 0
        %v8806 = vpop.f32.mrb[0].mxu0
        %v8807 = vadd.f32 %v8550, %v8806
        %v8808 = vpop.f32.mrb[0].mxu0
        %v8809 = vpop.f32.mrb[0].mxu0
        %v8810 = vadd.f32 %v8553, %v8809
        %v8811 = vpop.f32.mrb[0].mxu0
        %8812 = vmatprep.mubr.bf16.mxu0 %v6184
        %8813 = vmatmul.mubr.bf16.gmra.mrb[0].mxu0 %v6183
        %v8814 = vpop.f32.mrb[0].mxu0
        %v8815 = vadd.f32 %v8558, %v8814
        %v8816 = vpop.f32.mrb[0].mxu0
        %v8817 = vpop.f32.mrb[0].mxu0
        %v8818 = vadd.f32 %v8561, %v8817
        %v8819 = vpop.f32.mrb[0].mxu0
        %8820 = vmatprep.mubr.bf16.mxu0 0
        %8821 = vmatmul.mubr.bf16.gmra.mrb[0].mxu0 0
        %v8822 = vpop.f32.mrb[0].mxu0
        %v8823 = vadd.f32 %v8566, %v8822
        %v8824 = vpop.f32.mrb[0].mxu0
        %v8825 = vpop.f32.mrb[0].mxu0
        %v8826 = vadd.f32 %v8569, %v8825
        %v8827 = vpop.f32.mrb[0].mxu0
        %8828 = vmatprep.mubr.bf16.mxu0 %v6187
        %8829 = vmatmul.mubr.bf16.gmra.mrb[0].mxu0 %v6186
        %v8830 = vpop.f32.mrb[0].mxu0
        %v8831 = vadd.f32 %v8574, %v8830
        %v8832 = vpop.f32.mrb[0].mxu0
        %v8833 = vpop.f32.mrb[0].mxu0
        %v8834 = vadd.f32 %v8577, %v8833
        %v8835 = vpop.f32.mrb[0].mxu0
        %8836 = vmatprep.mubr.bf16.mxu0 0
        %8837 = vmatmul.mubr.bf16.gmra.mrb[0].mxu0 0
        %v8838 = vpop.f32.mrb[0].mxu0
        %v8839 = vadd.f32 %v8582, %v8838
        %v8840 = vpop.f32.mrb[0].mxu0
        %v8841 = vpop.f32.mrb[0].mxu0
        %v8842 = vadd.f32 %v8585, %v8841
        %v8843 = vpop.f32.mrb[0].mxu0
        %8844 = vmatprep.mubr.bf16.mxu0 %v6190
        %8845 = vmatmul.mubr.bf16.gmra.mrb[0].mxu0 %v6189
        %v8846 = vpop.f32.mrb[0].mxu0
        %v8847 = vadd.f32 %v8590, %v8846
        %v8848 = vpop.f32.mrb[0].mxu0
        %v8849 = vpop.f32.mrb[0].mxu0
        %v8850 = vadd.f32 %v8593, %v8849
        %v8851 = vpop.f32.mrb[0].mxu0
        %8852 = vmatprep.mubr.bf16.mxu0 0
        %8853 = vmatmul.mubr.bf16.gmra.mrb[0].mxu0 0
        %v8854 = vpop.f32.mrb[0].mxu0
        %v8855 = vadd.f32 %v8598, %v8854
        %v8856 = vpop.f32.mrb[0].mxu0
        %v8857 = vpop.f32.mrb[0].mxu0
        %v8858 = vadd.f32 %v8601, %v8857
        %v8859 = vpop.f32.mrb[0].mxu0
        %8860 = vmatprep.mubr.bf16.mxu0 %v6193
        %8861 = vmatmul.mubr.bf16.gmra.mrb[0].mxu0 %v6192
        %v8862 = vpop.f32.mrb[0].mxu0
        %v8863 = vadd.f32 %v8606, %v8862
        %v8864 = vpop.f32.mrb[0].mxu0
        %v8865 = vpop.f32.mrb[0].mxu0
        %v8866 = vadd.f32 %v8609, %v8865
        %v8867 = vpop.f32.mrb[0].mxu0
        %8868 = vmatprep.mubr.bf16.mxu0 0
        %8869 = vmatmul.mubr.bf16.gmra.mrb[0].mxu0 0
        %v8870 = vpop.f32.mrb[0].mxu0
        %v8871 = vadd.f32 %v8614, %v8870
        %v8872 = vpop.f32.mrb[0].mxu0
        %v8873 = vpop.f32.mrb[0].mxu0
        %v8874 = vadd.f32 %v8617, %v8873
        %v8875 = vpop.f32.mrb[0].mxu0
        %8876 = vmatprep.mubr.bf16.mxu0 %v6196
        %8877 = vmatmul.mubr.bf16.gmra.mrb[0].mxu0 %v6195
        %v8878 = vpop.f32.mrb[0].mxu0
        %v8879 = vadd.f32 %v8622, %v8878
        %v8880 = vpop.f32.mrb[0].mxu0
        %v8881 = vpop.f32.mrb[0].mxu0
        %v8882 = vadd.f32 %v8625, %v8881
        %v8883 = vpop.f32.mrb[0].mxu0
        %8884 = vmatprep.mubr.bf16.mxu0 0
        %8885 = vmatmul.mubr.bf16.gmra.mrb[0].mxu0 0
        %v8886 = vpop.f32.mrb[0].mxu0
        %v8887 = vadd.f32 %v8630, %v8886
        %v8888 = vpop.f32.mrb[0].mxu0
        %v8889 = vpop.f32.mrb[0].mxu0
        %v8890 = vadd.f32 %v8633, %v8889
        %v8891 = vpop.f32.mrb[0].mxu0
        %8892 = vmatprep.mubr.bf16.mxu0 %v6199
        %8893 = vmatmul.mubr.bf16.gmra.mrb[0].mxu0 %v6198
        %v8894 = vpop.f32.mrb[0].mxu0
        %v8895 = vadd.f32 %v8638, %v8894
        %v8896 = vpop.f32.mrb[0].mxu0
        %v8897 = vpop.f32.mrb[0].mxu0
        %v8898 = vadd.f32 %v8641, %v8897
        %v8899 = vpop.f32.mrb[0].mxu0
        %8900 = vmatprep.mubr.bf16.mxu0 0
        %8901 = vmatmul.mubr.bf16.gmra.mrb[0].mxu0 0
        %v8902 = vpop.f32.mrb[0].mxu0
        %v8903 = vadd.f32 %v8646, %v8902
        %v8904 = vpop.f32.mrb[0].mxu0
        %v8905 = vpop.f32.mrb[0].mxu0
        %v8906 = vadd.f32 %v8649, %v8905
        %v8907 = vpop.f32.mrb[0].mxu0
        %8908 = vmatprep.mubr.bf16.mxu0 %v6202
        %8909 = vmatmul.mubr.bf16.gmra.mrb[0].mxu0 %v6201
        %v8910 = vpop.f32.mrb[0].mxu0
        %v8911 = vadd.f32 %v8654, %v8910
        %v8912 = vpop.f32.mrb[0].mxu0
        %v8913 = vpop.f32.mrb[0].mxu0
        %v8914 = vadd.f32 %v8657, %v8913
        %v8915 = vpop.f32.mrb[0].mxu0
        %8916 = vmatprep.mubr.bf16.mxu0 0
        %8917 = vmatmul.mubr.bf16.gmra.mrb[0].mxu0 0
        %v8918 = vpop.f32.mrb[0].mxu0
        %v8919 = vadd.f32 %v8662, %v8918
        %v8920 = vpop.f32.mrb[0].mxu0
        %v8921 = vpop.f32.mrb[0].mxu0
        %v8922 = vadd.f32 %v8665, %v8921
        %v8923 = vpop.f32.mrb[0].mxu0
        %8924 = vmatprep.mubr.bf16.mxu0 %v6205
        %8925 = vmatmul.mubr.bf16.gmra.mrb[0].mxu0 %v6204
        %v8926 = vpop.f32.mrb[0].mxu0
        %v8927 = vadd.f32 %v8670, %v8926
        %v8928 = vpop.f32.mrb[0].mxu0
        %v8929 = vpop.f32.mrb[0].mxu0
        %v8930 = vadd.f32 %v8673, %v8929
        %v8931 = vpop.f32.mrb[0].mxu0
        %8932 = vmatprep.mubr.bf16.mxu0 0
        %8933 = vmatmul.mubr.bf16.gmra.mrb[0].mxu0 0
        %v8934 = vpop.f32.mrb[0].mxu0
        %v8935 = vadd.f32 %v8678, %v8934
        %v8936 = vpop.f32.mrb[0].mxu0
        %v8937 = vpop.f32.mrb[0].mxu0
        %v8938 = vadd.f32 %v8681, %v8937
        %v8939 = vpop.f32.mrb[0].mxu0
        %8940 = vmatprep.mubr.bf16.mxu0 0
        %8941 = vmatmul.mubr.bf16.gmra.mrb[0].mxu0 0
        %v8942 = vpop.f32.mrb[0].mxu0
        %v8943 = vadd.f32 %v8686, %v8942
        %v8944 = vpop.f32.mrb[0].mxu0
        %v8945 = vpop.f32.mrb[0].mxu0
        %v8946 = vadd.f32 %v8689, %v8945
        %v8947 = vpop.f32.mrb[0].mxu0
        %8948 = vmatprep.mubr.bf16.mxu0 0
        %8949 = vmatmul.mubr.bf16.gmra.mrb[0].mxu0 0
        %v8950 = vpop.f32.mrb[0].mxu0
        %v8951 = vadd.f32 %v8694, %v8950
        %v8952 = vpop.f32.mrb[0].mxu0
        %v8953 = vpop.f32.mrb[0].mxu0
        %v8954 = vadd.f32 %v8697, %v8953
        %v8955 = vpop.f32.mrb[0].mxu0
        %8956 = vmatprep.mubr.bf16.mxu0 0
        %8957 = vmatmul.mubr.bf16.gmra.mrb[0].mxu0 0
        %v8958 = vpop.f32.mrb[0].mxu0
        %v8959 = vadd.f32 %v8702, %v8958
        %v8960 = vpop.f32.mrb[0].mxu0
        %v8961 = vpop.f32.mrb[0].mxu0
        %v8962 = vadd.f32 %v8705, %v8961
        %v8963 = vpop.f32.mrb[0].mxu0
        %8964 = vmatprep.mubr.bf16.mxu0 0
        %8965 = vmatmul.mubr.bf16.gmra.mrb[0].mxu0 0
        %v8966 = vpop.f32.mrb[0].mxu0
        %v8967 = vadd.f32 %v8710, %v8966
        %v8968 = vpop.f32.mrb[0].mxu0
        %v8969 = vpop.f32.mrb[0].mxu0
        %v8970 = vadd.f32 %v8713, %v8969
        %v8971 = vpop.f32.mrb[0].mxu0
        %8972 = vdwg.mxu0
        %8973 = vmatprep.subr.bf16.mxu0 0
        %8974 = vmatpush1.bf16.msra.mxu0 %v7046
        %8975 = vmatprep.subr.bf16.mxu0 0
        %8976 = vmatpush1.bf16.msra.mxu0 %v7047
        %8977 = vmatprep.subr.bf16.mxu0 0
        %8978 = vmatpush1.bf16.msra.mxu0 %v7048
        %8979 = vmatprep.subr.bf16.mxu0 0
        %8980 = vmatpush1.bf16.msra.mxu0 %v7049
        %8981 = vmatprep.subr.bf16.mxu0 0
        %8982 = vmatpush1.bf16.msra.mxu0 %v7050
        %8983 = vmatprep.subr.bf16.mxu0 0
        %8984 = vmatpush1.bf16.msra.mxu0 %v7051
        %8985 = vmatprep.subr.bf16.mxu0 0
        %8986 = vmatpush1.bf16.msra.mxu0 %v7052
        %8987 = vmatprep.subr.bf16.mxu0 0
        %8988 = vmatpush1.bf16.msra.mxu0 %v7053
        %8989 = vmatprep.subr.bf16.mxu0 0
        %8990 = vmatpush1.bf16.msra.mxu0 0
        %8991 = vmatprep.subr.bf16.mxu0 0
        %8992 = vmatpush1.bf16.msra.mxu0 0
        %8993 = vmatprep.subr.bf16.mxu0 0
        %8994 = vmatpush1.bf16.msra.mxu0 0
        %8995 = vmatprep.subr.bf16.mxu0 0
        %8996 = vmatpush1.bf16.msra.mxu0 0
        %8997 = vmatprep.subr.bf16.mxu0 0
        %8998 = vmatpush1.bf16.msra.mxu0 0
        %8999 = vmatprep.subr.bf16.mxu0 0
        %9000 = vmatpush1.bf16.msra.mxu0 0
        %9001 = vmatprep.subr.bf16.mxu0 0
        %9002 = vmatpush1.bf16.msra.mxu0 0
        %9003 = vmatprep.subr.bf16.mxu0 0
        %9004 = vmatpush1.bf16.msra.mxu0 0
        %9005 = vmatprep.mubr.bf16.mxu0 0
        %9006 = vmatmul.mubr.bf16.gmra.mrb[0].mxu0 %v6173
        %v9007 = vpop.f32.mrb[0].mxu0
        %v9008 = vadd.f32 %v8751, %v9007
        %v9009 = vpop.f32.mrb[0].mxu0
        %v9010 = vpop.f32.mrb[0].mxu0
        %v9011 = vadd.f32 %v8754, %v9010
        %v9012 = vpop.f32.mrb[0].mxu0
        %9013 = vmatprep.mubr.bf16.mxu0 0
        %9014 = vmatmul.mubr.bf16.gmra.mrb[0].mxu0 0
        %v9015 = vpop.f32.mrb[0].mxu0
        %v9016 = vadd.f32 %v8759, %v9015
        %v9017 = vpop.f32.mrb[0].mxu0
        %v9018 = vpop.f32.mrb[0].mxu0
        %v9019 = vadd.f32 %v8762, %v9018
        %v9020 = vpop.f32.mrb[0].mxu0
        %9021 = vmatprep.mubr.bf16.mxu0 0
        %9022 = vmatmul.mubr.bf16.gmra.mrb[0].mxu0 %v6176
        %v9023 = vpop.f32.mrb[0].mxu0
        %v9024 = vadd.f32 %v8767, %v9023
        %v9025 = vpop.f32.mrb[0].mxu0
        %v9026 = vpop.f32.mrb[0].mxu0
        %v9027 = vadd.f32 %v8770, %v9026
        %v9028 = vpop.f32.mrb[0].mxu0
        %9029 = vmatprep.mubr.bf16.mxu0 0
        %9030 = vmatmul.mubr.bf16.gmra.mrb[0].mxu0 0
        %v9031 = vpop.f32.mrb[0].mxu0
        %v9032 = vadd.f32 %v8775, %v9031
        %v9033 = vpop.f32.mrb[0].mxu0
        %v9034 = vpop.f32.mrb[0].mxu0
        %v9035 = vadd.f32 %v8778, %v9034
        %v9036 = vpop.f32.mrb[0].mxu0
        %9037 = vmatprep.mubr.bf16.mxu0 0
        %9038 = vmatmul.mubr.bf16.gmra.mrb[0].mxu0 %v6179
        %v9039 = vpop.f32.mrb[0].mxu0
        %v9040 = vadd.f32 %v8783, %v9039
        %v9041 = vpop.f32.mrb[0].mxu0
        %v9042 = vpop.f32.mrb[0].mxu0
        %v9043 = vadd.f32 %v8786, %v9042
        %v9044 = vpop.f32.mrb[0].mxu0
        %9045 = vmatprep.mubr.bf16.mxu0 0
        %9046 = vmatmul.mubr.bf16.gmra.mrb[0].mxu0 0
        %v9047 = vpop.f32.mrb[0].mxu0
        %v9048 = vadd.f32 %v8791, %v9047
        %v9049 = vpop.f32.mrb[0].mxu0
        %v9050 = vpop.f32.mrb[0].mxu0
        %v9051 = vadd.f32 %v8794, %v9050
        %v9052 = vpop.f32.mrb[0].mxu0
        %9053 = vmatprep.mubr.bf16.mxu0 0
        %9054 = vmatmul.mubr.bf16.gmra.mrb[0].mxu0 %v6182
        %v9055 = vpop.f32.mrb[0].mxu0
        %v9056 = vadd.f32 %v8799, %v9055
        %v9057 = vpop.f32.mrb[0].mxu0
        %v9058 = vpop.f32.mrb[0].mxu0
        %v9059 = vadd.f32 %v8802, %v9058
        %v9060 = vpop.f32.mrb[0].mxu0
        %9061 = vmatprep.mubr.bf16.mxu0 0
        %9062 = vmatmul.mubr.bf16.gmra.mrb[0].mxu0 0
        %v9063 = vpop.f32.mrb[0].mxu0
        %v9064 = vadd.f32 %v8807, %v9063
        %v9065 = vpop.f32.mrb[0].mxu0
        %v9066 = vpop.f32.mrb[0].mxu0
        %v9067 = vadd.f32 %v8810, %v9066
        %v9068 = vpop.f32.mrb[0].mxu0
        %9069 = vmatprep.mubr.bf16.mxu0 0
        %9070 = vmatmul.mubr.bf16.gmra.mrb[0].mxu0 %v6185
        %v9071 = vpop.f32.mrb[0].mxu0
        %v9072 = vadd.f32 %v8815, %v9071
        %v9073 = vpop.f32.mrb[0].mxu0
        %v9074 = vpop.f32.mrb[0].mxu0
        %v9075 = vadd.f32 %v8818, %v9074
        %v9076 = vpop.f32.mrb[0].mxu0
        %9077 = vmatprep.mubr.bf16.mxu0 0
        %9078 = vmatmul.mubr.bf16.gmra.mrb[0].mxu0 0
        %v9079 = vpop.f32.mrb[0].mxu0
        %v9080 = vadd.f32 %v8823, %v9079
        %v9081 = vpop.f32.mrb[0].mxu0
        %v9082 = vpop.f32.mrb[0].mxu0
        %v9083 = vadd.f32 %v8826, %v9082
        %v9084 = vpop.f32.mrb[0].mxu0
        %9085 = vmatprep.mubr.bf16.mxu0 0
        %9086 = vmatmul.mubr.bf16.gmra.mrb[0].mxu0 %v6188
        %v9087 = vpop.f32.mrb[0].mxu0
        %v9088 = vadd.f32 %v8831, %v9087
        %v9089 = vpop.f32.mrb[0].mxu0
        %v9090 = vpop.f32.mrb[0].mxu0
        %v9091 = vadd.f32 %v8834, %v9090
        %v9092 = vpop.f32.mrb[0].mxu0
        %9093 = vmatprep.mubr.bf16.mxu0 0
        %9094 = vmatmul.mubr.bf16.gmra.mrb[0].mxu0 0
        %v9095 = vpop.f32.mrb[0].mxu0
        %v9096 = vadd.f32 %v8839, %v9095
        %v9097 = vpop.f32.mrb[0].mxu0
        %v9098 = vpop.f32.mrb[0].mxu0
        %v9099 = vadd.f32 %v8842, %v9098
        %v9100 = vpop.f32.mrb[0].mxu0
        %9101 = vmatprep.mubr.bf16.mxu0 0
        %9102 = vmatmul.mubr.bf16.gmra.mrb[0].mxu0 %v6191
        %v9103 = vpop.f32.mrb[0].mxu0
        %v9104 = vadd.f32 %v8847, %v9103
        %v9105 = vpop.f32.mrb[0].mxu0
        %v9106 = vpop.f32.mrb[0].mxu0
        %v9107 = vadd.f32 %v8850, %v9106
        %v9108 = vpop.f32.mrb[0].mxu0
        %9109 = vmatprep.mubr.bf16.mxu0 0
        %9110 = vmatmul.mubr.bf16.gmra.mrb[0].mxu0 0
        %v9111 = vpop.f32.mrb[0].mxu0
        %v9112 = vadd.f32 %v8855, %v9111
        %v9113 = vpop.f32.mrb[0].mxu0
        %v9114 = vpop.f32.mrb[0].mxu0
        %v9115 = vadd.f32 %v8858, %v9114
        %v9116 = vpop.f32.mrb[0].mxu0
        %9117 = vmatprep.mubr.bf16.mxu0 0
        %9118 = vmatmul.mubr.bf16.gmra.mrb[0].mxu0 %v6194
        %v9119 = vpop.f32.mrb[0].mxu0
        %v9120 = vadd.f32 %v8863, %v9119
        %v9121 = vpop.f32.mrb[0].mxu0
        %v9122 = vpop.f32.mrb[0].mxu0
        %v9123 = vadd.f32 %v8866, %v9122
        %v9124 = vpop.f32.mrb[0].mxu0
        %9125 = vmatprep.mubr.bf16.mxu0 0
        %9126 = vmatmul.mubr.bf16.gmra.mrb[0].mxu0 0
        %v9127 = vpop.f32.mrb[0].mxu0
        %v9128 = vadd.f32 %v8871, %v9127
        %v9129 = vpop.f32.mrb[0].mxu0
        %v9130 = vpop.f32.mrb[0].mxu0
        %v9131 = vadd.f32 %v8874, %v9130
        %v9132 = vpop.f32.mrb[0].mxu0
        %9133 = vmatprep.mubr.bf16.mxu0 0
        %9134 = vmatmul.mubr.bf16.gmra.mrb[0].mxu0 %v6197
        %v9135 = vpop.f32.mrb[0].mxu0
        %v9136 = vadd.f32 %v8879, %v9135
        %v9137 = vpop.f32.mrb[0].mxu0
        %v9138 = vpop.f32.mrb[0].mxu0
        %v9139 = vadd.f32 %v8882, %v9138
        %v9140 = vpop.f32.mrb[0].mxu0
        %9141 = vmatprep.mubr.bf16.mxu0 0
        %9142 = vmatmul.mubr.bf16.gmra.mrb[0].mxu0 0
        %v9143 = vpop.f32.mrb[0].mxu0
        %v9144 = vadd.f32 %v8887, %v9143
        %v9145 = vpop.f32.mrb[0].mxu0
        %v9146 = vpop.f32.mrb[0].mxu0
        %v9147 = vadd.f32 %v8890, %v9146
        %v9148 = vpop.f32.mrb[0].mxu0
        %9149 = vmatprep.mubr.bf16.mxu0 0
        %9150 = vmatmul.mubr.bf16.gmra.mrb[0].mxu0 %v6200
        %v9151 = vpop.f32.mrb[0].mxu0
        %v9152 = vadd.f32 %v8895, %v9151
        %v9153 = vpop.f32.mrb[0].mxu0
        %v9154 = vpop.f32.mrb[0].mxu0
        %v9155 = vadd.f32 %v8898, %v9154
        %v9156 = vpop.f32.mrb[0].mxu0
        %9157 = vmatprep.mubr.bf16.mxu0 0
        %9158 = vmatmul.mubr.bf16.gmra.mrb[0].mxu0 0
        %v9159 = vpop.f32.mrb[0].mxu0
        %v9160 = vadd.f32 %v8903, %v9159
        %v9161 = vpop.f32.mrb[0].mxu0
        %v9162 = vpop.f32.mrb[0].mxu0
        %v9163 = vadd.f32 %v8906, %v9162
        %v9164 = vpop.f32.mrb[0].mxu0
        %9165 = vmatprep.mubr.bf16.mxu0 0
        %9166 = vmatmul.mubr.bf16.gmra.mrb[0].mxu0 %v6203
        %v9167 = vpop.f32.mrb[0].mxu0
        %v9168 = vadd.f32 %v8911, %v9167
        %v9169 = vpop.f32.mrb[0].mxu0
        %v9170 = vpop.f32.mrb[0].mxu0
        %v9171 = vadd.f32 %v8914, %v9170
        %v9172 = vpop.f32.mrb[0].mxu0
        %9173 = vmatprep.mubr.bf16.mxu0 0
        %9174 = vmatmul.mubr.bf16.gmra.mrb[0].mxu0 0
        %v9175 = vpop.f32.mrb[0].mxu0
        %v9176 = vadd.f32 %v8919, %v9175
        %v9177 = vpop.f32.mrb[0].mxu0
        %v9178 = vpop.f32.mrb[0].mxu0
        %v9179 = vadd.f32 %v8922, %v9178
        %v9180 = vpop.f32.mrb[0].mxu0
        %9181 = vmatprep.mubr.bf16.mxu0 0
        %9182 = vmatmul.mubr.bf16.gmra.mrb[0].mxu0 %v6206
        %v9183 = vpop.f32.mrb[0].mxu0
        %v9184 = vadd.f32 %v8927, %v9183
        %v9185 = vpop.f32.mrb[0].mxu0
        %v9186 = vpop.f32.mrb[0].mxu0
        %v9187 = vadd.f32 %v8930, %v9186
        %v9188 = vpop.f32.mrb[0].mxu0
        %9189 = vmatprep.mubr.bf16.mxu0 0
        %9190 = vmatmul.mubr.bf16.gmra.mrb[0].mxu0 0
        %v9191 = vpop.f32.mrb[0].mxu0
        %v9192 = vadd.f32 %v8935, %v9191
        %v9193 = vpop.f32.mrb[0].mxu0
        %v9194 = vpop.f32.mrb[0].mxu0
        %v9195 = vadd.f32 %v8938, %v9194
        %v9196 = vpop.f32.mrb[0].mxu0
        %9197 = vmatprep.mubr.bf16.mxu0 0
        %9198 = vmatmul.mubr.bf16.gmra.mrb[0].mxu0 0
        %v9199 = vpop.f32.mrb[0].mxu0
        %v9200 = vadd.f32 %v8943, %v9199
        %v9201 = vpop.f32.mrb[0].mxu0
        %v9202 = vpop.f32.mrb[0].mxu0
        %v9203 = vadd.f32 %v8946, %v9202
        %v9204 = vpop.f32.mrb[0].mxu0
        %9205 = vmatprep.mubr.bf16.mxu0 0
        %9206 = vmatmul.mubr.bf16.gmra.mrb[0].mxu0 0
        %v9207 = vpop.f32.mrb[0].mxu0
        %v9208 = vadd.f32 %v8951, %v9207
        %v9209 = vpop.f32.mrb[0].mxu0
        %v9210 = vpop.f32.mrb[0].mxu0
        %v9211 = vadd.f32 %v8954, %v9210
        %v9212 = vpop.f32.mrb[0].mxu0
        %9213 = vmatprep.mubr.bf16.mxu0 0
        %9214 = vmatmul.mubr.bf16.gmra.mrb[0].mxu0 0
        %v9215 = vpop.f32.mrb[0].mxu0
        %v9216 = vadd.f32 %v8959, %v9215
        %v9217 = vpop.f32.mrb[0].mxu0
        %v9218 = vpop.f32.mrb[0].mxu0
        %v9219 = vadd.f32 %v8962, %v9218
        %v9220 = vpop.f32.mrb[0].mxu0
        %9221 = vmatprep.mubr.bf16.mxu0 0
        %9222 = vmatmul.mubr.bf16.gmra.mrb[0].mxu0 0
        %v9223 = vpop.f32.mrb[0].mxu0
        %v9224 = vadd.f32 %v8967, %v9223
        %v9225 = vpop.f32.mrb[0].mxu0
        %v9226 = vpop.f32.mrb[0].mxu0
        %v9227 = vadd.f32 %v8970, %v9226
        %v9228 = vpop.f32.mrb[0].mxu0
        %9229 = vdwg.mxu0
        %9230 = vst [vmem:[%s756] sm:$0xff] %v9008
        %9231 = vst [vmem:[%s756 + $0x8] sm:$0xff] %v9011
        %9232 = vst [vmem:[%s756 + $0x10] sm:$0xff] %v9016
        %9233 = vst [vmem:[%s756 + $0x18] sm:$0xff] %v9019
        %9234 = vst [vmem:[%s756 + $0x20] sm:$0xff] %v9024
        %9235 = vst [vmem:[%s756 + $0x28] sm:$0xff] %v9027
        %9236 = vst [vmem:[%s756 + $0x30] sm:$0xff] %v9032
        %9237 = vst [vmem:[%s756 + $0x38] sm:$0xff] %v9035
        %9238 = vst [vmem:[%s756 + $0x40] sm:$0xff] %v9040
        %9239 = vst [vmem:[%s756 + $0x48] sm:$0xff] %v9043
        %9240 = vst [vmem:[%s756 + $0x50] sm:$0xff] %v9048
        %9241 = vst [vmem:[%s756 + $0x58] sm:$0xff] %v9051
        %9242 = vst [vmem:[%s756 + $0x60] sm:$0xff] %v9056
        %9243 = vst [vmem:[%s756 + $0x68] sm:$0xff] %v9059
        %9244 = vst [vmem:[%s756 + $0x70] sm:$0xff] %v9064
        %9245 = vst [vmem:[%s756 + $0x78] sm:$0xff] %v9067
        %9246 = vst [vmem:[%s756 + $0x80] sm:$0xff] %v9072
        %9247 = vst [vmem:[%s756 + $0x88] sm:$0xff] %v9075
        %9248 = vst [vmem:[%s756 + $0x90] sm:$0xff] %v9080
        %9249 = vst [vmem:[%s756 + $0x98] sm:$0xff] %v9083
        %9250 = vst [vmem:[%s756 + $0xa0] sm:$0xff] %v9088
        %9251 = vst [vmem:[%s756 + $0xa8] sm:$0xff] %v9091
        %9252 = vst [vmem:[%s756 + $0xb0] sm:$0xff] %v9096
        %9253 = vst [vmem:[%s756 + $0xb8] sm:$0xff] %v9099
        %9254 = vst [vmem:[%s756 + $0xc0] sm:$0xff] %v9104
        %9255 = vst [vmem:[%s756 + $0xc8] sm:$0xff] %v9107
        %9256 = vst [vmem:[%s756 + $0xd0] sm:$0xff] %v9112
        %9257 = vst [vmem:[%s756 + $0xd8] sm:$0xff] %v9115
        %9258 = vst [vmem:[%s756 + $0xe0] sm:$0xff] %v9120
        %9259 = vst [vmem:[%s756 + $0xe8] sm:$0xff] %v9123
        %9260 = vst [vmem:[%s756 + $0xf0] sm:$0xff] %v9128
        %9261 = vst [vmem:[%s756 + $0xf8] sm:$0xff] %v9131
        %9262 = vst [vmem:[%s756 + $0x100] sm:$0xff] %v9136
        %9263 = vst [vmem:[%s756 + $0x108] sm:$0xff] %v9139
        %9264 = vst [vmem:[%s756 + $0x110] sm:$0xff] %v9144
        %9265 = vst [vmem:[%s756 + $0x118] sm:$0xff] %v9147
        %9266 = vst [vmem:[%s756 + $0x120] sm:$0xff] %v9152
        %9267 = vst [vmem:[%s756 + $0x128] sm:$0xff] %v9155
        %9268 = vst [vmem:[%s756 + $0x130] sm:$0xff] %v9160
        %9269 = vst [vmem:[%s756 + $0x138] sm:$0xff] %v9163
        %9270 = vst [vmem:[%s756 + $0x140] sm:$0xff] %v9168
        %9271 = vst [vmem:[%s756 + $0x148] sm:$0xff] %v9171
        %9272 = vst [vmem:[%s756 + $0x150] sm:$0xff] %v9176
        %9273 = vst [vmem:[%s756 + $0x158] sm:$0xff] %v9179
        %9274 = vst [vmem:[%s756 + $0x160] sm:$0xff] %v9184
        %9275 = vst [vmem:[%s756 + $0x168] sm:$0xff] %v9187
        %9276 = vst [vmem:[%s756 + $0x170] sm:$0xff] %v9192
        %9277 = vst [vmem:[%s756 + $0x178] sm:$0xff] %v9195
        %9278 = vst [vmem:[%s756 + $0x180] sm:$0xff] %v9200
        %9279 = vst [vmem:[%s756 + $0x188] sm:$0xff] %v9203
        %9280 = vst [vmem:[%s756 + $0x190] sm:$0xff] %v9208
        %9281 = vst [vmem:[%s756 + $0x198] sm:$0xff] %v9211
        %9282 = vst [vmem:[%s756 + $0x1a0] sm:$0xff] %v9216
        %9283 = vst [vmem:[%s756 + $0x1a8] sm:$0xff] %v9219
        %9284 = vst [vmem:[%s756 + $0x1b0] sm:$0xff] %v9224
        %9285 = vst [vmem:[%s756 + $0x1b8] sm:$0xff] %v9227
        %s9286 = sand.u32 %s427, 1
        %s9287 = sand.u32 %s427, 1
        %s9288 = smul.addr %s9287, 448
        %s9289 = scalar_lea.vmem [#allocation3], %s9288
        %s9290 = smul.u32 2, %s31
        %p9291 = scmp.lt.s32.totalorder %s9290, 3
        %s9292 = scalar_select %p9291, %s9290, 3
        %s9293 = smul.addr %s9292, 8
        %s9294 = scalar_lea.vmem %s19, %s9293
        // Predicated region
        $region131: #{cvae2_forward.1} parent=125 // pred_check
          %p9295 = pneg %p437
        $region132: #{cvae2_forward.1} parent=125 // pred_check_branch
          %9297 = sbr.rel (%p9295) target = $region134
        $region133: #{cvae2_forward.1} parent=125 // pred_region
          %s9298 = smul.u32 2, %s31
          %s9299 = smul.addr %s9298, 8
          %s9300 = scalar_lea.vmem %s18, %s9299
          // Predicated region
          $region135: #{cvae2_forward.1} parent=133 // pred_check
            _
          $region136: #{cvae2_forward.1} parent=133 // pred_check_branch
            %9302 = sbr.rel (0) target = $region138
          $region137: #{cvae2_forward.1} parent=133 // pred_region
            // Predicated region
            $region139: #{cvae2_forward.1} parent=137 // pred_check
              _
            $region140: #{cvae2_forward.1} parent=137 // pred_check_branch
              %9304 = sbr.rel (0) target = $region142
            $region141: #{cvae2_forward.1} parent=137 // pred_region
              // Predicated region
              $region154: #{cvae2_forward.1} parent=141 // pred_check
                _
              $region155: #{cvae2_forward.1} parent=141 // pred_check_branch
                %9429 = sbr.rel (0) target = $region157
              $region156: #{cvae2_forward.1} parent=141 // pred_region
                loop: start=0, step=1, limit=1
                $region158: #{cvae2_forward.1} parent=156 // loop_pre_header
                  _
                $region159: #{cvae2_forward.1} parent=156 // loop_header
                  %s9431 = sphi 0, %s9435
                  %p9432 = scmp.ge.s32.totalorder %s9431, 1
                  %s9436 = sphi %s9289, %s9289
                  %s9437 = sphi %s9300, %s9300
                $region160: #{cvae2_forward.1} parent=156 // loop_header_branch
                  %9434 = sbr.rel (%p9432) target = $region164
                $region161: #{cvae2_forward.1} parent=156 // loop_body
                  %v9438 = vld [vmem:[%s9436] sm:$0xff]
                  %9439 = vst [vmem:[%s9437] sm:$0xff] %v9438
                  %v9440 = vld [vmem:[%s9436 + $0x8] sm:$0xff]
                  %9441 = vst [vmem:[%s9437 + $0x8] sm:$0xff] %v9440
                  %v9442 = vld [vmem:[%s9436 + $0x10] sm:$0xff]
                  %9443 = vst [vmem:[%s9437 + $0x20] sm:$0xff] %v9442
                  %v9444 = vld [vmem:[%s9436 + $0x18] sm:$0xff]
                  %9445 = vst [vmem:[%s9437 + $0x28] sm:$0xff] %v9444
                  %v9446 = vld [vmem:[%s9436 + $0x20] sm:$0xff]
                  %9447 = vst [vmem:[%s9437 + $0x40] sm:$0xff] %v9446
                  %v9448 = vld [vmem:[%s9436 + $0x28] sm:$0xff]
                  %9449 = vst [vmem:[%s9437 + $0x48] sm:$0xff] %v9448
                  %v9450 = vld [vmem:[%s9436 + $0x30] sm:$0xff]
                  %9451 = vst [vmem:[%s9437 + $0x60] sm:$0xff] %v9450
                  %v9452 = vld [vmem:[%s9436 + $0x38] sm:$0xff]
                  %9453 = vst [vmem:[%s9437 + $0x68] sm:$0xff] %v9452
                  %v9454 = vld [vmem:[%s9436 + $0x40] sm:$0xff]
                  %9455 = vst [vmem:[%s9437 + $0x80] sm:$0xff] %v9454
                  %v9456 = vld [vmem:[%s9436 + $0x48] sm:$0xff]
                  %9457 = vst [vmem:[%s9437 + $0x88] sm:$0xff] %v9456
                  %v9458 = vld [vmem:[%s9436 + $0x50] sm:$0xff]
                  %9459 = vst [vmem:[%s9437 + $0xa0] sm:$0xff] %v9458
                  %v9460 = vld [vmem:[%s9436 + $0x58] sm:$0xff]
                  %9461 = vst [vmem:[%s9437 + $0xa8] sm:$0xff] %v9460
                  %v9462 = vld [vmem:[%s9436 + $0x60] sm:$0xff]
                  %9463 = vst [vmem:[%s9437 + $0xc0] sm:$0xff] %v9462
                  %v9464 = vld [vmem:[%s9436 + $0x68] sm:$0xff]
                  %9465 = vst [vmem:[%s9437 + $0xc8] sm:$0xff] %v9464
                  %v9466 = vld [vmem:[%s9436 + $0x70] sm:$0xff]
                  %9467 = vst [vmem:[%s9437 + $0xe0] sm:$0xff] %v9466
                  %v9468 = vld [vmem:[%s9436 + $0x78] sm:$0xff]
                  %9469 = vst [vmem:[%s9437 + $0xe8] sm:$0xff] %v9468
                  %v9470 = vld [vmem:[%s9436 + $0x80] sm:$0xff]
                  %9471 = vst [vmem:[%s9437 + $0x100] sm:$0xff] %v9470
                  %v9472 = vld [vmem:[%s9436 + $0x88] sm:$0xff]
                  %9473 = vst [vmem:[%s9437 + $0x108] sm:$0xff] %v9472
                  %v9474 = vld [vmem:[%s9436 + $0x90] sm:$0xff]
                  %9475 = vst [vmem:[%s9437 + $0x120] sm:$0xff] %v9474
                  %v9476 = vld [vmem:[%s9436 + $0x98] sm:$0xff]
                  %9477 = vst [vmem:[%s9437 + $0x128] sm:$0xff] %v9476
                  %v9478 = vld [vmem:[%s9436 + $0xa0] sm:$0xff]
                  %9479 = vst [vmem:[%s9437 + $0x140] sm:$0xff] %v9478
                  %v9480 = vld [vmem:[%s9436 + $0xa8] sm:$0xff]
                  %9481 = vst [vmem:[%s9437 + $0x148] sm:$0xff] %v9480
                  %v9482 = vld [vmem:[%s9436 + $0xb0] sm:$0xff]
                  %9483 = vst [vmem:[%s9437 + $0x160] sm:$0xff] %v9482
                  %v9484 = vld [vmem:[%s9436 + $0xb8] sm:$0xff]
                  %9485 = vst [vmem:[%s9437 + $0x168] sm:$0xff] %v9484
                  %v9486 = vld [vmem:[%s9436 + $0xc0] sm:$0xff]
                  %9487 = vst [vmem:[%s9437 + $0x180] sm:$0xff] %v9486
                  %v9488 = vld [vmem:[%s9436 + $0xc8] sm:$0xff]
                  %9489 = vst [vmem:[%s9437 + $0x188] sm:$0xff] %v9488
                  %v9490 = vld [vmem:[%s9436 + $0xd0] sm:$0xff]
                  %9491 = vst [vmem:[%s9437 + $0x1a0] sm:$0xff] %v9490
                  %v9492 = vld [vmem:[%s9436 + $0xd8] sm:$0xff]
                  %9493 = vst [vmem:[%s9437 + $0x1a8] sm:$0xff] %v9492
                  %v9494 = vld [vmem:[%s9436 + $0xe0] sm:$0xff]
                  %9495 = vst [vmem:[%s9437 + $0x1c0] sm:$0xff] %v9494
                  %v9496 = vld [vmem:[%s9436 + $0xe8] sm:$0xff]
                  %9497 = vst [vmem:[%s9437 + $0x1c8] sm:$0xff] %v9496
                  %v9498 = vld [vmem:[%s9436 + $0xf0] sm:$0xff]
                  %9499 = vst [vmem:[%s9437 + $0x1e0] sm:$0xff] %v9498
                  %v9500 = vld [vmem:[%s9436 + $0xf8] sm:$0xff]
                  %9501 = vst [vmem:[%s9437 + $0x1e8] sm:$0xff] %v9500
                  %v9502 = vld [vmem:[%s9436 + $0x100] sm:$0xff]
                  %9503 = vst [vmem:[%s9437 + $0x200] sm:$0xff] %v9502
                  %v9504 = vld [vmem:[%s9436 + $0x108] sm:$0xff]
                  %9505 = vst [vmem:[%s9437 + $0x208] sm:$0xff] %v9504
                  %v9506 = vld [vmem:[%s9436 + $0x110] sm:$0xff]
                  %9507 = vst [vmem:[%s9437 + $0x220] sm:$0xff] %v9506
                  %v9508 = vld [vmem:[%s9436 + $0x118] sm:$0xff]
                  %9509 = vst [vmem:[%s9437 + $0x228] sm:$0xff] %v9508
                  %v9510 = vld [vmem:[%s9436 + $0x120] sm:$0xff]
                  %9511 = vst [vmem:[%s9437 + $0x240] sm:$0xff] %v9510
                  %v9512 = vld [vmem:[%s9436 + $0x128] sm:$0xff]
                  %9513 = vst [vmem:[%s9437 + $0x248] sm:$0xff] %v9512
                  %v9514 = vld [vmem:[%s9436 + $0x130] sm:$0xff]
                  %9515 = vst [vmem:[%s9437 + $0x260] sm:$0xff] %v9514
                  %v9516 = vld [vmem:[%s9436 + $0x138] sm:$0xff]
                  %9517 = vst [vmem:[%s9437 + $0x268] sm:$0xff] %v9516
                  %v9518 = vld [vmem:[%s9436 + $0x140] sm:$0xff]
                  %9519 = vst [vmem:[%s9437 + $0x280] sm:$0xff] %v9518
                  %v9520 = vld [vmem:[%s9436 + $0x148] sm:$0xff]
                  %9521 = vst [vmem:[%s9437 + $0x288] sm:$0xff] %v9520
                  %v9522 = vld [vmem:[%s9436 + $0x150] sm:$0xff]
                  %9523 = vst [vmem:[%s9437 + $0x2a0] sm:$0xff] %v9522
                  %v9524 = vld [vmem:[%s9436 + $0x158] sm:$0xff]
                  %9525 = vst [vmem:[%s9437 + $0x2a8] sm:$0xff] %v9524
                  %v9526 = vld [vmem:[%s9436 + $0x160] sm:$0xff]
                  %9527 = vst [vmem:[%s9437 + $0x2c0] sm:$0xff] %v9526
                  %v9528 = vld [vmem:[%s9436 + $0x168] sm:$0xff]
                  %9529 = vst [vmem:[%s9437 + $0x2c8] sm:$0xff] %v9528
                  %v9530 = vld [vmem:[%s9436 + $0x170] sm:$0xff]
                  %9531 = vst [vmem:[%s9437 + $0x2e0] sm:$0xff] %v9530
                  %v9532 = vld [vmem:[%s9436 + $0x178] sm:$0xff]
                  %9533 = vst [vmem:[%s9437 + $0x2e8] sm:$0xff] %v9532
                  %v9534 = vld [vmem:[%s9436 + $0x180] sm:$0xff]
                  %9535 = vst [vmem:[%s9437 + $0x300] sm:$0xff] %v9534
                  %v9536 = vld [vmem:[%s9436 + $0x188] sm:$0xff]
                  %9537 = vst [vmem:[%s9437 + $0x308] sm:$0xff] %v9536
                  %v9538 = vld [vmem:[%s9436 + $0x190] sm:$0xff]
                  %9539 = vst [vmem:[%s9437 + $0x320] sm:$0xff] %v9538
                  %v9540 = vld [vmem:[%s9436 + $0x198] sm:$0xff]
                  %9541 = vst [vmem:[%s9437 + $0x328] sm:$0xff] %v9540
                  %v9542 = vld [vmem:[%s9436 + $0x1a0] sm:$0xff]
                  %9543 = vst [vmem:[%s9437 + $0x340] sm:$0xff] %v9542
                  %v9544 = vld [vmem:[%s9436 + $0x1a8] sm:$0xff]
                  %9545 = vst [vmem:[%s9437 + $0x348] sm:$0xff] %v9544
                  %v9546 = vld [vmem:[%s9436 + $0x1b0] sm:$0xff]
                  %9547 = vst [vmem:[%s9437 + $0x360] sm:$0xff] %v9546
                  %v9548 = vld [vmem:[%s9436 + $0x1b8] sm:$0xff]
                  %9549 = vst [vmem:[%s9437 + $0x368] sm:$0xff] %v9548
                $region162: #{cvae2_forward.1} parent=156 // loop_footer
                  %s9435 = sadd.s32 1, %s9431
                $region163: #{cvae2_forward.1} parent=156 // loop_footer_branch
                  %9430 = sbr.rel target = $region159
                $region164: #{cvae2_forward.1} parent=156 // loop_exit
                  _
              $region157: #{cvae2_forward.1} parent=141 // pred_fallthru
                _
              // Predicated region
              $region165: #{cvae2_forward.1} parent=141 // pred_check
                _
              $region166: #{cvae2_forward.1} parent=141 // pred_check_branch
                %9551 = sbr.rel target = $region168
              $region167: #{cvae2_forward.1} parent=141 // pred_region
                _
              $region168: #{cvae2_forward.1} parent=141 // pred_fallthru
                _
            $region142: #{cvae2_forward.1} parent=137 // pred_fallthru
              _
            // Predicated region
            $region143: #{cvae2_forward.1} parent=137 // pred_check
              _
            $region144: #{cvae2_forward.1} parent=137 // pred_check_branch
              %9306 = sbr.rel target = $region146
            $region145: #{cvae2_forward.1} parent=137 // pred_region
              loop: start=0, step=1, limit=1
              $region147: #{cvae2_forward.1} parent=145 // loop_pre_header
                _
              $region148: #{cvae2_forward.1} parent=145 // loop_header
                %s9309 = sphi 0, %s9313
                %p9310 = scmp.ge.s32.totalorder %s9309, 1
                %s9314 = sphi %s9289, %s9289
                %s9315 = sphi %s9300, %s9300
              $region149: #{cvae2_forward.1} parent=145 // loop_header_branch
                %9312 = sbr.rel (%p9310) target = $region153
              $region150: #{cvae2_forward.1} parent=145 // loop_body
                %v9316 = vld [vmem:[%s9314] sm:$0xff]
                %9317 = vst [vmem:[%s9315] sm:$0xff] %v9316
                %v9318 = vld [vmem:[%s9314 + $0x8] sm:$0xff]
                %9319 = vst [vmem:[%s9315 + $0x8] sm:$0xff] %v9318
                %v9320 = vld [vmem:[%s9314 + $0x10] sm:$0xff]
                %9321 = vst [vmem:[%s9315 + $0x20] sm:$0xff] %v9320
                %v9322 = vld [vmem:[%s9314 + $0x18] sm:$0xff]
                %9323 = vst [vmem:[%s9315 + $0x28] sm:$0xff] %v9322
                %v9324 = vld [vmem:[%s9314 + $0x20] sm:$0xff]
                %9325 = vst [vmem:[%s9315 + $0x40] sm:$0xff] %v9324
                %v9326 = vld [vmem:[%s9314 + $0x28] sm:$0xff]
                %9327 = vst [vmem:[%s9315 + $0x48] sm:$0xff] %v9326
                %v9328 = vld [vmem:[%s9314 + $0x30] sm:$0xff]
                %9329 = vst [vmem:[%s9315 + $0x60] sm:$0xff] %v9328
                %v9330 = vld [vmem:[%s9314 + $0x38] sm:$0xff]
                %9331 = vst [vmem:[%s9315 + $0x68] sm:$0xff] %v9330
                %v9332 = vld [vmem:[%s9314 + $0x40] sm:$0xff]
                %9333 = vst [vmem:[%s9315 + $0x80] sm:$0xff] %v9332
                %v9334 = vld [vmem:[%s9314 + $0x48] sm:$0xff]
                %9335 = vst [vmem:[%s9315 + $0x88] sm:$0xff] %v9334
                %v9336 = vld [vmem:[%s9314 + $0x50] sm:$0xff]
                %9337 = vst [vmem:[%s9315 + $0xa0] sm:$0xff] %v9336
                %v9338 = vld [vmem:[%s9314 + $0x58] sm:$0xff]
                %9339 = vst [vmem:[%s9315 + $0xa8] sm:$0xff] %v9338
                %v9340 = vld [vmem:[%s9314 + $0x60] sm:$0xff]
                %9341 = vst [vmem:[%s9315 + $0xc0] sm:$0xff] %v9340
                %v9342 = vld [vmem:[%s9314 + $0x68] sm:$0xff]
                %9343 = vst [vmem:[%s9315 + $0xc8] sm:$0xff] %v9342
                %v9344 = vld [vmem:[%s9314 + $0x70] sm:$0xff]
                %9345 = vst [vmem:[%s9315 + $0xe0] sm:$0xff] %v9344
                %v9346 = vld [vmem:[%s9314 + $0x78] sm:$0xff]
                %9347 = vst [vmem:[%s9315 + $0xe8] sm:$0xff] %v9346
                %v9348 = vld [vmem:[%s9314 + $0x80] sm:$0xff]
                %9349 = vst [vmem:[%s9315 + $0x100] sm:$0xff] %v9348
                %v9350 = vld [vmem:[%s9314 + $0x88] sm:$0xff]
                %9351 = vst [vmem:[%s9315 + $0x108] sm:$0xff] %v9350
                %v9352 = vld [vmem:[%s9314 + $0x90] sm:$0xff]
                %9353 = vst [vmem:[%s9315 + $0x120] sm:$0xff] %v9352
                %v9354 = vld [vmem:[%s9314 + $0x98] sm:$0xff]
                %9355 = vst [vmem:[%s9315 + $0x128] sm:$0xff] %v9354
                %v9356 = vld [vmem:[%s9314 + $0xa0] sm:$0xff]
                %9357 = vst [vmem:[%s9315 + $0x140] sm:$0xff] %v9356
                %v9358 = vld [vmem:[%s9314 + $0xa8] sm:$0xff]
                %9359 = vst [vmem:[%s9315 + $0x148] sm:$0xff] %v9358
                %v9360 = vld [vmem:[%s9314 + $0xb0] sm:$0xff]
                %9361 = vst [vmem:[%s9315 + $0x160] sm:$0xff] %v9360
                %v9362 = vld [vmem:[%s9314 + $0xb8] sm:$0xff]
                %9363 = vst [vmem:[%s9315 + $0x168] sm:$0xff] %v9362
                %v9364 = vld [vmem:[%s9314 + $0xc0] sm:$0xff]
                %9365 = vst [vmem:[%s9315 + $0x180] sm:$0xff] %v9364
                %v9366 = vld [vmem:[%s9314 + $0xc8] sm:$0xff]
                %9367 = vst [vmem:[%s9315 + $0x188] sm:$0xff] %v9366
                %v9368 = vld [vmem:[%s9314 + $0xd0] sm:$0xff]
                %9369 = vst [vmem:[%s9315 + $0x1a0] sm:$0xff] %v9368
                %v9370 = vld [vmem:[%s9314 + $0xd8] sm:$0xff]
                %9371 = vst [vmem:[%s9315 + $0x1a8] sm:$0xff] %v9370
                %v9372 = vld [vmem:[%s9314 + $0xe0] sm:$0xff]
                %9373 = vst [vmem:[%s9315 + $0x1c0] sm:$0xff] %v9372
                %v9374 = vld [vmem:[%s9314 + $0xe8] sm:$0xff]
                %9375 = vst [vmem:[%s9315 + $0x1c8] sm:$0xff] %v9374
                %v9376 = vld [vmem:[%s9314 + $0xf0] sm:$0xff]
                %9377 = vst [vmem:[%s9315 + $0x1e0] sm:$0xff] %v9376
                %v9378 = vld [vmem:[%s9314 + $0xf8] sm:$0xff]
                %9379 = vst [vmem:[%s9315 + $0x1e8] sm:$0xff] %v9378
                %v9380 = vld [vmem:[%s9314 + $0x100] sm:$0xff]
                %9381 = vst [vmem:[%s9315 + $0x200] sm:$0xff] %v9380
                %v9382 = vld [vmem:[%s9314 + $0x108] sm:$0xff]
                %9383 = vst [vmem:[%s9315 + $0x208] sm:$0xff] %v9382
                %v9384 = vld [vmem:[%s9314 + $0x110] sm:$0xff]
                %9385 = vst [vmem:[%s9315 + $0x220] sm:$0xff] %v9384
                %v9386 = vld [vmem:[%s9314 + $0x118] sm:$0xff]
                %9387 = vst [vmem:[%s9315 + $0x228] sm:$0xff] %v9386
                %v9388 = vld [vmem:[%s9314 + $0x120] sm:$0xff]
                %9389 = vst [vmem:[%s9315 + $0x240] sm:$0xff] %v9388
                %v9390 = vld [vmem:[%s9314 + $0x128] sm:$0xff]
                %9391 = vst [vmem:[%s9315 + $0x248] sm:$0xff] %v9390
                %v9392 = vld [vmem:[%s9314 + $0x130] sm:$0xff]
                %9393 = vst [vmem:[%s9315 + $0x260] sm:$0xff] %v9392
                %v9394 = vld [vmem:[%s9314 + $0x138] sm:$0xff]
                %9395 = vst [vmem:[%s9315 + $0x268] sm:$0xff] %v9394
                %v9396 = vld [vmem:[%s9314 + $0x140] sm:$0xff]
                %9397 = vst [vmem:[%s9315 + $0x280] sm:$0xff] %v9396
                %v9398 = vld [vmem:[%s9314 + $0x148] sm:$0xff]
                %9399 = vst [vmem:[%s9315 + $0x288] sm:$0xff] %v9398
                %v9400 = vld [vmem:[%s9314 + $0x150] sm:$0xff]
                %9401 = vst [vmem:[%s9315 + $0x2a0] sm:$0xff] %v9400
                %v9402 = vld [vmem:[%s9314 + $0x158] sm:$0xff]
                %9403 = vst [vmem:[%s9315 + $0x2a8] sm:$0xff] %v9402
                %v9404 = vld [vmem:[%s9314 + $0x160] sm:$0xff]
                %9405 = vst [vmem:[%s9315 + $0x2c0] sm:$0xff] %v9404
                %v9406 = vld [vmem:[%s9314 + $0x168] sm:$0xff]
                %9407 = vst [vmem:[%s9315 + $0x2c8] sm:$0xff] %v9406
                %v9408 = vld [vmem:[%s9314 + $0x170] sm:$0xff]
                %9409 = vst [vmem:[%s9315 + $0x2e0] sm:$0xff] %v9408
                %v9410 = vld [vmem:[%s9314 + $0x178] sm:$0xff]
                %9411 = vst [vmem:[%s9315 + $0x2e8] sm:$0xff] %v9410
                %v9412 = vld [vmem:[%s9314 + $0x180] sm:$0xff]
                %9413 = vst [vmem:[%s9315 + $0x300] sm:$0xff] %v9412
                %v9414 = vld [vmem:[%s9314 + $0x188] sm:$0xff]
                %9415 = vst [vmem:[%s9315 + $0x308] sm:$0xff] %v9414
                %v9416 = vld [vmem:[%s9314 + $0x190] sm:$0xff]
                %9417 = vst [vmem:[%s9315 + $0x320] sm:$0xff] %v9416
                %v9418 = vld [vmem:[%s9314 + $0x198] sm:$0xff]
                %9419 = vst [vmem:[%s9315 + $0x328] sm:$0xff] %v9418
                %v9420 = vld [vmem:[%s9314 + $0x1a0] sm:$0xff]
                %9421 = vst [vmem:[%s9315 + $0x340] sm:$0xff] %v9420
                %v9422 = vld [vmem:[%s9314 + $0x1a8] sm:$0xff]
                %9423 = vst [vmem:[%s9315 + $0x348] sm:$0xff] %v9422
                %v9424 = vld [vmem:[%s9314 + $0x1b0] sm:$0xff]
                %9425 = vst [vmem:[%s9315 + $0x360] sm:$0xff] %v9424
                %v9426 = vld [vmem:[%s9314 + $0x1b8] sm:$0xff]
                %9427 = vst [vmem:[%s9315 + $0x368] sm:$0xff] %v9426
              $region151: #{cvae2_forward.1} parent=145 // loop_footer
                %s9313 = sadd.s32 1, %s9309
              $region152: #{cvae2_forward.1} parent=145 // loop_footer_branch
                %9308 = sbr.rel target = $region148
              $region153: #{cvae2_forward.1} parent=145 // loop_exit
                _
            $region146: #{cvae2_forward.1} parent=137 // pred_fallthru
              _
          $region138: #{cvae2_forward.1} parent=133 // pred_fallthru
            _
          %9552 = vnop
        $region134: #{cvae2_forward.1} parent=125 // pred_fallthru
          _
        // Predicated region
        $region169: #{cvae2_forward.1} parent=125 // pred_check
          %p9553 = pneg %p463
        $region170: #{cvae2_forward.1} parent=125 // pred_check_branch
          %9555 = sbr.rel (%p9553) target = $region172
        $region171: #{cvae2_forward.1} parent=125 // pred_region
          %s9556 = smul.u32 2, %s31
        $region172: #{cvae2_forward.1} parent=125 // pred_fallthru
          _
      $region126: #{cvae2_forward.1} parent=5 // pred_fallthru
        _
      %p9557 = scmp.le.s32.totalorder 2, %s26
      // Predicated region
      $region173: #{cvae2_forward.1} parent=5 // pred_check
        %p9558 = pneg %p9557
      $region174: #{cvae2_forward.1} parent=5 // pred_check_branch
        %9560 = sbr.rel (%p9558) target = $region176
      $region175: #{cvae2_forward.1} parent=5 // pred_region
        %s9561 = ssub.s32 %s26, 2
        // Predicated region
        $region177: #{cvae2_forward.1} parent=175 // pred_check
          %p9562 = pneg %p443
        $region178: #{cvae2_forward.1} parent=175 // pred_check_branch
          %9564 = sbr.rel (%p9562) target = $region180
        $region179: #{cvae2_forward.1} parent=175 // pred_region
          %s9565 = sand.u32 %s428, 1
          %s9566 = sand.u32 %s428, 1
          %s9567 = smul.addr %s9566, 448
          %s9568 = scalar_lea.vmem [#allocation3], %s9567
        $region180: #{cvae2_forward.1} parent=175 // pred_fallthru
          _
        // Predicated region
        $region181: #{cvae2_forward.1} parent=175 // pred_check
          %p9569 = pneg %p469
        $region182: #{cvae2_forward.1} parent=175 // pred_check_branch
          %9571 = sbr.rel (%p9569) target = $region184
        $region183: #{cvae2_forward.1} parent=175 // pred_region
          %s9572 = smul.u32 2, %s32
          %p9573 = scmp.lt.s32.totalorder %s9572, 3
          %s9574 = scalar_select %p9573, %s9572, 3
          %s9575 = smul.addr %s9574, 8
          %s9576 = scalar_lea.vmem %s19, %s9575
        $region184: #{cvae2_forward.1} parent=175 // pred_fallthru
          _
      $region176: #{cvae2_forward.1} parent=5 // pred_fallthru
        _
    $region6: #{cvae2_forward.1} parent=1 // loop_footer
      %s30 = sadd.s32 1, %s26
    $region7: #{cvae2_forward.1} parent=1 // loop_footer_branch
      %25 = sbr.rel target = $region3
    $region8: #{cvae2_forward.1} parent=1 // loop_exit
      _

</llo_original>
